<compile_context>
chip_gen: v7x
topology: tpu7x:2x2x1
jax: 0.10.0
libtpu: 0.0.40
codegen_flags: <defaults>
</compile_context>

<pallas_src>
import functools
import math

import jax
import jax.numpy as jnp
from jax import lax
from jax.experimental import pallas as pl
from jax.experimental.pallas import tpu as pltpu

# ---------------- configuration (small, consistent with __init__) ------------
NUM_NTYPE = 3                  # node types (slots)
NUM_HIDDEN = 16                # num_hidden
NUM_CLASSES = 16               # num_classes (== num_hidden so aggr view is exact)
NUM_LAYERS = 2                 # num_layers
HEADS = [2, 2, 2]              # heads (len = num_layers + 1)
NUM_ETYPES = 4                 # num_etypes (also DistMult num_rel)
NEG_SLOPE = 0.2                # negative_slope
ALPHA_RES = 0.05               # slotGATConv `alpha` (residual attention mixing)
IN_DIMS = [8, 12, 10]          # in_dims per node type
NODE_COUNTS = [16, 12, 12]     # nodes per type  -> N = 40
NUM_QUERIES = 16               # link-prediction queries

N_PAD = 128                    # pad node count to a lane-dense (8x128-tile) size
_ETAB_ARG_IDX = 8              # position of the SMEM edge-type attention table

assert len(set(HEADS)) == 1    # residual-attention chaining assumes constant heads
assert NUM_HIDDEN == NUM_CLASSES  # aggr_func views slots with num_classes (torch code)


def _full_spec(shape):
    nd = len(shape)
    return pl.BlockSpec(shape, lambda i, _nd=nd: (0,) * _nd)


# ---------------- fused forward kernel ----------------------------------------
def slotgat_fused_kernel(xaug_ref, waug_ref, adj_ref, etype_ref,
                         wh0_ref, wh1_ref, wh2_ref, ahat_ref, etab_ref,
                         wdec_ref, loh_ref, roh_ref, moh_ref, out_ref, *,
                         num_slots, num_heads, hidden, classes, num_layers,
                         num_rel, neg_slope, res_alpha, num_queries):
    T, K, H, C = num_slots, num_heads, hidden, classes
    adj = adj_ref[...]                          # [N, N] float; adj[dst, src]
    etype = etype_ref[...]                      # [N, N] int32 edge-type map
    edge_mask = adj > 0.0
    # per-relation indicator masks, hoisted (reused by every layer / head)
    rel_masks = [(etype == r).astype(jnp.float32) for r in range(num_rel)]

    def l2norm_slotmean(x):
        # self.l2_norm (l2BySlot='False') followed by aggr_func('average').
        # NOTE: the torch code views slots with num_classes; valid since H == C.
        ss = jnp.sum(x * x, axis=1, keepdims=True)
        xn = x * lax.rsqrt(jnp.maximum(ss, 1e-24))   # == x / max(||x||, 1e-12)
        acc = xn[:, 0:C]
        for t in range(1, T):
            acc = acc + xn[:, t * C:(t + 1) * C]
        return acc * (1.0 / T)

    # fc_list projection + emsen slot placement; bias folded into x_aug/w_aug.
    h_in = jnp.dot(xaug_ref[...], waug_ref[...],
                   preferred_element_type=jnp.float32)           # [N, T*H]
    emb = [l2norm_slotmean(h_in)]

    wh_refs = (wh0_ref, wh1_ref, wh2_ref)
    res_attn = None
    for l in range(num_layers + 1):
        d_out = H if l < num_layers else C
        td = T * d_out
        # all slots x all heads of this layer in one wide block-diagonal matmul
        ft_all = jnp.dot(h_in, wh_refs[l][...],
                         preferred_element_type=jnp.float32)     # [N, K*T*d_out]
        # attention projections (er / el) for all heads; lane-padded to 128 cols
        erl = jnp.dot(ft_all, ahat_ref[l],
                      preferred_element_type=jnp.float32)        # [N, 128]
        erl_t = jnp.transpose(erl)                               # [128, N]

        outs, attns = [], []
        for k in range(K):
            ft_k = ft_all[:, k * td:(k + 1) * td]
            # e[i, j] = er[i] + el[j]: VPU broadcast add (no MXU outer product)
            e = erl[:, k:k + 1] + erl_t[K + k:K + k + 1, :]
            # per-edge-type attention bias, in-kernel select from the int map
            for r in range(num_rel):
                e = e + rel_masks[r] * etab_ref[l * num_rel * K + r * K + k]
            e = jnp.where(e > 0, e, neg_slope * e)               # leaky_relu
            masked = jnp.where(edge_mask, e, -1e30)
            m = jnp.max(masked, axis=1, keepdims=True)
            unnorm = jnp.exp(masked - m) * adj
            denom = jnp.maximum(jnp.sum(unnorm, axis=1, keepdims=True), 1e-30)
            attn = unnorm * (1.0 / denom)                        # edge softmax
            if l > 0:                                            # residual attention
                attn = attn * (1.0 - res_alpha) + res_attn[k] * res_alpha
            out_k = jnp.dot(attn, ft_k, preferred_element_type=jnp.float32)
            if l < num_layers:                                   # hidden layers: elu
                out_k = jnp.where(out_k > 0, out_k, jnp.exp(out_k) - 1.0)
            outs.append(out_k)
            attns.append(attn)
        res_attn = attns                                         # stays in VMEM

        h_mean = outs[0]
        for k in range(1, K):
            h_mean = h_mean + outs[k]
        h_mean = h_mean * (1.0 / K)                              # h.mean(1)
        emb.append(l2norm_slotmean(h_mean))
        if l < num_layers:
            h_in = jnp.concatenate(outs, axis=1)                 # h.flatten(1)

    # inProcessEmb='True', aggregator='average' -> concat along feature axis
    o = jnp.concatenate(emb, axis=1)                             # [N, (L+2)*C]

    # DistMult decoder + sigmoid ('after'); gathers done as one-hot matmuls
    left_emb = jnp.dot(loh_ref[...], o, preferred_element_type=jnp.float32)
    right_emb = jnp.dot(roh_ref[...], o, preferred_element_type=jnp.float32)
    tmp = jnp.dot(left_emb, wdec_ref[...],
                  preferred_element_type=jnp.float32)            # [Q, R*D]
    d = (num_layers + 2) * C
    moh = moh_ref[...]
    scores = jnp.zeros((num_queries, 1), jnp.float32)
    for r in range(num_rel):
        s = jnp.sum(tmp[:, r * d:(r + 1) * d] * right_emb, axis=1, keepdims=True)
        scores = scores + moh[:, r:r + 1] * s
    out_ref[...] = jax.nn.sigmoid(scores)                        # F.sigmoid


# ---------------- wrapper: pack / pad parameters and graph ---------------------
def _pack_inputs(params, features_list, adj, etype_dense, left, right, mid):
    T, H, C, E = NUM_NTYPE, NUM_HIDDEN, NUM_CLASSES, NUM_ETYPES
    K, L = HEADS[0], NUM_LAYERS
    N = adj.shape[0]
    in_tot = sum(IN_DIMS)

    # Features + node-type one-hot packed block-diagonally, so the per-node-type
    # fc projection + bias + slot placement become ONE matmul in-kernel.
    x_aug = jnp.zeros((N_PAD, in_tot + T), jnp.float32)
    w_aug = jnp.zeros((in_tot + T, T * H), jnp.float32)
    row = col = 0
    for t in range(T):
        n_t, d_t = NODE_COUNTS[t], IN_DIMS[t]
        x_aug = x_aug.at[row:row + n_t, col:col + d_t].set(features_list[t])
        x_aug = x_aug.at[row:row + n_t, in_tot + t].set(1.0)
        w_aug = w_aug.at[col:col + d_t, t * H:(t + 1) * H].set(params["fc_w"][t])
        w_aug = w_aug.at[in_tot + t, t * H:(t + 1) * H].set(params["fc_b"][t][0])
        row += n_t
        col += d_t

    adj_p = jnp.zeros((N_PAD, N_PAD), jnp.float32).at[:N, :N].set(adj)
    et_p = jnp.zeros((N_PAD, N_PAD), jnp.int32).at[:N, :N].set(etype_dense)

    # Per-layer block-diagonal slot x head weights: rows ordered (k_prev, slot,
    # feat), cols ordered (head, slot, feat). Attention vectors folded into a
    # lane-padded [K*T*d_out, 128] matrix (cols 0..K-1 = a_r, K..2K-1 = a_l).
    w_hats, a_hats, etabs = [], [], []
    for l in range(L + 1):
        gp = params["gat"][l]
        d_out = H if l < L else C
        k_prev = 1 if l == 0 else HEADS[l - 1]
        wh = jnp.zeros((k_prev * T * H, K * T * d_out), jnp.float32)
        for t in range(T):
            for kp in range(k_prev):
                for k in range(K):
                    wh = wh.at[(kp * T + t) * H:(kp * T + t + 1) * H,
                               (k * T + t) * d_out:(k * T + t + 1) * d_out].set(
                        gp["w"][t, kp * H:(kp + 1) * H, k * d_out:(k + 1) * d_out])
        ah = jnp.zeros((K * T * d_out, N_PAD), jnp.float32)
        for k in range(K):
            ah = ah.at[k * T * d_out:(k + 1) * T * d_out, k].set(gp["attn_r"][:, k])
            ah = ah.at[k * T * d_out:(k + 1) * T * d_out, K + k].set(gp["attn_l"][:, k])
        w_hats.append(wh)
        a_hats.append(ah)
        etabs.append(gp["etype_att"])
    a_hat = jnp.stack(a_hats, 0)                                 # [L+1, K*T*d, 128]
    etab_flat = jnp.stack(etabs, 0).reshape(-1)                  # [(L+1)*E*K] (SMEM)

    D = C * (L + 2)
    wdec = jnp.transpose(params["dec_w"], (1, 0, 2)).reshape(D, E * D)

    loh = jax.nn.one_hot(left, N_PAD, dtype=jnp.float32)
    roh = jax.nn.one_hot(right, N_PAD, dtype=jnp.float32)
    moh = jax.nn.one_hot(mid, E, dtype=jnp.float32)

    return (x_aug, w_aug, adj_p, et_p, w_hats[0], w_hats[1], w_hats[2],
            a_hat, etab_flat, wdec, loh, roh, moh)


# ---------------- full slotGAT.forward ------------------------------------------
def slot_gat_forward(params, features_list, adj, etype_dense, left, right, mid):
    args = _pack_inputs(params, features_list, adj, etype_dense, left, right, mid)
    q = left.shape[0]
    kern = functools.partial(
        slotgat_fused_kernel, num_slots=NUM_NTYPE, num_heads=HEADS[0],
        hidden=NUM_HIDDEN, classes=NUM_CLASSES, num_layers=NUM_LAYERS,
        num_rel=NUM_ETYPES, neg_slope=NEG_SLOPE, res_alpha=ALPHA_RES,
        num_queries=q)

    in_specs = []
    for i, a in enumerate(args):
        if i == _ETAB_ARG_IDX:      # small scalar table -> SMEM
            in_specs.append(pl.BlockSpec(memory_space=pltpu.MemorySpace.SMEM))
        else:
            in_specs.append(_full_spec(a.shape))

    scores = pl.pallas_call(
        kern,
        grid=(1,),
        in_specs=in_specs,
        out_specs=_full_spec((q, 1)),
        out_shape=jax.ShapeDtypeStruct((q, 1), jnp.float32),
        compiler_params=pltpu.CompilerParams(
            dimension_semantics=("arbitrary",)),
    )(*args)
    return scores[:, 0]


# ---------------- deterministic parameter construction ---------------------------
def init_params(key):
    T, H, C = NUM_NTYPE, NUM_HIDDEN, NUM_CLASSES
    ki = iter(jax.random.split(key, 64))
    params = {}
    params["fc_w"] = [
        jax.random.normal(next(ki), (IN_DIMS[t], H), jnp.float32)
        * (1.414 * math.sqrt(2.0 / (IN_DIMS[t] + H))) for t in range(T)]
    params["fc_b"] = [jnp.zeros((1, H), jnp.float32) for _ in range(T)]

    d_ins = [H] + [H * HEADS[l - 1] for l in range(1, NUM_LAYERS)] \
            + [H * HEADS[NUM_LAYERS - 1]]
    d_outs = [H] * NUM_LAYERS + [C]
    gat = []
    for l in range(NUM_LAYERS + 1):
        d_in, d_out, K = d_ins[l], d_outs[l], HEADS[l]
        gat.append({
            "w": jax.random.normal(next(ki), (T, d_in, K * d_out), jnp.float32)
                 * (1.414 * math.sqrt(2.0 / (d_in + d_out))),
            "attn_l": jax.random.normal(next(ki), (T * d_out, K), jnp.float32) * 0.1,
            "attn_r": jax.random.normal(next(ki), (T * d_out, K), jnp.float32) * 0.1,
            "etype_att": jax.random.normal(next(ki), (NUM_ETYPES, K), jnp.float32) * 0.1,
        })
    params["gat"] = gat

    D = C * (NUM_LAYERS + 2)                    # DistMult dim = num_classes*(L+2)
    params["dec_w"] = jax.random.normal(next(ki), (NUM_ETYPES, D, D), jnp.float32) \
        * (1.414 * math.sqrt(2.0 / (D + D)))
    # note: self.last_fc / macroLinear exist in __init__ but are unused for
    # aggregator='average'.
    return params


# ---------------- main ------------------------------------------------------------
if __name__ == "__main__":
    key = jax.random.PRNGKey(0)
    k_param, k_feat, k_edge, k_et, k_q = jax.random.split(key, 5)
    params = init_params(k_param)

    feat_keys = jax.random.split(k_feat, NUM_NTYPE)
    features_list = [
        jax.random.normal(feat_keys[t], (NODE_COUNTS[t], IN_DIMS[t]), jnp.float32)
        for t in range(NUM_NTYPE)]
    N = sum(NODE_COUNTS)

    # random heterogeneous graph (dense adjacency + edge-type map), plus self loops
    n_edges = 80
    ek1, ek2 = jax.random.split(k_edge)
    src = jax.random.randint(ek1, (n_edges,), 0, N)
    dst = jax.random.randint(ek2, (n_edges,), 0, N)
    etype = jax.random.randint(k_et, (n_edges,), 0, NUM_ETYPES)
    adj = jnp.zeros((N, N), jnp.float32).at[dst, src].set(1.0)
    adj = jnp.maximum(adj, jnp.eye(N, dtype=jnp.float32))          # self loops
    etype_dense = jnp.zeros((N, N), jnp.int32).at[dst, src].set(etype)

    # link-prediction queries (left, right node ids; mid = relation id)
    q1, q2, q3 = jax.random.split(k_q, 3)
    left = jax.random.randint(q1, (NUM_QUERIES,), 0, N)
    right = jax.random.randint(q2, (NUM_QUERIES,), 0, N)
    mid = jax.random.randint(q3, (NUM_QUERIES,), 0, NUM_ETYPES)

    scores = jax.jit(slot_gat_forward)(
        params, features_list, adj, etype_dense, left, right, mid)
    scores = jax.block_until_ready(scores)
    assert scores.shape == (NUM_QUERIES,)
    assert bool(jnp.all(jnp.isfinite(scores)))
    assert bool(jnp.all((scores >= 0.0) & (scores <= 1.0)))
    print("KERNEL_OK")
</pallas_src>

<mosaic_0001>
module attributes {stable_mosaic.version = 11 : i64} {
  func.func @slotgat_fused_kernel(%arg0: i32, %arg1: memref<128x33xf32, #tpu.memory_space<vmem>>, %arg2: memref<33x48xf32, #tpu.memory_space<vmem>>, %arg3: memref<128x128xf32, #tpu.memory_space<vmem>>, %arg4: memref<128x128xi32, #tpu.memory_space<vmem>>, %arg5: memref<48x96xf32, #tpu.memory_space<vmem>>, %arg6: memref<96x96xf32, #tpu.memory_space<vmem>>, %arg7: memref<96x96xf32, #tpu.memory_space<vmem>>, %arg8: memref<3x96x128xf32, #tpu.memory_space<vmem>>, %arg9: memref<24xf32, #tpu.memory_space<smem>>, %arg10: memref<64x256xf32, #tpu.memory_space<vmem>>, %arg11: memref<16x128xf32, #tpu.memory_space<vmem>>, %arg12: memref<16x128xf32, #tpu.memory_space<vmem>>, %arg13: memref<16x4xf32, #tpu.memory_space<vmem>>, %arg14: memref<16x1xf32, #tpu.memory_space<vmem>>) attributes {dimension_semantics = [#tpu.dimension_semantics<arbitrary>], iteration_bounds = array<i64: 1>, scalar_prefetch = 0 : i64, scratch_operands = 0 : i64, tpu.core_type = #tpu.core_type<tc>, window_params = [{pipeline_mode = #tpu.pipeline_mode<synchronous>, transform_indices = @transform_0, window_bounds = array<i64: 128, 33>}, {pipeline_mode = #tpu.pipeline_mode<synchronous>, transform_indices = @transform_1, window_bounds = array<i64: 33, 48>}, {pipeline_mode = #tpu.pipeline_mode<synchronous>, transform_indices = @transform_2, window_bounds = array<i64: 128, 128>}, {pipeline_mode = #tpu.pipeline_mode<synchronous>, transform_indices = @transform_3, window_bounds = array<i64: 128, 128>}, {pipeline_mode = #tpu.pipeline_mode<synchronous>, transform_indices = @transform_4, window_bounds = array<i64: 48, 96>}, {pipeline_mode = #tpu.pipeline_mode<synchronous>, transform_indices = @transform_5, window_bounds = array<i64: 96, 96>}, {pipeline_mode = #tpu.pipeline_mode<synchronous>, transform_indices = @transform_6, window_bounds = array<i64: 96, 96>}, {pipeline_mode = #tpu.pipeline_mode<synchronous>, transform_indices = @transform_7, window_bounds = array<i64: 3, 96, 128>}, {transform_indices = @transform_8, window_bounds = array<i64: 24>}, {pipeline_mode = #tpu.pipeline_mode<synchronous>, transform_indices = @transform_9, window_bounds = array<i64: 64, 256>}, {pipeline_mode = #tpu.pipeline_mode<synchronous>, transform_indices = @transform_10, window_bounds = array<i64: 16, 128>}, {pipeline_mode = #tpu.pipeline_mode<synchronous>, transform_indices = @transform_11, window_bounds = array<i64: 16, 128>}, {pipeline_mode = #tpu.pipeline_mode<synchronous>, transform_indices = @transform_12, window_bounds = array<i64: 16, 4>}, {pipeline_mode = #tpu.pipeline_mode<synchronous>, transform_indices = @transform_13, window_bounds = array<i64: 16, 1>}]} {
    %c0 = arith.constant 0 : index
    %c0_0 = arith.constant 0 : index
    %0 = vector.load %arg3[%c0, %c0_0] : memref<128x128xf32, #tpu.memory_space<vmem>>, vector<128x128xf32>
    %c0_1 = arith.constant 0 : index
    %c0_2 = arith.constant 0 : index
    %1 = vector.load %arg4[%c0_1, %c0_2] : memref<128x128xi32, #tpu.memory_space<vmem>>, vector<128x128xi32>
    %cst = arith.constant 0.000000e+00 : f32
    %2 = vector.broadcast %cst : f32 to vector<128x128xf32>
    %3 = arith.cmpf ogt, %0, %2 : vector<128x128xf32>
    %c0_i32 = arith.constant 0 : i32
    %4 = vector.broadcast %c0_i32 : i32 to vector<128x128xi32>
    %5 = arith.cmpi eq, %1, %4 : vector<128x128xi32>
    %6 = arith.extui %5 : vector<128x128xi1> to vector<128x128xi32>
    %7 = arith.sitofp %6 : vector<128x128xi32> to vector<128x128xf32>
    %c1_i32 = arith.constant 1 : i32
    %8 = vector.broadcast %c1_i32 : i32 to vector<128x128xi32>
    %9 = arith.cmpi eq, %1, %8 : vector<128x128xi32>
    %10 = arith.extui %9 : vector<128x128xi1> to vector<128x128xi32>
    %11 = arith.sitofp %10 : vector<128x128xi32> to vector<128x128xf32>
    %c2_i32 = arith.constant 2 : i32
    %12 = vector.broadcast %c2_i32 : i32 to vector<128x128xi32>
    %13 = arith.cmpi eq, %1, %12 : vector<128x128xi32>
    %14 = arith.extui %13 : vector<128x128xi1> to vector<128x128xi32>
    %15 = arith.sitofp %14 : vector<128x128xi32> to vector<128x128xf32>
    %c3_i32 = arith.constant 3 : i32
    %16 = vector.broadcast %c3_i32 : i32 to vector<128x128xi32>
    %17 = arith.cmpi eq, %1, %16 : vector<128x128xi32>
    %18 = arith.extui %17 : vector<128x128xi1> to vector<128x128xi32>
    %19 = arith.sitofp %18 : vector<128x128xi32> to vector<128x128xf32>
    %c0_3 = arith.constant 0 : index
    %c0_4 = arith.constant 0 : index
    %20 = vector.load %arg1[%c0_3, %c0_4] : memref<128x33xf32, #tpu.memory_space<vmem>>, vector<128x33xf32>
    %c0_5 = arith.constant 0 : index
    %c0_6 = arith.constant 0 : index
    %21 = vector.load %arg2[%c0_5, %c0_6] : memref<33x48xf32, #tpu.memory_space<vmem>>, vector<33x48xf32>
    %cst_7 = arith.constant dense<0.000000e+00> : vector<128x48xf32>
    %22 = tpu.matmul %20, %21, %cst_7 {dimension_numbers = #tpu.dot_dimension_numbers<[1], [0], [0], [1], [0, 0, 1, 1], [], []>} : vector<128x33xf32>, vector<33x48xf32>, vector<128x48xf32> -> vector<128x48xf32>
    %23 = arith.mulf %22, %22 : vector<128x48xf32>
    %cst_8 = arith.constant dense<0.000000e+00> : vector<128xf32>
    %24 = vector.multi_reduction <add>, %23, %cst_8 [1] : vector<128x48xf32> to vector<128xf32>
    %25 = vector.shape_cast %24 : vector<128xf32> to vector<128x1xf32>
    %cst_9 = arith.constant 1.000000e-24 : f32
    %26 = vector.broadcast %cst_9 : f32 to vector<128x1xf32>
    %27 = arith.maximumf %25, %26 : vector<128x1xf32>
    %28 = math.rsqrt %27 : vector<128x1xf32>
    %29 = vector.broadcast %28 : vector<128x1xf32> to vector<128x48xf32>
    %30 = arith.mulf %22, %29 : vector<128x48xf32>
    %31 = vector.extract_strided_slice %30 {offsets = [0, 0], sizes = [128, 16], strides = [1, 1]} : vector<128x48xf32> to vector<128x16xf32>
    %32 = vector.extract_strided_slice %30 {offsets = [0, 16], sizes = [128, 16], strides = [1, 1]} : vector<128x48xf32> to vector<128x16xf32>
    %33 = arith.addf %31, %32 : vector<128x16xf32>
    %34 = vector.extract_strided_slice %30 {offsets = [0, 32], sizes = [128, 16], strides = [1, 1]} : vector<128x48xf32> to vector<128x16xf32>
    %35 = arith.addf %33, %34 : vector<128x16xf32>
    %cst_10 = arith.constant 0.333333343 : f32
    %36 = vector.broadcast %cst_10 : f32 to vector<128x16xf32>
    %37 = arith.mulf %35, %36 : vector<128x16xf32>
    %c0_11 = arith.constant 0 : index
    %c0_12 = arith.constant 0 : index
    %38 = vector.load %arg5[%c0_11, %c0_12] : memref<48x96xf32, #tpu.memory_space<vmem>>, vector<48x96xf32>
    %cst_13 = arith.constant dense<0.000000e+00> : vector<128x96xf32>
    %39 = tpu.matmul %22, %38, %cst_13 {dimension_numbers = #tpu.dot_dimension_numbers<[1], [0], [0], [1], [0, 0, 1, 1], [], []>} : vector<128x48xf32>, vector<48x96xf32>, vector<128x96xf32> -> vector<128x96xf32>
    %c0_14 = arith.constant 0 : index
    %c0_15 = arith.constant 0 : index
    %c0_16 = arith.constant 0 : index
    %40 = vector.load %arg8[%c0_14, %c0_15, %c0_16] : memref<3x96x128xf32, #tpu.memory_space<vmem>>, vector<1x96x128xf32>
    %41 = vector.shape_cast %40 : vector<1x96x128xf32> to vector<96x128xf32>
    %cst_17 = arith.constant dense<0.000000e+00> : vector<128x128xf32>
    %42 = tpu.matmul %39, %41, %cst_17 {dimension_numbers = #tpu.dot_dimension_numbers<[1], [0], [0], [1], [0, 0, 1, 1], [], []>} : vector<128x96xf32>, vector<96x128xf32>, vector<128x128xf32> -> vector<128x128xf32>
    %43 = tpu.transpose %42, [1, 0] : vector<128x128xf32> -> vector<128x128xf32>
    %44 = vector.extract_strided_slice %39 {offsets = [0, 0], sizes = [128, 48], strides = [1, 1]} : vector<128x96xf32> to vector<128x48xf32>
    %45 = vector.extract_strided_slice %42 {offsets = [0, 0], sizes = [128, 1], strides = [1, 1]} : vector<128x128xf32> to vector<128x1xf32>
    %46 = vector.extract_strided_slice %43 {offsets = [2, 0], sizes = [1, 128], strides = [1, 1]} : vector<128x128xf32> to vector<1x128xf32>
    %47 = vector.broadcast %45 : vector<128x1xf32> to vector<128x128xf32>
    %48 = vector.broadcast %46 : vector<1x128xf32> to vector<128x128xf32>
    %49 = arith.addf %47, %48 : vector<128x128xf32>
    %c0_18 = arith.constant 0 : index
    %50 = memref.load %arg9[%c0_18] : memref<24xf32, #tpu.memory_space<smem>>
    %51 = vector.broadcast %50 : f32 to vector<128x128xf32>
    %52 = arith.mulf %7, %51 : vector<128x128xf32>
    %53 = arith.addf %49, %52 : vector<128x128xf32>
    %c2 = arith.constant 2 : index
    %54 = memref.load %arg9[%c2] : memref<24xf32, #tpu.memory_space<smem>>
    %55 = vector.broadcast %54 : f32 to vector<128x128xf32>
    %56 = arith.mulf %11, %55 : vector<128x128xf32>
    %57 = arith.addf %53, %56 : vector<128x128xf32>
    %c4 = arith.constant 4 : index
    %58 = memref.load %arg9[%c4] : memref<24xf32, #tpu.memory_space<smem>>
    %59 = vector.broadcast %58 : f32 to vector<128x128xf32>
    %60 = arith.mulf %15, %59 : vector<128x128xf32>
    %61 = arith.addf %57, %60 : vector<128x128xf32>
    %c6 = arith.constant 6 : index
    %62 = memref.load %arg9[%c6] : memref<24xf32, #tpu.memory_space<smem>>
    %63 = vector.broadcast %62 : f32 to vector<128x128xf32>
    %64 = arith.mulf %19, %63 : vector<128x128xf32>
    %65 = arith.addf %61, %64 : vector<128x128xf32>
    %cst_19 = arith.constant 0.000000e+00 : f32
    %66 = vector.broadcast %cst_19 : f32 to vector<128x128xf32>
    %67 = arith.cmpf ogt, %65, %66 : vector<128x128xf32>
    %cst_20 = arith.constant 2.000000e-01 : f32
    %68 = vector.broadcast %cst_20 : f32 to vector<128x128xf32>
    %69 = arith.mulf %68, %65 : vector<128x128xf32>
    %70 = arith.select %67, %65, %69 : vector<128x128xi1>, vector<128x128xf32>
    %cst_21 = arith.constant -1.000000e+30 : f32
    %71 = vector.broadcast %cst_21 : f32 to vector<128x128xf32>
    %72 = arith.select %3, %70, %71 : vector<128x128xi1>, vector<128x128xf32>
    %cst_22 = arith.constant dense<0xFF800000> : vector<128xf32>
    %73 = vector.multi_reduction <maximumf>, %72, %cst_22 [1] : vector<128x128xf32> to vector<128xf32>
    %74 = vector.shape_cast %73 : vector<128xf32> to vector<128x1xf32>
    %75 = vector.broadcast %74 : vector<128x1xf32> to vector<128x128xf32>
    %76 = arith.subf %72, %75 : vector<128x128xf32>
    %77 = math.exp %76 : vector<128x128xf32>
    %78 = arith.mulf %77, %0 : vector<128x128xf32>
    %cst_23 = arith.constant dense<0.000000e+00> : vector<128xf32>
    %79 = vector.multi_reduction <add>, %78, %cst_23 [1] : vector<128x128xf32> to vector<128xf32>
    %80 = vector.shape_cast %79 : vector<128xf32> to vector<128x1xf32>
    %cst_24 = arith.constant 1.000000e-30 : f32
    %81 = vector.broadcast %cst_24 : f32 to vector<128x1xf32>
    %82 = arith.maximumf %80, %81 : vector<128x1xf32>
    %cst_25 = arith.constant 1.000000e+00 : f32
    %83 = vector.broadcast %cst_25 : f32 to vector<128x1xf32>
    %84 = arith.divf %83, %82 : vector<128x1xf32>
    %85 = vector.broadcast %84 : vector<128x1xf32> to vector<128x128xf32>
    %86 = arith.mulf %78, %85 : vector<128x128xf32>
    %cst_26 = arith.constant dense<0.000000e+00> : vector<128x48xf32>
    %87 = tpu.matmul %86, %44, %cst_26 {dimension_numbers = #tpu.dot_dimension_numbers<[1], [0], [0], [1], [0, 0, 1, 1], [], []>} : vector<128x128xf32>, vector<128x48xf32>, vector<128x48xf32> -> vector<128x48xf32>
    %cst_27 = arith.constant 0.000000e+00 : f32
    %88 = vector.broadcast %cst_27 : f32 to vector<128x48xf32>
    %89 = arith.cmpf ogt, %87, %88 : vector<128x48xf32>
    %90 = math.exp %87 : vector<128x48xf32>
    %cst_28 = arith.constant 1.000000e+00 : f32
    %91 = vector.broadcast %cst_28 : f32 to vector<128x48xf32>
    %92 = arith.subf %90, %91 : vector<128x48xf32>
    %93 = arith.select %89, %87, %92 : vector<128x48xi1>, vector<128x48xf32>
    %94 = vector.extract_strided_slice %39 {offsets = [0, 48], sizes = [128, 48], strides = [1, 1]} : vector<128x96xf32> to vector<128x48xf32>
    %95 = vector.extract_strided_slice %42 {offsets = [0, 1], sizes = [128, 1], strides = [1, 1]} : vector<128x128xf32> to vector<128x1xf32>
    %96 = vector.extract_strided_slice %43 {offsets = [3, 0], sizes = [1, 128], strides = [1, 1]} : vector<128x128xf32> to vector<1x128xf32>
    %97 = vector.broadcast %95 : vector<128x1xf32> to vector<128x128xf32>
    %98 = vector.broadcast %96 : vector<1x128xf32> to vector<128x128xf32>
    %99 = arith.addf %97, %98 : vector<128x128xf32>
    %c1 = arith.constant 1 : index
    %100 = memref.load %arg9[%c1] : memref<24xf32, #tpu.memory_space<smem>>
    %101 = vector.broadcast %100 : f32 to vector<128x128xf32>
    %102 = arith.mulf %7, %101 : vector<128x128xf32>
    %103 = arith.addf %99, %102 : vector<128x128xf32>
    %c3 = arith.constant 3 : index
    %104 = memref.load %arg9[%c3] : memref<24xf32, #tpu.memory_space<smem>>
    %105 = vector.broadcast %104 : f32 to vector<128x128xf32>
    %106 = arith.mulf %11, %105 : vector<128x128xf32>
    %107 = arith.addf %103, %106 : vector<128x128xf32>
    %c5 = arith.constant 5 : index
    %108 = memref.load %arg9[%c5] : memref<24xf32, #tpu.memory_space<smem>>
    %109 = vector.broadcast %108 : f32 to vector<128x128xf32>
    %110 = arith.mulf %15, %109 : vector<128x128xf32>
    %111 = arith.addf %107, %110 : vector<128x128xf32>
    %c7 = arith.constant 7 : index
    %112 = memref.load %arg9[%c7] : memref<24xf32, #tpu.memory_space<smem>>
    %113 = vector.broadcast %112 : f32 to vector<128x128xf32>
    %114 = arith.mulf %19, %113 : vector<128x128xf32>
    %115 = arith.addf %111, %114 : vector<128x128xf32>
    %cst_29 = arith.constant 0.000000e+00 : f32
    %116 = vector.broadcast %cst_29 : f32 to vector<128x128xf32>
    %117 = arith.cmpf ogt, %115, %116 : vector<128x128xf32>
    %cst_30 = arith.constant 2.000000e-01 : f32
    %118 = vector.broadcast %cst_30 : f32 to vector<128x128xf32>
    %119 = arith.mulf %118, %115 : vector<128x128xf32>
    %120 = arith.select %117, %115, %119 : vector<128x128xi1>, vector<128x128xf32>
    %cst_31 = arith.constant -1.000000e+30 : f32
    %121 = vector.broadcast %cst_31 : f32 to vector<128x128xf32>
    %122 = arith.select %3, %120, %121 : vector<128x128xi1>, vector<128x128xf32>
    %cst_32 = arith.constant dense<0xFF800000> : vector<128xf32>
    %123 = vector.multi_reduction <maximumf>, %122, %cst_32 [1] : vector<128x128xf32> to vector<128xf32>
    %124 = vector.shape_cast %123 : vector<128xf32> to vector<128x1xf32>
    %125 = vector.broadcast %124 : vector<128x1xf32> to vector<128x128xf32>
    %126 = arith.subf %122, %125 : vector<128x128xf32>
    %127 = math.exp %126 : vector<128x128xf32>
    %128 = arith.mulf %127, %0 : vector<128x128xf32>
    %cst_33 = arith.constant dense<0.000000e+00> : vector<128xf32>
    %129 = vector.multi_reduction <add>, %128, %cst_33 [1] : vector<128x128xf32> to vector<128xf32>
    %130 = vector.shape_cast %129 : vector<128xf32> to vector<128x1xf32>
    %cst_34 = arith.constant 1.000000e-30 : f32
    %131 = vector.broadcast %cst_34 : f32 to vector<128x1xf32>
    %132 = arith.maximumf %130, %131 : vector<128x1xf32>
    %cst_35 = arith.constant 1.000000e+00 : f32
    %133 = vector.broadcast %cst_35 : f32 to vector<128x1xf32>
    %134 = arith.divf %133, %132 : vector<128x1xf32>
    %135 = vector.broadcast %134 : vector<128x1xf32> to vector<128x128xf32>
    %136 = arith.mulf %128, %135 : vector<128x128xf32>
    %cst_36 = arith.constant dense<0.000000e+00> : vector<128x48xf32>
    %137 = tpu.matmul %136, %94, %cst_36 {dimension_numbers = #tpu.dot_dimension_numbers<[1], [0], [0], [1], [0, 0, 1, 1], [], []>} : vector<128x128xf32>, vector<128x48xf32>, vector<128x48xf32> -> vector<128x48xf32>
    %cst_37 = arith.constant 0.000000e+00 : f32
    %138 = vector.broadcast %cst_37 : f32 to vector<128x48xf32>
    %139 = arith.cmpf ogt, %137, %138 : vector<128x48xf32>
    %140 = math.exp %137 : vector<128x48xf32>
    %cst_38 = arith.constant 1.000000e+00 : f32
    %141 = vector.broadcast %cst_38 : f32 to vector<128x48xf32>
    %142 = arith.subf %140, %141 : vector<128x48xf32>
    %143 = arith.select %139, %137, %142 : vector<128x48xi1>, vector<128x48xf32>
    %144 = arith.addf %93, %143 : vector<128x48xf32>
    %cst_39 = arith.constant 5.000000e-01 : f32
    %145 = vector.broadcast %cst_39 : f32 to vector<128x48xf32>
    %146 = arith.mulf %144, %145 : vector<128x48xf32>
    %147 = arith.mulf %146, %146 : vector<128x48xf32>
    %cst_40 = arith.constant dense<0.000000e+00> : vector<128xf32>
    %148 = vector.multi_reduction <add>, %147, %cst_40 [1] : vector<128x48xf32> to vector<128xf32>
    %149 = vector.shape_cast %148 : vector<128xf32> to vector<128x1xf32>
    %cst_41 = arith.constant 1.000000e-24 : f32
    %150 = vector.broadcast %cst_41 : f32 to vector<128x1xf32>
    %151 = arith.maximumf %149, %150 : vector<128x1xf32>
    %152 = math.rsqrt %151 : vector<128x1xf32>
    %153 = vector.broadcast %152 : vector<128x1xf32> to vector<128x48xf32>
    %154 = arith.mulf %146, %153 : vector<128x48xf32>
    %155 = vector.extract_strided_slice %154 {offsets = [0, 0], sizes = [128, 16], strides = [1, 1]} : vector<128x48xf32> to vector<128x16xf32>
    %156 = vector.extract_strided_slice %154 {offsets = [0, 16], sizes = [128, 16], strides = [1, 1]} : vector<128x48xf32> to vector<128x16xf32>
    %157 = arith.addf %155, %156 : vector<128x16xf32>
    %158 = vector.extract_strided_slice %154 {offsets = [0, 32], sizes = [128, 16], strides = [1, 1]} : vector<128x48xf32> to vector<128x16xf32>
    %159 = arith.addf %157, %158 : vector<128x16xf32>
    %cst_42 = arith.constant 0.333333343 : f32
    %160 = vector.broadcast %cst_42 : f32 to vector<128x16xf32>
    %161 = arith.mulf %159, %160 : vector<128x16xf32>
    %162 = tpu.concatenate %93, %143 in 1 : vector<128x48xf32>, vector<128x48xf32> -> vector<128x96xf32>
    %c0_43 = arith.constant 0 : index
    %c0_44 = arith.constant 0 : index
    %163 = vector.load %arg6[%c0_43, %c0_44] : memref<96x96xf32, #tpu.memory_space<vmem>>, vector<96x96xf32>
    %cst_45 = arith.constant dense<0.000000e+00> : vector<128x96xf32>
    %164 = tpu.matmul %162, %163, %cst_45 {dimension_numbers = #tpu.dot_dimension_numbers<[1], [0], [0], [1], [0, 0, 1, 1], [], []>} : vector<128x96xf32>, vector<96x96xf32>, vector<128x96xf32> -> vector<128x96xf32>
    %c1_46 = arith.constant 1 : index
    %c0_47 = arith.constant 0 : index
    %c0_48 = arith.constant 0 : index
    %165 = vector.load %arg8[%c1_46, %c0_47, %c0_48] : memref<3x96x128xf32, #tpu.memory_space<vmem>>, vector<1x96x128xf32>
    %166 = vector.shape_cast %165 : vector<1x96x128xf32> to vector<96x128xf32>
    %cst_49 = arith.constant dense<0.000000e+00> : vector<128x128xf32>
    %167 = tpu.matmul %164, %166, %cst_49 {dimension_numbers = #tpu.dot_dimension_numbers<[1], [0], [0], [1], [0, 0, 1, 1], [], []>} : vector<128x96xf32>, vector<96x128xf32>, vector<128x128xf32> -> vector<128x128xf32>
    %168 = tpu.transpose %167, [1, 0] : vector<128x128xf32> -> vector<128x128xf32>
    %169 = vector.extract_strided_slice %164 {offsets = [0, 0], sizes = [128, 48], strides = [1, 1]} : vector<128x96xf32> to vector<128x48xf32>
    %170 = vector.extract_strided_slice %167 {offsets = [0, 0], sizes = [128, 1], strides = [1, 1]} : vector<128x128xf32> to vector<128x1xf32>
    %171 = vector.extract_strided_slice %168 {offsets = [2, 0], sizes = [1, 128], strides = [1, 1]} : vector<128x128xf32> to vector<1x128xf32>
    %172 = vector.broadcast %170 : vector<128x1xf32> to vector<128x128xf32>
    %173 = vector.broadcast %171 : vector<1x128xf32> to vector<128x128xf32>
    %174 = arith.addf %172, %173 : vector<128x128xf32>
    %c8 = arith.constant 8 : index
    %175 = memref.load %arg9[%c8] : memref<24xf32, #tpu.memory_space<smem>>
    %176 = vector.broadcast %175 : f32 to vector<128x128xf32>
    %177 = arith.mulf %7, %176 : vector<128x128xf32>
    %178 = arith.addf %174, %177 : vector<128x128xf32>
    %c10 = arith.constant 10 : index
    %179 = memref.load %arg9[%c10] : memref<24xf32, #tpu.memory_space<smem>>
    %180 = vector.broadcast %179 : f32 to vector<128x128xf32>
    %181 = arith.mulf %11, %180 : vector<128x128xf32>
    %182 = arith.addf %178, %181 : vector<128x128xf32>
    %c12 = arith.constant 12 : index
    %183 = memref.load %arg9[%c12] : memref<24xf32, #tpu.memory_space<smem>>
    %184 = vector.broadcast %183 : f32 to vector<128x128xf32>
    %185 = arith.mulf %15, %184 : vector<128x128xf32>
    %186 = arith.addf %182, %185 : vector<128x128xf32>
    %c14 = arith.constant 14 : index
    %187 = memref.load %arg9[%c14] : memref<24xf32, #tpu.memory_space<smem>>
    %188 = vector.broadcast %187 : f32 to vector<128x128xf32>
    %189 = arith.mulf %19, %188 : vector<128x128xf32>
    %190 = arith.addf %186, %189 : vector<128x128xf32>
    %cst_50 = arith.constant 0.000000e+00 : f32
    %191 = vector.broadcast %cst_50 : f32 to vector<128x128xf32>
    %192 = arith.cmpf ogt, %190, %191 : vector<128x128xf32>
    %cst_51 = arith.constant 2.000000e-01 : f32
    %193 = vector.broadcast %cst_51 : f32 to vector<128x128xf32>
    %194 = arith.mulf %193, %190 : vector<128x128xf32>
    %195 = arith.select %192, %190, %194 : vector<128x128xi1>, vector<128x128xf32>
    %cst_52 = arith.constant -1.000000e+30 : f32
    %196 = vector.broadcast %cst_52 : f32 to vector<128x128xf32>
    %197 = arith.select %3, %195, %196 : vector<128x128xi1>, vector<128x128xf32>
    %cst_53 = arith.constant dense<0xFF800000> : vector<128xf32>
    %198 = vector.multi_reduction <maximumf>, %197, %cst_53 [1] : vector<128x128xf32> to vector<128xf32>
    %199 = vector.shape_cast %198 : vector<128xf32> to vector<128x1xf32>
    %200 = vector.broadcast %199 : vector<128x1xf32> to vector<128x128xf32>
    %201 = arith.subf %197, %200 : vector<128x128xf32>
    %202 = math.exp %201 : vector<128x128xf32>
    %203 = arith.mulf %202, %0 : vector<128x128xf32>
    %cst_54 = arith.constant dense<0.000000e+00> : vector<128xf32>
    %204 = vector.multi_reduction <add>, %203, %cst_54 [1] : vector<128x128xf32> to vector<128xf32>
    %205 = vector.shape_cast %204 : vector<128xf32> to vector<128x1xf32>
    %cst_55 = arith.constant 1.000000e-30 : f32
    %206 = vector.broadcast %cst_55 : f32 to vector<128x1xf32>
    %207 = arith.maximumf %205, %206 : vector<128x1xf32>
    %cst_56 = arith.constant 1.000000e+00 : f32
    %208 = vector.broadcast %cst_56 : f32 to vector<128x1xf32>
    %209 = arith.divf %208, %207 : vector<128x1xf32>
    %210 = vector.broadcast %209 : vector<128x1xf32> to vector<128x128xf32>
    %211 = arith.mulf %203, %210 : vector<128x128xf32>
    %cst_57 = arith.constant 0.949999988 : f32
    %212 = vector.broadcast %cst_57 : f32 to vector<128x128xf32>
    %213 = arith.mulf %211, %212 : vector<128x128xf32>
    %cst_58 = arith.constant 5.000000e-02 : f32
    %214 = vector.broadcast %cst_58 : f32 to vector<128x128xf32>
    %215 = arith.mulf %86, %214 : vector<128x128xf32>
    %216 = arith.addf %213, %215 : vector<128x128xf32>
    %cst_59 = arith.constant dense<0.000000e+00> : vector<128x48xf32>
    %217 = tpu.matmul %216, %169, %cst_59 {dimension_numbers = #tpu.dot_dimension_numbers<[1], [0], [0], [1], [0, 0, 1, 1], [], []>} : vector<128x128xf32>, vector<128x48xf32>, vector<128x48xf32> -> vector<128x48xf32>
    %cst_60 = arith.constant 0.000000e+00 : f32
    %218 = vector.broadcast %cst_60 : f32 to vector<128x48xf32>
    %219 = arith.cmpf ogt, %217, %218 : vector<128x48xf32>
    %220 = math.exp %217 : vector<128x48xf32>
    %cst_61 = arith.constant 1.000000e+00 : f32
    %221 = vector.broadcast %cst_61 : f32 to vector<128x48xf32>
    %222 = arith.subf %220, %221 : vector<128x48xf32>
    %223 = arith.select %219, %217, %222 : vector<128x48xi1>, vector<128x48xf32>
    %224 = vector.extract_strided_slice %164 {offsets = [0, 48], sizes = [128, 48], strides = [1, 1]} : vector<128x96xf32> to vector<128x48xf32>
    %225 = vector.extract_strided_slice %167 {offsets = [0, 1], sizes = [128, 1], strides = [1, 1]} : vector<128x128xf32> to vector<128x1xf32>
    %226 = vector.extract_strided_slice %168 {offsets = [3, 0], sizes = [1, 128], strides = [1, 1]} : vector<128x128xf32> to vector<1x128xf32>
    %227 = vector.broadcast %225 : vector<128x1xf32> to vector<128x128xf32>
    %228 = vector.broadcast %226 : vector<1x128xf32> to vector<128x128xf32>
    %229 = arith.addf %227, %228 : vector<128x128xf32>
    %c9 = arith.constant 9 : index
    %230 = memref.load %arg9[%c9] : memref<24xf32, #tpu.memory_space<smem>>
    %231 = vector.broadcast %230 : f32 to vector<128x128xf32>
    %232 = arith.mulf %7, %231 : vector<128x128xf32>
    %233 = arith.addf %229, %232 : vector<128x128xf32>
    %c11 = arith.constant 11 : index
    %234 = memref.load %arg9[%c11] : memref<24xf32, #tpu.memory_space<smem>>
    %235 = vector.broadcast %234 : f32 to vector<128x128xf32>
    %236 = arith.mulf %11, %235 : vector<128x128xf32>
    %237 = arith.addf %233, %236 : vector<128x128xf32>
    %c13 = arith.constant 13 : index
    %238 = memref.load %arg9[%c13] : memref<24xf32, #tpu.memory_space<smem>>
    %239 = vector.broadcast %238 : f32 to vector<128x128xf32>
    %240 = arith.mulf %15, %239 : vector<128x128xf32>
    %241 = arith.addf %237, %240 : vector<128x128xf32>
    %c15 = arith.constant 15 : index
    %242 = memref.load %arg9[%c15] : memref<24xf32, #tpu.memory_space<smem>>
    %243 = vector.broadcast %242 : f32 to vector<128x128xf32>
    %244 = arith.mulf %19, %243 : vector<128x128xf32>
    %245 = arith.addf %241, %244 : vector<128x128xf32>
    %cst_62 = arith.constant 0.000000e+00 : f32
    %246 = vector.broadcast %cst_62 : f32 to vector<128x128xf32>
    %247 = arith.cmpf ogt, %245, %246 : vector<128x128xf32>
    %cst_63 = arith.constant 2.000000e-01 : f32
    %248 = vector.broadcast %cst_63 : f32 to vector<128x128xf32>
    %249 = arith.mulf %248, %245 : vector<128x128xf32>
    %250 = arith.select %247, %245, %249 : vector<128x128xi1>, vector<128x128xf32>
    %cst_64 = arith.constant -1.000000e+30 : f32
    %251 = vector.broadcast %cst_64 : f32 to vector<128x128xf32>
    %252 = arith.select %3, %250, %251 : vector<128x128xi1>, vector<128x128xf32>
    %cst_65 = arith.constant dense<0xFF800000> : vector<128xf32>
    %253 = vector.multi_reduction <maximumf>, %252, %cst_65 [1] : vector<128x128xf32> to vector<128xf32>
    %254 = vector.shape_cast %253 : vector<128xf32> to vector<128x1xf32>
    %255 = vector.broadcast %254 : vector<128x1xf32> to vector<128x128xf32>
    %256 = arith.subf %252, %255 : vector<128x128xf32>
    %257 = math.exp %256 : vector<128x128xf32>
    %258 = arith.mulf %257, %0 : vector<128x128xf32>
    %cst_66 = arith.constant dense<0.000000e+00> : vector<128xf32>
    %259 = vector.multi_reduction <add>, %258, %cst_66 [1] : vector<128x128xf32> to vector<128xf32>
    %260 = vector.shape_cast %259 : vector<128xf32> to vector<128x1xf32>
    %cst_67 = arith.constant 1.000000e-30 : f32
    %261 = vector.broadcast %cst_67 : f32 to vector<128x1xf32>
    %262 = arith.maximumf %260, %261 : vector<128x1xf32>
    %cst_68 = arith.constant 1.000000e+00 : f32
    %263 = vector.broadcast %cst_68 : f32 to vector<128x1xf32>
    %264 = arith.divf %263, %262 : vector<128x1xf32>
    %265 = vector.broadcast %264 : vector<128x1xf32> to vector<128x128xf32>
    %266 = arith.mulf %258, %265 : vector<128x128xf32>
    %cst_69 = arith.constant 0.949999988 : f32
    %267 = vector.broadcast %cst_69 : f32 to vector<128x128xf32>
    %268 = arith.mulf %266, %267 : vector<128x128xf32>
    %cst_70 = arith.constant 5.000000e-02 : f32
    %269 = vector.broadcast %cst_70 : f32 to vector<128x128xf32>
    %270 = arith.mulf %136, %269 : vector<128x128xf32>
    %271 = arith.addf %268, %270 : vector<128x128xf32>
    %cst_71 = arith.constant dense<0.000000e+00> : vector<128x48xf32>
    %272 = tpu.matmul %271, %224, %cst_71 {dimension_numbers = #tpu.dot_dimension_numbers<[1], [0], [0], [1], [0, 0, 1, 1], [], []>} : vector<128x128xf32>, vector<128x48xf32>, vector<128x48xf32> -> vector<128x48xf32>
    %cst_72 = arith.constant 0.000000e+00 : f32
    %273 = vector.broadcast %cst_72 : f32 to vector<128x48xf32>
    %274 = arith.cmpf ogt, %272, %273 : vector<128x48xf32>
    %275 = math.exp %272 : vector<128x48xf32>
    %cst_73 = arith.constant 1.000000e+00 : f32
    %276 = vector.broadcast %cst_73 : f32 to vector<128x48xf32>
    %277 = arith.subf %275, %276 : vector<128x48xf32>
    %278 = arith.select %274, %272, %277 : vector<128x48xi1>, vector<128x48xf32>
    %279 = arith.addf %223, %278 : vector<128x48xf32>
    %cst_74 = arith.constant 5.000000e-01 : f32
    %280 = vector.broadcast %cst_74 : f32 to vector<128x48xf32>
    %281 = arith.mulf %279, %280 : vector<128x48xf32>
    %282 = arith.mulf %281, %281 : vector<128x48xf32>
    %cst_75 = arith.constant dense<0.000000e+00> : vector<128xf32>
    %283 = vector.multi_reduction <add>, %282, %cst_75 [1] : vector<128x48xf32> to vector<128xf32>
    %284 = vector.shape_cast %283 : vector<128xf32> to vector<128x1xf32>
    %cst_76 = arith.constant 1.000000e-24 : f32
    %285 = vector.broadcast %cst_76 : f32 to vector<128x1xf32>
    %286 = arith.maximumf %284, %285 : vector<128x1xf32>
    %287 = math.rsqrt %286 : vector<128x1xf32>
    %288 = vector.broadcast %287 : vector<128x1xf32> to vector<128x48xf32>
    %289 = arith.mulf %281, %288 : vector<128x48xf32>
    %290 = vector.extract_strided_slice %289 {offsets = [0, 0], sizes = [128, 16], strides = [1, 1]} : vector<128x48xf32> to vector<128x16xf32>
    %291 = vector.extract_strided_slice %289 {offsets = [0, 16], sizes = [128, 16], strides = [1, 1]} : vector<128x48xf32> to vector<128x16xf32>
    %292 = arith.addf %290, %291 : vector<128x16xf32>
    %293 = vector.extract_strided_slice %289 {offsets = [0, 32], sizes = [128, 16], strides = [1, 1]} : vector<128x48xf32> to vector<128x16xf32>
    %294 = arith.addf %292, %293 : vector<128x16xf32>
    %cst_77 = arith.constant 0.333333343 : f32
    %295 = vector.broadcast %cst_77 : f32 to vector<128x16xf32>
    %296 = arith.mulf %294, %295 : vector<128x16xf32>
    %297 = tpu.concatenate %223, %278 in 1 : vector<128x48xf32>, vector<128x48xf32> -> vector<128x96xf32>
    %c0_78 = arith.constant 0 : index
    %c0_79 = arith.constant 0 : index
    %298 = vector.load %arg7[%c0_78, %c0_79] : memref<96x96xf32, #tpu.memory_space<vmem>>, vector<96x96xf32>
    %cst_80 = arith.constant dense<0.000000e+00> : vector<128x96xf32>
    %299 = tpu.matmul %297, %298, %cst_80 {dimension_numbers = #tpu.dot_dimension_numbers<[1], [0], [0], [1], [0, 0, 1, 1], [], []>} : vector<128x96xf32>, vector<96x96xf32>, vector<128x96xf32> -> vector<128x96xf32>
    %c2_81 = arith.constant 2 : index
    %c0_82 = arith.constant 0 : index
    %c0_83 = arith.constant 0 : index
    %300 = vector.load %arg8[%c2_81, %c0_82, %c0_83] : memref<3x96x128xf32, #tpu.memory_space<vmem>>, vector<1x96x128xf32>
    %301 = vector.shape_cast %300 : vector<1x96x128xf32> to vector<96x128xf32>
    %cst_84 = arith.constant dense<0.000000e+00> : vector<128x128xf32>
    %302 = tpu.matmul %299, %301, %cst_84 {dimension_numbers = #tpu.dot_dimension_numbers<[1], [0], [0], [1], [0, 0, 1, 1], [], []>} : vector<128x96xf32>, vector<96x128xf32>, vector<128x128xf32> -> vector<128x128xf32>
    %303 = tpu.transpose %302, [1, 0] : vector<128x128xf32> -> vector<128x128xf32>
    %304 = vector.extract_strided_slice %299 {offsets = [0, 0], sizes = [128, 48], strides = [1, 1]} : vector<128x96xf32> to vector<128x48xf32>
    %305 = vector.extract_strided_slice %302 {offsets = [0, 0], sizes = [128, 1], strides = [1, 1]} : vector<128x128xf32> to vector<128x1xf32>
    %306 = vector.extract_strided_slice %303 {offsets = [2, 0], sizes = [1, 128], strides = [1, 1]} : vector<128x128xf32> to vector<1x128xf32>
    %307 = vector.broadcast %305 : vector<128x1xf32> to vector<128x128xf32>
    %308 = vector.broadcast %306 : vector<1x128xf32> to vector<128x128xf32>
    %309 = arith.addf %307, %308 : vector<128x128xf32>
    %c16 = arith.constant 16 : index
    %310 = memref.load %arg9[%c16] : memref<24xf32, #tpu.memory_space<smem>>
    %311 = vector.broadcast %310 : f32 to vector<128x128xf32>
    %312 = arith.mulf %7, %311 : vector<128x128xf32>
    %313 = arith.addf %309, %312 : vector<128x128xf32>
    %c18 = arith.constant 18 : index
    %314 = memref.load %arg9[%c18] : memref<24xf32, #tpu.memory_space<smem>>
    %315 = vector.broadcast %314 : f32 to vector<128x128xf32>
    %316 = arith.mulf %11, %315 : vector<128x128xf32>
    %317 = arith.addf %313, %316 : vector<128x128xf32>
    %c20 = arith.constant 20 : index
    %318 = memref.load %arg9[%c20] : memref<24xf32, #tpu.memory_space<smem>>
    %319 = vector.broadcast %318 : f32 to vector<128x128xf32>
    %320 = arith.mulf %15, %319 : vector<128x128xf32>
    %321 = arith.addf %317, %320 : vector<128x128xf32>
    %c22 = arith.constant 22 : index
    %322 = memref.load %arg9[%c22] : memref<24xf32, #tpu.memory_space<smem>>
    %323 = vector.broadcast %322 : f32 to vector<128x128xf32>
    %324 = arith.mulf %19, %323 : vector<128x128xf32>
    %325 = arith.addf %321, %324 : vector<128x128xf32>
    %cst_85 = arith.constant 0.000000e+00 : f32
    %326 = vector.broadcast %cst_85 : f32 to vector<128x128xf32>
    %327 = arith.cmpf ogt, %325, %326 : vector<128x128xf32>
    %cst_86 = arith.constant 2.000000e-01 : f32
    %328 = vector.broadcast %cst_86 : f32 to vector<128x128xf32>
    %329 = arith.mulf %328, %325 : vector<128x128xf32>
    %330 = arith.select %327, %325, %329 : vector<128x128xi1>, vector<128x128xf32>
    %cst_87 = arith.constant -1.000000e+30 : f32
    %331 = vector.broadcast %cst_87 : f32 to vector<128x128xf32>
    %332 = arith.select %3, %330, %331 : vector<128x128xi1>, vector<128x128xf32>
    %cst_88 = arith.constant dense<0xFF800000> : vector<128xf32>
    %333 = vector.multi_reduction <maximumf>, %332, %cst_88 [1] : vector<128x128xf32> to vector<128xf32>
    %334 = vector.shape_cast %333 : vector<128xf32> to vector<128x1xf32>
    %335 = vector.broadcast %334 : vector<128x1xf32> to vector<128x128xf32>
    %336 = arith.subf %332, %335 : vector<128x128xf32>
    %337 = math.exp %336 : vector<128x128xf32>
    %338 = arith.mulf %337, %0 : vector<128x128xf32>
    %cst_89 = arith.constant dense<0.000000e+00> : vector<128xf32>
    %339 = vector.multi_reduction <add>, %338, %cst_89 [1] : vector<128x128xf32> to vector<128xf32>
    %340 = vector.shape_cast %339 : vector<128xf32> to vector<128x1xf32>
    %cst_90 = arith.constant 1.000000e-30 : f32
    %341 = vector.broadcast %cst_90 : f32 to vector<128x1xf32>
    %342 = arith.maximumf %340, %341 : vector<128x1xf32>
    %cst_91 = arith.constant 1.000000e+00 : f32
    %343 = vector.broadcast %cst_91 : f32 to vector<128x1xf32>
    %344 = arith.divf %343, %342 : vector<128x1xf32>
    %345 = vector.broadcast %344 : vector<128x1xf32> to vector<128x128xf32>
    %346 = arith.mulf %338, %345 : vector<128x128xf32>
    %cst_92 = arith.constant 0.949999988 : f32
    %347 = vector.broadcast %cst_92 : f32 to vector<128x128xf32>
    %348 = arith.mulf %346, %347 : vector<128x128xf32>
    %cst_93 = arith.constant 5.000000e-02 : f32
    %349 = vector.broadcast %cst_93 : f32 to vector<128x128xf32>
    %350 = arith.mulf %216, %349 : vector<128x128xf32>
    %351 = arith.addf %348, %350 : vector<128x128xf32>
    %cst_94 = arith.constant dense<0.000000e+00> : vector<128x48xf32>
    %352 = tpu.matmul %351, %304, %cst_94 {dimension_numbers = #tpu.dot_dimension_numbers<[1], [0], [0], [1], [0, 0, 1, 1], [], []>} : vector<128x128xf32>, vector<128x48xf32>, vector<128x48xf32> -> vector<128x48xf32>
    %353 = vector.extract_strided_slice %299 {offsets = [0, 48], sizes = [128, 48], strides = [1, 1]} : vector<128x96xf32> to vector<128x48xf32>
    %354 = vector.extract_strided_slice %302 {offsets = [0, 1], sizes = [128, 1], strides = [1, 1]} : vector<128x128xf32> to vector<128x1xf32>
    %355 = vector.extract_strided_slice %303 {offsets = [3, 0], sizes = [1, 128], strides = [1, 1]} : vector<128x128xf32> to vector<1x128xf32>
    %356 = vector.broadcast %354 : vector<128x1xf32> to vector<128x128xf32>
    %357 = vector.broadcast %355 : vector<1x128xf32> to vector<128x128xf32>
    %358 = arith.addf %356, %357 : vector<128x128xf32>
    %c17 = arith.constant 17 : index
    %359 = memref.load %arg9[%c17] : memref<24xf32, #tpu.memory_space<smem>>
    %360 = vector.broadcast %359 : f32 to vector<128x128xf32>
    %361 = arith.mulf %7, %360 : vector<128x128xf32>
    %362 = arith.addf %358, %361 : vector<128x128xf32>
    %c19 = arith.constant 19 : index
    %363 = memref.load %arg9[%c19] : memref<24xf32, #tpu.memory_space<smem>>
    %364 = vector.broadcast %363 : f32 to vector<128x128xf32>
    %365 = arith.mulf %11, %364 : vector<128x128xf32>
    %366 = arith.addf %362, %365 : vector<128x128xf32>
    %c21 = arith.constant 21 : index
    %367 = memref.load %arg9[%c21] : memref<24xf32, #tpu.memory_space<smem>>
    %368 = vector.broadcast %367 : f32 to vector<128x128xf32>
    %369 = arith.mulf %15, %368 : vector<128x128xf32>
    %370 = arith.addf %366, %369 : vector<128x128xf32>
    %c23 = arith.constant 23 : index
    %371 = memref.load %arg9[%c23] : memref<24xf32, #tpu.memory_space<smem>>
    %372 = vector.broadcast %371 : f32 to vector<128x128xf32>
    %373 = arith.mulf %19, %372 : vector<128x128xf32>
    %374 = arith.addf %370, %373 : vector<128x128xf32>
    %cst_95 = arith.constant 0.000000e+00 : f32
    %375 = vector.broadcast %cst_95 : f32 to vector<128x128xf32>
    %376 = arith.cmpf ogt, %374, %375 : vector<128x128xf32>
    %cst_96 = arith.constant 2.000000e-01 : f32
    %377 = vector.broadcast %cst_96 : f32 to vector<128x128xf32>
    %378 = arith.mulf %377, %374 : vector<128x128xf32>
    %379 = arith.select %376, %374, %378 : vector<128x128xi1>, vector<128x128xf32>
    %cst_97 = arith.constant -1.000000e+30 : f32
    %380 = vector.broadcast %cst_97 : f32 to vector<128x128xf32>
    %381 = arith.select %3, %379, %380 : vector<128x128xi1>, vector<128x128xf32>
    %cst_98 = arith.constant dense<0xFF800000> : vector<128xf32>
    %382 = vector.multi_reduction <maximumf>, %381, %cst_98 [1] : vector<128x128xf32> to vector<128xf32>
    %383 = vector.shape_cast %382 : vector<128xf32> to vector<128x1xf32>
    %384 = vector.broadcast %383 : vector<128x1xf32> to vector<128x128xf32>
    %385 = arith.subf %381, %384 : vector<128x128xf32>
    %386 = math.exp %385 : vector<128x128xf32>
    %387 = arith.mulf %386, %0 : vector<128x128xf32>
    %cst_99 = arith.constant dense<0.000000e+00> : vector<128xf32>
    %388 = vector.multi_reduction <add>, %387, %cst_99 [1] : vector<128x128xf32> to vector<128xf32>
    %389 = vector.shape_cast %388 : vector<128xf32> to vector<128x1xf32>
    %cst_100 = arith.constant 1.000000e-30 : f32
    %390 = vector.broadcast %cst_100 : f32 to vector<128x1xf32>
    %391 = arith.maximumf %389, %390 : vector<128x1xf32>
    %cst_101 = arith.constant 1.000000e+00 : f32
    %392 = vector.broadcast %cst_101 : f32 to vector<128x1xf32>
    %393 = arith.divf %392, %391 : vector<128x1xf32>
    %394 = vector.broadcast %393 : vector<128x1xf32> to vector<128x128xf32>
    %395 = arith.mulf %387, %394 : vector<128x128xf32>
    %cst_102 = arith.constant 0.949999988 : f32
    %396 = vector.broadcast %cst_102 : f32 to vector<128x128xf32>
    %397 = arith.mulf %395, %396 : vector<128x128xf32>
    %cst_103 = arith.constant 5.000000e-02 : f32
    %398 = vector.broadcast %cst_103 : f32 to vector<128x128xf32>
    %399 = arith.mulf %271, %398 : vector<128x128xf32>
    %400 = arith.addf %397, %399 : vector<128x128xf32>
    %cst_104 = arith.constant dense<0.000000e+00> : vector<128x48xf32>
    %401 = tpu.matmul %400, %353, %cst_104 {dimension_numbers = #tpu.dot_dimension_numbers<[1], [0], [0], [1], [0, 0, 1, 1], [], []>} : vector<128x128xf32>, vector<128x48xf32>, vector<128x48xf32> -> vector<128x48xf32>
    %402 = arith.addf %352, %401 : vector<128x48xf32>
    %cst_105 = arith.constant 5.000000e-01 : f32
    %403 = vector.broadcast %cst_105 : f32 to vector<128x48xf32>
    %404 = arith.mulf %402, %403 : vector<128x48xf32>
    %405 = arith.mulf %404, %404 : vector<128x48xf32>
    %cst_106 = arith.constant dense<0.000000e+00> : vector<128xf32>
    %406 = vector.multi_reduction <add>, %405, %cst_106 [1] : vector<128x48xf32> to vector<128xf32>
    %407 = vector.shape_cast %406 : vector<128xf32> to vector<128x1xf32>
    %cst_107 = arith.constant 1.000000e-24 : f32
    %408 = vector.broadcast %cst_107 : f32 to vector<128x1xf32>
    %409 = arith.maximumf %407, %408 : vector<128x1xf32>
    %410 = math.rsqrt %409 : vector<128x1xf32>
    %411 = vector.broadcast %410 : vector<128x1xf32> to vector<128x48xf32>
    %412 = arith.mulf %404, %411 : vector<128x48xf32>
    %413 = vector.extract_strided_slice %412 {offsets = [0, 0], sizes = [128, 16], strides = [1, 1]} : vector<128x48xf32> to vector<128x16xf32>
    %414 = vector.extract_strided_slice %412 {offsets = [0, 16], sizes = [128, 16], strides = [1, 1]} : vector<128x48xf32> to vector<128x16xf32>
    %415 = arith.addf %413, %414 : vector<128x16xf32>
    %416 = vector.extract_strided_slice %412 {offsets = [0, 32], sizes = [128, 16], strides = [1, 1]} : vector<128x48xf32> to vector<128x16xf32>
    %417 = arith.addf %415, %416 : vector<128x16xf32>
    %cst_108 = arith.constant 0.333333343 : f32
    %418 = vector.broadcast %cst_108 : f32 to vector<128x16xf32>
    %419 = arith.mulf %417, %418 : vector<128x16xf32>
    %420 = tpu.concatenate %37, %161, %296, %419 in 1 : vector<128x16xf32>, vector<128x16xf32>, vector<128x16xf32>, vector<128x16xf32> -> vector<128x64xf32>
    %c0_109 = arith.constant 0 : index
    %c0_110 = arith.constant 0 : index
    %421 = vector.load %arg11[%c0_109, %c0_110] : memref<16x128xf32, #tpu.memory_space<vmem>>, vector<16x128xf32>
    %cst_111 = arith.constant dense<0.000000e+00> : vector<16x64xf32>
    %422 = tpu.matmul %421, %420, %cst_111 {dimension_numbers = #tpu.dot_dimension_numbers<[1], [0], [0], [1], [0, 0, 1, 1], [], []>} : vector<16x128xf32>, vector<128x64xf32>, vector<16x64xf32> -> vector<16x64xf32>
    %c0_112 = arith.constant 0 : index
    %c0_113 = arith.constant 0 : index
    %423 = vector.load %arg12[%c0_112, %c0_113] : memref<16x128xf32, #tpu.memory_space<vmem>>, vector<16x128xf32>
    %cst_114 = arith.constant dense<0.000000e+00> : vector<16x64xf32>
    %424 = tpu.matmul %423, %420, %cst_114 {dimension_numbers = #tpu.dot_dimension_numbers<[1], [0], [0], [1], [0, 0, 1, 1], [], []>} : vector<16x128xf32>, vector<128x64xf32>, vector<16x64xf32> -> vector<16x64xf32>
    %c0_115 = arith.constant 0 : index
    %c0_116 = arith.constant 0 : index
    %425 = vector.load %arg10[%c0_115, %c0_116] : memref<64x256xf32, #tpu.memory_space<vmem>>, vector<64x256xf32>
    %cst_117 = arith.constant dense<0.000000e+00> : vector<16x256xf32>
    %426 = tpu.matmul %422, %425, %cst_117 {dimension_numbers = #tpu.dot_dimension_numbers<[1], [0], [0], [1], [0, 0, 1, 1], [], []>} : vector<16x64xf32>, vector<64x256xf32>, vector<16x256xf32> -> vector<16x256xf32>
    %c0_118 = arith.constant 0 : index
    %c0_119 = arith.constant 0 : index
    %427 = vector.load %arg13[%c0_118, %c0_119] : memref<16x4xf32, #tpu.memory_space<vmem>>, vector<16x4xf32>
    %cst_120 = arith.constant 0.000000e+00 : f32
    %428 = vector.broadcast %cst_120 : f32 to vector<16x1xf32>
    %429 = vector.extract_strided_slice %426 {offsets = [0, 0], sizes = [16, 64], strides = [1, 1]} : vector<16x256xf32> to vector<16x64xf32>
    %430 = arith.mulf %429, %424 : vector<16x64xf32>
    %cst_121 = arith.constant dense<0.000000e+00> : vector<16xf32>
    %431 = vector.multi_reduction <add>, %430, %cst_121 [1] : vector<16x64xf32> to vector<16xf32>
    %432 = vector.shape_cast %431 : vector<16xf32> to vector<16x1xf32>
    %433 = vector.extract_strided_slice %427 {offsets = [0, 0], sizes = [16, 1], strides = [1, 1]} : vector<16x4xf32> to vector<16x1xf32>
    %434 = arith.mulf %433, %432 : vector<16x1xf32>
    %435 = arith.addf %428, %434 : vector<16x1xf32>
    %436 = vector.extract_strided_slice %426 {offsets = [0, 64], sizes = [16, 64], strides = [1, 1]} : vector<16x256xf32> to vector<16x64xf32>
    %437 = arith.mulf %436, %424 : vector<16x64xf32>
    %cst_122 = arith.constant dense<0.000000e+00> : vector<16xf32>
    %438 = vector.multi_reduction <add>, %437, %cst_122 [1] : vector<16x64xf32> to vector<16xf32>
    %439 = vector.shape_cast %438 : vector<16xf32> to vector<16x1xf32>
    %440 = vector.extract_strided_slice %427 {offsets = [0, 1], sizes = [16, 1], strides = [1, 1]} : vector<16x4xf32> to vector<16x1xf32>
    %441 = arith.mulf %440, %439 : vector<16x1xf32>
    %442 = arith.addf %435, %441 : vector<16x1xf32>
    %443 = vector.extract_strided_slice %426 {offsets = [0, 128], sizes = [16, 64], strides = [1, 1]} : vector<16x256xf32> to vector<16x64xf32>
    %444 = arith.mulf %443, %424 : vector<16x64xf32>
    %cst_123 = arith.constant dense<0.000000e+00> : vector<16xf32>
    %445 = vector.multi_reduction <add>, %444, %cst_123 [1] : vector<16x64xf32> to vector<16xf32>
    %446 = vector.shape_cast %445 : vector<16xf32> to vector<16x1xf32>
    %447 = vector.extract_strided_slice %427 {offsets = [0, 2], sizes = [16, 1], strides = [1, 1]} : vector<16x4xf32> to vector<16x1xf32>
    %448 = arith.mulf %447, %446 : vector<16x1xf32>
    %449 = arith.addf %442, %448 : vector<16x1xf32>
    %450 = vector.extract_strided_slice %426 {offsets = [0, 192], sizes = [16, 64], strides = [1, 1]} : vector<16x256xf32> to vector<16x64xf32>
    %451 = arith.mulf %450, %424 : vector<16x64xf32>
    %cst_124 = arith.constant dense<0.000000e+00> : vector<16xf32>
    %452 = vector.multi_reduction <add>, %451, %cst_124 [1] : vector<16x64xf32> to vector<16xf32>
    %453 = vector.shape_cast %452 : vector<16xf32> to vector<16x1xf32>
    %454 = vector.extract_strided_slice %427 {offsets = [0, 3], sizes = [16, 1], strides = [1, 1]} : vector<16x4xf32> to vector<16x1xf32>
    %455 = arith.mulf %454, %453 : vector<16x1xf32>
    %456 = arith.addf %449, %455 : vector<16x1xf32>
    %457 = arith.negf %456 : vector<16x1xf32>
    %458 = math.exp %457 : vector<16x1xf32>
    %cst_125 = arith.constant 1.000000e+00 : f32
    %459 = vector.broadcast %cst_125 : f32 to vector<16x1xf32>
    %460 = arith.addf %459, %458 : vector<16x1xf32>
    %461 = arith.divf %459, %460 : vector<16x1xf32>
    %c0_126 = arith.constant 0 : index
    %c0_127 = arith.constant 0 : index
    %462 = vector.load %arg14[%c0_126, %c0_127] : memref<16x1xf32, #tpu.memory_space<vmem>>, vector<16x1xf32>
    tpu.vector_store %arg14[%c0_126, %c0_127], %461 {strides = array<i32>} : memref<16x1xf32, #tpu.memory_space<vmem>>, vector<16x1xf32>,
    return
  }
  func.func @transform_0(%arg0: i32) -> (i32, i32) {
    %c0_i32 = arith.constant 0 : i32
    %c0_i32_0 = arith.constant 0 : i32
    %c0_i32_1 = arith.constant 0 : i32
    return %c0_i32, %c0_i32_0 : i32, i32
  }
  func.func @transform_1(%arg0: i32) -> (i32, i32) {
    %c0_i32 = arith.constant 0 : i32
    %c0_i32_0 = arith.constant 0 : i32
    %c0_i32_1 = arith.constant 0 : i32
    return %c0_i32, %c0_i32_0 : i32, i32
  }
  func.func @transform_2(%arg0: i32) -> (i32, i32) {
    %c0_i32 = arith.constant 0 : i32
    %c0_i32_0 = arith.constant 0 : i32
    %c0_i32_1 = arith.constant 0 : i32
    return %c0_i32, %c0_i32_0 : i32, i32
  }
  func.func @transform_3(%arg0: i32) -> (i32, i32) {
    %c0_i32 = arith.constant 0 : i32
    %c0_i32_0 = arith.constant 0 : i32
    %c0_i32_1 = arith.constant 0 : i32
    return %c0_i32, %c0_i32_0 : i32, i32
  }
  func.func @transform_4(%arg0: i32) -> (i32, i32) {
    %c0_i32 = arith.constant 0 : i32
    %c0_i32_0 = arith.constant 0 : i32
    %c0_i32_1 = arith.constant 0 : i32
    return %c0_i32, %c0_i32_0 : i32, i32
  }
  func.func @transform_5(%arg0: i32) -> (i32, i32) {
    %c0_i32 = arith.constant 0 : i32
    %c0_i32_0 = arith.constant 0 : i32
    %c0_i32_1 = arith.constant 0 : i32
    return %c0_i32, %c0_i32_0 : i32, i32
  }
  func.func @transform_6(%arg0: i32) -> (i32, i32) {
    %c0_i32 = arith.constant 0 : i32
    %c0_i32_0 = arith.constant 0 : i32
    %c0_i32_1 = arith.constant 0 : i32
    return %c0_i32, %c0_i32_0 : i32, i32
  }
  func.func @transform_7(%arg0: i32) -> (i32, i32, i32) {
    %c0_i32 = arith.constant 0 : i32
    %c0_i32_0 = arith.constant 0 : i32
    %c0_i32_1 = arith.constant 0 : i32
    %c0_i32_2 = arith.constant 0 : i32
    return %c0_i32, %c0_i32_0, %c0_i32_1 : i32, i32, i32
  }
  func.func @transform_8(%arg0: i32) -> i32 {
    %c0_i32 = arith.constant 0 : i32
    %c0_i32_0 = arith.constant 0 : i32
    return %c0_i32 : i32
  }
  func.func @transform_9(%arg0: i32) -> (i32, i32) {
    %c0_i32 = arith.constant 0 : i32
    %c0_i32_0 = arith.constant 0 : i32
    %c0_i32_1 = arith.constant 0 : i32
    return %c0_i32, %c0_i32_0 : i32, i32
  }
  func.func @transform_10(%arg0: i32) -> (i32, i32) {
    %c0_i32 = arith.constant 0 : i32
    %c0_i32_0 = arith.constant 0 : i32
    %c0_i32_1 = arith.constant 0 : i32
    return %c0_i32, %c0_i32_0 : i32, i32
  }
  func.func @transform_11(%arg0: i32) -> (i32, i32) {
    %c0_i32 = arith.constant 0 : i32
    %c0_i32_0 = arith.constant 0 : i32
    %c0_i32_1 = arith.constant 0 : i32
    return %c0_i32, %c0_i32_0 : i32, i32
  }
  func.func @transform_12(%arg0: i32) -> (i32, i32) {
    %c0_i32 = arith.constant 0 : i32
    %c0_i32_0 = arith.constant 0 : i32
    %c0_i32_1 = arith.constant 0 : i32
    return %c0_i32, %c0_i32_0 : i32, i32
  }
  func.func @transform_13(%arg0: i32) -> (i32, i32) {
    %c0_i32 = arith.constant 0 : i32
    %c0_i32_0 = arith.constant 0 : i32
    %c0_i32_1 = arith.constant 0 : i32
    return %c0_i32, %c0_i32_0 : i32, i32
  }
}

</mosaic_0001>

<llo_original>
// kernel: slot_gat_forward.1
$region0: #{slot_gat_forward.1}
  #allocation0 [shape = 'u32[]', space=smem, size = 0x4, offset = 0x4, fixed_abs, tag = 'smem constant byte address 0x4 - core index']
  #allocation1 [shape = 'u32[144,128]{1,0:T(1,128)}', space=vmem, size = 0x12000, scoped, tag = 'internal scratch']
  %s0 = inlined_call_operand.vmem [shape: f32[128,33], index: 0, kind: input, shape index: {}]
  %s1 = inlined_call_operand.vmem [shape: f32[33,48], index: 1, kind: input, shape index: {}]
  %s2 = inlined_call_operand.vmem [shape: f32[128,128], index: 2, kind: input, shape index: {}]
  %s3 = inlined_call_operand.vmem [shape: s32[128,128], index: 3, kind: input, shape index: {}]
  %s4 = inlined_call_operand.vmem [shape: f32[48,96], index: 4, kind: input, shape index: {}]
  %s5 = inlined_call_operand.vmem [shape: f32[96,96], index: 5, kind: input, shape index: {}]
  %s6 = inlined_call_operand.vmem [shape: f32[96,96], index: 6, kind: input, shape index: {}]
  %s7 = inlined_call_operand.vmem [shape: f32[3,96,128], index: 7, kind: input, shape index: {}]
  %s8 = inlined_call_operand.vmem [shape: f32[24], index: 8, kind: input, shape index: {}]
  %s9 = inlined_call_operand.vmem [shape: f32[64,256], index: 9, kind: input, shape index: {}]
  %s10 = inlined_call_operand.vmem [shape: f32[16,128], index: 10, kind: input, shape index: {}]
  %s11 = inlined_call_operand.vmem [shape: f32[16,128], index: 11, kind: input, shape index: {}]
  %s12 = inlined_call_operand.vmem [shape: f32[16,4], index: 12, kind: input, shape index: {}]
  %s13 = inlined_call_operand.vmem [shape: f32[16,1], index: 13, kind: output, shape index: {}]
  %s14 = sld [smem:[#allocation0]]
  $region66: #{slot_gat_forward.1} parent=0
    _
  %s16 = ssub.s32 1, %s14
  %s17 = scalar_select 0, %s16, %s14
  $region1: #{slot_gat_forward.1} parent=0
    #allocation2 [shape = 'u8[512]{0}', space=smem, size = 0x200, scoped, tag = 'input window, operand 8, single buffered']
    #allocation3 [shape = 's32[1]{0}', space=sflag, size = 0x4, scoped, tag = 'scoped memory for slot_gat_forward.1']
    %18 = vsyncpa [#allocation3], 0
    // Predicated region
    $region2: #{slot_gat_forward.1} parent=1 // pred_check
      _
    $region3: #{slot_gat_forward.1} parent=1 // pred_check_branch
      %20 = sbr.rel (0) target = $region5
    $region4: #{slot_gat_forward.1} parent=1 // pred_region
      _
    $region5: #{slot_gat_forward.1} parent=1 // pred_fallthru
      _
    // Predicated region
    $region6: #{slot_gat_forward.1} parent=1 // pred_check
      _
    $region7: #{slot_gat_forward.1} parent=1 // pred_check_branch
      %22 = sbr.rel (0) target = $region9
    $region8: #{slot_gat_forward.1} parent=1 // pred_region
      _
    $region9: #{slot_gat_forward.1} parent=1 // pred_fallthru
      _
    // Predicated region
    $region10: #{slot_gat_forward.1} parent=1 // pred_check
      _
    $region11: #{slot_gat_forward.1} parent=1 // pred_check_branch
      %24 = sbr.rel (0) target = $region13
    $region12: #{slot_gat_forward.1} parent=1 // pred_region
      _
    $region13: #{slot_gat_forward.1} parent=1 // pred_fallthru
      _
    // Predicated region
    $region14: #{slot_gat_forward.1} parent=1 // pred_check
      _
    $region15: #{slot_gat_forward.1} parent=1 // pred_check_branch
      %26 = sbr.rel (0) target = $region17
    $region16: #{slot_gat_forward.1} parent=1 // pred_region
      _
    $region17: #{slot_gat_forward.1} parent=1 // pred_fallthru
      _
    // Predicated region
    $region18: #{slot_gat_forward.1} parent=1 // pred_check
      _
    $region19: #{slot_gat_forward.1} parent=1 // pred_check_branch
      %28 = sbr.rel (0) target = $region21
    $region20: #{slot_gat_forward.1} parent=1 // pred_region
      _
    $region21: #{slot_gat_forward.1} parent=1 // pred_fallthru
      _
    // Predicated region
    $region22: #{slot_gat_forward.1} parent=1 // pred_check
      _
    $region23: #{slot_gat_forward.1} parent=1 // pred_check_branch
      %30 = sbr.rel (0) target = $region25
    $region24: #{slot_gat_forward.1} parent=1 // pred_region
      _
    $region25: #{slot_gat_forward.1} parent=1 // pred_fallthru
      _
    // Predicated region
    $region26: #{slot_gat_forward.1} parent=1 // pred_check
      _
    $region27: #{slot_gat_forward.1} parent=1 // pred_check_branch
      %32 = sbr.rel (0) target = $region29
    $region28: #{slot_gat_forward.1} parent=1 // pred_region
      _
    $region29: #{slot_gat_forward.1} parent=1 // pred_fallthru
      _
    // Predicated region
    $region30: #{slot_gat_forward.1} parent=1 // pred_check
      _
    $region31: #{slot_gat_forward.1} parent=1 // pred_check_branch
      %34 = sbr.rel (0) target = $region33
    $region32: #{slot_gat_forward.1} parent=1 // pred_region
      _
    $region33: #{slot_gat_forward.1} parent=1 // pred_fallthru
      _
    // Predicated region
    $region34: #{slot_gat_forward.1} parent=1 // pred_check
      _
    $region35: #{slot_gat_forward.1} parent=1 // pred_check_branch
      %36 = sbr.rel (0) target = $region37
    $region36: #{slot_gat_forward.1} parent=1 // pred_region
      %s38 = ssub.s32 16, 16
      %39 = vsyncadd [#allocation3], %s38
      %s41 = sshll.u32 %s8, 4
      %s42 = int_to_ptr.vmem [resolvable:$true] %s41
      %44 = dma.vmem_to_smem %s42, 16, [#allocation2], [#allocation3]
    $region37: #{slot_gat_forward.1} parent=1 // pred_fallthru
      _
    // Predicated region
    $region38: #{slot_gat_forward.1} parent=1 // pred_check
      _
    $region39: #{slot_gat_forward.1} parent=1 // pred_check_branch
      %46 = sbr.rel (0) target = $region41
    $region40: #{slot_gat_forward.1} parent=1 // pred_region
      _
    $region41: #{slot_gat_forward.1} parent=1 // pred_fallthru
      _
    // Predicated region
    $region42: #{slot_gat_forward.1} parent=1 // pred_check
      _
    $region43: #{slot_gat_forward.1} parent=1 // pred_check_branch
      %48 = sbr.rel (0) target = $region45
    $region44: #{slot_gat_forward.1} parent=1 // pred_region
      _
    $region45: #{slot_gat_forward.1} parent=1 // pred_fallthru
      _
    // Predicated region
    $region46: #{slot_gat_forward.1} parent=1 // pred_check
      _
    $region47: #{slot_gat_forward.1} parent=1 // pred_check_branch
      %50 = sbr.rel (0) target = $region49
    $region48: #{slot_gat_forward.1} parent=1 // pred_region
      _
    $region49: #{slot_gat_forward.1} parent=1 // pred_fallthru
      _
    // Predicated region
    $region50: #{slot_gat_forward.1} parent=1 // pred_check
      _
    $region51: #{slot_gat_forward.1} parent=1 // pred_check_branch
      %52 = sbr.rel (0) target = $region53
    $region52: #{slot_gat_forward.1} parent=1 // pred_region
      _
    $region53: #{slot_gat_forward.1} parent=1 // pred_fallthru
      _
    // Predicated region
    $region54: #{slot_gat_forward.1} parent=1 // pred_check
      _
    $region55: #{slot_gat_forward.1} parent=1 // pred_check_branch
      %54 = sbr.rel (0) target = $region57
    $region56: #{slot_gat_forward.1} parent=1 // pred_region
      %55 = dma.done [#allocation3], 16
    $region57: #{slot_gat_forward.1} parent=1 // pred_fallthru
      _
    %56 = sfence
    %v57 = vld [vmem:[%s2] sm:$0xff]
    %v58 = vld [vmem:[%s2 + $0x8] sm:$0xff]
    %v59 = vld [vmem:[%s2 + $0x10] sm:$0xff]
    %v60 = vld [vmem:[%s2 + $0x18] sm:$0xff]
    %v61 = vld [vmem:[%s2 + $0x20] sm:$0xff]
    %v62 = vld [vmem:[%s2 + $0x28] sm:$0xff]
    %v63 = vld [vmem:[%s2 + $0x30] sm:$0xff]
    %v64 = vld [vmem:[%s2 + $0x38] sm:$0xff]
    %v65 = vld [vmem:[%s2 + $0x40] sm:$0xff]
    %v66 = vld [vmem:[%s2 + $0x48] sm:$0xff]
    %v67 = vld [vmem:[%s2 + $0x50] sm:$0xff]
    %v68 = vld [vmem:[%s2 + $0x58] sm:$0xff]
    %v69 = vld [vmem:[%s2 + $0x60] sm:$0xff]
    %v70 = vld [vmem:[%s2 + $0x68] sm:$0xff]
    %v71 = vld [vmem:[%s2 + $0x70] sm:$0xff]
    %v72 = vld [vmem:[%s2 + $0x78] sm:$0xff]
    %v73 = vld [vmem:[%s3] sm:$0xff]
    %v74 = vld [vmem:[%s3 + $0x8] sm:$0xff]
    %v75 = vld [vmem:[%s3 + $0x10] sm:$0xff]
    %v76 = vld [vmem:[%s3 + $0x18] sm:$0xff]
    %v77 = vld [vmem:[%s3 + $0x20] sm:$0xff]
    %v78 = vld [vmem:[%s3 + $0x28] sm:$0xff]
    %v79 = vld [vmem:[%s3 + $0x30] sm:$0xff]
    %v80 = vld [vmem:[%s3 + $0x38] sm:$0xff]
    %v81 = vld [vmem:[%s3 + $0x40] sm:$0xff]
    %v82 = vld [vmem:[%s3 + $0x48] sm:$0xff]
    %v83 = vld [vmem:[%s3 + $0x50] sm:$0xff]
    %v84 = vld [vmem:[%s3 + $0x58] sm:$0xff]
    %v85 = vld [vmem:[%s3 + $0x60] sm:$0xff]
    %v86 = vld [vmem:[%s3 + $0x68] sm:$0xff]
    %v87 = vld [vmem:[%s3 + $0x70] sm:$0xff]
    %v88 = vld [vmem:[%s3 + $0x78] sm:$0xff]
    %vm89 = vcmp.gt.f32.partialorder %v57, 0.0
    %vm90 = vcmp.gt.f32.partialorder %v58, 0.0
    %vm91 = vcmp.gt.f32.partialorder %v59, 0.0
    %vm92 = vcmp.gt.f32.partialorder %v60, 0.0
    %vm93 = vcmp.gt.f32.partialorder %v61, 0.0
    %vm94 = vcmp.gt.f32.partialorder %v62, 0.0
    %vm95 = vcmp.gt.f32.partialorder %v63, 0.0
    %vm96 = vcmp.gt.f32.partialorder %v64, 0.0
    %vm97 = vcmp.gt.f32.partialorder %v65, 0.0
    %vm98 = vcmp.gt.f32.partialorder %v66, 0.0
    %vm99 = vcmp.gt.f32.partialorder %v67, 0.0
    %vm100 = vcmp.gt.f32.partialorder %v68, 0.0
    %vm101 = vcmp.gt.f32.partialorder %v69, 0.0
    %vm102 = vcmp.gt.f32.partialorder %v70, 0.0
    %vm103 = vcmp.gt.f32.partialorder %v71, 0.0
    %vm104 = vcmp.gt.f32.partialorder %v72, 0.0
    %vm105 = vcmp.eq.s32.totalorder %v73, 0
    %vm106 = vcmp.eq.s32.totalorder %v74, 0
    %vm107 = vcmp.eq.s32.totalorder %v75, 0
    %vm108 = vcmp.eq.s32.totalorder %v76, 0
    %vm109 = vcmp.eq.s32.totalorder %v77, 0
    %vm110 = vcmp.eq.s32.totalorder %v78, 0
    %vm111 = vcmp.eq.s32.totalorder %v79, 0
    %vm112 = vcmp.eq.s32.totalorder %v80, 0
    %vm113 = vcmp.eq.s32.totalorder %v81, 0
    %vm114 = vcmp.eq.s32.totalorder %v82, 0
    %vm115 = vcmp.eq.s32.totalorder %v83, 0
    %vm116 = vcmp.eq.s32.totalorder %v84, 0
    %vm117 = vcmp.eq.s32.totalorder %v85, 0
    %vm118 = vcmp.eq.s32.totalorder %v86, 0
    %vm119 = vcmp.eq.s32.totalorder %v87, 0
    %vm120 = vcmp.eq.s32.totalorder %v88, 0
    %v121 = vsel %vm105, 1, 0
    %v122 = vsel %vm106, 1, 0
    %v123 = vsel %vm107, 1, 0
    %v124 = vsel %vm108, 1, 0
    %v125 = vsel %vm109, 1, 0
    %v126 = vsel %vm110, 1, 0
    %v127 = vsel %vm111, 1, 0
    %v128 = vsel %vm112, 1, 0
    %v129 = vsel %vm113, 1, 0
    %v130 = vsel %vm114, 1, 0
    %v131 = vsel %vm115, 1, 0
    %v132 = vsel %vm116, 1, 0
    %v133 = vsel %vm117, 1, 0
    %v134 = vsel %vm118, 1, 0
    %v135 = vsel %vm119, 1, 0
    %v136 = vsel %vm120, 1, 0
    %v137 = vcvt.s32.f32 %v121
    %v138 = vcvt.s32.f32 %v122
    %v139 = vcvt.s32.f32 %v123
    %v140 = vcvt.s32.f32 %v124
    %v141 = vcvt.s32.f32 %v125
    %v142 = vcvt.s32.f32 %v126
    %v143 = vcvt.s32.f32 %v127
    %v144 = vcvt.s32.f32 %v128
    %v145 = vcvt.s32.f32 %v129
    %v146 = vcvt.s32.f32 %v130
    %v147 = vcvt.s32.f32 %v131
    %v148 = vcvt.s32.f32 %v132
    %v149 = vcvt.s32.f32 %v133
    %v150 = vcvt.s32.f32 %v134
    %v151 = vcvt.s32.f32 %v135
    %v152 = vcvt.s32.f32 %v136
    %vm153 = vcmp.eq.s32.totalorder %v73, 1
    %vm154 = vcmp.eq.s32.totalorder %v74, 1
    %vm155 = vcmp.eq.s32.totalorder %v75, 1
    %vm156 = vcmp.eq.s32.totalorder %v76, 1
    %vm157 = vcmp.eq.s32.totalorder %v77, 1
    %vm158 = vcmp.eq.s32.totalorder %v78, 1
    %vm159 = vcmp.eq.s32.totalorder %v79, 1
    %vm160 = vcmp.eq.s32.totalorder %v80, 1
    %vm161 = vcmp.eq.s32.totalorder %v81, 1
    %vm162 = vcmp.eq.s32.totalorder %v82, 1
    %vm163 = vcmp.eq.s32.totalorder %v83, 1
    %vm164 = vcmp.eq.s32.totalorder %v84, 1
    %vm165 = vcmp.eq.s32.totalorder %v85, 1
    %vm166 = vcmp.eq.s32.totalorder %v86, 1
    %vm167 = vcmp.eq.s32.totalorder %v87, 1
    %vm168 = vcmp.eq.s32.totalorder %v88, 1
    %v169 = vsel %vm153, 1, 0
    %v170 = vsel %vm154, 1, 0
    %v171 = vsel %vm155, 1, 0
    %v172 = vsel %vm156, 1, 0
    %v173 = vsel %vm157, 1, 0
    %v174 = vsel %vm158, 1, 0
    %v175 = vsel %vm159, 1, 0
    %v176 = vsel %vm160, 1, 0
    %v177 = vsel %vm161, 1, 0
    %v178 = vsel %vm162, 1, 0
    %v179 = vsel %vm163, 1, 0
    %v180 = vsel %vm164, 1, 0
    %v181 = vsel %vm165, 1, 0
    %v182 = vsel %vm166, 1, 0
    %v183 = vsel %vm167, 1, 0
    %v184 = vsel %vm168, 1, 0
    %v185 = vcvt.s32.f32 %v169
    %v186 = vcvt.s32.f32 %v170
    %v187 = vcvt.s32.f32 %v171
    %v188 = vcvt.s32.f32 %v172
    %v189 = vcvt.s32.f32 %v173
    %v190 = vcvt.s32.f32 %v174
    %v191 = vcvt.s32.f32 %v175
    %v192 = vcvt.s32.f32 %v176
    %v193 = vcvt.s32.f32 %v177
    %v194 = vcvt.s32.f32 %v178
    %v195 = vcvt.s32.f32 %v179
    %v196 = vcvt.s32.f32 %v180
    %v197 = vcvt.s32.f32 %v181
    %v198 = vcvt.s32.f32 %v182
    %v199 = vcvt.s32.f32 %v183
    %v200 = vcvt.s32.f32 %v184
    %vm201 = vcmp.eq.s32.totalorder %v73, 2
    %vm202 = vcmp.eq.s32.totalorder %v74, 2
    %vm203 = vcmp.eq.s32.totalorder %v75, 2
    %vm204 = vcmp.eq.s32.totalorder %v76, 2
    %vm205 = vcmp.eq.s32.totalorder %v77, 2
    %vm206 = vcmp.eq.s32.totalorder %v78, 2
    %vm207 = vcmp.eq.s32.totalorder %v79, 2
    %vm208 = vcmp.eq.s32.totalorder %v80, 2
    %vm209 = vcmp.eq.s32.totalorder %v81, 2
    %vm210 = vcmp.eq.s32.totalorder %v82, 2
    %vm211 = vcmp.eq.s32.totalorder %v83, 2
    %vm212 = vcmp.eq.s32.totalorder %v84, 2
    %vm213 = vcmp.eq.s32.totalorder %v85, 2
    %vm214 = vcmp.eq.s32.totalorder %v86, 2
    %vm215 = vcmp.eq.s32.totalorder %v87, 2
    %vm216 = vcmp.eq.s32.totalorder %v88, 2
    %v217 = vsel %vm201, 1, 0
    %v218 = vsel %vm202, 1, 0
    %v219 = vsel %vm203, 1, 0
    %v220 = vsel %vm204, 1, 0
    %v221 = vsel %vm205, 1, 0
    %v222 = vsel %vm206, 1, 0
    %v223 = vsel %vm207, 1, 0
    %v224 = vsel %vm208, 1, 0
    %v225 = vsel %vm209, 1, 0
    %v226 = vsel %vm210, 1, 0
    %v227 = vsel %vm211, 1, 0
    %v228 = vsel %vm212, 1, 0
    %v229 = vsel %vm213, 1, 0
    %v230 = vsel %vm214, 1, 0
    %v231 = vsel %vm215, 1, 0
    %v232 = vsel %vm216, 1, 0
    %v233 = vcvt.s32.f32 %v217
    %v234 = vcvt.s32.f32 %v218
    %v235 = vcvt.s32.f32 %v219
    %v236 = vcvt.s32.f32 %v220
    %v237 = vcvt.s32.f32 %v221
    %v238 = vcvt.s32.f32 %v222
    %v239 = vcvt.s32.f32 %v223
    %v240 = vcvt.s32.f32 %v224
    %v241 = vcvt.s32.f32 %v225
    %v242 = vcvt.s32.f32 %v226
    %v243 = vcvt.s32.f32 %v227
    %v244 = vcvt.s32.f32 %v228
    %v245 = vcvt.s32.f32 %v229
    %v246 = vcvt.s32.f32 %v230
    %v247 = vcvt.s32.f32 %v231
    %v248 = vcvt.s32.f32 %v232
    %vm249 = vcmp.eq.s32.totalorder %v73, 3
    %vm250 = vcmp.eq.s32.totalorder %v74, 3
    %vm251 = vcmp.eq.s32.totalorder %v75, 3
    %vm252 = vcmp.eq.s32.totalorder %v76, 3
    %vm253 = vcmp.eq.s32.totalorder %v77, 3
    %vm254 = vcmp.eq.s32.totalorder %v78, 3
    %vm255 = vcmp.eq.s32.totalorder %v79, 3
    %vm256 = vcmp.eq.s32.totalorder %v80, 3
    %vm257 = vcmp.eq.s32.totalorder %v81, 3
    %vm258 = vcmp.eq.s32.totalorder %v82, 3
    %vm259 = vcmp.eq.s32.totalorder %v83, 3
    %vm260 = vcmp.eq.s32.totalorder %v84, 3
    %vm261 = vcmp.eq.s32.totalorder %v85, 3
    %vm262 = vcmp.eq.s32.totalorder %v86, 3
    %vm263 = vcmp.eq.s32.totalorder %v87, 3
    %vm264 = vcmp.eq.s32.totalorder %v88, 3
    %v265 = vsel %vm249, 1, 0
    %v266 = vsel %vm250, 1, 0
    %v267 = vsel %vm251, 1, 0
    %v268 = vsel %vm252, 1, 0
    %v269 = vsel %vm253, 1, 0
    %v270 = vsel %vm254, 1, 0
    %v271 = vsel %vm255, 1, 0
    %v272 = vsel %vm256, 1, 0
    %v273 = vsel %vm257, 1, 0
    %v274 = vsel %vm258, 1, 0
    %v275 = vsel %vm259, 1, 0
    %v276 = vsel %vm260, 1, 0
    %v277 = vsel %vm261, 1, 0
    %v278 = vsel %vm262, 1, 0
    %v279 = vsel %vm263, 1, 0
    %v280 = vsel %vm264, 1, 0
    %v281 = vcvt.s32.f32 %v265
    %v282 = vcvt.s32.f32 %v266
    %v283 = vcvt.s32.f32 %v267
    %v284 = vcvt.s32.f32 %v268
    %v285 = vcvt.s32.f32 %v269
    %v286 = vcvt.s32.f32 %v270
    %v287 = vcvt.s32.f32 %v271
    %v288 = vcvt.s32.f32 %v272
    %v289 = vcvt.s32.f32 %v273
    %v290 = vcvt.s32.f32 %v274
    %v291 = vcvt.s32.f32 %v275
    %v292 = vcvt.s32.f32 %v276
    %v293 = vcvt.s32.f32 %v277
    %v294 = vcvt.s32.f32 %v278
    %v295 = vcvt.s32.f32 %v279
    %v296 = vcvt.s32.f32 %v280
    %v297 = vld [vmem:[%s0] sm:$0xff]
    %v298 = vld [vmem:[%s0 + $0x8] sm:$0xff]
    %v299 = vld [vmem:[%s0 + $0x10] sm:$0xff]
    %v300 = vld [vmem:[%s0 + $0x18] sm:$0xff]
    %v301 = vld [vmem:[%s0 + $0x20] sm:$0xff]
    %v302 = vld [vmem:[%s0 + $0x28] sm:$0xff]
    %v303 = vld [vmem:[%s0 + $0x30] sm:$0xff]
    %v304 = vld [vmem:[%s0 + $0x38] sm:$0xff]
    %v305 = vld [vmem:[%s0 + $0x40] sm:$0xff]
    %v306 = vld [vmem:[%s0 + $0x48] sm:$0xff]
    %v307 = vld [vmem:[%s0 + $0x50] sm:$0xff]
    %v308 = vld [vmem:[%s0 + $0x58] sm:$0xff]
    %v309 = vld [vmem:[%s0 + $0x60] sm:$0xff]
    %v310 = vld [vmem:[%s0 + $0x68] sm:$0xff]
    %v311 = vld [vmem:[%s0 + $0x70] sm:$0xff]
    %v312 = vld [vmem:[%s0 + $0x78] sm:$0xff]
    %v313 = vld [vmem:[%s1] sm:$0xff]
    %v314 = vld [vmem:[%s1 + $0x8] sm:$0xff]
    %v315 = vld [vmem:[%s1 + $0x10] sm:$0xff]
    %v316 = vld [vmem:[%s1 + $0x18] sm:$0xff]
    %v317 = vld [vmem:[%s1 + $0x20] sm:$0x1]
    %vm318 = vcmask 269312
    %v320 = vsel %vm318, %v297, 0
    %v323 = vsel %vm318, %v298, 0
    %v326 = vsel %vm318, %v299, 0
    %v329 = vsel %vm318, %v300, 0
    %v332 = vsel %vm318, %v301, 0
    %v335 = vsel %vm318, %v302, 0
    %v338 = vsel %vm318, %v303, 0
    %v341 = vsel %vm318, %v304, 0
    %v344 = vsel %vm318, %v305, 0
    %v347 = vsel %vm318, %v306, 0
    %v350 = vsel %vm318, %v307, 0
    %v353 = vsel %vm318, %v308, 0
    %v356 = vsel %vm318, %v309, 0
    %v359 = vsel %vm318, %v310, 0
    %v362 = vsel %vm318, %v311, 0
    %v365 = vsel %vm318, %v312, 0
    %vm367 = vcmask 1040384
    %v369 = vsel %vm367, %v317, 0
    %371 = vmatprep.subr.mxu0 0.0
    %372 = vmatpush1.msra.mxu0 %v313
    %373 = vmatprep.subr.mxu0 0.0
    %374 = vmatpush1.msra.mxu0 %v314
    %375 = vmatprep.subr.mxu0 0.0
    %376 = vmatpush1.msra.mxu0 %v315
    %377 = vmatprep.subr.mxu0 0.0
    %378 = vmatpush1.msra.mxu0 %v316
    %379 = vmatprep.subr.mxu0 0.0
    %380 = vmatpush1.msra.mxu0 %v369
    %381 = vmatprep.subr.mxu0 0.0
    %382 = vmatpush1.msra.mxu0 0.0
    %383 = vmatprep.subr.mxu0 0.0
    %384 = vmatpush1.msra.mxu0 0.0
    %385 = vmatprep.subr.mxu0 0.0
    %386 = vmatpush1.msra.mxu0 0.0
    %387 = vmatprep.subr.mxu0 0.0
    %388 = vmatpush1.msra.mxu0 0.0
    %389 = vmatprep.subr.mxu0 0.0
    %390 = vmatpush1.msra.mxu0 0.0
    %391 = vmatprep.subr.mxu0 0.0
    %392 = vmatpush1.msra.mxu0 0.0
    %393 = vmatprep.subr.mxu0 0.0
    %394 = vmatpush1.msra.mxu0 0.0
    %395 = vmatprep.subr.mxu0 0.0
    %396 = vmatpush1.msra.mxu0 0.0
    %397 = vmatprep.subr.mxu0 0.0
    %398 = vmatpush1.msra.mxu0 0.0
    %399 = vmatprep.subr.mxu0 0.0
    %400 = vmatpush1.msra.mxu0 0.0
    %401 = vmatprep.subr.mxu0 0.0
    %402 = vmatpush1.msra.mxu0 0.0
    %403 = vmatprep.subr.mxu0 0.0
    %404 = vmatpush1.msra.mxu0 0.0
    %405 = vmatprep.subr.mxu0 0.0
    %406 = vmatpush1.msra.mxu0 0.0
    %407 = vmatprep.subr.mxu0 0.0
    %408 = vmatpush1.msra.mxu0 0.0
    %409 = vmatprep.subr.mxu0 0.0
    %410 = vmatpush1.msra.mxu0 0.0
    %411 = vmatprep.subr.mxu0 0.0
    %412 = vmatpush1.msra.mxu0 0.0
    %413 = vmatprep.subr.mxu0 0.0
    %414 = vmatpush1.msra.mxu0 0.0
    %415 = vmatprep.subr.mxu0 0.0
    %416 = vmatpush1.msra.mxu0 0.0
    %417 = vmatprep.subr.mxu0 0.0
    %418 = vmatpush1.msra.mxu0 0.0
    %419 = vmatprep.subr.mxu0 0.0
    %420 = vmatpush1.msra.mxu0 0.0
    %421 = vmatprep.subr.mxu0 0.0
    %422 = vmatpush1.msra.mxu0 0.0
    %423 = vmatprep.subr.mxu0 0.0
    %424 = vmatpush1.msra.mxu0 0.0
    %425 = vmatprep.subr.mxu0 0.0
    %426 = vmatpush1.msra.mxu0 0.0
    %427 = vmatprep.subr.mxu0 0.0
    %428 = vmatpush1.msra.mxu0 0.0
    %429 = vmatprep.subr.mxu0 0.0
    %430 = vmatpush1.msra.mxu0 0.0
    %431 = vmatprep.subr.mxu0 0.0
    %432 = vmatpush1.msra.mxu0 0.0
    %433 = vmatprep.subr.mxu0 0.0
    %434 = vmatpush1.msra.mxu0 0.0
    %435 = vmatprep.mubr.f32.mxu0 0.0
    %436 = vmatmul.mubr.f32.gmra.mrb[0].mxu0 %v320
    %v437 = vpop.f32.mrb[0].mxu0
    %v438 = vadd.f32 0.0, %v437
    %v439 = vpop.f32.mrb[0].mxu0
    %440 = vmatprep.mubr.f32.mxu0 0.0
    %441 = vmatmul.mubr.f32.gmra.mrb[0].mxu0 %v323
    %v442 = vpop.f32.mrb[0].mxu0
    %v443 = vadd.f32 0.0, %v442
    %v444 = vpop.f32.mrb[0].mxu0
    %445 = vmatprep.mubr.f32.mxu0 0.0
    %446 = vmatmul.mubr.f32.gmra.mrb[0].mxu0 %v326
    %v447 = vpop.f32.mrb[0].mxu0
    %v448 = vadd.f32 0.0, %v447
    %v449 = vpop.f32.mrb[0].mxu0
    %450 = vmatprep.mubr.f32.mxu0 0.0
    %451 = vmatmul.mubr.f32.gmra.mrb[0].mxu0 %v329
    %v452 = vpop.f32.mrb[0].mxu0
    %v453 = vadd.f32 0.0, %v452
    %v454 = vpop.f32.mrb[0].mxu0
    %455 = vmatprep.mubr.f32.mxu0 0.0
    %456 = vmatmul.mubr.f32.gmra.mrb[0].mxu0 %v332
    %v457 = vpop.f32.mrb[0].mxu0
    %v458 = vadd.f32 0.0, %v457
    %v459 = vpop.f32.mrb[0].mxu0
    %460 = vmatprep.mubr.f32.mxu0 0.0
    %461 = vmatmul.mubr.f32.gmra.mrb[0].mxu0 %v335
    %v462 = vpop.f32.mrb[0].mxu0
    %v463 = vadd.f32 0.0, %v462
    %v464 = vpop.f32.mrb[0].mxu0
    %465 = vmatprep.mubr.f32.mxu0 0.0
    %466 = vmatmul.mubr.f32.gmra.mrb[0].mxu0 %v338
    %v467 = vpop.f32.mrb[0].mxu0
    %v468 = vadd.f32 0.0, %v467
    %v469 = vpop.f32.mrb[0].mxu0
    %470 = vmatprep.mubr.f32.mxu0 0.0
    %471 = vmatmul.mubr.f32.gmra.mrb[0].mxu0 %v341
    %v472 = vpop.f32.mrb[0].mxu0
    %v473 = vadd.f32 0.0, %v472
    %v474 = vpop.f32.mrb[0].mxu0
    %475 = vmatprep.mubr.f32.mxu0 0.0
    %476 = vmatmul.mubr.f32.gmra.mrb[0].mxu0 %v344
    %v477 = vpop.f32.mrb[0].mxu0
    %v478 = vadd.f32 0.0, %v477
    %v479 = vpop.f32.mrb[0].mxu0
    %480 = vmatprep.mubr.f32.mxu0 0.0
    %481 = vmatmul.mubr.f32.gmra.mrb[0].mxu0 %v347
    %v482 = vpop.f32.mrb[0].mxu0
    %v483 = vadd.f32 0.0, %v482
    %v484 = vpop.f32.mrb[0].mxu0
    %485 = vmatprep.mubr.f32.mxu0 0.0
    %486 = vmatmul.mubr.f32.gmra.mrb[0].mxu0 %v350
    %v487 = vpop.f32.mrb[0].mxu0
    %v488 = vadd.f32 0.0, %v487
    %v489 = vpop.f32.mrb[0].mxu0
    %490 = vmatprep.mubr.f32.mxu0 0.0
    %491 = vmatmul.mubr.f32.gmra.mrb[0].mxu0 %v353
    %v492 = vpop.f32.mrb[0].mxu0
    %v493 = vadd.f32 0.0, %v492
    %v494 = vpop.f32.mrb[0].mxu0
    %495 = vmatprep.mubr.f32.mxu0 0.0
    %496 = vmatmul.mubr.f32.gmra.mrb[0].mxu0 %v356
    %v497 = vpop.f32.mrb[0].mxu0
    %v498 = vadd.f32 0.0, %v497
    %v499 = vpop.f32.mrb[0].mxu0
    %500 = vmatprep.mubr.f32.mxu0 0.0
    %501 = vmatmul.mubr.f32.gmra.mrb[0].mxu0 %v359
    %v502 = vpop.f32.mrb[0].mxu0
    %v503 = vadd.f32 0.0, %v502
    %v504 = vpop.f32.mrb[0].mxu0
    %505 = vmatprep.mubr.f32.mxu0 0.0
    %506 = vmatmul.mubr.f32.gmra.mrb[0].mxu0 %v362
    %v507 = vpop.f32.mrb[0].mxu0
    %v508 = vadd.f32 0.0, %v507
    %v509 = vpop.f32.mrb[0].mxu0
    %510 = vmatprep.mubr.f32.mxu0 0.0
    %511 = vmatmul.mubr.f32.gmra.mrb[0].mxu0 %v365
    %v512 = vpop.f32.mrb[0].mxu0
    %v513 = vadd.f32 0.0, %v512
    %v514 = vpop.f32.mrb[0].mxu0
    %515 = vdwg.mxu0
    %v516 = vmul.f32 %v438, %v438
    %v517 = vmul.f32 %v443, %v443
    %v518 = vmul.f32 %v448, %v448
    %v519 = vmul.f32 %v453, %v453
    %v520 = vmul.f32 %v458, %v458
    %v521 = vmul.f32 %v463, %v463
    %v522 = vmul.f32 %v468, %v468
    %v523 = vmul.f32 %v473, %v473
    %v524 = vmul.f32 %v478, %v478
    %v525 = vmul.f32 %v483, %v483
    %v526 = vmul.f32 %v488, %v488
    %v527 = vmul.f32 %v493, %v493
    %v528 = vmul.f32 %v498, %v498
    %v529 = vmul.f32 %v503, %v503
    %v530 = vmul.f32 %v508, %v508
    %v531 = vmul.f32 %v513, %v513
    %vm532 = vcmask 392192
    %v533 = vsel %vm532, %v516, 0.0
    %534 = vadd.xlane.f32.xlu0 %v533
    %v535 = vpop.xlane.xlu0 %534
    %v536 = vsel %vm532, %v517, 0.0
    %537 = vadd.xlane.f32.xlu0 %v536
    %v538 = vpop.xlane.xlu0 %537
    %v539 = vsel %vm532, %v518, 0.0
    %540 = vadd.xlane.f32.xlu0 %v539
    %v541 = vpop.xlane.xlu0 %540
    %v542 = vsel %vm532, %v519, 0.0
    %543 = vadd.xlane.f32.xlu0 %v542
    %v544 = vpop.xlane.xlu0 %543
    %v545 = vsel %vm532, %v520, 0.0
    %546 = vadd.xlane.f32.xlu0 %v545
    %v547 = vpop.xlane.xlu0 %546
    %v548 = vsel %vm532, %v521, 0.0
    %549 = vadd.xlane.f32.xlu0 %v548
    %v550 = vpop.xlane.xlu0 %549
    %v551 = vsel %vm532, %v522, 0.0
    %552 = vadd.xlane.f32.xlu0 %v551
    %v553 = vpop.xlane.xlu0 %552
    %v554 = vsel %vm532, %v523, 0.0
    %555 = vadd.xlane.f32.xlu0 %v554
    %v556 = vpop.xlane.xlu0 %555
    %v557 = vsel %vm532, %v524, 0.0
    %558 = vadd.xlane.f32.xlu0 %v557
    %v559 = vpop.xlane.xlu0 %558
    %v560 = vsel %vm532, %v525, 0.0
    %561 = vadd.xlane.f32.xlu0 %v560
    %v562 = vpop.xlane.xlu0 %561
    %v563 = vsel %vm532, %v526, 0.0
    %564 = vadd.xlane.f32.xlu0 %v563
    %v565 = vpop.xlane.xlu0 %564
    %v566 = vsel %vm532, %v527, 0.0
    %567 = vadd.xlane.f32.xlu0 %v566
    %v568 = vpop.xlane.xlu0 %567
    %v569 = vsel %vm532, %v528, 0.0
    %570 = vadd.xlane.f32.xlu0 %v569
    %v571 = vpop.xlane.xlu0 %570
    %v572 = vsel %vm532, %v529, 0.0
    %573 = vadd.xlane.f32.xlu0 %v572
    %v574 = vpop.xlane.xlu0 %573
    %v575 = vsel %vm532, %v530, 0.0
    %576 = vadd.xlane.f32.xlu0 %v575
    %v577 = vpop.xlane.xlu0 %576
    %v578 = vsel %vm532, %v531, 0.0
    %579 = vadd.xlane.f32.xlu0 %v578
    %v580 = vpop.xlane.xlu0 %579
    %v581 = vmax.f32 %v535, 1e-24
    %v582 = vmax.f32 %v538, 1e-24
    %v583 = vmax.f32 %v541, 1e-24
    %v584 = vmax.f32 %v544, 1e-24
    %v585 = vmax.f32 %v547, 1e-24
    %v586 = vmax.f32 %v550, 1e-24
    %v587 = vmax.f32 %v553, 1e-24
    %v588 = vmax.f32 %v556, 1e-24
    %v589 = vmax.f32 %v559, 1e-24
    %v590 = vmax.f32 %v562, 1e-24
    %v591 = vmax.f32 %v565, 1e-24
    %v592 = vmax.f32 %v568, 1e-24
    %v593 = vmax.f32 %v571, 1e-24
    %v594 = vmax.f32 %v574, 1e-24
    %v595 = vmax.f32 %v577, 1e-24
    %v596 = vmax.f32 %v580, 1e-24
    %v597 = vrsqrt.pop %v581
    %v598 = vrsqrt.pop %v582
    %v599 = vrsqrt.pop %v583
    %v600 = vrsqrt.pop %v584
    %v601 = vrsqrt.pop %v585
    %v602 = vrsqrt.pop %v586
    %v603 = vrsqrt.pop %v587
    %v604 = vrsqrt.pop %v588
    %v605 = vrsqrt.pop %v589
    %v606 = vrsqrt.pop %v590
    %v607 = vrsqrt.pop %v591
    %v608 = vrsqrt.pop %v592
    %v609 = vrsqrt.pop %v593
    %v610 = vrsqrt.pop %v594
    %v611 = vrsqrt.pop %v595
    %v612 = vrsqrt.pop %v596
    %v613 = vmul.f32 %v438, %v597
    %v614 = vmul.f32 %v443, %v598
    %v615 = vmul.f32 %v448, %v599
    %v616 = vmul.f32 %v453, %v600
    %v617 = vmul.f32 %v458, %v601
    %v618 = vmul.f32 %v463, %v602
    %v619 = vmul.f32 %v468, %v603
    %v620 = vmul.f32 %v473, %v604
    %v621 = vmul.f32 %v478, %v605
    %v622 = vmul.f32 %v483, %v606
    %v623 = vmul.f32 %v488, %v607
    %v624 = vmul.f32 %v493, %v608
    %v625 = vmul.f32 %v498, %v609
    %v626 = vmul.f32 %v503, %v610
    %v627 = vmul.f32 %v508, %v611
    %v628 = vmul.f32 %v513, %v612
    %645 = vrot.lane.b32.xlu0 %v613, 112
    %v646 = vpop.permute.xlu0 %645
    %647 = vrot.lane.b32.xlu0 %v614, 112
    %v648 = vpop.permute.xlu0 %647
    %649 = vrot.lane.b32.xlu0 %v615, 112
    %v650 = vpop.permute.xlu0 %649
    %651 = vrot.lane.b32.xlu0 %v616, 112
    %v652 = vpop.permute.xlu0 %651
    %653 = vrot.lane.b32.xlu0 %v617, 112
    %v654 = vpop.permute.xlu0 %653
    %655 = vrot.lane.b32.xlu0 %v618, 112
    %v656 = vpop.permute.xlu0 %655
    %657 = vrot.lane.b32.xlu0 %v619, 112
    %v658 = vpop.permute.xlu0 %657
    %659 = vrot.lane.b32.xlu0 %v620, 112
    %v660 = vpop.permute.xlu0 %659
    %661 = vrot.lane.b32.xlu0 %v621, 112
    %v662 = vpop.permute.xlu0 %661
    %663 = vrot.lane.b32.xlu0 %v622, 112
    %v664 = vpop.permute.xlu0 %663
    %665 = vrot.lane.b32.xlu0 %v623, 112
    %v666 = vpop.permute.xlu0 %665
    %667 = vrot.lane.b32.xlu0 %v624, 112
    %v668 = vpop.permute.xlu0 %667
    %669 = vrot.lane.b32.xlu0 %v625, 112
    %v670 = vpop.permute.xlu0 %669
    %671 = vrot.lane.b32.xlu0 %v626, 112
    %v672 = vpop.permute.xlu0 %671
    %673 = vrot.lane.b32.xlu0 %v627, 112
    %v674 = vpop.permute.xlu0 %673
    %675 = vrot.lane.b32.xlu0 %v628, 112
    %v676 = vpop.permute.xlu0 %675
    %v693 = vadd.f32 %v613, %v646
    %v694 = vadd.f32 %v614, %v648
    %v695 = vadd.f32 %v615, %v650
    %v696 = vadd.f32 %v616, %v652
    %v697 = vadd.f32 %v617, %v654
    %v698 = vadd.f32 %v618, %v656
    %v699 = vadd.f32 %v619, %v658
    %v700 = vadd.f32 %v620, %v660
    %v701 = vadd.f32 %v621, %v662
    %v702 = vadd.f32 %v622, %v664
    %v703 = vadd.f32 %v623, %v666
    %v704 = vadd.f32 %v624, %v668
    %v705 = vadd.f32 %v625, %v670
    %v706 = vadd.f32 %v626, %v672
    %v707 = vadd.f32 %v627, %v674
    %v708 = vadd.f32 %v628, %v676
    %709 = vrot.lane.b32.xlu0 %v613, 96
    %v710 = vpop.permute.xlu0 %709
    %711 = vrot.lane.b32.xlu0 %v614, 96
    %v712 = vpop.permute.xlu0 %711
    %713 = vrot.lane.b32.xlu0 %v615, 96
    %v714 = vpop.permute.xlu0 %713
    %715 = vrot.lane.b32.xlu0 %v616, 96
    %v716 = vpop.permute.xlu0 %715
    %717 = vrot.lane.b32.xlu0 %v617, 96
    %v718 = vpop.permute.xlu0 %717
    %719 = vrot.lane.b32.xlu0 %v618, 96
    %v720 = vpop.permute.xlu0 %719
    %721 = vrot.lane.b32.xlu0 %v619, 96
    %v722 = vpop.permute.xlu0 %721
    %723 = vrot.lane.b32.xlu0 %v620, 96
    %v724 = vpop.permute.xlu0 %723
    %725 = vrot.lane.b32.xlu0 %v621, 96
    %v726 = vpop.permute.xlu0 %725
    %727 = vrot.lane.b32.xlu0 %v622, 96
    %v728 = vpop.permute.xlu0 %727
    %729 = vrot.lane.b32.xlu0 %v623, 96
    %v730 = vpop.permute.xlu0 %729
    %731 = vrot.lane.b32.xlu0 %v624, 96
    %v732 = vpop.permute.xlu0 %731
    %733 = vrot.lane.b32.xlu0 %v625, 96
    %v734 = vpop.permute.xlu0 %733
    %735 = vrot.lane.b32.xlu0 %v626, 96
    %v736 = vpop.permute.xlu0 %735
    %737 = vrot.lane.b32.xlu0 %v627, 96
    %v738 = vpop.permute.xlu0 %737
    %739 = vrot.lane.b32.xlu0 %v628, 96
    %v740 = vpop.permute.xlu0 %739
    %v757 = vadd.f32 %v693, %v710
    %v758 = vadd.f32 %v694, %v712
    %v759 = vadd.f32 %v695, %v714
    %v760 = vadd.f32 %v696, %v716
    %v761 = vadd.f32 %v697, %v718
    %v762 = vadd.f32 %v698, %v720
    %v763 = vadd.f32 %v699, %v722
    %v764 = vadd.f32 %v700, %v724
    %v765 = vadd.f32 %v701, %v726
    %v766 = vadd.f32 %v702, %v728
    %v767 = vadd.f32 %v703, %v730
    %v768 = vadd.f32 %v704, %v732
    %v769 = vadd.f32 %v705, %v734
    %v770 = vadd.f32 %v706, %v736
    %v771 = vadd.f32 %v707, %v738
    %v772 = vadd.f32 %v708, %v740
    %v773 = vmul.f32 %v757, 0.33333334
    %v774 = vmul.f32 %v758, 0.33333334
    %v775 = vmul.f32 %v759, 0.33333334
    %v776 = vmul.f32 %v760, 0.33333334
    %v777 = vmul.f32 %v761, 0.33333334
    %v778 = vmul.f32 %v762, 0.33333334
    %v779 = vmul.f32 %v763, 0.33333334
    %v780 = vmul.f32 %v764, 0.33333334
    %v781 = vmul.f32 %v765, 0.33333334
    %v782 = vmul.f32 %v766, 0.33333334
    %v783 = vmul.f32 %v767, 0.33333334
    %v784 = vmul.f32 %v768, 0.33333334
    %v785 = vmul.f32 %v769, 0.33333334
    %v786 = vmul.f32 %v770, 0.33333334
    %v787 = vmul.f32 %v771, 0.33333334
    %v788 = vmul.f32 %v772, 0.33333334
    %v789 = vld [vmem:[%s4] sm:$0xff]
    %v790 = vld [vmem:[%s4 + $0x8] sm:$0xff]
    %v791 = vld [vmem:[%s4 + $0x10] sm:$0xff]
    %v792 = vld [vmem:[%s4 + $0x18] sm:$0xff]
    %v793 = vld [vmem:[%s4 + $0x20] sm:$0xff]
    %v794 = vld [vmem:[%s4 + $0x28] sm:$0xff]
    %v796 = vsel %vm532, %v438, 0
    %v799 = vsel %vm532, %v443, 0
    %v802 = vsel %vm532, %v448, 0
    %v805 = vsel %vm532, %v453, 0
    %v808 = vsel %vm532, %v458, 0
    %v811 = vsel %vm532, %v463, 0
    %v814 = vsel %vm532, %v468, 0
    %v817 = vsel %vm532, %v473, 0
    %v820 = vsel %vm532, %v478, 0
    %v823 = vsel %vm532, %v483, 0
    %v826 = vsel %vm532, %v488, 0
    %v829 = vsel %vm532, %v493, 0
    %v832 = vsel %vm532, %v498, 0
    %v835 = vsel %vm532, %v503, 0
    %v838 = vsel %vm532, %v508, 0
    %v841 = vsel %vm532, %v513, 0
    %843 = vmatprep.subr.mxu0 0.0
    %844 = vmatpush1.msra.mxu0 %v789
    %845 = vmatprep.subr.mxu0 0.0
    %846 = vmatpush1.msra.mxu0 %v790
    %847 = vmatprep.subr.mxu0 0.0
    %848 = vmatpush1.msra.mxu0 %v791
    %849 = vmatprep.subr.mxu0 0.0
    %850 = vmatpush1.msra.mxu0 %v792
    %851 = vmatprep.subr.mxu0 0.0
    %852 = vmatpush1.msra.mxu0 %v793
    %853 = vmatprep.subr.mxu0 0.0
    %854 = vmatpush1.msra.mxu0 %v794
    %855 = vmatprep.subr.mxu0 0.0
    %856 = vmatpush1.msra.mxu0 0.0
    %857 = vmatprep.subr.mxu0 0.0
    %858 = vmatpush1.msra.mxu0 0.0
    %859 = vmatprep.subr.mxu0 0.0
    %860 = vmatpush1.msra.mxu0 0.0
    %861 = vmatprep.subr.mxu0 0.0
    %862 = vmatpush1.msra.mxu0 0.0
    %863 = vmatprep.subr.mxu0 0.0
    %864 = vmatpush1.msra.mxu0 0.0
    %865 = vmatprep.subr.mxu0 0.0
    %866 = vmatpush1.msra.mxu0 0.0
    %867 = vmatprep.subr.mxu0 0.0
    %868 = vmatpush1.msra.mxu0 0.0
    %869 = vmatprep.subr.mxu0 0.0
    %870 = vmatpush1.msra.mxu0 0.0
    %871 = vmatprep.subr.mxu0 0.0
    %872 = vmatpush1.msra.mxu0 0.0
    %873 = vmatprep.subr.mxu0 0.0
    %874 = vmatpush1.msra.mxu0 0.0
    %875 = vmatprep.subr.mxu0 0.0
    %876 = vmatpush1.msra.mxu0 0.0
    %877 = vmatprep.subr.mxu0 0.0
    %878 = vmatpush1.msra.mxu0 0.0
    %879 = vmatprep.subr.mxu0 0.0
    %880 = vmatpush1.msra.mxu0 0.0
    %881 = vmatprep.subr.mxu0 0.0
    %882 = vmatpush1.msra.mxu0 0.0
    %883 = vmatprep.subr.mxu0 0.0
    %884 = vmatpush1.msra.mxu0 0.0
    %885 = vmatprep.subr.mxu0 0.0
    %886 = vmatpush1.msra.mxu0 0.0
    %887 = vmatprep.subr.mxu0 0.0
    %888 = vmatpush1.msra.mxu0 0.0
    %889 = vmatprep.subr.mxu0 0.0
    %890 = vmatpush1.msra.mxu0 0.0
    %891 = vmatprep.subr.mxu0 0.0
    %892 = vmatpush1.msra.mxu0 0.0
    %893 = vmatprep.subr.mxu0 0.0
    %894 = vmatpush1.msra.mxu0 0.0
    %895 = vmatprep.subr.mxu0 0.0
    %896 = vmatpush1.msra.mxu0 0.0
    %897 = vmatprep.subr.mxu0 0.0
    %898 = vmatpush1.msra.mxu0 0.0
    %899 = vmatprep.subr.mxu0 0.0
    %900 = vmatpush1.msra.mxu0 0.0
    %901 = vmatprep.subr.mxu0 0.0
    %902 = vmatpush1.msra.mxu0 0.0
    %903 = vmatprep.subr.mxu0 0.0
    %904 = vmatpush1.msra.mxu0 0.0
    %905 = vmatprep.subr.mxu0 0.0
    %906 = vmatpush1.msra.mxu0 0.0
    %907 = vmatprep.mubr.f32.mxu0 0.0
    %908 = vmatmul.mubr.f32.gmra.mrb[0].mxu0 %v796
    %v909 = vpop.f32.mrb[0].mxu0
    %v910 = vadd.f32 0.0, %v909
    %v911 = vpop.f32.mrb[0].mxu0
    %912 = vmatprep.mubr.f32.mxu0 0.0
    %913 = vmatmul.mubr.f32.gmra.mrb[0].mxu0 %v799
    %v914 = vpop.f32.mrb[0].mxu0
    %v915 = vadd.f32 0.0, %v914
    %v916 = vpop.f32.mrb[0].mxu0
    %917 = vmatprep.mubr.f32.mxu0 0.0
    %918 = vmatmul.mubr.f32.gmra.mrb[0].mxu0 %v802
    %v919 = vpop.f32.mrb[0].mxu0
    %v920 = vadd.f32 0.0, %v919
    %v921 = vpop.f32.mrb[0].mxu0
    %922 = vmatprep.mubr.f32.mxu0 0.0
    %923 = vmatmul.mubr.f32.gmra.mrb[0].mxu0 %v805
    %v924 = vpop.f32.mrb[0].mxu0
    %v925 = vadd.f32 0.0, %v924
    %v926 = vpop.f32.mrb[0].mxu0
    %927 = vmatprep.mubr.f32.mxu0 0.0
    %928 = vmatmul.mubr.f32.gmra.mrb[0].mxu0 %v808
    %v929 = vpop.f32.mrb[0].mxu0
    %v930 = vadd.f32 0.0, %v929
    %v931 = vpop.f32.mrb[0].mxu0
    %932 = vmatprep.mubr.f32.mxu0 0.0
    %933 = vmatmul.mubr.f32.gmra.mrb[0].mxu0 %v811
    %v934 = vpop.f32.mrb[0].mxu0
    %v935 = vadd.f32 0.0, %v934
    %v936 = vpop.f32.mrb[0].mxu0
    %937 = vmatprep.mubr.f32.mxu0 0.0
    %938 = vmatmul.mubr.f32.gmra.mrb[0].mxu0 %v814
    %v939 = vpop.f32.mrb[0].mxu0
    %v940 = vadd.f32 0.0, %v939
    %v941 = vpop.f32.mrb[0].mxu0
    %942 = vmatprep.mubr.f32.mxu0 0.0
    %943 = vmatmul.mubr.f32.gmra.mrb[0].mxu0 %v817
    %v944 = vpop.f32.mrb[0].mxu0
    %v945 = vadd.f32 0.0, %v944
    %v946 = vpop.f32.mrb[0].mxu0
    %947 = vmatprep.mubr.f32.mxu0 0.0
    %948 = vmatmul.mubr.f32.gmra.mrb[0].mxu0 %v820
    %v949 = vpop.f32.mrb[0].mxu0
    %v950 = vadd.f32 0.0, %v949
    %v951 = vpop.f32.mrb[0].mxu0
    %952 = vmatprep.mubr.f32.mxu0 0.0
    %953 = vmatmul.mubr.f32.gmra.mrb[0].mxu0 %v823
    %v954 = vpop.f32.mrb[0].mxu0
    %v955 = vadd.f32 0.0, %v954
    %v956 = vpop.f32.mrb[0].mxu0
    %957 = vmatprep.mubr.f32.mxu0 0.0
    %958 = vmatmul.mubr.f32.gmra.mrb[0].mxu0 %v826
    %v959 = vpop.f32.mrb[0].mxu0
    %v960 = vadd.f32 0.0, %v959
    %v961 = vpop.f32.mrb[0].mxu0
    %962 = vmatprep.mubr.f32.mxu0 0.0
    %963 = vmatmul.mubr.f32.gmra.mrb[0].mxu0 %v829
    %v964 = vpop.f32.mrb[0].mxu0
    %v965 = vadd.f32 0.0, %v964
    %v966 = vpop.f32.mrb[0].mxu0
    %967 = vmatprep.mubr.f32.mxu0 0.0
    %968 = vmatmul.mubr.f32.gmra.mrb[0].mxu0 %v832
    %v969 = vpop.f32.mrb[0].mxu0
    %v970 = vadd.f32 0.0, %v969
    %v971 = vpop.f32.mrb[0].mxu0
    %972 = vmatprep.mubr.f32.mxu0 0.0
    %973 = vmatmul.mubr.f32.gmra.mrb[0].mxu0 %v835
    %v974 = vpop.f32.mrb[0].mxu0
    %v975 = vadd.f32 0.0, %v974
    %v976 = vpop.f32.mrb[0].mxu0
    %977 = vmatprep.mubr.f32.mxu0 0.0
    %978 = vmatmul.mubr.f32.gmra.mrb[0].mxu0 %v838
    %v979 = vpop.f32.mrb[0].mxu0
    %v980 = vadd.f32 0.0, %v979
    %v981 = vpop.f32.mrb[0].mxu0
    %982 = vmatprep.mubr.f32.mxu0 0.0
    %983 = vmatmul.mubr.f32.gmra.mrb[0].mxu0 %v841
    %v984 = vpop.f32.mrb[0].mxu0
    %v985 = vadd.f32 0.0, %v984
    %v986 = vpop.f32.mrb[0].mxu0
    %987 = vdwg.mxu0
    %v988 = vld [vmem:[%s7] sm:$0xff]
    %v989 = vld [vmem:[%s7 + $0x8] sm:$0xff]
    %v990 = vld [vmem:[%s7 + $0x10] sm:$0xff]
    %v991 = vld [vmem:[%s7 + $0x18] sm:$0xff]
    %v992 = vld [vmem:[%s7 + $0x20] sm:$0xff]
    %v993 = vld [vmem:[%s7 + $0x28] sm:$0xff]
    %v994 = vld [vmem:[%s7 + $0x30] sm:$0xff]
    %v995 = vld [vmem:[%s7 + $0x38] sm:$0xff]
    %v996 = vld [vmem:[%s7 + $0x40] sm:$0xff]
    %v997 = vld [vmem:[%s7 + $0x48] sm:$0xff]
    %v998 = vld [vmem:[%s7 + $0x50] sm:$0xff]
    %v999 = vld [vmem:[%s7 + $0x58] sm:$0xff]
    %vm1000 = vcmask 785408
    %v1002 = vsel %vm1000, %v910, 0
    %v1005 = vsel %vm1000, %v915, 0
    %v1008 = vsel %vm1000, %v920, 0
    %v1011 = vsel %vm1000, %v925, 0
    %v1014 = vsel %vm1000, %v930, 0
    %v1017 = vsel %vm1000, %v935, 0
    %v1020 = vsel %vm1000, %v940, 0
    %v1023 = vsel %vm1000, %v945, 0
    %v1026 = vsel %vm1000, %v950, 0
    %v1029 = vsel %vm1000, %v955, 0
    %v1032 = vsel %vm1000, %v960, 0
    %v1035 = vsel %vm1000, %v965, 0
    %v1038 = vsel %vm1000, %v970, 0
    %v1041 = vsel %vm1000, %v975, 0
    %v1044 = vsel %vm1000, %v980, 0
    %v1047 = vsel %vm1000, %v985, 0
    %1049 = vmatprep.subr.mxu0 0.0
    %1050 = vmatpush1.msra.mxu0 %v988
    %1051 = vmatprep.subr.mxu0 0.0
    %1052 = vmatpush1.msra.mxu0 %v989
    %1053 = vmatprep.subr.mxu0 0.0
    %1054 = vmatpush1.msra.mxu0 %v990
    %1055 = vmatprep.subr.mxu0 0.0
    %1056 = vmatpush1.msra.mxu0 %v991
    %1057 = vmatprep.subr.mxu0 0.0
    %1058 = vmatpush1.msra.mxu0 %v992
    %1059 = vmatprep.subr.mxu0 0.0
    %1060 = vmatpush1.msra.mxu0 %v993
    %1061 = vmatprep.subr.mxu0 0.0
    %1062 = vmatpush1.msra.mxu0 %v994
    %1063 = vmatprep.subr.mxu0 0.0
    %1064 = vmatpush1.msra.mxu0 %v995
    %1065 = vmatprep.subr.mxu0 0.0
    %1066 = vmatpush1.msra.mxu0 %v996
    %1067 = vmatprep.subr.mxu0 0.0
    %1068 = vmatpush1.msra.mxu0 %v997
    %1069 = vmatprep.subr.mxu0 0.0
    %1070 = vmatpush1.msra.mxu0 %v998
    %1071 = vmatprep.subr.mxu0 0.0
    %1072 = vmatpush1.msra.mxu0 %v999
    %1073 = vmatprep.subr.mxu0 0.0
    %1074 = vmatpush1.msra.mxu0 0.0
    %1075 = vmatprep.subr.mxu0 0.0
    %1076 = vmatpush1.msra.mxu0 0.0
    %1077 = vmatprep.subr.mxu0 0.0
    %1078 = vmatpush1.msra.mxu0 0.0
    %1079 = vmatprep.subr.mxu0 0.0
    %1080 = vmatpush1.msra.mxu0 0.0
    %1081 = vmatprep.subr.mxu0 0.0
    %1082 = vmatpush1.msra.mxu0 0.0
    %1083 = vmatprep.subr.mxu0 0.0
    %1084 = vmatpush1.msra.mxu0 0.0
    %1085 = vmatprep.subr.mxu0 0.0
    %1086 = vmatpush1.msra.mxu0 0.0
    %1087 = vmatprep.subr.mxu0 0.0
    %1088 = vmatpush1.msra.mxu0 0.0
    %1089 = vmatprep.subr.mxu0 0.0
    %1090 = vmatpush1.msra.mxu0 0.0
    %1091 = vmatprep.subr.mxu0 0.0
    %1092 = vmatpush1.msra.mxu0 0.0
    %1093 = vmatprep.subr.mxu0 0.0
    %1094 = vmatpush1.msra.mxu0 0.0
    %1095 = vmatprep.subr.mxu0 0.0
    %1096 = vmatpush1.msra.mxu0 0.0
    %1097 = vmatprep.subr.mxu0 0.0
    %1098 = vmatpush1.msra.mxu0 0.0
    %1099 = vmatprep.subr.mxu0 0.0
    %1100 = vmatpush1.msra.mxu0 0.0
    %1101 = vmatprep.subr.mxu0 0.0
    %1102 = vmatpush1.msra.mxu0 0.0
    %1103 = vmatprep.subr.mxu0 0.0
    %1104 = vmatpush1.msra.mxu0 0.0
    %1105 = vmatprep.subr.mxu0 0.0
    %1106 = vmatpush1.msra.mxu0 0.0
    %1107 = vmatprep.subr.mxu0 0.0
    %1108 = vmatpush1.msra.mxu0 0.0
    %1109 = vmatprep.subr.mxu0 0.0
    %1110 = vmatpush1.msra.mxu0 0.0
    %1111 = vmatprep.subr.mxu0 0.0
    %1112 = vmatpush1.msra.mxu0 0.0
    %1113 = vmatprep.mubr.f32.mxu0 0.0
    %1114 = vmatmul.mubr.f32.gmra.mrb[0].mxu0 %v1002
    %v1115 = vpop.f32.mrb[0].mxu0
    %v1116 = vadd.f32 0.0, %v1115
    %v1117 = vpop.f32.mrb[0].mxu0
    %1118 = vmatprep.mubr.f32.mxu0 0.0
    %1119 = vmatmul.mubr.f32.gmra.mrb[0].mxu0 %v1005
    %v1120 = vpop.f32.mrb[0].mxu0
    %v1121 = vadd.f32 0.0, %v1120
    %v1122 = vpop.f32.mrb[0].mxu0
    %1123 = vmatprep.mubr.f32.mxu0 0.0
    %1124 = vmatmul.mubr.f32.gmra.mrb[0].mxu0 %v1008
    %v1125 = vpop.f32.mrb[0].mxu0
    %v1126 = vadd.f32 0.0, %v1125
    %v1127 = vpop.f32.mrb[0].mxu0
    %1128 = vmatprep.mubr.f32.mxu0 0.0
    %1129 = vmatmul.mubr.f32.gmra.mrb[0].mxu0 %v1011
    %v1130 = vpop.f32.mrb[0].mxu0
    %v1131 = vadd.f32 0.0, %v1130
    %v1132 = vpop.f32.mrb[0].mxu0
    %1133 = vmatprep.mubr.f32.mxu0 0.0
    %1134 = vmatmul.mubr.f32.gmra.mrb[0].mxu0 %v1014
    %v1135 = vpop.f32.mrb[0].mxu0
    %v1136 = vadd.f32 0.0, %v1135
    %v1137 = vpop.f32.mrb[0].mxu0
    %1138 = vmatprep.mubr.f32.mxu0 0.0
    %1139 = vmatmul.mubr.f32.gmra.mrb[0].mxu0 %v1017
    %v1140 = vpop.f32.mrb[0].mxu0
    %v1141 = vadd.f32 0.0, %v1140
    %v1142 = vpop.f32.mrb[0].mxu0
    %1143 = vmatprep.mubr.f32.mxu0 0.0
    %1144 = vmatmul.mubr.f32.gmra.mrb[0].mxu0 %v1020
    %v1145 = vpop.f32.mrb[0].mxu0
    %v1146 = vadd.f32 0.0, %v1145
    %v1147 = vpop.f32.mrb[0].mxu0
    %1148 = vmatprep.mubr.f32.mxu0 0.0
    %1149 = vmatmul.mubr.f32.gmra.mrb[0].mxu0 %v1023
    %v1150 = vpop.f32.mrb[0].mxu0
    %v1151 = vadd.f32 0.0, %v1150
    %v1152 = vpop.f32.mrb[0].mxu0
    %1153 = vmatprep.mubr.f32.mxu0 0.0
    %1154 = vmatmul.mubr.f32.gmra.mrb[0].mxu0 %v1026
    %v1155 = vpop.f32.mrb[0].mxu0
    %v1156 = vadd.f32 0.0, %v1155
    %v1157 = vpop.f32.mrb[0].mxu0
    %1158 = vmatprep.mubr.f32.mxu0 0.0
    %1159 = vmatmul.mubr.f32.gmra.mrb[0].mxu0 %v1029
    %v1160 = vpop.f32.mrb[0].mxu0
    %v1161 = vadd.f32 0.0, %v1160
    %v1162 = vpop.f32.mrb[0].mxu0
    %1163 = vmatprep.mubr.f32.mxu0 0.0
    %1164 = vmatmul.mubr.f32.gmra.mrb[0].mxu0 %v1032
    %v1165 = vpop.f32.mrb[0].mxu0
    %v1166 = vadd.f32 0.0, %v1165
    %v1167 = vpop.f32.mrb[0].mxu0
    %1168 = vmatprep.mubr.f32.mxu0 0.0
    %1169 = vmatmul.mubr.f32.gmra.mrb[0].mxu0 %v1035
    %v1170 = vpop.f32.mrb[0].mxu0
    %v1171 = vadd.f32 0.0, %v1170
    %v1172 = vpop.f32.mrb[0].mxu0
    %1173 = vmatprep.mubr.f32.mxu0 0.0
    %1174 = vmatmul.mubr.f32.gmra.mrb[0].mxu0 %v1038
    %v1175 = vpop.f32.mrb[0].mxu0
    %v1176 = vadd.f32 0.0, %v1175
    %v1177 = vpop.f32.mrb[0].mxu0
    %1178 = vmatprep.mubr.f32.mxu0 0.0
    %1179 = vmatmul.mubr.f32.gmra.mrb[0].mxu0 %v1041
    %v1180 = vpop.f32.mrb[0].mxu0
    %v1181 = vadd.f32 0.0, %v1180
    %v1182 = vpop.f32.mrb[0].mxu0
    %1183 = vmatprep.mubr.f32.mxu0 0.0
    %1184 = vmatmul.mubr.f32.gmra.mrb[0].mxu0 %v1044
    %v1185 = vpop.f32.mrb[0].mxu0
    %v1186 = vadd.f32 0.0, %v1185
    %v1187 = vpop.f32.mrb[0].mxu0
    %1188 = vmatprep.mubr.f32.mxu0 0.0
    %1189 = vmatmul.mubr.f32.gmra.mrb[0].mxu0 %v1047
    %v1190 = vpop.f32.mrb[0].mxu0
    %v1191 = vadd.f32 0.0, %v1190
    %v1192 = vpop.f32.mrb[0].mxu0
    %1193 = vdwg.mxu0
    %1194 = vxpose.xlu0.b32.start [1/16] %v1116, 128
    %1195 = vxpose.xlu0.b32.cont [2/16] %v1121, 128
    %1196 = vxpose.xlu0.b32.cont [3/16] %v1126, 128
    %1197 = vxpose.xlu0.b32.cont [4/16] %v1131, 128
    %1198 = vxpose.xlu0.b32.cont [5/16] %v1136, 128
    %1199 = vxpose.xlu0.b32.cont [6/16] %v1141, 128
    %1200 = vxpose.xlu0.b32.cont [7/16] %v1146, 128
    %1201 = vxpose.xlu0.b32.cont [8/16] %v1151, 128
    %1202 = vxpose.xlu0.b32.cont [9/16] %v1156, 128
    %1203 = vxpose.xlu0.b32.cont [10/16] %v1161, 128
    %1204 = vxpose.xlu0.b32.cont [11/16] %v1166, 128
    %1205 = vxpose.xlu0.b32.cont [12/16] %v1171, 128
    %1206 = vxpose.xlu0.b32.cont [13/16] %v1176, 128
    %1207 = vxpose.xlu0.b32.cont [14/16] %v1181, 128
    %1208 = vxpose.xlu0.b32.cont [15/16] %v1186, 128
    %1209 = vxpose.xlu0.b32.end [16/16] %v1191, 128
    %v1210 = vpop.trf.xlu0
    %v1211 = vpop.trf.xlu0
    %v1212 = vpop.trf.xlu0
    %v1213 = vpop.trf.xlu0
    %v1214 = vpop.trf.xlu0
    %v1215 = vpop.trf.xlu0
    %v1216 = vpop.trf.xlu0
    %v1217 = vpop.trf.xlu0
    %v1218 = vpop.trf.xlu0
    %v1219 = vpop.trf.xlu0
    %v1220 = vpop.trf.xlu0
    %v1221 = vpop.trf.xlu0
    %v1222 = vpop.trf.xlu0
    %v1223 = vpop.trf.xlu0
    %v1224 = vpop.trf.xlu0
    %v1225 = vpop.trf.xlu0
    %1227 = vset.pattern.permute.xlu0 0
    %1228 = vperm.xlu0 %1227, %v1116
    %v1229 = vpop.permute.xlu0 %1228
    %1232 = vset.pattern.permute.xlu0 0
    %1233 = vperm.xlu0 %1232, %v1121
    %v1234 = vpop.permute.xlu0 %1233
    %1237 = vset.pattern.permute.xlu0 0
    %1238 = vperm.xlu0 %1237, %v1126
    %v1239 = vpop.permute.xlu0 %1238
    %1242 = vset.pattern.permute.xlu0 0
    %1243 = vperm.xlu0 %1242, %v1131
    %v1244 = vpop.permute.xlu0 %1243
    %1247 = vset.pattern.permute.xlu0 0
    %1248 = vperm.xlu0 %1247, %v1136
    %v1249 = vpop.permute.xlu0 %1248
    %1252 = vset.pattern.permute.xlu0 0
    %1253 = vperm.xlu0 %1252, %v1141
    %v1254 = vpop.permute.xlu0 %1253
    %1257 = vset.pattern.permute.xlu0 0
    %1258 = vperm.xlu0 %1257, %v1146
    %v1259 = vpop.permute.xlu0 %1258
    %1262 = vset.pattern.permute.xlu0 0
    %1263 = vperm.xlu0 %1262, %v1151
    %v1264 = vpop.permute.xlu0 %1263
    %1267 = vset.pattern.permute.xlu0 0
    %1268 = vperm.xlu0 %1267, %v1156
    %v1269 = vpop.permute.xlu0 %1268
    %1272 = vset.pattern.permute.xlu0 0
    %1273 = vperm.xlu0 %1272, %v1161
    %v1274 = vpop.permute.xlu0 %1273
    %1277 = vset.pattern.permute.xlu0 0
    %1278 = vperm.xlu0 %1277, %v1166
    %v1279 = vpop.permute.xlu0 %1278
    %1282 = vset.pattern.permute.xlu0 0
    %1283 = vperm.xlu0 %1282, %v1171
    %v1284 = vpop.permute.xlu0 %1283
    %1287 = vset.pattern.permute.xlu0 0
    %1288 = vperm.xlu0 %1287, %v1176
    %v1289 = vpop.permute.xlu0 %1288
    %1292 = vset.pattern.permute.xlu0 0
    %1293 = vperm.xlu0 %1292, %v1181
    %v1294 = vpop.permute.xlu0 %1293
    %1297 = vset.pattern.permute.xlu0 0
    %1298 = vperm.xlu0 %1297, %v1186
    %v1299 = vpop.permute.xlu0 %1298
    %1302 = vset.pattern.permute.xlu0 0
    %1303 = vperm.xlu0 %1302, %v1191
    %v1304 = vpop.permute.xlu0 %1303
    %v1306 = vlaneseq
    %v1307 = vshrl.u32 %v1306, 7
    %v1308 = vsub.s32 2, %v1307
    %v1309 = vrot.slane %v1210, %v1308
    %v1310 = vadd.f32 %v1229, %v1309
    %v1311 = vadd.f32 %v1234, %v1309
    %v1312 = vadd.f32 %v1239, %v1309
    %v1313 = vadd.f32 %v1244, %v1309
    %v1314 = vadd.f32 %v1249, %v1309
    %v1315 = vadd.f32 %v1254, %v1309
    %v1316 = vadd.f32 %v1259, %v1309
    %v1317 = vadd.f32 %v1264, %v1309
    %v1318 = vadd.f32 %v1269, %v1309
    %v1319 = vadd.f32 %v1274, %v1309
    %v1320 = vadd.f32 %v1279, %v1309
    %v1321 = vadd.f32 %v1284, %v1309
    %v1322 = vadd.f32 %v1289, %v1309
    %v1323 = vadd.f32 %v1294, %v1309
    %v1324 = vadd.f32 %v1299, %v1309
    %v1325 = vadd.f32 %v1304, %v1309
    %s1326 = sld [smem:[#allocation2]]
    %v1327 = vstv %s1326
    %v1328 = vmul.f32 %v137, %v1327
    %v1329 = vmul.f32 %v138, %v1327
    %v1330 = vmul.f32 %v139, %v1327
    %v1331 = vmul.f32 %v140, %v1327
    %v1332 = vmul.f32 %v141, %v1327
    %v1333 = vmul.f32 %v142, %v1327
    %v1334 = vmul.f32 %v143, %v1327
    %v1335 = vmul.f32 %v144, %v1327
    %v1336 = vmul.f32 %v145, %v1327
    %v1337 = vmul.f32 %v146, %v1327
    %v1338 = vmul.f32 %v147, %v1327
    %v1339 = vmul.f32 %v148, %v1327
    %v1340 = vmul.f32 %v149, %v1327
    %v1341 = vmul.f32 %v150, %v1327
    %v1342 = vmul.f32 %v151, %v1327
    %v1343 = vmul.f32 %v152, %v1327
    %v1344 = vadd.f32 %v1310, %v1328
    %v1345 = vadd.f32 %v1311, %v1329
    %v1346 = vadd.f32 %v1312, %v1330
    %v1347 = vadd.f32 %v1313, %v1331
    %v1348 = vadd.f32 %v1314, %v1332
    %v1349 = vadd.f32 %v1315, %v1333
    %v1350 = vadd.f32 %v1316, %v1334
    %v1351 = vadd.f32 %v1317, %v1335
    %v1352 = vadd.f32 %v1318, %v1336
    %v1353 = vadd.f32 %v1319, %v1337
    %v1354 = vadd.f32 %v1320, %v1338
    %v1355 = vadd.f32 %v1321, %v1339
    %v1356 = vadd.f32 %v1322, %v1340
    %v1357 = vadd.f32 %v1323, %v1341
    %v1358 = vadd.f32 %v1324, %v1342
    %v1359 = vadd.f32 %v1325, %v1343
    %s1360 = sld [smem:[#allocation2 + $0x2]]
    %v1361 = vstv %s1360
    %v1362 = vmul.f32 %v185, %v1361
    %v1363 = vmul.f32 %v186, %v1361
    %v1364 = vmul.f32 %v187, %v1361
    %v1365 = vmul.f32 %v188, %v1361
    %v1366 = vmul.f32 %v189, %v1361
    %v1367 = vmul.f32 %v190, %v1361
    %v1368 = vmul.f32 %v191, %v1361
    %v1369 = vmul.f32 %v192, %v1361
    %v1370 = vmul.f32 %v193, %v1361
    %v1371 = vmul.f32 %v194, %v1361
    %v1372 = vmul.f32 %v195, %v1361
    %v1373 = vmul.f32 %v196, %v1361
    %v1374 = vmul.f32 %v197, %v1361
    %v1375 = vmul.f32 %v198, %v1361
    %v1376 = vmul.f32 %v199, %v1361
    %v1377 = vmul.f32 %v200, %v1361
    %v1378 = vadd.f32 %v1344, %v1362
    %v1379 = vadd.f32 %v1345, %v1363
    %v1380 = vadd.f32 %v1346, %v1364
    %v1381 = vadd.f32 %v1347, %v1365
    %v1382 = vadd.f32 %v1348, %v1366
    %v1383 = vadd.f32 %v1349, %v1367
    %v1384 = vadd.f32 %v1350, %v1368
    %v1385 = vadd.f32 %v1351, %v1369
    %v1386 = vadd.f32 %v1352, %v1370
    %v1387 = vadd.f32 %v1353, %v1371
    %v1388 = vadd.f32 %v1354, %v1372
    %v1389 = vadd.f32 %v1355, %v1373
    %v1390 = vadd.f32 %v1356, %v1374
    %v1391 = vadd.f32 %v1357, %v1375
    %v1392 = vadd.f32 %v1358, %v1376
    %v1393 = vadd.f32 %v1359, %v1377
    %s1394 = sld [smem:[#allocation2 + $0x4]]
    %v1395 = vstv %s1394
    %v1396 = vmul.f32 %v233, %v1395
    %v1397 = vmul.f32 %v234, %v1395
    %v1398 = vmul.f32 %v235, %v1395
    %v1399 = vmul.f32 %v236, %v1395
    %v1400 = vmul.f32 %v237, %v1395
    %v1401 = vmul.f32 %v238, %v1395
    %v1402 = vmul.f32 %v239, %v1395
    %v1403 = vmul.f32 %v240, %v1395
    %v1404 = vmul.f32 %v241, %v1395
    %v1405 = vmul.f32 %v242, %v1395
    %v1406 = vmul.f32 %v243, %v1395
    %v1407 = vmul.f32 %v244, %v1395
    %v1408 = vmul.f32 %v245, %v1395
    %v1409 = vmul.f32 %v246, %v1395
    %v1410 = vmul.f32 %v247, %v1395
    %v1411 = vmul.f32 %v248, %v1395
    %v1412 = vadd.f32 %v1378, %v1396
    %v1413 = vadd.f32 %v1379, %v1397
    %v1414 = vadd.f32 %v1380, %v1398
    %v1415 = vadd.f32 %v1381, %v1399
    %v1416 = vadd.f32 %v1382, %v1400
    %v1417 = vadd.f32 %v1383, %v1401
    %v1418 = vadd.f32 %v1384, %v1402
    %v1419 = vadd.f32 %v1385, %v1403
    %v1420 = vadd.f32 %v1386, %v1404
    %v1421 = vadd.f32 %v1387, %v1405
    %v1422 = vadd.f32 %v1388, %v1406
    %v1423 = vadd.f32 %v1389, %v1407
    %v1424 = vadd.f32 %v1390, %v1408
    %v1425 = vadd.f32 %v1391, %v1409
    %v1426 = vadd.f32 %v1392, %v1410
    %v1427 = vadd.f32 %v1393, %v1411
    %s1428 = sld [smem:[#allocation2 + $0x6]]
    %v1429 = vstv %s1428
    %v1430 = vmul.f32 %v281, %v1429
    %v1431 = vmul.f32 %v282, %v1429
    %v1432 = vmul.f32 %v283, %v1429
    %v1433 = vmul.f32 %v284, %v1429
    %v1434 = vmul.f32 %v285, %v1429
    %v1435 = vmul.f32 %v286, %v1429
    %v1436 = vmul.f32 %v287, %v1429
    %v1437 = vmul.f32 %v288, %v1429
    %v1438 = vmul.f32 %v289, %v1429
    %v1439 = vmul.f32 %v290, %v1429
    %v1440 = vmul.f32 %v291, %v1429
    %v1441 = vmul.f32 %v292, %v1429
    %v1442 = vmul.f32 %v293, %v1429
    %v1443 = vmul.f32 %v294, %v1429
    %v1444 = vmul.f32 %v295, %v1429
    %v1445 = vmul.f32 %v296, %v1429
    %v1446 = vadd.f32 %v1412, %v1430
    %v1447 = vadd.f32 %v1413, %v1431
    %v1448 = vadd.f32 %v1414, %v1432
    %v1449 = vadd.f32 %v1415, %v1433
    %v1450 = vadd.f32 %v1416, %v1434
    %v1451 = vadd.f32 %v1417, %v1435
    %v1452 = vadd.f32 %v1418, %v1436
    %v1453 = vadd.f32 %v1419, %v1437
    %v1454 = vadd.f32 %v1420, %v1438
    %v1455 = vadd.f32 %v1421, %v1439
    %v1456 = vadd.f32 %v1422, %v1440
    %v1457 = vadd.f32 %v1423, %v1441
    %v1458 = vadd.f32 %v1424, %v1442
    %v1459 = vadd.f32 %v1425, %v1443
    %v1460 = vadd.f32 %v1426, %v1444
    %v1461 = vadd.f32 %v1427, %v1445
    %vm1462 = vcmp.gt.f32.partialorder %v1446, 0.0
    %vm1463 = vcmp.gt.f32.partialorder %v1447, 0.0
    %vm1464 = vcmp.gt.f32.partialorder %v1448, 0.0
    %vm1465 = vcmp.gt.f32.partialorder %v1449, 0.0
    %vm1466 = vcmp.gt.f32.partialorder %v1450, 0.0
    %vm1467 = vcmp.gt.f32.partialorder %v1451, 0.0
    %vm1468 = vcmp.gt.f32.partialorder %v1452, 0.0
    %vm1469 = vcmp.gt.f32.partialorder %v1453, 0.0
    %vm1470 = vcmp.gt.f32.partialorder %v1454, 0.0
    %vm1471 = vcmp.gt.f32.partialorder %v1455, 0.0
    %vm1472 = vcmp.gt.f32.partialorder %v1456, 0.0
    %vm1473 = vcmp.gt.f32.partialorder %v1457, 0.0
    %vm1474 = vcmp.gt.f32.partialorder %v1458, 0.0
    %vm1475 = vcmp.gt.f32.partialorder %v1459, 0.0
    %vm1476 = vcmp.gt.f32.partialorder %v1460, 0.0
    %vm1477 = vcmp.gt.f32.partialorder %v1461, 0.0
    %v1478 = vmul.f32 %v1446, 0.2
    %v1479 = vmul.f32 %v1447, 0.2
    %v1480 = vmul.f32 %v1448, 0.2
    %v1481 = vmul.f32 %v1449, 0.2
    %v1482 = vmul.f32 %v1450, 0.2
    %v1483 = vmul.f32 %v1451, 0.2
    %v1484 = vmul.f32 %v1452, 0.2
    %v1485 = vmul.f32 %v1453, 0.2
    %v1486 = vmul.f32 %v1454, 0.2
    %v1487 = vmul.f32 %v1455, 0.2
    %v1488 = vmul.f32 %v1456, 0.2
    %v1489 = vmul.f32 %v1457, 0.2
    %v1490 = vmul.f32 %v1458, 0.2
    %v1491 = vmul.f32 %v1459, 0.2
    %v1492 = vmul.f32 %v1460, 0.2
    %v1493 = vmul.f32 %v1461, 0.2
    %v1494 = vsel %vm1462, %v1446, %v1478
    %v1495 = vsel %vm1463, %v1447, %v1479
    %v1496 = vsel %vm1464, %v1448, %v1480
    %v1497 = vsel %vm1465, %v1449, %v1481
    %v1498 = vsel %vm1466, %v1450, %v1482
    %v1499 = vsel %vm1467, %v1451, %v1483
    %v1500 = vsel %vm1468, %v1452, %v1484
    %v1501 = vsel %vm1469, %v1453, %v1485
    %v1502 = vsel %vm1470, %v1454, %v1486
    %v1503 = vsel %vm1471, %v1455, %v1487
    %v1504 = vsel %vm1472, %v1456, %v1488
    %v1505 = vsel %vm1473, %v1457, %v1489
    %v1506 = vsel %vm1474, %v1458, %v1490
    %v1507 = vsel %vm1475, %v1459, %v1491
    %v1508 = vsel %vm1476, %v1460, %v1492
    %v1509 = vsel %vm1477, %v1461, %v1493
    %v1510 = vsel %vm89, %v1494, -1e+30
    %v1511 = vsel %vm90, %v1495, -1e+30
    %v1512 = vsel %vm91, %v1496, -1e+30
    %v1513 = vsel %vm92, %v1497, -1e+30
    %v1514 = vsel %vm93, %v1498, -1e+30
    %v1515 = vsel %vm94, %v1499, -1e+30
    %v1516 = vsel %vm95, %v1500, -1e+30
    %v1517 = vsel %vm96, %v1501, -1e+30
    %v1518 = vsel %vm97, %v1502, -1e+30
    %v1519 = vsel %vm98, %v1503, -1e+30
    %v1520 = vsel %vm99, %v1504, -1e+30
    %v1521 = vsel %vm100, %v1505, -1e+30
    %v1522 = vsel %vm101, %v1506, -1e+30
    %v1523 = vsel %vm102, %v1507, -1e+30
    %v1524 = vsel %vm103, %v1508, -1e+30
    %v1525 = vsel %vm104, %v1509, -1e+30
    %1526 = vmax.xlane.f32.xlu0 %v1510
    %v1527 = vpop.xlane.xlu0 %1526
    %1528 = vmax.xlane.f32.xlu0 %v1511
    %v1529 = vpop.xlane.xlu0 %1528
    %1530 = vmax.xlane.f32.xlu0 %v1512
    %v1531 = vpop.xlane.xlu0 %1530
    %1532 = vmax.xlane.f32.xlu0 %v1513
    %v1533 = vpop.xlane.xlu0 %1532
    %1534 = vmax.xlane.f32.xlu0 %v1514
    %v1535 = vpop.xlane.xlu0 %1534
    %1536 = vmax.xlane.f32.xlu0 %v1515
    %v1537 = vpop.xlane.xlu0 %1536
    %1538 = vmax.xlane.f32.xlu0 %v1516
    %v1539 = vpop.xlane.xlu0 %1538
    %1540 = vmax.xlane.f32.xlu0 %v1517
    %v1541 = vpop.xlane.xlu0 %1540
    %1542 = vmax.xlane.f32.xlu0 %v1518
    %v1543 = vpop.xlane.xlu0 %1542
    %1544 = vmax.xlane.f32.xlu0 %v1519
    %v1545 = vpop.xlane.xlu0 %1544
    %1546 = vmax.xlane.f32.xlu0 %v1520
    %v1547 = vpop.xlane.xlu0 %1546
    %1548 = vmax.xlane.f32.xlu0 %v1521
    %v1549 = vpop.xlane.xlu0 %1548
    %1550 = vmax.xlane.f32.xlu0 %v1522
    %v1551 = vpop.xlane.xlu0 %1550
    %1552 = vmax.xlane.f32.xlu0 %v1523
    %v1553 = vpop.xlane.xlu0 %1552
    %1554 = vmax.xlane.f32.xlu0 %v1524
    %v1555 = vpop.xlane.xlu0 %1554
    %1556 = vmax.xlane.f32.xlu0 %v1525
    %v1557 = vpop.xlane.xlu0 %1556
    %v1558 = vsub.f32 %v1510, %v1527
    %v1559 = vsub.f32 %v1511, %v1529
    %v1560 = vsub.f32 %v1512, %v1531
    %v1561 = vsub.f32 %v1513, %v1533
    %v1562 = vsub.f32 %v1514, %v1535
    %v1563 = vsub.f32 %v1515, %v1537
    %v1564 = vsub.f32 %v1516, %v1539
    %v1565 = vsub.f32 %v1517, %v1541
    %v1566 = vsub.f32 %v1518, %v1543
    %v1567 = vsub.f32 %v1519, %v1545
    %v1568 = vsub.f32 %v1520, %v1547
    %v1569 = vsub.f32 %v1521, %v1549
    %v1570 = vsub.f32 %v1522, %v1551
    %v1571 = vsub.f32 %v1523, %v1553
    %v1572 = vsub.f32 %v1524, %v1555
    %v1573 = vsub.f32 %v1525, %v1557
    %v1574 = vmul.f32 %v1558, 1.442695
    %v1575 = vpow.pop %v1574
    %v1576 = vmul.f32 %v1559, 1.442695
    %v1577 = vpow.pop %v1576
    %v1578 = vmul.f32 %v1560, 1.442695
    %v1579 = vpow.pop %v1578
    %v1580 = vmul.f32 %v1561, 1.442695
    %v1581 = vpow.pop %v1580
    %v1582 = vmul.f32 %v1562, 1.442695
    %v1583 = vpow.pop %v1582
    %v1584 = vmul.f32 %v1563, 1.442695
    %v1585 = vpow.pop %v1584
    %v1586 = vmul.f32 %v1564, 1.442695
    %v1587 = vpow.pop %v1586
    %v1588 = vmul.f32 %v1565, 1.442695
    %v1589 = vpow.pop %v1588
    %v1590 = vmul.f32 %v1566, 1.442695
    %v1591 = vpow.pop %v1590
    %v1592 = vmul.f32 %v1567, 1.442695
    %v1593 = vpow.pop %v1592
    %v1594 = vmul.f32 %v1568, 1.442695
    %v1595 = vpow.pop %v1594
    %v1596 = vmul.f32 %v1569, 1.442695
    %v1597 = vpow.pop %v1596
    %v1598 = vmul.f32 %v1570, 1.442695
    %v1599 = vpow.pop %v1598
    %v1600 = vmul.f32 %v1571, 1.442695
    %v1601 = vpow.pop %v1600
    %v1602 = vmul.f32 %v1572, 1.442695
    %v1603 = vpow.pop %v1602
    %v1604 = vmul.f32 %v1573, 1.442695
    %v1605 = vpow.pop %v1604
    %v1606 = vmul.f32 %v1575, %v57
    %v1607 = vmul.f32 %v1577, %v58
    %v1608 = vmul.f32 %v1579, %v59
    %v1609 = vmul.f32 %v1581, %v60
    %v1610 = vmul.f32 %v1583, %v61
    %v1611 = vmul.f32 %v1585, %v62
    %v1612 = vmul.f32 %v1587, %v63
    %v1613 = vmul.f32 %v1589, %v64
    %v1614 = vmul.f32 %v1591, %v65
    %v1615 = vmul.f32 %v1593, %v66
    %v1616 = vmul.f32 %v1595, %v67
    %v1617 = vmul.f32 %v1597, %v68
    %v1618 = vmul.f32 %v1599, %v69
    %v1619 = vmul.f32 %v1601, %v70
    %v1620 = vmul.f32 %v1603, %v71
    %v1621 = vmul.f32 %v1605, %v72
    %1622 = vadd.xlane.f32.xlu0 %v1606
    %v1623 = vpop.xlane.xlu0 %1622
    %1624 = vadd.xlane.f32.xlu0 %v1607
    %v1625 = vpop.xlane.xlu0 %1624
    %1626 = vadd.xlane.f32.xlu0 %v1608
    %v1627 = vpop.xlane.xlu0 %1626
    %1628 = vadd.xlane.f32.xlu0 %v1609
    %v1629 = vpop.xlane.xlu0 %1628
    %1630 = vadd.xlane.f32.xlu0 %v1610
    %v1631 = vpop.xlane.xlu0 %1630
    %1632 = vadd.xlane.f32.xlu0 %v1611
    %v1633 = vpop.xlane.xlu0 %1632
    %1634 = vadd.xlane.f32.xlu0 %v1612
    %v1635 = vpop.xlane.xlu0 %1634
    %1636 = vadd.xlane.f32.xlu0 %v1613
    %v1637 = vpop.xlane.xlu0 %1636
    %1638 = vadd.xlane.f32.xlu0 %v1614
    %v1639 = vpop.xlane.xlu0 %1638
    %1640 = vadd.xlane.f32.xlu0 %v1615
    %v1641 = vpop.xlane.xlu0 %1640
    %1642 = vadd.xlane.f32.xlu0 %v1616
    %v1643 = vpop.xlane.xlu0 %1642
    %1644 = vadd.xlane.f32.xlu0 %v1617
    %v1645 = vpop.xlane.xlu0 %1644
    %1646 = vadd.xlane.f32.xlu0 %v1618
    %v1647 = vpop.xlane.xlu0 %1646
    %1648 = vadd.xlane.f32.xlu0 %v1619
    %v1649 = vpop.xlane.xlu0 %1648
    %1650 = vadd.xlane.f32.xlu0 %v1620
    %v1651 = vpop.xlane.xlu0 %1650
    %1652 = vadd.xlane.f32.xlu0 %v1621
    %v1653 = vpop.xlane.xlu0 %1652
    %v1654 = vmax.f32 %v1623, 1e-30
    %v1655 = vmax.f32 %v1625, 1e-30
    %v1656 = vmax.f32 %v1627, 1e-30
    %v1657 = vmax.f32 %v1629, 1e-30
    %v1658 = vmax.f32 %v1631, 1e-30
    %v1659 = vmax.f32 %v1633, 1e-30
    %v1660 = vmax.f32 %v1635, 1e-30
    %v1661 = vmax.f32 %v1637, 1e-30
    %v1662 = vmax.f32 %v1639, 1e-30
    %v1663 = vmax.f32 %v1641, 1e-30
    %v1664 = vmax.f32 %v1643, 1e-30
    %v1665 = vmax.f32 %v1645, 1e-30
    %v1666 = vmax.f32 %v1647, 1e-30
    %v1667 = vmax.f32 %v1649, 1e-30
    %v1668 = vmax.f32 %v1651, 1e-30
    %v1669 = vmax.f32 %v1653, 1e-30
    %v1670 = vrcp.pop %v1654
    %v1671 = vmul.f32 1.0, %v1670
    %v1672 = vrcp.pop %v1655
    %v1673 = vmul.f32 1.0, %v1672
    %v1674 = vrcp.pop %v1656
    %v1675 = vmul.f32 1.0, %v1674
    %v1676 = vrcp.pop %v1657
    %v1677 = vmul.f32 1.0, %v1676
    %v1678 = vrcp.pop %v1658
    %v1679 = vmul.f32 1.0, %v1678
    %v1680 = vrcp.pop %v1659
    %v1681 = vmul.f32 1.0, %v1680
    %v1682 = vrcp.pop %v1660
    %v1683 = vmul.f32 1.0, %v1682
    %v1684 = vrcp.pop %v1661
    %v1685 = vmul.f32 1.0, %v1684
    %v1686 = vrcp.pop %v1662
    %v1687 = vmul.f32 1.0, %v1686
    %v1688 = vrcp.pop %v1663
    %v1689 = vmul.f32 1.0, %v1688
    %v1690 = vrcp.pop %v1664
    %v1691 = vmul.f32 1.0, %v1690
    %v1692 = vrcp.pop %v1665
    %v1693 = vmul.f32 1.0, %v1692
    %v1694 = vrcp.pop %v1666
    %v1695 = vmul.f32 1.0, %v1694
    %v1696 = vrcp.pop %v1667
    %v1697 = vmul.f32 1.0, %v1696
    %v1698 = vrcp.pop %v1668
    %v1699 = vmul.f32 1.0, %v1698
    %v1700 = vrcp.pop %v1669
    %v1701 = vmul.f32 1.0, %v1700
    %v1702 = vmul.f32 %v1606, %v1671
    %v1703 = vmul.f32 %v1607, %v1673
    %v1704 = vmul.f32 %v1608, %v1675
    %v1705 = vmul.f32 %v1609, %v1677
    %v1706 = vmul.f32 %v1610, %v1679
    %v1707 = vmul.f32 %v1611, %v1681
    %v1708 = vmul.f32 %v1612, %v1683
    %v1709 = vmul.f32 %v1613, %v1685
    %v1710 = vmul.f32 %v1614, %v1687
    %v1711 = vmul.f32 %v1615, %v1689
    %v1712 = vmul.f32 %v1616, %v1691
    %v1713 = vmul.f32 %v1617, %v1693
    %v1714 = vmul.f32 %v1618, %v1695
    %v1715 = vmul.f32 %v1619, %v1697
    %v1716 = vmul.f32 %v1620, %v1699
    %v1717 = vmul.f32 %v1621, %v1701
    %1718 = vmatprep.subr.mxu0 0.0
    %1719 = vmatpush1.msra.mxu0 %v910
    %1720 = vmatprep.subr.mxu0 0.0
    %1721 = vmatpush1.msra.mxu0 %v915
    %1722 = vmatprep.subr.mxu0 0.0
    %1723 = vmatpush1.msra.mxu0 %v920
    %1724 = vmatprep.subr.mxu0 0.0
    %1725 = vmatpush1.msra.mxu0 %v925
    %1726 = vmatprep.subr.mxu0 0.0
    %1727 = vmatpush1.msra.mxu0 %v930
    %1728 = vmatprep.subr.mxu0 0.0
    %1729 = vmatpush1.msra.mxu0 %v935
    %1730 = vmatprep.subr.mxu0 0.0
    %1731 = vmatpush1.msra.mxu0 %v940
    %1732 = vmatprep.subr.mxu0 0.0
    %1733 = vmatpush1.msra.mxu0 %v945
    %1734 = vmatprep.subr.mxu0 0.0
    %1735 = vmatpush1.msra.mxu0 %v950
    %1736 = vmatprep.subr.mxu0 0.0
    %1737 = vmatpush1.msra.mxu0 %v955
    %1738 = vmatprep.subr.mxu0 0.0
    %1739 = vmatpush1.msra.mxu0 %v960
    %1740 = vmatprep.subr.mxu0 0.0
    %1741 = vmatpush1.msra.mxu0 %v965
    %1742 = vmatprep.subr.mxu0 0.0
    %1743 = vmatpush1.msra.mxu0 %v970
    %1744 = vmatprep.subr.mxu0 0.0
    %1745 = vmatpush1.msra.mxu0 %v975
    %1746 = vmatprep.subr.mxu0 0.0
    %1747 = vmatpush1.msra.mxu0 %v980
    %1748 = vmatprep.subr.mxu0 0.0
    %1749 = vmatpush1.msra.mxu0 %v985
    %1750 = vmatprep.subr.mxu0 0.0
    %1751 = vmatpush1.msra.mxu0 0.0
    %1752 = vmatprep.subr.mxu0 0.0
    %1753 = vmatpush1.msra.mxu0 0.0
    %1754 = vmatprep.subr.mxu0 0.0
    %1755 = vmatpush1.msra.mxu0 0.0
    %1756 = vmatprep.subr.mxu0 0.0
    %1757 = vmatpush1.msra.mxu0 0.0
    %1758 = vmatprep.subr.mxu0 0.0
    %1759 = vmatpush1.msra.mxu0 0.0
    %1760 = vmatprep.subr.mxu0 0.0
    %1761 = vmatpush1.msra.mxu0 0.0
    %1762 = vmatprep.subr.mxu0 0.0
    %1763 = vmatpush1.msra.mxu0 0.0
    %1764 = vmatprep.subr.mxu0 0.0
    %1765 = vmatpush1.msra.mxu0 0.0
    %1766 = vmatprep.subr.mxu0 0.0
    %1767 = vmatpush1.msra.mxu0 0.0
    %1768 = vmatprep.subr.mxu0 0.0
    %1769 = vmatpush1.msra.mxu0 0.0
    %1770 = vmatprep.subr.mxu0 0.0
    %1771 = vmatpush1.msra.mxu0 0.0
    %1772 = vmatprep.subr.mxu0 0.0
    %1773 = vmatpush1.msra.mxu0 0.0
    %1774 = vmatprep.subr.mxu0 0.0
    %1775 = vmatpush1.msra.mxu0 0.0
    %1776 = vmatprep.subr.mxu0 0.0
    %1777 = vmatpush1.msra.mxu0 0.0
    %1778 = vmatprep.subr.mxu0 0.0
    %1779 = vmatpush1.msra.mxu0 0.0
    %1780 = vmatprep.subr.mxu0 0.0
    %1781 = vmatpush1.msra.mxu0 0.0
    %1782 = vmatprep.mubr.f32.mxu0 0.0
    %1783 = vmatmul.mubr.f32.gmra.mrb[0].mxu0 %v1702
    %v1784 = vpop.f32.mrb[0].mxu0
    %v1785 = vadd.f32 0.0, %v1784
    %v1786 = vpop.f32.mrb[0].mxu0
    %1787 = vmatprep.mubr.f32.mxu0 0.0
    %1788 = vmatmul.mubr.f32.gmra.mrb[0].mxu0 %v1703
    %v1789 = vpop.f32.mrb[0].mxu0
    %v1790 = vadd.f32 0.0, %v1789
    %v1791 = vpop.f32.mrb[0].mxu0
    %1792 = vmatprep.mubr.f32.mxu0 0.0
    %1793 = vmatmul.mubr.f32.gmra.mrb[0].mxu0 %v1704
    %v1794 = vpop.f32.mrb[0].mxu0
    %v1795 = vadd.f32 0.0, %v1794
    %v1796 = vpop.f32.mrb[0].mxu0
    %1797 = vmatprep.mubr.f32.mxu0 0.0
    %1798 = vmatmul.mubr.f32.gmra.mrb[0].mxu0 %v1705
    %v1799 = vpop.f32.mrb[0].mxu0
    %v1800 = vadd.f32 0.0, %v1799
    %v1801 = vpop.f32.mrb[0].mxu0
    %1802 = vmatprep.mubr.f32.mxu0 0.0
    %1803 = vmatmul.mubr.f32.gmra.mrb[0].mxu0 %v1706
    %v1804 = vpop.f32.mrb[0].mxu0
    %v1805 = vadd.f32 0.0, %v1804
    %v1806 = vpop.f32.mrb[0].mxu0
    %1807 = vmatprep.mubr.f32.mxu0 0.0
    %1808 = vmatmul.mubr.f32.gmra.mrb[0].mxu0 %v1707
    %v1809 = vpop.f32.mrb[0].mxu0
    %v1810 = vadd.f32 0.0, %v1809
    %v1811 = vpop.f32.mrb[0].mxu0
    %1812 = vmatprep.mubr.f32.mxu0 0.0
    %1813 = vmatmul.mubr.f32.gmra.mrb[0].mxu0 %v1708
    %v1814 = vpop.f32.mrb[0].mxu0
    %v1815 = vadd.f32 0.0, %v1814
    %v1816 = vpop.f32.mrb[0].mxu0
    %1817 = vmatprep.mubr.f32.mxu0 0.0
    %1818 = vmatmul.mubr.f32.gmra.mrb[0].mxu0 %v1709
    %v1819 = vpop.f32.mrb[0].mxu0
    %v1820 = vadd.f32 0.0, %v1819
    %v1821 = vpop.f32.mrb[0].mxu0
    %1822 = vmatprep.mubr.f32.mxu0 0.0
    %1823 = vmatmul.mubr.f32.gmra.mrb[0].mxu0 %v1710
    %v1824 = vpop.f32.mrb[0].mxu0
    %v1825 = vadd.f32 0.0, %v1824
    %v1826 = vpop.f32.mrb[0].mxu0
    %1827 = vmatprep.mubr.f32.mxu0 0.0
    %1828 = vmatmul.mubr.f32.gmra.mrb[0].mxu0 %v1711
    %v1829 = vpop.f32.mrb[0].mxu0
    %v1830 = vadd.f32 0.0, %v1829
    %v1831 = vpop.f32.mrb[0].mxu0
    %1832 = vmatprep.mubr.f32.mxu0 0.0
    %1833 = vmatmul.mubr.f32.gmra.mrb[0].mxu0 %v1712
    %v1834 = vpop.f32.mrb[0].mxu0
    %v1835 = vadd.f32 0.0, %v1834
    %v1836 = vpop.f32.mrb[0].mxu0
    %1837 = vmatprep.mubr.f32.mxu0 0.0
    %1838 = vmatmul.mubr.f32.gmra.mrb[0].mxu0 %v1713
    %v1839 = vpop.f32.mrb[0].mxu0
    %v1840 = vadd.f32 0.0, %v1839
    %v1841 = vpop.f32.mrb[0].mxu0
    %1842 = vmatprep.mubr.f32.mxu0 0.0
    %1843 = vmatmul.mubr.f32.gmra.mrb[0].mxu0 %v1714
    %v1844 = vpop.f32.mrb[0].mxu0
    %v1845 = vadd.f32 0.0, %v1844
    %v1846 = vpop.f32.mrb[0].mxu0
    %1847 = vmatprep.mubr.f32.mxu0 0.0
    %1848 = vmatmul.mubr.f32.gmra.mrb[0].mxu0 %v1715
    %v1849 = vpop.f32.mrb[0].mxu0
    %v1850 = vadd.f32 0.0, %v1849
    %v1851 = vpop.f32.mrb[0].mxu0
    %1852 = vmatprep.mubr.f32.mxu0 0.0
    %1853 = vmatmul.mubr.f32.gmra.mrb[0].mxu0 %v1716
    %v1854 = vpop.f32.mrb[0].mxu0
    %v1855 = vadd.f32 0.0, %v1854
    %v1856 = vpop.f32.mrb[0].mxu0
    %1857 = vmatprep.mubr.f32.mxu0 0.0
    %1858 = vmatmul.mubr.f32.gmra.mrb[0].mxu0 %v1717
    %v1859 = vpop.f32.mrb[0].mxu0
    %v1860 = vadd.f32 0.0, %v1859
    %v1861 = vpop.f32.mrb[0].mxu0
    %1862 = vdwg.mxu0
    %vm1863 = vcmp.gt.f32.partialorder %v1785, 0.0
    %vm1864 = vcmp.gt.f32.partialorder %v1790, 0.0
    %vm1865 = vcmp.gt.f32.partialorder %v1795, 0.0
    %vm1866 = vcmp.gt.f32.partialorder %v1800, 0.0
    %vm1867 = vcmp.gt.f32.partialorder %v1805, 0.0
    %vm1868 = vcmp.gt.f32.partialorder %v1810, 0.0
    %vm1869 = vcmp.gt.f32.partialorder %v1815, 0.0
    %vm1870 = vcmp.gt.f32.partialorder %v1820, 0.0
    %vm1871 = vcmp.gt.f32.partialorder %v1825, 0.0
    %vm1872 = vcmp.gt.f32.partialorder %v1830, 0.0
    %vm1873 = vcmp.gt.f32.partialorder %v1835, 0.0
    %vm1874 = vcmp.gt.f32.partialorder %v1840, 0.0
    %vm1875 = vcmp.gt.f32.partialorder %v1845, 0.0
    %vm1876 = vcmp.gt.f32.partialorder %v1850, 0.0
    %vm1877 = vcmp.gt.f32.partialorder %v1855, 0.0
    %vm1878 = vcmp.gt.f32.partialorder %v1860, 0.0
    %v1879 = vmul.f32 %v1785, 1.442695
    %v1880 = vpow.pop %v1879
    %v1881 = vmul.f32 %v1790, 1.442695
    %v1882 = vpow.pop %v1881
    %v1883 = vmul.f32 %v1795, 1.442695
    %v1884 = vpow.pop %v1883
    %v1885 = vmul.f32 %v1800, 1.442695
    %v1886 = vpow.pop %v1885
    %v1887 = vmul.f32 %v1805, 1.442695
    %v1888 = vpow.pop %v1887
    %v1889 = vmul.f32 %v1810, 1.442695
    %v1890 = vpow.pop %v1889
    %v1891 = vmul.f32 %v1815, 1.442695
    %v1892 = vpow.pop %v1891
    %v1893 = vmul.f32 %v1820, 1.442695
    %v1894 = vpow.pop %v1893
    %v1895 = vmul.f32 %v1825, 1.442695
    %v1896 = vpow.pop %v1895
    %v1897 = vmul.f32 %v1830, 1.442695
    %v1898 = vpow.pop %v1897
    %v1899 = vmul.f32 %v1835, 1.442695
    %v1900 = vpow.pop %v1899
    %v1901 = vmul.f32 %v1840, 1.442695
    %v1902 = vpow.pop %v1901
    %v1903 = vmul.f32 %v1845, 1.442695
    %v1904 = vpow.pop %v1903
    %v1905 = vmul.f32 %v1850, 1.442695
    %v1906 = vpow.pop %v1905
    %v1907 = vmul.f32 %v1855, 1.442695
    %v1908 = vpow.pop %v1907
    %v1909 = vmul.f32 %v1860, 1.442695
    %v1910 = vpow.pop %v1909
    %v1911 = vsub.f32 %v1880, 1.0
    %v1912 = vsub.f32 %v1882, 1.0
    %v1913 = vsub.f32 %v1884, 1.0
    %v1914 = vsub.f32 %v1886, 1.0
    %v1915 = vsub.f32 %v1888, 1.0
    %v1916 = vsub.f32 %v1890, 1.0
    %v1917 = vsub.f32 %v1892, 1.0
    %v1918 = vsub.f32 %v1894, 1.0
    %v1919 = vsub.f32 %v1896, 1.0
    %v1920 = vsub.f32 %v1898, 1.0
    %v1921 = vsub.f32 %v1900, 1.0
    %v1922 = vsub.f32 %v1902, 1.0
    %v1923 = vsub.f32 %v1904, 1.0
    %v1924 = vsub.f32 %v1906, 1.0
    %v1925 = vsub.f32 %v1908, 1.0
    %v1926 = vsub.f32 %v1910, 1.0
    %v1927 = vsel %vm1863, %v1785, %v1911
    %v1928 = vsel %vm1864, %v1790, %v1912
    %v1929 = vsel %vm1865, %v1795, %v1913
    %v1930 = vsel %vm1866, %v1800, %v1914
    %v1931 = vsel %vm1867, %v1805, %v1915
    %v1932 = vsel %vm1868, %v1810, %v1916
    %v1933 = vsel %vm1869, %v1815, %v1917
    %v1934 = vsel %vm1870, %v1820, %v1918
    %v1935 = vsel %vm1871, %v1825, %v1919
    %v1936 = vsel %vm1872, %v1830, %v1920
    %v1937 = vsel %vm1873, %v1835, %v1921
    %v1938 = vsel %vm1874, %v1840, %v1922
    %v1939 = vsel %vm1875, %v1845, %v1923
    %v1940 = vsel %vm1876, %v1850, %v1924
    %v1941 = vsel %vm1877, %v1855, %v1925
    %v1942 = vsel %vm1878, %v1860, %v1926
    %1943 = vset.pattern.permute.xlu0 1
    %1944 = vperm.xlu0 %1943, %v1116
    %v1945 = vpop.permute.xlu0 %1944
    %1947 = vset.pattern.permute.xlu0 1
    %1948 = vperm.xlu0 %1947, %v1121
    %v1949 = vpop.permute.xlu0 %1948
    %1951 = vset.pattern.permute.xlu0 1
    %1952 = vperm.xlu0 %1951, %v1126
    %v1953 = vpop.permute.xlu0 %1952
    %1955 = vset.pattern.permute.xlu0 1
    %1956 = vperm.xlu0 %1955, %v1131
    %v1957 = vpop.permute.xlu0 %1956
    %1959 = vset.pattern.permute.xlu0 1
    %1960 = vperm.xlu0 %1959, %v1136
    %v1961 = vpop.permute.xlu0 %1960
    %1963 = vset.pattern.permute.xlu0 1
    %1964 = vperm.xlu0 %1963, %v1141
    %v1965 = vpop.permute.xlu0 %1964
    %1967 = vset.pattern.permute.xlu0 1
    %1968 = vperm.xlu0 %1967, %v1146
    %v1969 = vpop.permute.xlu0 %1968
    %1971 = vset.pattern.permute.xlu0 1
    %1972 = vperm.xlu0 %1971, %v1151
    %v1973 = vpop.permute.xlu0 %1972
    %1975 = vset.pattern.permute.xlu0 1
    %1976 = vperm.xlu0 %1975, %v1156
    %v1977 = vpop.permute.xlu0 %1976
    %1979 = vset.pattern.permute.xlu0 1
    %1980 = vperm.xlu0 %1979, %v1161
    %v1981 = vpop.permute.xlu0 %1980
    %1983 = vset.pattern.permute.xlu0 1
    %1984 = vperm.xlu0 %1983, %v1166
    %v1985 = vpop.permute.xlu0 %1984
    %1987 = vset.pattern.permute.xlu0 1
    %1988 = vperm.xlu0 %1987, %v1171
    %v1989 = vpop.permute.xlu0 %1988
    %1991 = vset.pattern.permute.xlu0 1
    %1992 = vperm.xlu0 %1991, %v1176
    %v1993 = vpop.permute.xlu0 %1992
    %1995 = vset.pattern.permute.xlu0 1
    %1996 = vperm.xlu0 %1995, %v1181
    %v1997 = vpop.permute.xlu0 %1996
    %1999 = vset.pattern.permute.xlu0 1
    %2000 = vperm.xlu0 %1999, %v1186
    %v2001 = vpop.permute.xlu0 %2000
    %2003 = vset.pattern.permute.xlu0 1
    %2004 = vperm.xlu0 %2003, %v1191
    %v2005 = vpop.permute.xlu0 %2004
    %v2007 = vlaneseq
    %v2008 = vshrl.u32 %v2007, 7
    %v2009 = vsub.s32 3, %v2008
    %v2010 = vrot.slane %v1210, %v2009
    %v2011 = vadd.f32 %v1945, %v2010
    %v2012 = vadd.f32 %v1949, %v2010
    %v2013 = vadd.f32 %v1953, %v2010
    %v2014 = vadd.f32 %v1957, %v2010
    %v2015 = vadd.f32 %v1961, %v2010
    %v2016 = vadd.f32 %v1965, %v2010
    %v2017 = vadd.f32 %v1969, %v2010
    %v2018 = vadd.f32 %v1973, %v2010
    %v2019 = vadd.f32 %v1977, %v2010
    %v2020 = vadd.f32 %v1981, %v2010
    %v2021 = vadd.f32 %v1985, %v2010
    %v2022 = vadd.f32 %v1989, %v2010
    %v2023 = vadd.f32 %v1993, %v2010
    %v2024 = vadd.f32 %v1997, %v2010
    %v2025 = vadd.f32 %v2001, %v2010
    %v2026 = vadd.f32 %v2005, %v2010
    %s2027 = sld [smem:[#allocation2 + $0x1]]
    %v2028 = vstv %s2027
    %v2029 = vmul.f32 %v137, %v2028
    %v2030 = vmul.f32 %v138, %v2028
    %v2031 = vmul.f32 %v139, %v2028
    %v2032 = vmul.f32 %v140, %v2028
    %v2033 = vmul.f32 %v141, %v2028
    %v2034 = vmul.f32 %v142, %v2028
    %v2035 = vmul.f32 %v143, %v2028
    %v2036 = vmul.f32 %v144, %v2028
    %v2037 = vmul.f32 %v145, %v2028
    %v2038 = vmul.f32 %v146, %v2028
    %v2039 = vmul.f32 %v147, %v2028
    %v2040 = vmul.f32 %v148, %v2028
    %v2041 = vmul.f32 %v149, %v2028
    %v2042 = vmul.f32 %v150, %v2028
    %v2043 = vmul.f32 %v151, %v2028
    %v2044 = vmul.f32 %v152, %v2028
    %v2045 = vadd.f32 %v2011, %v2029
    %v2046 = vadd.f32 %v2012, %v2030
    %v2047 = vadd.f32 %v2013, %v2031
    %v2048 = vadd.f32 %v2014, %v2032
    %v2049 = vadd.f32 %v2015, %v2033
    %v2050 = vadd.f32 %v2016, %v2034
    %v2051 = vadd.f32 %v2017, %v2035
    %v2052 = vadd.f32 %v2018, %v2036
    %v2053 = vadd.f32 %v2019, %v2037
    %v2054 = vadd.f32 %v2020, %v2038
    %v2055 = vadd.f32 %v2021, %v2039
    %v2056 = vadd.f32 %v2022, %v2040
    %v2057 = vadd.f32 %v2023, %v2041
    %v2058 = vadd.f32 %v2024, %v2042
    %v2059 = vadd.f32 %v2025, %v2043
    %v2060 = vadd.f32 %v2026, %v2044
    %s2061 = sld [smem:[#allocation2 + $0x3]]
    %v2062 = vstv %s2061
    %v2063 = vmul.f32 %v185, %v2062
    %v2064 = vmul.f32 %v186, %v2062
    %v2065 = vmul.f32 %v187, %v2062
    %v2066 = vmul.f32 %v188, %v2062
    %v2067 = vmul.f32 %v189, %v2062
    %v2068 = vmul.f32 %v190, %v2062
    %v2069 = vmul.f32 %v191, %v2062
    %v2070 = vmul.f32 %v192, %v2062
    %v2071 = vmul.f32 %v193, %v2062
    %v2072 = vmul.f32 %v194, %v2062
    %v2073 = vmul.f32 %v195, %v2062
    %v2074 = vmul.f32 %v196, %v2062
    %v2075 = vmul.f32 %v197, %v2062
    %v2076 = vmul.f32 %v198, %v2062
    %v2077 = vmul.f32 %v199, %v2062
    %v2078 = vmul.f32 %v200, %v2062
    %v2079 = vadd.f32 %v2045, %v2063
    %v2080 = vadd.f32 %v2046, %v2064
    %v2081 = vadd.f32 %v2047, %v2065
    %v2082 = vadd.f32 %v2048, %v2066
    %v2083 = vadd.f32 %v2049, %v2067
    %v2084 = vadd.f32 %v2050, %v2068
    %v2085 = vadd.f32 %v2051, %v2069
    %v2086 = vadd.f32 %v2052, %v2070
    %v2087 = vadd.f32 %v2053, %v2071
    %v2088 = vadd.f32 %v2054, %v2072
    %v2089 = vadd.f32 %v2055, %v2073
    %v2090 = vadd.f32 %v2056, %v2074
    %v2091 = vadd.f32 %v2057, %v2075
    %v2092 = vadd.f32 %v2058, %v2076
    %v2093 = vadd.f32 %v2059, %v2077
    %v2094 = vadd.f32 %v2060, %v2078
    %s2095 = sld [smem:[#allocation2 + $0x5]]
    %v2096 = vstv %s2095
    %v2097 = vmul.f32 %v233, %v2096
    %v2098 = vmul.f32 %v234, %v2096
    %v2099 = vmul.f32 %v235, %v2096
    %v2100 = vmul.f32 %v236, %v2096
    %v2101 = vmul.f32 %v237, %v2096
    %v2102 = vmul.f32 %v238, %v2096
    %v2103 = vmul.f32 %v239, %v2096
    %v2104 = vmul.f32 %v240, %v2096
    %v2105 = vmul.f32 %v241, %v2096
    %v2106 = vmul.f32 %v242, %v2096
    %v2107 = vmul.f32 %v243, %v2096
    %v2108 = vmul.f32 %v244, %v2096
    %v2109 = vmul.f32 %v245, %v2096
    %v2110 = vmul.f32 %v246, %v2096
    %v2111 = vmul.f32 %v247, %v2096
    %v2112 = vmul.f32 %v248, %v2096
    %v2113 = vadd.f32 %v2079, %v2097
    %v2114 = vadd.f32 %v2080, %v2098
    %v2115 = vadd.f32 %v2081, %v2099
    %v2116 = vadd.f32 %v2082, %v2100
    %v2117 = vadd.f32 %v2083, %v2101
    %v2118 = vadd.f32 %v2084, %v2102
    %v2119 = vadd.f32 %v2085, %v2103
    %v2120 = vadd.f32 %v2086, %v2104
    %v2121 = vadd.f32 %v2087, %v2105
    %v2122 = vadd.f32 %v2088, %v2106
    %v2123 = vadd.f32 %v2089, %v2107
    %v2124 = vadd.f32 %v2090, %v2108
    %v2125 = vadd.f32 %v2091, %v2109
    %v2126 = vadd.f32 %v2092, %v2110
    %v2127 = vadd.f32 %v2093, %v2111
    %v2128 = vadd.f32 %v2094, %v2112
    %s2129 = sld [smem:[#allocation2 + $0x7]]
    %v2130 = vstv %s2129
    %v2131 = vmul.f32 %v281, %v2130
    %v2132 = vmul.f32 %v282, %v2130
    %v2133 = vmul.f32 %v283, %v2130
    %v2134 = vmul.f32 %v284, %v2130
    %v2135 = vmul.f32 %v285, %v2130
    %v2136 = vmul.f32 %v286, %v2130
    %v2137 = vmul.f32 %v287, %v2130
    %v2138 = vmul.f32 %v288, %v2130
    %v2139 = vmul.f32 %v289, %v2130
    %v2140 = vmul.f32 %v290, %v2130
    %v2141 = vmul.f32 %v291, %v2130
    %v2142 = vmul.f32 %v292, %v2130
    %v2143 = vmul.f32 %v293, %v2130
    %v2144 = vmul.f32 %v294, %v2130
    %v2145 = vmul.f32 %v295, %v2130
    %v2146 = vmul.f32 %v296, %v2130
    %v2147 = vadd.f32 %v2113, %v2131
    %v2148 = vadd.f32 %v2114, %v2132
    %v2149 = vadd.f32 %v2115, %v2133
    %v2150 = vadd.f32 %v2116, %v2134
    %v2151 = vadd.f32 %v2117, %v2135
    %v2152 = vadd.f32 %v2118, %v2136
    %v2153 = vadd.f32 %v2119, %v2137
    %v2154 = vadd.f32 %v2120, %v2138
    %v2155 = vadd.f32 %v2121, %v2139
    %v2156 = vadd.f32 %v2122, %v2140
    %v2157 = vadd.f32 %v2123, %v2141
    %v2158 = vadd.f32 %v2124, %v2142
    %v2159 = vadd.f32 %v2125, %v2143
    %v2160 = vadd.f32 %v2126, %v2144
    %v2161 = vadd.f32 %v2127, %v2145
    %v2162 = vadd.f32 %v2128, %v2146
    %vm2163 = vcmp.gt.f32.partialorder %v2147, 0.0
    %vm2164 = vcmp.gt.f32.partialorder %v2148, 0.0
    %vm2165 = vcmp.gt.f32.partialorder %v2149, 0.0
    %vm2166 = vcmp.gt.f32.partialorder %v2150, 0.0
    %vm2167 = vcmp.gt.f32.partialorder %v2151, 0.0
    %vm2168 = vcmp.gt.f32.partialorder %v2152, 0.0
    %vm2169 = vcmp.gt.f32.partialorder %v2153, 0.0
    %vm2170 = vcmp.gt.f32.partialorder %v2154, 0.0
    %vm2171 = vcmp.gt.f32.partialorder %v2155, 0.0
    %vm2172 = vcmp.gt.f32.partialorder %v2156, 0.0
    %vm2173 = vcmp.gt.f32.partialorder %v2157, 0.0
    %vm2174 = vcmp.gt.f32.partialorder %v2158, 0.0
    %vm2175 = vcmp.gt.f32.partialorder %v2159, 0.0
    %vm2176 = vcmp.gt.f32.partialorder %v2160, 0.0
    %vm2177 = vcmp.gt.f32.partialorder %v2161, 0.0
    %vm2178 = vcmp.gt.f32.partialorder %v2162, 0.0
    %v2179 = vmul.f32 %v2147, 0.2
    %v2180 = vmul.f32 %v2148, 0.2
    %v2181 = vmul.f32 %v2149, 0.2
    %v2182 = vmul.f32 %v2150, 0.2
    %v2183 = vmul.f32 %v2151, 0.2
    %v2184 = vmul.f32 %v2152, 0.2
    %v2185 = vmul.f32 %v2153, 0.2
    %v2186 = vmul.f32 %v2154, 0.2
    %v2187 = vmul.f32 %v2155, 0.2
    %v2188 = vmul.f32 %v2156, 0.2
    %v2189 = vmul.f32 %v2157, 0.2
    %v2190 = vmul.f32 %v2158, 0.2
    %v2191 = vmul.f32 %v2159, 0.2
    %v2192 = vmul.f32 %v2160, 0.2
    %v2193 = vmul.f32 %v2161, 0.2
    %v2194 = vmul.f32 %v2162, 0.2
    %v2195 = vsel %vm2163, %v2147, %v2179
    %v2196 = vsel %vm2164, %v2148, %v2180
    %v2197 = vsel %vm2165, %v2149, %v2181
    %v2198 = vsel %vm2166, %v2150, %v2182
    %v2199 = vsel %vm2167, %v2151, %v2183
    %v2200 = vsel %vm2168, %v2152, %v2184
    %v2201 = vsel %vm2169, %v2153, %v2185
    %v2202 = vsel %vm2170, %v2154, %v2186
    %v2203 = vsel %vm2171, %v2155, %v2187
    %v2204 = vsel %vm2172, %v2156, %v2188
    %v2205 = vsel %vm2173, %v2157, %v2189
    %v2206 = vsel %vm2174, %v2158, %v2190
    %v2207 = vsel %vm2175, %v2159, %v2191
    %v2208 = vsel %vm2176, %v2160, %v2192
    %v2209 = vsel %vm2177, %v2161, %v2193
    %v2210 = vsel %vm2178, %v2162, %v2194
    %v2211 = vsel %vm89, %v2195, -1e+30
    %v2212 = vsel %vm90, %v2196, -1e+30
    %v2213 = vsel %vm91, %v2197, -1e+30
    %v2214 = vsel %vm92, %v2198, -1e+30
    %v2215 = vsel %vm93, %v2199, -1e+30
    %v2216 = vsel %vm94, %v2200, -1e+30
    %v2217 = vsel %vm95, %v2201, -1e+30
    %v2218 = vsel %vm96, %v2202, -1e+30
    %v2219 = vsel %vm97, %v2203, -1e+30
    %v2220 = vsel %vm98, %v2204, -1e+30
    %v2221 = vsel %vm99, %v2205, -1e+30
    %v2222 = vsel %vm100, %v2206, -1e+30
    %v2223 = vsel %vm101, %v2207, -1e+30
    %v2224 = vsel %vm102, %v2208, -1e+30
    %v2225 = vsel %vm103, %v2209, -1e+30
    %v2226 = vsel %vm104, %v2210, -1e+30
    %2227 = vmax.xlane.f32.xlu0 %v2211
    %v2228 = vpop.xlane.xlu0 %2227
    %2229 = vmax.xlane.f32.xlu0 %v2212
    %v2230 = vpop.xlane.xlu0 %2229
    %2231 = vmax.xlane.f32.xlu0 %v2213
    %v2232 = vpop.xlane.xlu0 %2231
    %2233 = vmax.xlane.f32.xlu0 %v2214
    %v2234 = vpop.xlane.xlu0 %2233
    %2235 = vmax.xlane.f32.xlu0 %v2215
    %v2236 = vpop.xlane.xlu0 %2235
    %2237 = vmax.xlane.f32.xlu0 %v2216
    %v2238 = vpop.xlane.xlu0 %2237
    %2239 = vmax.xlane.f32.xlu0 %v2217
    %v2240 = vpop.xlane.xlu0 %2239
    %2241 = vmax.xlane.f32.xlu0 %v2218
    %v2242 = vpop.xlane.xlu0 %2241
    %2243 = vmax.xlane.f32.xlu0 %v2219
    %v2244 = vpop.xlane.xlu0 %2243
    %2245 = vmax.xlane.f32.xlu0 %v2220
    %v2246 = vpop.xlane.xlu0 %2245
    %2247 = vmax.xlane.f32.xlu0 %v2221
    %v2248 = vpop.xlane.xlu0 %2247
    %2249 = vmax.xlane.f32.xlu0 %v2222
    %v2250 = vpop.xlane.xlu0 %2249
    %2251 = vmax.xlane.f32.xlu0 %v2223
    %v2252 = vpop.xlane.xlu0 %2251
    %2253 = vmax.xlane.f32.xlu0 %v2224
    %v2254 = vpop.xlane.xlu0 %2253
    %2255 = vmax.xlane.f32.xlu0 %v2225
    %v2256 = vpop.xlane.xlu0 %2255
    %2257 = vmax.xlane.f32.xlu0 %v2226
    %v2258 = vpop.xlane.xlu0 %2257
    %v2259 = vsub.f32 %v2211, %v2228
    %v2260 = vsub.f32 %v2212, %v2230
    %v2261 = vsub.f32 %v2213, %v2232
    %v2262 = vsub.f32 %v2214, %v2234
    %v2263 = vsub.f32 %v2215, %v2236
    %v2264 = vsub.f32 %v2216, %v2238
    %v2265 = vsub.f32 %v2217, %v2240
    %v2266 = vsub.f32 %v2218, %v2242
    %v2267 = vsub.f32 %v2219, %v2244
    %v2268 = vsub.f32 %v2220, %v2246
    %v2269 = vsub.f32 %v2221, %v2248
    %v2270 = vsub.f32 %v2222, %v2250
    %v2271 = vsub.f32 %v2223, %v2252
    %v2272 = vsub.f32 %v2224, %v2254
    %v2273 = vsub.f32 %v2225, %v2256
    %v2274 = vsub.f32 %v2226, %v2258
    %v2275 = vmul.f32 %v2259, 1.442695
    %v2276 = vpow.pop %v2275
    %v2277 = vmul.f32 %v2260, 1.442695
    %v2278 = vpow.pop %v2277
    %v2279 = vmul.f32 %v2261, 1.442695
    %v2280 = vpow.pop %v2279
    %v2281 = vmul.f32 %v2262, 1.442695
    %v2282 = vpow.pop %v2281
    %v2283 = vmul.f32 %v2263, 1.442695
    %v2284 = vpow.pop %v2283
    %v2285 = vmul.f32 %v2264, 1.442695
    %v2286 = vpow.pop %v2285
    %v2287 = vmul.f32 %v2265, 1.442695
    %v2288 = vpow.pop %v2287
    %v2289 = vmul.f32 %v2266, 1.442695
    %v2290 = vpow.pop %v2289
    %v2291 = vmul.f32 %v2267, 1.442695
    %v2292 = vpow.pop %v2291
    %v2293 = vmul.f32 %v2268, 1.442695
    %v2294 = vpow.pop %v2293
    %v2295 = vmul.f32 %v2269, 1.442695
    %v2296 = vpow.pop %v2295
    %v2297 = vmul.f32 %v2270, 1.442695
    %v2298 = vpow.pop %v2297
    %v2299 = vmul.f32 %v2271, 1.442695
    %v2300 = vpow.pop %v2299
    %v2301 = vmul.f32 %v2272, 1.442695
    %v2302 = vpow.pop %v2301
    %v2303 = vmul.f32 %v2273, 1.442695
    %v2304 = vpow.pop %v2303
    %v2305 = vmul.f32 %v2274, 1.442695
    %v2306 = vpow.pop %v2305
    %v2307 = vmul.f32 %v2276, %v57
    %v2308 = vmul.f32 %v2278, %v58
    %v2309 = vmul.f32 %v2280, %v59
    %v2310 = vmul.f32 %v2282, %v60
    %v2311 = vmul.f32 %v2284, %v61
    %v2312 = vmul.f32 %v2286, %v62
    %v2313 = vmul.f32 %v2288, %v63
    %v2314 = vmul.f32 %v2290, %v64
    %v2315 = vmul.f32 %v2292, %v65
    %v2316 = vmul.f32 %v2294, %v66
    %v2317 = vmul.f32 %v2296, %v67
    %v2318 = vmul.f32 %v2298, %v68
    %v2319 = vmul.f32 %v2300, %v69
    %v2320 = vmul.f32 %v2302, %v70
    %v2321 = vmul.f32 %v2304, %v71
    %v2322 = vmul.f32 %v2306, %v72
    %2323 = vadd.xlane.f32.xlu0 %v2307
    %v2324 = vpop.xlane.xlu0 %2323
    %2325 = vadd.xlane.f32.xlu0 %v2308
    %v2326 = vpop.xlane.xlu0 %2325
    %2327 = vadd.xlane.f32.xlu0 %v2309
    %v2328 = vpop.xlane.xlu0 %2327
    %2329 = vadd.xlane.f32.xlu0 %v2310
    %v2330 = vpop.xlane.xlu0 %2329
    %2331 = vadd.xlane.f32.xlu0 %v2311
    %v2332 = vpop.xlane.xlu0 %2331
    %2333 = vadd.xlane.f32.xlu0 %v2312
    %v2334 = vpop.xlane.xlu0 %2333
    %2335 = vadd.xlane.f32.xlu0 %v2313
    %v2336 = vpop.xlane.xlu0 %2335
    %2337 = vadd.xlane.f32.xlu0 %v2314
    %v2338 = vpop.xlane.xlu0 %2337
    %2339 = vadd.xlane.f32.xlu0 %v2315
    %v2340 = vpop.xlane.xlu0 %2339
    %2341 = vadd.xlane.f32.xlu0 %v2316
    %v2342 = vpop.xlane.xlu0 %2341
    %2343 = vadd.xlane.f32.xlu0 %v2317
    %v2344 = vpop.xlane.xlu0 %2343
    %2345 = vadd.xlane.f32.xlu0 %v2318
    %v2346 = vpop.xlane.xlu0 %2345
    %2347 = vadd.xlane.f32.xlu0 %v2319
    %v2348 = vpop.xlane.xlu0 %2347
    %2349 = vadd.xlane.f32.xlu0 %v2320
    %v2350 = vpop.xlane.xlu0 %2349
    %2351 = vadd.xlane.f32.xlu0 %v2321
    %v2352 = vpop.xlane.xlu0 %2351
    %2353 = vadd.xlane.f32.xlu0 %v2322
    %v2354 = vpop.xlane.xlu0 %2353
    %v2355 = vmax.f32 %v2324, 1e-30
    %v2356 = vmax.f32 %v2326, 1e-30
    %v2357 = vmax.f32 %v2328, 1e-30
    %v2358 = vmax.f32 %v2330, 1e-30
    %v2359 = vmax.f32 %v2332, 1e-30
    %v2360 = vmax.f32 %v2334, 1e-30
    %v2361 = vmax.f32 %v2336, 1e-30
    %v2362 = vmax.f32 %v2338, 1e-30
    %v2363 = vmax.f32 %v2340, 1e-30
    %v2364 = vmax.f32 %v2342, 1e-30
    %v2365 = vmax.f32 %v2344, 1e-30
    %v2366 = vmax.f32 %v2346, 1e-30
    %v2367 = vmax.f32 %v2348, 1e-30
    %v2368 = vmax.f32 %v2350, 1e-30
    %v2369 = vmax.f32 %v2352, 1e-30
    %v2370 = vmax.f32 %v2354, 1e-30
    %v2371 = vrcp.pop %v2355
    %v2372 = vmul.f32 1.0, %v2371
    %v2373 = vrcp.pop %v2356
    %v2374 = vmul.f32 1.0, %v2373
    %v2375 = vrcp.pop %v2357
    %v2376 = vmul.f32 1.0, %v2375
    %v2377 = vrcp.pop %v2358
    %v2378 = vmul.f32 1.0, %v2377
    %v2379 = vrcp.pop %v2359
    %v2380 = vmul.f32 1.0, %v2379
    %v2381 = vrcp.pop %v2360
    %v2382 = vmul.f32 1.0, %v2381
    %v2383 = vrcp.pop %v2361
    %v2384 = vmul.f32 1.0, %v2383
    %v2385 = vrcp.pop %v2362
    %v2386 = vmul.f32 1.0, %v2385
    %v2387 = vrcp.pop %v2363
    %v2388 = vmul.f32 1.0, %v2387
    %v2389 = vrcp.pop %v2364
    %v2390 = vmul.f32 1.0, %v2389
    %v2391 = vrcp.pop %v2365
    %v2392 = vmul.f32 1.0, %v2391
    %v2393 = vrcp.pop %v2366
    %v2394 = vmul.f32 1.0, %v2393
    %v2395 = vrcp.pop %v2367
    %v2396 = vmul.f32 1.0, %v2395
    %v2397 = vrcp.pop %v2368
    %v2398 = vmul.f32 1.0, %v2397
    %v2399 = vrcp.pop %v2369
    %v2400 = vmul.f32 1.0, %v2399
    %v2401 = vrcp.pop %v2370
    %v2402 = vmul.f32 1.0, %v2401
    %v2403 = vmul.f32 %v2307, %v2372
    %v2404 = vmul.f32 %v2308, %v2374
    %v2405 = vmul.f32 %v2309, %v2376
    %v2406 = vmul.f32 %v2310, %v2378
    %v2407 = vmul.f32 %v2311, %v2380
    %v2408 = vmul.f32 %v2312, %v2382
    %v2409 = vmul.f32 %v2313, %v2384
    %v2410 = vmul.f32 %v2314, %v2386
    %v2411 = vmul.f32 %v2315, %v2388
    %v2412 = vmul.f32 %v2316, %v2390
    %v2413 = vmul.f32 %v2317, %v2392
    %v2414 = vmul.f32 %v2318, %v2394
    %v2415 = vmul.f32 %v2319, %v2396
    %v2416 = vmul.f32 %v2320, %v2398
    %v2417 = vmul.f32 %v2321, %v2400
    %v2418 = vmul.f32 %v2322, %v2402
    %2419 = vrot.lane.b32.xlu0 %v910, 80
    %v2420 = vpop.permute.xlu0 %2419
    %2421 = vrot.lane.b32.xlu0 %v915, 80
    %v2422 = vpop.permute.xlu0 %2421
    %2423 = vrot.lane.b32.xlu0 %v920, 80
    %v2424 = vpop.permute.xlu0 %2423
    %2425 = vrot.lane.b32.xlu0 %v925, 80
    %v2426 = vpop.permute.xlu0 %2425
    %2427 = vrot.lane.b32.xlu0 %v930, 80
    %v2428 = vpop.permute.xlu0 %2427
    %2429 = vrot.lane.b32.xlu0 %v935, 80
    %v2430 = vpop.permute.xlu0 %2429
    %2431 = vrot.lane.b32.xlu0 %v940, 80
    %v2432 = vpop.permute.xlu0 %2431
    %2433 = vrot.lane.b32.xlu0 %v945, 80
    %v2434 = vpop.permute.xlu0 %2433
    %2435 = vrot.lane.b32.xlu0 %v950, 80
    %v2436 = vpop.permute.xlu0 %2435
    %2437 = vrot.lane.b32.xlu0 %v955, 80
    %v2438 = vpop.permute.xlu0 %2437
    %2439 = vrot.lane.b32.xlu0 %v960, 80
    %v2440 = vpop.permute.xlu0 %2439
    %2441 = vrot.lane.b32.xlu0 %v965, 80
    %v2442 = vpop.permute.xlu0 %2441
    %2443 = vrot.lane.b32.xlu0 %v970, 80
    %v2444 = vpop.permute.xlu0 %2443
    %2445 = vrot.lane.b32.xlu0 %v975, 80
    %v2446 = vpop.permute.xlu0 %2445
    %2447 = vrot.lane.b32.xlu0 %v980, 80
    %v2448 = vpop.permute.xlu0 %2447
    %2449 = vrot.lane.b32.xlu0 %v985, 80
    %v2450 = vpop.permute.xlu0 %2449
    %2467 = vmatprep.subr.mxu0 0.0
    %2468 = vmatpush1.msra.mxu0 %v2420
    %2469 = vmatprep.subr.mxu0 0.0
    %2470 = vmatpush1.msra.mxu0 %v2422
    %2471 = vmatprep.subr.mxu0 0.0
    %2472 = vmatpush1.msra.mxu0 %v2424
    %2473 = vmatprep.subr.mxu0 0.0
    %2474 = vmatpush1.msra.mxu0 %v2426
    %2475 = vmatprep.subr.mxu0 0.0
    %2476 = vmatpush1.msra.mxu0 %v2428
    %2477 = vmatprep.subr.mxu0 0.0
    %2478 = vmatpush1.msra.mxu0 %v2430
    %2479 = vmatprep.subr.mxu0 0.0
    %2480 = vmatpush1.msra.mxu0 %v2432
    %2481 = vmatprep.subr.mxu0 0.0
    %2482 = vmatpush1.msra.mxu0 %v2434
    %2483 = vmatprep.subr.mxu0 0.0
    %2484 = vmatpush1.msra.mxu0 %v2436
    %2485 = vmatprep.subr.mxu0 0.0
    %2486 = vmatpush1.msra.mxu0 %v2438
    %2487 = vmatprep.subr.mxu0 0.0
    %2488 = vmatpush1.msra.mxu0 %v2440
    %2489 = vmatprep.subr.mxu0 0.0
    %2490 = vmatpush1.msra.mxu0 %v2442
    %2491 = vmatprep.subr.mxu0 0.0
    %2492 = vmatpush1.msra.mxu0 %v2444
    %2493 = vmatprep.subr.mxu0 0.0
    %2494 = vmatpush1.msra.mxu0 %v2446
    %2495 = vmatprep.subr.mxu0 0.0
    %2496 = vmatpush1.msra.mxu0 %v2448
    %2497 = vmatprep.subr.mxu0 0.0
    %2498 = vmatpush1.msra.mxu0 %v2450
    %2499 = vmatprep.subr.mxu0 0.0
    %2500 = vmatpush1.msra.mxu0 0.0
    %2501 = vmatprep.subr.mxu0 0.0
    %2502 = vmatpush1.msra.mxu0 0.0
    %2503 = vmatprep.subr.mxu0 0.0
    %2504 = vmatpush1.msra.mxu0 0.0
    %2505 = vmatprep.subr.mxu0 0.0
    %2506 = vmatpush1.msra.mxu0 0.0
    %2507 = vmatprep.subr.mxu0 0.0
    %2508 = vmatpush1.msra.mxu0 0.0
    %2509 = vmatprep.subr.mxu0 0.0
    %2510 = vmatpush1.msra.mxu0 0.0
    %2511 = vmatprep.subr.mxu0 0.0
    %2512 = vmatpush1.msra.mxu0 0.0
    %2513 = vmatprep.subr.mxu0 0.0
    %2514 = vmatpush1.msra.mxu0 0.0
    %2515 = vmatprep.subr.mxu0 0.0
    %2516 = vmatpush1.msra.mxu0 0.0
    %2517 = vmatprep.subr.mxu0 0.0
    %2518 = vmatpush1.msra.mxu0 0.0
    %2519 = vmatprep.subr.mxu0 0.0
    %2520 = vmatpush1.msra.mxu0 0.0
    %2521 = vmatprep.subr.mxu0 0.0
    %2522 = vmatpush1.msra.mxu0 0.0
    %2523 = vmatprep.subr.mxu0 0.0
    %2524 = vmatpush1.msra.mxu0 0.0
    %2525 = vmatprep.subr.mxu0 0.0
    %2526 = vmatpush1.msra.mxu0 0.0
    %2527 = vmatprep.subr.mxu0 0.0
    %2528 = vmatpush1.msra.mxu0 0.0
    %2529 = vmatprep.subr.mxu0 0.0
    %2530 = vmatpush1.msra.mxu0 0.0
    %2531 = vmatprep.mubr.f32.mxu0 0.0
    %2532 = vmatmul.mubr.f32.gmra.mrb[0].mxu0 %v2403
    %v2533 = vpop.f32.mrb[0].mxu0
    %v2534 = vadd.f32 0.0, %v2533
    %v2535 = vpop.f32.mrb[0].mxu0
    %2536 = vmatprep.mubr.f32.mxu0 0.0
    %2537 = vmatmul.mubr.f32.gmra.mrb[0].mxu0 %v2404
    %v2538 = vpop.f32.mrb[0].mxu0
    %v2539 = vadd.f32 0.0, %v2538
    %v2540 = vpop.f32.mrb[0].mxu0
    %2541 = vmatprep.mubr.f32.mxu0 0.0
    %2542 = vmatmul.mubr.f32.gmra.mrb[0].mxu0 %v2405
    %v2543 = vpop.f32.mrb[0].mxu0
    %v2544 = vadd.f32 0.0, %v2543
    %v2545 = vpop.f32.mrb[0].mxu0
    %2546 = vmatprep.mubr.f32.mxu0 0.0
    %2547 = vmatmul.mubr.f32.gmra.mrb[0].mxu0 %v2406
    %v2548 = vpop.f32.mrb[0].mxu0
    %v2549 = vadd.f32 0.0, %v2548
    %v2550 = vpop.f32.mrb[0].mxu0
    %2551 = vmatprep.mubr.f32.mxu0 0.0
    %2552 = vmatmul.mubr.f32.gmra.mrb[0].mxu0 %v2407
    %v2553 = vpop.f32.mrb[0].mxu0
    %v2554 = vadd.f32 0.0, %v2553
    %v2555 = vpop.f32.mrb[0].mxu0
    %2556 = vmatprep.mubr.f32.mxu0 0.0
    %2557 = vmatmul.mubr.f32.gmra.mrb[0].mxu0 %v2408
    %v2558 = vpop.f32.mrb[0].mxu0
    %v2559 = vadd.f32 0.0, %v2558
    %v2560 = vpop.f32.mrb[0].mxu0
    %2561 = vmatprep.mubr.f32.mxu0 0.0
    %2562 = vmatmul.mubr.f32.gmra.mrb[0].mxu0 %v2409
    %v2563 = vpop.f32.mrb[0].mxu0
    %v2564 = vadd.f32 0.0, %v2563
    %v2565 = vpop.f32.mrb[0].mxu0
    %2566 = vmatprep.mubr.f32.mxu0 0.0
    %2567 = vmatmul.mubr.f32.gmra.mrb[0].mxu0 %v2410
    %v2568 = vpop.f32.mrb[0].mxu0
    %v2569 = vadd.f32 0.0, %v2568
    %v2570 = vpop.f32.mrb[0].mxu0
    %2571 = vmatprep.mubr.f32.mxu0 0.0
    %2572 = vmatmul.mubr.f32.gmra.mrb[0].mxu0 %v2411
    %v2573 = vpop.f32.mrb[0].mxu0
    %v2574 = vadd.f32 0.0, %v2573
    %v2575 = vpop.f32.mrb[0].mxu0
    %2576 = vmatprep.mubr.f32.mxu0 0.0
    %2577 = vmatmul.mubr.f32.gmra.mrb[0].mxu0 %v2412
    %v2578 = vpop.f32.mrb[0].mxu0
    %v2579 = vadd.f32 0.0, %v2578
    %v2580 = vpop.f32.mrb[0].mxu0
    %2581 = vmatprep.mubr.f32.mxu0 0.0
    %2582 = vmatmul.mubr.f32.gmra.mrb[0].mxu0 %v2413
    %v2583 = vpop.f32.mrb[0].mxu0
    %v2584 = vadd.f32 0.0, %v2583
    %v2585 = vpop.f32.mrb[0].mxu0
    %2586 = vmatprep.mubr.f32.mxu0 0.0
    %2587 = vmatmul.mubr.f32.gmra.mrb[0].mxu0 %v2414
    %v2588 = vpop.f32.mrb[0].mxu0
    %v2589 = vadd.f32 0.0, %v2588
    %v2590 = vpop.f32.mrb[0].mxu0
    %2591 = vmatprep.mubr.f32.mxu0 0.0
    %2592 = vmatmul.mubr.f32.gmra.mrb[0].mxu0 %v2415
    %v2593 = vpop.f32.mrb[0].mxu0
    %v2594 = vadd.f32 0.0, %v2593
    %v2595 = vpop.f32.mrb[0].mxu0
    %2596 = vmatprep.mubr.f32.mxu0 0.0
    %2597 = vmatmul.mubr.f32.gmra.mrb[0].mxu0 %v2416
    %v2598 = vpop.f32.mrb[0].mxu0
    %v2599 = vadd.f32 0.0, %v2598
    %v2600 = vpop.f32.mrb[0].mxu0
    %2601 = vmatprep.mubr.f32.mxu0 0.0
    %2602 = vmatmul.mubr.f32.gmra.mrb[0].mxu0 %v2417
    %v2603 = vpop.f32.mrb[0].mxu0
    %v2604 = vadd.f32 0.0, %v2603
    %v2605 = vpop.f32.mrb[0].mxu0
    %2606 = vmatprep.mubr.f32.mxu0 0.0
    %2607 = vmatmul.mubr.f32.gmra.mrb[0].mxu0 %v2418
    %v2608 = vpop.f32.mrb[0].mxu0
    %v2609 = vadd.f32 0.0, %v2608
    %v2610 = vpop.f32.mrb[0].mxu0
    %2611 = vdwg.mxu0
    %vm2612 = vcmp.gt.f32.partialorder %v2534, 0.0
    %vm2613 = vcmp.gt.f32.partialorder %v2539, 0.0
    %vm2614 = vcmp.gt.f32.partialorder %v2544, 0.0
    %vm2615 = vcmp.gt.f32.partialorder %v2549, 0.0
    %vm2616 = vcmp.gt.f32.partialorder %v2554, 0.0
    %vm2617 = vcmp.gt.f32.partialorder %v2559, 0.0
    %vm2618 = vcmp.gt.f32.partialorder %v2564, 0.0
    %vm2619 = vcmp.gt.f32.partialorder %v2569, 0.0
    %vm2620 = vcmp.gt.f32.partialorder %v2574, 0.0
    %vm2621 = vcmp.gt.f32.partialorder %v2579, 0.0
    %vm2622 = vcmp.gt.f32.partialorder %v2584, 0.0
    %vm2623 = vcmp.gt.f32.partialorder %v2589, 0.0
    %vm2624 = vcmp.gt.f32.partialorder %v2594, 0.0
    %vm2625 = vcmp.gt.f32.partialorder %v2599, 0.0
    %vm2626 = vcmp.gt.f32.partialorder %v2604, 0.0
    %vm2627 = vcmp.gt.f32.partialorder %v2609, 0.0
    %v2628 = vmul.f32 %v2534, 1.442695
    %v2629 = vpow.pop %v2628
    %v2630 = vmul.f32 %v2539, 1.442695
    %v2631 = vpow.pop %v2630
    %v2632 = vmul.f32 %v2544, 1.442695
    %v2633 = vpow.pop %v2632
    %v2634 = vmul.f32 %v2549, 1.442695
    %v2635 = vpow.pop %v2634
    %v2636 = vmul.f32 %v2554, 1.442695
    %v2637 = vpow.pop %v2636
    %v2638 = vmul.f32 %v2559, 1.442695
    %v2639 = vpow.pop %v2638
    %v2640 = vmul.f32 %v2564, 1.442695
    %v2641 = vpow.pop %v2640
    %v2642 = vmul.f32 %v2569, 1.442695
    %v2643 = vpow.pop %v2642
    %v2644 = vmul.f32 %v2574, 1.442695
    %v2645 = vpow.pop %v2644
    %v2646 = vmul.f32 %v2579, 1.442695
    %v2647 = vpow.pop %v2646
    %v2648 = vmul.f32 %v2584, 1.442695
    %v2649 = vpow.pop %v2648
    %v2650 = vmul.f32 %v2589, 1.442695
    %v2651 = vpow.pop %v2650
    %v2652 = vmul.f32 %v2594, 1.442695
    %v2653 = vpow.pop %v2652
    %v2654 = vmul.f32 %v2599, 1.442695
    %v2655 = vpow.pop %v2654
    %v2656 = vmul.f32 %v2604, 1.442695
    %v2657 = vpow.pop %v2656
    %v2658 = vmul.f32 %v2609, 1.442695
    %v2659 = vpow.pop %v2658
    %v2660 = vsub.f32 %v2629, 1.0
    %v2661 = vsub.f32 %v2631, 1.0
    %v2662 = vsub.f32 %v2633, 1.0
    %v2663 = vsub.f32 %v2635, 1.0
    %v2664 = vsub.f32 %v2637, 1.0
    %v2665 = vsub.f32 %v2639, 1.0
    %v2666 = vsub.f32 %v2641, 1.0
    %v2667 = vsub.f32 %v2643, 1.0
    %v2668 = vsub.f32 %v2645, 1.0
    %v2669 = vsub.f32 %v2647, 1.0
    %v2670 = vsub.f32 %v2649, 1.0
    %v2671 = vsub.f32 %v2651, 1.0
    %v2672 = vsub.f32 %v2653, 1.0
    %v2673 = vsub.f32 %v2655, 1.0
    %v2674 = vsub.f32 %v2657, 1.0
    %v2675 = vsub.f32 %v2659, 1.0
    %v2676 = vsel %vm2612, %v2534, %v2660
    %v2677 = vsel %vm2613, %v2539, %v2661
    %v2678 = vsel %vm2614, %v2544, %v2662
    %v2679 = vsel %vm2615, %v2549, %v2663
    %v2680 = vsel %vm2616, %v2554, %v2664
    %v2681 = vsel %vm2617, %v2559, %v2665
    %v2682 = vsel %vm2618, %v2564, %v2666
    %v2683 = vsel %vm2619, %v2569, %v2667
    %v2684 = vsel %vm2620, %v2574, %v2668
    %v2685 = vsel %vm2621, %v2579, %v2669
    %v2686 = vsel %vm2622, %v2584, %v2670
    %v2687 = vsel %vm2623, %v2589, %v2671
    %v2688 = vsel %vm2624, %v2594, %v2672
    %v2689 = vsel %vm2625, %v2599, %v2673
    %v2690 = vsel %vm2626, %v2604, %v2674
    %v2691 = vsel %vm2627, %v2609, %v2675
    %v2692 = vadd.f32 %v1927, %v2676
    %v2693 = vadd.f32 %v1928, %v2677
    %v2694 = vadd.f32 %v1929, %v2678
    %v2695 = vadd.f32 %v1930, %v2679
    %v2696 = vadd.f32 %v1931, %v2680
    %v2697 = vadd.f32 %v1932, %v2681
    %v2698 = vadd.f32 %v1933, %v2682
    %v2699 = vadd.f32 %v1934, %v2683
    %v2700 = vadd.f32 %v1935, %v2684
    %v2701 = vadd.f32 %v1936, %v2685
    %v2702 = vadd.f32 %v1937, %v2686
    %v2703 = vadd.f32 %v1938, %v2687
    %v2704 = vadd.f32 %v1939, %v2688
    %v2705 = vadd.f32 %v1940, %v2689
    %v2706 = vadd.f32 %v1941, %v2690
    %v2707 = vadd.f32 %v1942, %v2691
    %v2708 = vmul.f32 %v2692, 0.5
    %v2709 = vmul.f32 %v2693, 0.5
    %v2710 = vmul.f32 %v2694, 0.5
    %v2711 = vmul.f32 %v2695, 0.5
    %v2712 = vmul.f32 %v2696, 0.5
    %v2713 = vmul.f32 %v2697, 0.5
    %v2714 = vmul.f32 %v2698, 0.5
    %v2715 = vmul.f32 %v2699, 0.5
    %v2716 = vmul.f32 %v2700, 0.5
    %v2717 = vmul.f32 %v2701, 0.5
    %v2718 = vmul.f32 %v2702, 0.5
    %v2719 = vmul.f32 %v2703, 0.5
    %v2720 = vmul.f32 %v2704, 0.5
    %v2721 = vmul.f32 %v2705, 0.5
    %v2722 = vmul.f32 %v2706, 0.5
    %v2723 = vmul.f32 %v2707, 0.5
    %v2724 = vmul.f32 %v2708, %v2708
    %v2725 = vmul.f32 %v2709, %v2709
    %v2726 = vmul.f32 %v2710, %v2710
    %v2727 = vmul.f32 %v2711, %v2711
    %v2728 = vmul.f32 %v2712, %v2712
    %v2729 = vmul.f32 %v2713, %v2713
    %v2730 = vmul.f32 %v2714, %v2714
    %v2731 = vmul.f32 %v2715, %v2715
    %v2732 = vmul.f32 %v2716, %v2716
    %v2733 = vmul.f32 %v2717, %v2717
    %v2734 = vmul.f32 %v2718, %v2718
    %v2735 = vmul.f32 %v2719, %v2719
    %v2736 = vmul.f32 %v2720, %v2720
    %v2737 = vmul.f32 %v2721, %v2721
    %v2738 = vmul.f32 %v2722, %v2722
    %v2739 = vmul.f32 %v2723, %v2723
    %v2740 = vsel %vm532, %v2724, 0.0
    %2741 = vadd.xlane.f32.xlu0 %v2740
    %v2742 = vpop.xlane.xlu0 %2741
    %v2743 = vsel %vm532, %v2725, 0.0
    %2744 = vadd.xlane.f32.xlu0 %v2743
    %v2745 = vpop.xlane.xlu0 %2744
    %v2746 = vsel %vm532, %v2726, 0.0
    %2747 = vadd.xlane.f32.xlu0 %v2746
    %v2748 = vpop.xlane.xlu0 %2747
    %v2749 = vsel %vm532, %v2727, 0.0
    %2750 = vadd.xlane.f32.xlu0 %v2749
    %v2751 = vpop.xlane.xlu0 %2750
    %v2752 = vsel %vm532, %v2728, 0.0
    %2753 = vadd.xlane.f32.xlu0 %v2752
    %v2754 = vpop.xlane.xlu0 %2753
    %v2755 = vsel %vm532, %v2729, 0.0
    %2756 = vadd.xlane.f32.xlu0 %v2755
    %v2757 = vpop.xlane.xlu0 %2756
    %v2758 = vsel %vm532, %v2730, 0.0
    %2759 = vadd.xlane.f32.xlu0 %v2758
    %v2760 = vpop.xlane.xlu0 %2759
    %v2761 = vsel %vm532, %v2731, 0.0
    %2762 = vadd.xlane.f32.xlu0 %v2761
    %v2763 = vpop.xlane.xlu0 %2762
    %v2764 = vsel %vm532, %v2732, 0.0
    %2765 = vadd.xlane.f32.xlu0 %v2764
    %v2766 = vpop.xlane.xlu0 %2765
    %v2767 = vsel %vm532, %v2733, 0.0
    %2768 = vadd.xlane.f32.xlu0 %v2767
    %v2769 = vpop.xlane.xlu0 %2768
    %v2770 = vsel %vm532, %v2734, 0.0
    %2771 = vadd.xlane.f32.xlu0 %v2770
    %v2772 = vpop.xlane.xlu0 %2771
    %v2773 = vsel %vm532, %v2735, 0.0
    %2774 = vadd.xlane.f32.xlu0 %v2773
    %v2775 = vpop.xlane.xlu0 %2774
    %v2776 = vsel %vm532, %v2736, 0.0
    %2777 = vadd.xlane.f32.xlu0 %v2776
    %v2778 = vpop.xlane.xlu0 %2777
    %v2779 = vsel %vm532, %v2737, 0.0
    %2780 = vadd.xlane.f32.xlu0 %v2779
    %v2781 = vpop.xlane.xlu0 %2780
    %v2782 = vsel %vm532, %v2738, 0.0
    %2783 = vadd.xlane.f32.xlu0 %v2782
    %v2784 = vpop.xlane.xlu0 %2783
    %v2785 = vsel %vm532, %v2739, 0.0
    %2786 = vadd.xlane.f32.xlu0 %v2785
    %v2787 = vpop.xlane.xlu0 %2786
    %v2788 = vmax.f32 %v2742, 1e-24
    %v2789 = vmax.f32 %v2745, 1e-24
    %v2790 = vmax.f32 %v2748, 1e-24
    %v2791 = vmax.f32 %v2751, 1e-24
    %v2792 = vmax.f32 %v2754, 1e-24
    %v2793 = vmax.f32 %v2757, 1e-24
    %v2794 = vmax.f32 %v2760, 1e-24
    %v2795 = vmax.f32 %v2763, 1e-24
    %v2796 = vmax.f32 %v2766, 1e-24
    %v2797 = vmax.f32 %v2769, 1e-24
    %v2798 = vmax.f32 %v2772, 1e-24
    %v2799 = vmax.f32 %v2775, 1e-24
    %v2800 = vmax.f32 %v2778, 1e-24
    %v2801 = vmax.f32 %v2781, 1e-24
    %v2802 = vmax.f32 %v2784, 1e-24
    %v2803 = vmax.f32 %v2787, 1e-24
    %v2804 = vrsqrt.pop %v2788
    %v2805 = vrsqrt.pop %v2789
    %v2806 = vrsqrt.pop %v2790
    %v2807 = vrsqrt.pop %v2791
    %v2808 = vrsqrt.pop %v2792
    %v2809 = vrsqrt.pop %v2793
    %v2810 = vrsqrt.pop %v2794
    %v2811 = vrsqrt.pop %v2795
    %v2812 = vrsqrt.pop %v2796
    %v2813 = vrsqrt.pop %v2797
    %v2814 = vrsqrt.pop %v2798
    %v2815 = vrsqrt.pop %v2799
    %v2816 = vrsqrt.pop %v2800
    %v2817 = vrsqrt.pop %v2801
    %v2818 = vrsqrt.pop %v2802
    %v2819 = vrsqrt.pop %v2803
    %v2820 = vmul.f32 %v2708, %v2804
    %v2821 = vmul.f32 %v2709, %v2805
    %v2822 = vmul.f32 %v2710, %v2806
    %v2823 = vmul.f32 %v2711, %v2807
    %v2824 = vmul.f32 %v2712, %v2808
    %v2825 = vmul.f32 %v2713, %v2809
    %v2826 = vmul.f32 %v2714, %v2810
    %v2827 = vmul.f32 %v2715, %v2811
    %v2828 = vmul.f32 %v2716, %v2812
    %v2829 = vmul.f32 %v2717, %v2813
    %v2830 = vmul.f32 %v2718, %v2814
    %v2831 = vmul.f32 %v2719, %v2815
    %v2832 = vmul.f32 %v2720, %v2816
    %v2833 = vmul.f32 %v2721, %v2817
    %v2834 = vmul.f32 %v2722, %v2818
    %v2835 = vmul.f32 %v2723, %v2819
    %2852 = vrot.lane.b32.xlu0 %v2820, 112
    %v2853 = vpop.permute.xlu0 %2852
    %2854 = vrot.lane.b32.xlu0 %v2821, 112
    %v2855 = vpop.permute.xlu0 %2854
    %2856 = vrot.lane.b32.xlu0 %v2822, 112
    %v2857 = vpop.permute.xlu0 %2856
    %2858 = vrot.lane.b32.xlu0 %v2823, 112
    %v2859 = vpop.permute.xlu0 %2858
    %2860 = vrot.lane.b32.xlu0 %v2824, 112
    %v2861 = vpop.permute.xlu0 %2860
    %2862 = vrot.lane.b32.xlu0 %v2825, 112
    %v2863 = vpop.permute.xlu0 %2862
    %2864 = vrot.lane.b32.xlu0 %v2826, 112
    %v2865 = vpop.permute.xlu0 %2864
    %2866 = vrot.lane.b32.xlu0 %v2827, 112
    %v2867 = vpop.permute.xlu0 %2866
    %2868 = vrot.lane.b32.xlu0 %v2828, 112
    %v2869 = vpop.permute.xlu0 %2868
    %2870 = vrot.lane.b32.xlu0 %v2829, 112
    %v2871 = vpop.permute.xlu0 %2870
    %2872 = vrot.lane.b32.xlu0 %v2830, 112
    %v2873 = vpop.permute.xlu0 %2872
    %2874 = vrot.lane.b32.xlu0 %v2831, 112
    %v2875 = vpop.permute.xlu0 %2874
    %2876 = vrot.lane.b32.xlu0 %v2832, 112
    %v2877 = vpop.permute.xlu0 %2876
    %2878 = vrot.lane.b32.xlu0 %v2833, 112
    %v2879 = vpop.permute.xlu0 %2878
    %2880 = vrot.lane.b32.xlu0 %v2834, 112
    %v2881 = vpop.permute.xlu0 %2880
    %2882 = vrot.lane.b32.xlu0 %v2835, 112
    %v2883 = vpop.permute.xlu0 %2882
    %v2900 = vadd.f32 %v2820, %v2853
    %v2901 = vadd.f32 %v2821, %v2855
    %v2902 = vadd.f32 %v2822, %v2857
    %v2903 = vadd.f32 %v2823, %v2859
    %v2904 = vadd.f32 %v2824, %v2861
    %v2905 = vadd.f32 %v2825, %v2863
    %v2906 = vadd.f32 %v2826, %v2865
    %v2907 = vadd.f32 %v2827, %v2867
    %v2908 = vadd.f32 %v2828, %v2869
    %v2909 = vadd.f32 %v2829, %v2871
    %v2910 = vadd.f32 %v2830, %v2873
    %v2911 = vadd.f32 %v2831, %v2875
    %v2912 = vadd.f32 %v2832, %v2877
    %v2913 = vadd.f32 %v2833, %v2879
    %v2914 = vadd.f32 %v2834, %v2881
    %v2915 = vadd.f32 %v2835, %v2883
    %2916 = vrot.lane.b32.xlu0 %v2820, 96
    %v2917 = vpop.permute.xlu0 %2916
    %2918 = vrot.lane.b32.xlu0 %v2821, 96
    %v2919 = vpop.permute.xlu0 %2918
    %2920 = vrot.lane.b32.xlu0 %v2822, 96
    %v2921 = vpop.permute.xlu0 %2920
    %2922 = vrot.lane.b32.xlu0 %v2823, 96
    %v2923 = vpop.permute.xlu0 %2922
    %2924 = vrot.lane.b32.xlu0 %v2824, 96
    %v2925 = vpop.permute.xlu0 %2924
    %2926 = vrot.lane.b32.xlu0 %v2825, 96
    %v2927 = vpop.permute.xlu0 %2926
    %2928 = vrot.lane.b32.xlu0 %v2826, 96
    %v2929 = vpop.permute.xlu0 %2928
    %2930 = vrot.lane.b32.xlu0 %v2827, 96
    %v2931 = vpop.permute.xlu0 %2930
    %2932 = vrot.lane.b32.xlu0 %v2828, 96
    %v2933 = vpop.permute.xlu0 %2932
    %2934 = vrot.lane.b32.xlu0 %v2829, 96
    %v2935 = vpop.permute.xlu0 %2934
    %2936 = vrot.lane.b32.xlu0 %v2830, 96
    %v2937 = vpop.permute.xlu0 %2936
    %2938 = vrot.lane.b32.xlu0 %v2831, 96
    %v2939 = vpop.permute.xlu0 %2938
    %2940 = vrot.lane.b32.xlu0 %v2832, 96
    %v2941 = vpop.permute.xlu0 %2940
    %2942 = vrot.lane.b32.xlu0 %v2833, 96
    %v2943 = vpop.permute.xlu0 %2942
    %2944 = vrot.lane.b32.xlu0 %v2834, 96
    %v2945 = vpop.permute.xlu0 %2944
    %2946 = vrot.lane.b32.xlu0 %v2835, 96
    %v2947 = vpop.permute.xlu0 %2946
    %v2964 = vadd.f32 %v2900, %v2917
    %v2965 = vadd.f32 %v2901, %v2919
    %v2966 = vadd.f32 %v2902, %v2921
    %v2967 = vadd.f32 %v2903, %v2923
    %v2968 = vadd.f32 %v2904, %v2925
    %v2969 = vadd.f32 %v2905, %v2927
    %v2970 = vadd.f32 %v2906, %v2929
    %v2971 = vadd.f32 %v2907, %v2931
    %v2972 = vadd.f32 %v2908, %v2933
    %v2973 = vadd.f32 %v2909, %v2935
    %v2974 = vadd.f32 %v2910, %v2937
    %v2975 = vadd.f32 %v2911, %v2939
    %v2976 = vadd.f32 %v2912, %v2941
    %v2977 = vadd.f32 %v2913, %v2943
    %v2978 = vadd.f32 %v2914, %v2945
    %v2979 = vadd.f32 %v2915, %v2947
    %v2980 = vmul.f32 %v2964, 0.33333334
    %v2981 = vmul.f32 %v2965, 0.33333334
    %v2982 = vmul.f32 %v2966, 0.33333334
    %v2983 = vmul.f32 %v2967, 0.33333334
    %v2984 = vmul.f32 %v2968, 0.33333334
    %v2985 = vmul.f32 %v2969, 0.33333334
    %v2986 = vmul.f32 %v2970, 0.33333334
    %v2987 = vmul.f32 %v2971, 0.33333334
    %v2988 = vmul.f32 %v2972, 0.33333334
    %v2989 = vmul.f32 %v2973, 0.33333334
    %v2990 = vmul.f32 %v2974, 0.33333334
    %v2991 = vmul.f32 %v2975, 0.33333334
    %v2992 = vmul.f32 %v2976, 0.33333334
    %v2993 = vmul.f32 %v2977, 0.33333334
    %v2994 = vmul.f32 %v2978, 0.33333334
    %v2995 = vmul.f32 %v2979, 0.33333334
    %3012 = vrot.lane.b32.xlu0 %v2676, 48
    %v3013 = vpop.permute.xlu0 %3012
    %3014 = vrot.lane.b32.xlu0 %v2677, 48
    %v3015 = vpop.permute.xlu0 %3014
    %3016 = vrot.lane.b32.xlu0 %v2678, 48
    %v3017 = vpop.permute.xlu0 %3016
    %3018 = vrot.lane.b32.xlu0 %v2679, 48
    %v3019 = vpop.permute.xlu0 %3018
    %3020 = vrot.lane.b32.xlu0 %v2680, 48
    %v3021 = vpop.permute.xlu0 %3020
    %3022 = vrot.lane.b32.xlu0 %v2681, 48
    %v3023 = vpop.permute.xlu0 %3022
    %3024 = vrot.lane.b32.xlu0 %v2682, 48
    %v3025 = vpop.permute.xlu0 %3024
    %3026 = vrot.lane.b32.xlu0 %v2683, 48
    %v3027 = vpop.permute.xlu0 %3026
    %3028 = vrot.lane.b32.xlu0 %v2684, 48
    %v3029 = vpop.permute.xlu0 %3028
    %3030 = vrot.lane.b32.xlu0 %v2685, 48
    %v3031 = vpop.permute.xlu0 %3030
    %3032 = vrot.lane.b32.xlu0 %v2686, 48
    %v3033 = vpop.permute.xlu0 %3032
    %3034 = vrot.lane.b32.xlu0 %v2687, 48
    %v3035 = vpop.permute.xlu0 %3034
    %3036 = vrot.lane.b32.xlu0 %v2688, 48
    %v3037 = vpop.permute.xlu0 %3036
    %3038 = vrot.lane.b32.xlu0 %v2689, 48
    %v3039 = vpop.permute.xlu0 %3038
    %3040 = vrot.lane.b32.xlu0 %v2690, 48
    %v3041 = vpop.permute.xlu0 %3040
    %3042 = vrot.lane.b32.xlu0 %v2691, 48
    %v3043 = vpop.permute.xlu0 %3042
    %v3060 = vsel %vm532, %v1927, %v3013
    %v3061 = vsel %vm532, %v1928, %v3015
    %v3062 = vsel %vm532, %v1929, %v3017
    %v3063 = vsel %vm532, %v1930, %v3019
    %v3064 = vsel %vm532, %v1931, %v3021
    %v3065 = vsel %vm532, %v1932, %v3023
    %v3066 = vsel %vm532, %v1933, %v3025
    %v3067 = vsel %vm532, %v1934, %v3027
    %v3068 = vsel %vm532, %v1935, %v3029
    %v3069 = vsel %vm532, %v1936, %v3031
    %v3070 = vsel %vm532, %v1937, %v3033
    %v3071 = vsel %vm532, %v1938, %v3035
    %v3072 = vsel %vm532, %v1939, %v3037
    %v3073 = vsel %vm532, %v1940, %v3039
    %v3074 = vsel %vm532, %v1941, %v3041
    %v3075 = vsel %vm532, %v1942, %v3043
    %v3076 = vld [vmem:[%s5] sm:$0xff]
    %v3077 = vld [vmem:[%s5 + $0x8] sm:$0xff]
    %v3078 = vld [vmem:[%s5 + $0x10] sm:$0xff]
    %v3079 = vld [vmem:[%s5 + $0x18] sm:$0xff]
    %v3080 = vld [vmem:[%s5 + $0x20] sm:$0xff]
    %v3081 = vld [vmem:[%s5 + $0x28] sm:$0xff]
    %v3082 = vld [vmem:[%s5 + $0x30] sm:$0xff]
    %v3083 = vld [vmem:[%s5 + $0x38] sm:$0xff]
    %v3084 = vld [vmem:[%s5 + $0x40] sm:$0xff]
    %v3085 = vld [vmem:[%s5 + $0x48] sm:$0xff]
    %v3086 = vld [vmem:[%s5 + $0x50] sm:$0xff]
    %v3087 = vld [vmem:[%s5 + $0x58] sm:$0xff]
    %v3089 = vsel %vm1000, %v3060, 0
    %v3092 = vsel %vm1000, %v3061, 0
    %v3095 = vsel %vm1000, %v3062, 0
    %v3098 = vsel %vm1000, %v3063, 0
    %v3101 = vsel %vm1000, %v3064, 0
    %v3104 = vsel %vm1000, %v3065, 0
    %v3107 = vsel %vm1000, %v3066, 0
    %v3110 = vsel %vm1000, %v3067, 0
    %v3113 = vsel %vm1000, %v3068, 0
    %v3116 = vsel %vm1000, %v3069, 0
    %v3119 = vsel %vm1000, %v3070, 0
    %v3122 = vsel %vm1000, %v3071, 0
    %v3125 = vsel %vm1000, %v3072, 0
    %v3128 = vsel %vm1000, %v3073, 0
    %v3131 = vsel %vm1000, %v3074, 0
    %v3134 = vsel %vm1000, %v3075, 0
    %3136 = vmatprep.subr.mxu0 0.0
    %3137 = vmatpush1.msra.mxu0 %v3076
    %3138 = vmatprep.subr.mxu0 0.0
    %3139 = vmatpush1.msra.mxu0 %v3077
    %3140 = vmatprep.subr.mxu0 0.0
    %3141 = vmatpush1.msra.mxu0 %v3078
    %3142 = vmatprep.subr.mxu0 0.0
    %3143 = vmatpush1.msra.mxu0 %v3079
    %3144 = vmatprep.subr.mxu0 0.0
    %3145 = vmatpush1.msra.mxu0 %v3080
    %3146 = vmatprep.subr.mxu0 0.0
    %3147 = vmatpush1.msra.mxu0 %v3081
    %3148 = vmatprep.subr.mxu0 0.0
    %3149 = vmatpush1.msra.mxu0 %v3082
    %3150 = vmatprep.subr.mxu0 0.0
    %3151 = vmatpush1.msra.mxu0 %v3083
    %3152 = vmatprep.subr.mxu0 0.0
    %3153 = vmatpush1.msra.mxu0 %v3084
    %3154 = vmatprep.subr.mxu0 0.0
    %3155 = vmatpush1.msra.mxu0 %v3085
    %3156 = vmatprep.subr.mxu0 0.0
    %3157 = vmatpush1.msra.mxu0 %v3086
    %3158 = vmatprep.subr.mxu0 0.0
    %3159 = vmatpush1.msra.mxu0 %v3087
    %3160 = vmatprep.subr.mxu0 0.0
    %3161 = vmatpush1.msra.mxu0 0.0
    %3162 = vmatprep.subr.mxu0 0.0
    %3163 = vmatpush1.msra.mxu0 0.0
    %3164 = vmatprep.subr.mxu0 0.0
    %3165 = vmatpush1.msra.mxu0 0.0
    %3166 = vmatprep.subr.mxu0 0.0
    %3167 = vmatpush1.msra.mxu0 0.0
    %3168 = vmatprep.subr.mxu0 0.0
    %3169 = vmatpush1.msra.mxu0 0.0
    %3170 = vmatprep.subr.mxu0 0.0
    %3171 = vmatpush1.msra.mxu0 0.0
    %3172 = vmatprep.subr.mxu0 0.0
    %3173 = vmatpush1.msra.mxu0 0.0
    %3174 = vmatprep.subr.mxu0 0.0
    %3175 = vmatpush1.msra.mxu0 0.0
    %3176 = vmatprep.subr.mxu0 0.0
    %3177 = vmatpush1.msra.mxu0 0.0
    %3178 = vmatprep.subr.mxu0 0.0
    %3179 = vmatpush1.msra.mxu0 0.0
    %3180 = vmatprep.subr.mxu0 0.0
    %3181 = vmatpush1.msra.mxu0 0.0
    %3182 = vmatprep.subr.mxu0 0.0
    %3183 = vmatpush1.msra.mxu0 0.0
    %3184 = vmatprep.subr.mxu0 0.0
    %3185 = vmatpush1.msra.mxu0 0.0
    %3186 = vmatprep.subr.mxu0 0.0
    %3187 = vmatpush1.msra.mxu0 0.0
    %3188 = vmatprep.subr.mxu0 0.0
    %3189 = vmatpush1.msra.mxu0 0.0
    %3190 = vmatprep.subr.mxu0 0.0
    %3191 = vmatpush1.msra.mxu0 0.0
    %3192 = vmatprep.subr.mxu0 0.0
    %3193 = vmatpush1.msra.mxu0 0.0
    %3194 = vmatprep.subr.mxu0 0.0
    %3195 = vmatpush1.msra.mxu0 0.0
    %3196 = vmatprep.subr.mxu0 0.0
    %3197 = vmatpush1.msra.mxu0 0.0
    %3198 = vmatprep.subr.mxu0 0.0
    %3199 = vmatpush1.msra.mxu0 0.0
    %3200 = vmatprep.mubr.f32.mxu0 0.0
    %3201 = vmatmul.mubr.f32.gmra.mrb[0].mxu0 %v3089
    %v3202 = vpop.f32.mrb[0].mxu0
    %v3203 = vadd.f32 0.0, %v3202
    %v3204 = vpop.f32.mrb[0].mxu0
    %3205 = vmatprep.mubr.f32.mxu0 0.0
    %3206 = vmatmul.mubr.f32.gmra.mrb[0].mxu0 %v3092
    %v3207 = vpop.f32.mrb[0].mxu0
    %v3208 = vadd.f32 0.0, %v3207
    %v3209 = vpop.f32.mrb[0].mxu0
    %3210 = vmatprep.mubr.f32.mxu0 0.0
    %3211 = vmatmul.mubr.f32.gmra.mrb[0].mxu0 %v3095
    %v3212 = vpop.f32.mrb[0].mxu0
    %v3213 = vadd.f32 0.0, %v3212
    %v3214 = vpop.f32.mrb[0].mxu0
    %3215 = vmatprep.mubr.f32.mxu0 0.0
    %3216 = vmatmul.mubr.f32.gmra.mrb[0].mxu0 %v3098
    %v3217 = vpop.f32.mrb[0].mxu0
    %v3218 = vadd.f32 0.0, %v3217
    %v3219 = vpop.f32.mrb[0].mxu0
    %3220 = vmatprep.mubr.f32.mxu0 0.0
    %3221 = vmatmul.mubr.f32.gmra.mrb[0].mxu0 %v3101
    %v3222 = vpop.f32.mrb[0].mxu0
    %v3223 = vadd.f32 0.0, %v3222
    %v3224 = vpop.f32.mrb[0].mxu0
    %3225 = vmatprep.mubr.f32.mxu0 0.0
    %3226 = vmatmul.mubr.f32.gmra.mrb[0].mxu0 %v3104
    %v3227 = vpop.f32.mrb[0].mxu0
    %v3228 = vadd.f32 0.0, %v3227
    %v3229 = vpop.f32.mrb[0].mxu0
    %3230 = vmatprep.mubr.f32.mxu0 0.0
    %3231 = vmatmul.mubr.f32.gmra.mrb[0].mxu0 %v3107
    %v3232 = vpop.f32.mrb[0].mxu0
    %v3233 = vadd.f32 0.0, %v3232
    %v3234 = vpop.f32.mrb[0].mxu0
    %3235 = vmatprep.mubr.f32.mxu0 0.0
    %3236 = vmatmul.mubr.f32.gmra.mrb[0].mxu0 %v3110
    %v3237 = vpop.f32.mrb[0].mxu0
    %v3238 = vadd.f32 0.0, %v3237
    %v3239 = vpop.f32.mrb[0].mxu0
    %3240 = vmatprep.mubr.f32.mxu0 0.0
    %3241 = vmatmul.mubr.f32.gmra.mrb[0].mxu0 %v3113
    %v3242 = vpop.f32.mrb[0].mxu0
    %v3243 = vadd.f32 0.0, %v3242
    %v3244 = vpop.f32.mrb[0].mxu0
    %3245 = vmatprep.mubr.f32.mxu0 0.0
    %3246 = vmatmul.mubr.f32.gmra.mrb[0].mxu0 %v3116
    %v3247 = vpop.f32.mrb[0].mxu0
    %v3248 = vadd.f32 0.0, %v3247
    %v3249 = vpop.f32.mrb[0].mxu0
    %3250 = vmatprep.mubr.f32.mxu0 0.0
    %3251 = vmatmul.mubr.f32.gmra.mrb[0].mxu0 %v3119
    %v3252 = vpop.f32.mrb[0].mxu0
    %v3253 = vadd.f32 0.0, %v3252
    %v3254 = vpop.f32.mrb[0].mxu0
    %3255 = vmatprep.mubr.f32.mxu0 0.0
    %3256 = vmatmul.mubr.f32.gmra.mrb[0].mxu0 %v3122
    %v3257 = vpop.f32.mrb[0].mxu0
    %v3258 = vadd.f32 0.0, %v3257
    %v3259 = vpop.f32.mrb[0].mxu0
    %3260 = vmatprep.mubr.f32.mxu0 0.0
    %3261 = vmatmul.mubr.f32.gmra.mrb[0].mxu0 %v3125
    %v3262 = vpop.f32.mrb[0].mxu0
    %v3263 = vadd.f32 0.0, %v3262
    %v3264 = vpop.f32.mrb[0].mxu0
    %3265 = vmatprep.mubr.f32.mxu0 0.0
    %3266 = vmatmul.mubr.f32.gmra.mrb[0].mxu0 %v3128
    %v3267 = vpop.f32.mrb[0].mxu0
    %v3268 = vadd.f32 0.0, %v3267
    %v3269 = vpop.f32.mrb[0].mxu0
    %3270 = vmatprep.mubr.f32.mxu0 0.0
    %3271 = vmatmul.mubr.f32.gmra.mrb[0].mxu0 %v3131
    %v3272 = vpop.f32.mrb[0].mxu0
    %v3273 = vadd.f32 0.0, %v3272
    %v3274 = vpop.f32.mrb[0].mxu0
    %3275 = vmatprep.mubr.f32.mxu0 0.0
    %3276 = vmatmul.mubr.f32.gmra.mrb[0].mxu0 %v3134
    %v3277 = vpop.f32.mrb[0].mxu0
    %v3278 = vadd.f32 0.0, %v3277
    %v3279 = vpop.f32.mrb[0].mxu0
    %3280 = vdwg.mxu0
    %s3281 = scalar_lea.vmem %s7, 96
    %v3282 = vld [vmem:[%s3281] sm:$0xff]
    %v3283 = vld [vmem:[%s3281 + $0x8] sm:$0xff]
    %v3284 = vld [vmem:[%s3281 + $0x10] sm:$0xff]
    %v3285 = vld [vmem:[%s3281 + $0x18] sm:$0xff]
    %v3286 = vld [vmem:[%s3281 + $0x20] sm:$0xff]
    %v3287 = vld [vmem:[%s3281 + $0x28] sm:$0xff]
    %v3288 = vld [vmem:[%s3281 + $0x30] sm:$0xff]
    %v3289 = vld [vmem:[%s3281 + $0x38] sm:$0xff]
    %v3290 = vld [vmem:[%s3281 + $0x40] sm:$0xff]
    %v3291 = vld [vmem:[%s3281 + $0x48] sm:$0xff]
    %v3292 = vld [vmem:[%s3281 + $0x50] sm:$0xff]
    %v3293 = vld [vmem:[%s3281 + $0x58] sm:$0xff]
    %v3295 = vsel %vm1000, %v3203, 0
    %v3298 = vsel %vm1000, %v3208, 0
    %v3301 = vsel %vm1000, %v3213, 0
    %v3304 = vsel %vm1000, %v3218, 0
    %v3307 = vsel %vm1000, %v3223, 0
    %v3310 = vsel %vm1000, %v3228, 0
    %v3313 = vsel %vm1000, %v3233, 0
    %v3316 = vsel %vm1000, %v3238, 0
    %v3319 = vsel %vm1000, %v3243, 0
    %v3322 = vsel %vm1000, %v3248, 0
    %v3325 = vsel %vm1000, %v3253, 0
    %v3328 = vsel %vm1000, %v3258, 0
    %v3331 = vsel %vm1000, %v3263, 0
    %v3334 = vsel %vm1000, %v3268, 0
    %v3337 = vsel %vm1000, %v3273, 0
    %v3340 = vsel %vm1000, %v3278, 0
    %3342 = vmatprep.subr.mxu0 0.0
    %3343 = vmatpush1.msra.mxu0 %v3282
    %3344 = vmatprep.subr.mxu0 0.0
    %3345 = vmatpush1.msra.mxu0 %v3283
    %3346 = vmatprep.subr.mxu0 0.0
    %3347 = vmatpush1.msra.mxu0 %v3284
    %3348 = vmatprep.subr.mxu0 0.0
    %3349 = vmatpush1.msra.mxu0 %v3285
    %3350 = vmatprep.subr.mxu0 0.0
    %3351 = vmatpush1.msra.mxu0 %v3286
    %3352 = vmatprep.subr.mxu0 0.0
    %3353 = vmatpush1.msra.mxu0 %v3287
    %3354 = vmatprep.subr.mxu0 0.0
    %3355 = vmatpush1.msra.mxu0 %v3288
    %3356 = vmatprep.subr.mxu0 0.0
    %3357 = vmatpush1.msra.mxu0 %v3289
    %3358 = vmatprep.subr.mxu0 0.0
    %3359 = vmatpush1.msra.mxu0 %v3290
    %3360 = vmatprep.subr.mxu0 0.0
    %3361 = vmatpush1.msra.mxu0 %v3291
    %3362 = vmatprep.subr.mxu0 0.0
    %3363 = vmatpush1.msra.mxu0 %v3292
    %3364 = vmatprep.subr.mxu0 0.0
    %3365 = vmatpush1.msra.mxu0 %v3293
    %3366 = vmatprep.subr.mxu0 0.0
    %3367 = vmatpush1.msra.mxu0 0.0
    %3368 = vmatprep.subr.mxu0 0.0
    %3369 = vmatpush1.msra.mxu0 0.0
    %3370 = vmatprep.subr.mxu0 0.0
    %3371 = vmatpush1.msra.mxu0 0.0
    %3372 = vmatprep.subr.mxu0 0.0
    %3373 = vmatpush1.msra.mxu0 0.0
    %3374 = vmatprep.subr.mxu0 0.0
    %3375 = vmatpush1.msra.mxu0 0.0
    %3376 = vmatprep.subr.mxu0 0.0
    %3377 = vmatpush1.msra.mxu0 0.0
    %3378 = vmatprep.subr.mxu0 0.0
    %3379 = vmatpush1.msra.mxu0 0.0
    %3380 = vmatprep.subr.mxu0 0.0
    %3381 = vmatpush1.msra.mxu0 0.0
    %3382 = vmatprep.subr.mxu0 0.0
    %3383 = vmatpush1.msra.mxu0 0.0
    %3384 = vmatprep.subr.mxu0 0.0
    %3385 = vmatpush1.msra.mxu0 0.0
    %3386 = vmatprep.subr.mxu0 0.0
    %3387 = vmatpush1.msra.mxu0 0.0
    %3388 = vmatprep.subr.mxu0 0.0
    %3389 = vmatpush1.msra.mxu0 0.0
    %3390 = vmatprep.subr.mxu0 0.0
    %3391 = vmatpush1.msra.mxu0 0.0
    %3392 = vmatprep.subr.mxu0 0.0
    %3393 = vmatpush1.msra.mxu0 0.0
    %3394 = vmatprep.subr.mxu0 0.0
    %3395 = vmatpush1.msra.mxu0 0.0
    %3396 = vmatprep.subr.mxu0 0.0
    %3397 = vmatpush1.msra.mxu0 0.0
    %3398 = vmatprep.subr.mxu0 0.0
    %3399 = vmatpush1.msra.mxu0 0.0
    %3400 = vmatprep.subr.mxu0 0.0
    %3401 = vmatpush1.msra.mxu0 0.0
    %3402 = vmatprep.subr.mxu0 0.0
    %3403 = vmatpush1.msra.mxu0 0.0
    %3404 = vmatprep.subr.mxu0 0.0
    %3405 = vmatpush1.msra.mxu0 0.0
    %3406 = vmatprep.mubr.f32.mxu0 0.0
    %3407 = vmatmul.mubr.f32.gmra.mrb[0].mxu0 %v3295
    %v3408 = vpop.f32.mrb[0].mxu0
    %v3409 = vadd.f32 0.0, %v3408
    %v3410 = vpop.f32.mrb[0].mxu0
    %3411 = vmatprep.mubr.f32.mxu0 0.0
    %3412 = vmatmul.mubr.f32.gmra.mrb[0].mxu0 %v3298
    %v3413 = vpop.f32.mrb[0].mxu0
    %v3414 = vadd.f32 0.0, %v3413
    %v3415 = vpop.f32.mrb[0].mxu0
    %3416 = vmatprep.mubr.f32.mxu0 0.0
    %3417 = vmatmul.mubr.f32.gmra.mrb[0].mxu0 %v3301
    %v3418 = vpop.f32.mrb[0].mxu0
    %v3419 = vadd.f32 0.0, %v3418
    %v3420 = vpop.f32.mrb[0].mxu0
    %3421 = vmatprep.mubr.f32.mxu0 0.0
    %3422 = vmatmul.mubr.f32.gmra.mrb[0].mxu0 %v3304
    %v3423 = vpop.f32.mrb[0].mxu0
    %v3424 = vadd.f32 0.0, %v3423
    %v3425 = vpop.f32.mrb[0].mxu0
    %3426 = vmatprep.mubr.f32.mxu0 0.0
    %3427 = vmatmul.mubr.f32.gmra.mrb[0].mxu0 %v3307
    %v3428 = vpop.f32.mrb[0].mxu0
    %v3429 = vadd.f32 0.0, %v3428
    %v3430 = vpop.f32.mrb[0].mxu0
    %3431 = vmatprep.mubr.f32.mxu0 0.0
    %3432 = vmatmul.mubr.f32.gmra.mrb[0].mxu0 %v3310
    %v3433 = vpop.f32.mrb[0].mxu0
    %v3434 = vadd.f32 0.0, %v3433
    %v3435 = vpop.f32.mrb[0].mxu0
    %3436 = vmatprep.mubr.f32.mxu0 0.0
    %3437 = vmatmul.mubr.f32.gmra.mrb[0].mxu0 %v3313
    %v3438 = vpop.f32.mrb[0].mxu0
    %v3439 = vadd.f32 0.0, %v3438
    %v3440 = vpop.f32.mrb[0].mxu0
    %3441 = vmatprep.mubr.f32.mxu0 0.0
    %3442 = vmatmul.mubr.f32.gmra.mrb[0].mxu0 %v3316
    %v3443 = vpop.f32.mrb[0].mxu0
    %v3444 = vadd.f32 0.0, %v3443
    %v3445 = vpop.f32.mrb[0].mxu0
    %3446 = vmatprep.mubr.f32.mxu0 0.0
    %3447 = vmatmul.mubr.f32.gmra.mrb[0].mxu0 %v3319
    %v3448 = vpop.f32.mrb[0].mxu0
    %v3449 = vadd.f32 0.0, %v3448
    %v3450 = vpop.f32.mrb[0].mxu0
    %3451 = vmatprep.mubr.f32.mxu0 0.0
    %3452 = vmatmul.mubr.f32.gmra.mrb[0].mxu0 %v3322
    %v3453 = vpop.f32.mrb[0].mxu0
    %v3454 = vadd.f32 0.0, %v3453
    %v3455 = vpop.f32.mrb[0].mxu0
    %3456 = vmatprep.mubr.f32.mxu0 0.0
    %3457 = vmatmul.mubr.f32.gmra.mrb[0].mxu0 %v3325
    %v3458 = vpop.f32.mrb[0].mxu0
    %v3459 = vadd.f32 0.0, %v3458
    %v3460 = vpop.f32.mrb[0].mxu0
    %3461 = vmatprep.mubr.f32.mxu0 0.0
    %3462 = vmatmul.mubr.f32.gmra.mrb[0].mxu0 %v3328
    %v3463 = vpop.f32.mrb[0].mxu0
    %v3464 = vadd.f32 0.0, %v3463
    %v3465 = vpop.f32.mrb[0].mxu0
    %3466 = vmatprep.mubr.f32.mxu0 0.0
    %3467 = vmatmul.mubr.f32.gmra.mrb[0].mxu0 %v3331
    %v3468 = vpop.f32.mrb[0].mxu0
    %v3469 = vadd.f32 0.0, %v3468
    %v3470 = vpop.f32.mrb[0].mxu0
    %3471 = vmatprep.mubr.f32.mxu0 0.0
    %3472 = vmatmul.mubr.f32.gmra.mrb[0].mxu0 %v3334
    %v3473 = vpop.f32.mrb[0].mxu0
    %v3474 = vadd.f32 0.0, %v3473
    %v3475 = vpop.f32.mrb[0].mxu0
    %3476 = vmatprep.mubr.f32.mxu0 0.0
    %3477 = vmatmul.mubr.f32.gmra.mrb[0].mxu0 %v3337
    %v3478 = vpop.f32.mrb[0].mxu0
    %v3479 = vadd.f32 0.0, %v3478
    %v3480 = vpop.f32.mrb[0].mxu0
    %3481 = vmatprep.mubr.f32.mxu0 0.0
    %3482 = vmatmul.mubr.f32.gmra.mrb[0].mxu0 %v3340
    %v3483 = vpop.f32.mrb[0].mxu0
    %v3484 = vadd.f32 0.0, %v3483
    %v3485 = vpop.f32.mrb[0].mxu0
    %3486 = vdwg.mxu0
    %3487 = vxpose.xlu0.b32.start [1/16] %v3409, 128
    %3488 = vxpose.xlu0.b32.cont [2/16] %v3414, 128
    %3489 = vxpose.xlu0.b32.cont [3/16] %v3419, 128
    %3490 = vxpose.xlu0.b32.cont [4/16] %v3424, 128
    %3491 = vxpose.xlu0.b32.cont [5/16] %v3429, 128
    %3492 = vxpose.xlu0.b32.cont [6/16] %v3434, 128
    %3493 = vxpose.xlu0.b32.cont [7/16] %v3439, 128
    %3494 = vxpose.xlu0.b32.cont [8/16] %v3444, 128
    %3495 = vxpose.xlu0.b32.cont [9/16] %v3449, 128
    %3496 = vxpose.xlu0.b32.cont [10/16] %v3454, 128
    %3497 = vxpose.xlu0.b32.cont [11/16] %v3459, 128
    %3498 = vxpose.xlu0.b32.cont [12/16] %v3464, 128
    %3499 = vxpose.xlu0.b32.cont [13/16] %v3469, 128
    %3500 = vxpose.xlu0.b32.cont [14/16] %v3474, 128
    %3501 = vxpose.xlu0.b32.cont [15/16] %v3479, 128
    %3502 = vxpose.xlu0.b32.end [16/16] %v3484, 128
    %v3503 = vpop.trf.xlu0
    %v3504 = vpop.trf.xlu0
    %v3505 = vpop.trf.xlu0
    %v3506 = vpop.trf.xlu0
    %v3507 = vpop.trf.xlu0
    %v3508 = vpop.trf.xlu0
    %v3509 = vpop.trf.xlu0
    %v3510 = vpop.trf.xlu0
    %v3511 = vpop.trf.xlu0
    %v3512 = vpop.trf.xlu0
    %v3513 = vpop.trf.xlu0
    %v3514 = vpop.trf.xlu0
    %v3515 = vpop.trf.xlu0
    %v3516 = vpop.trf.xlu0
    %v3517 = vpop.trf.xlu0
    %v3518 = vpop.trf.xlu0
    %3520 = vset.pattern.permute.xlu0 0
    %3521 = vperm.xlu0 %3520, %v3409
    %v3522 = vpop.permute.xlu0 %3521
    %3525 = vset.pattern.permute.xlu0 0
    %3526 = vperm.xlu0 %3525, %v3414
    %v3527 = vpop.permute.xlu0 %3526
    %3530 = vset.pattern.permute.xlu0 0
    %3531 = vperm.xlu0 %3530, %v3419
    %v3532 = vpop.permute.xlu0 %3531
    %3535 = vset.pattern.permute.xlu0 0
    %3536 = vperm.xlu0 %3535, %v3424
    %v3537 = vpop.permute.xlu0 %3536
    %3540 = vset.pattern.permute.xlu0 0
    %3541 = vperm.xlu0 %3540, %v3429
    %v3542 = vpop.permute.xlu0 %3541
    %3545 = vset.pattern.permute.xlu0 0
    %3546 = vperm.xlu0 %3545, %v3434
    %v3547 = vpop.permute.xlu0 %3546
    %3550 = vset.pattern.permute.xlu0 0
    %3551 = vperm.xlu0 %3550, %v3439
    %v3552 = vpop.permute.xlu0 %3551
    %3555 = vset.pattern.permute.xlu0 0
    %3556 = vperm.xlu0 %3555, %v3444
    %v3557 = vpop.permute.xlu0 %3556
    %3560 = vset.pattern.permute.xlu0 0
    %3561 = vperm.xlu0 %3560, %v3449
    %v3562 = vpop.permute.xlu0 %3561
    %3565 = vset.pattern.permute.xlu0 0
    %3566 = vperm.xlu0 %3565, %v3454
    %v3567 = vpop.permute.xlu0 %3566
    %3570 = vset.pattern.permute.xlu0 0
    %3571 = vperm.xlu0 %3570, %v3459
    %v3572 = vpop.permute.xlu0 %3571
    %3575 = vset.pattern.permute.xlu0 0
    %3576 = vperm.xlu0 %3575, %v3464
    %v3577 = vpop.permute.xlu0 %3576
    %3580 = vset.pattern.permute.xlu0 0
    %3581 = vperm.xlu0 %3580, %v3469
    %v3582 = vpop.permute.xlu0 %3581
    %3585 = vset.pattern.permute.xlu0 0
    %3586 = vperm.xlu0 %3585, %v3474
    %v3587 = vpop.permute.xlu0 %3586
    %3590 = vset.pattern.permute.xlu0 0
    %3591 = vperm.xlu0 %3590, %v3479
    %v3592 = vpop.permute.xlu0 %3591
    %3595 = vset.pattern.permute.xlu0 0
    %3596 = vperm.xlu0 %3595, %v3484
    %v3597 = vpop.permute.xlu0 %3596
    %v3599 = vlaneseq
    %v3600 = vshrl.u32 %v3599, 7
    %v3601 = vsub.s32 2, %v3600
    %v3602 = vrot.slane %v3503, %v3601
    %v3603 = vadd.f32 %v3522, %v3602
    %v3604 = vadd.f32 %v3527, %v3602
    %v3605 = vadd.f32 %v3532, %v3602
    %v3606 = vadd.f32 %v3537, %v3602
    %v3607 = vadd.f32 %v3542, %v3602
    %v3608 = vadd.f32 %v3547, %v3602
    %v3609 = vadd.f32 %v3552, %v3602
    %v3610 = vadd.f32 %v3557, %v3602
    %v3611 = vadd.f32 %v3562, %v3602
    %v3612 = vadd.f32 %v3567, %v3602
    %v3613 = vadd.f32 %v3572, %v3602
    %v3614 = vadd.f32 %v3577, %v3602
    %v3615 = vadd.f32 %v3582, %v3602
    %v3616 = vadd.f32 %v3587, %v3602
    %v3617 = vadd.f32 %v3592, %v3602
    %v3618 = vadd.f32 %v3597, %v3602
    %s3619 = sld [smem:[#allocation2 + $0x8]]
    %v3620 = vstv %s3619
    %v3621 = vmul.f32 %v137, %v3620
    %v3622 = vmul.f32 %v138, %v3620
    %v3623 = vmul.f32 %v139, %v3620
    %v3624 = vmul.f32 %v140, %v3620
    %v3625 = vmul.f32 %v141, %v3620
    %v3626 = vmul.f32 %v142, %v3620
    %v3627 = vmul.f32 %v143, %v3620
    %v3628 = vmul.f32 %v144, %v3620
    %v3629 = vmul.f32 %v145, %v3620
    %v3630 = vmul.f32 %v146, %v3620
    %v3631 = vmul.f32 %v147, %v3620
    %v3632 = vmul.f32 %v148, %v3620
    %v3633 = vmul.f32 %v149, %v3620
    %v3634 = vmul.f32 %v150, %v3620
    %v3635 = vmul.f32 %v151, %v3620
    %v3636 = vmul.f32 %v152, %v3620
    %v3637 = vadd.f32 %v3603, %v3621
    %v3638 = vadd.f32 %v3604, %v3622
    %v3639 = vadd.f32 %v3605, %v3623
    %v3640 = vadd.f32 %v3606, %v3624
    %v3641 = vadd.f32 %v3607, %v3625
    %v3642 = vadd.f32 %v3608, %v3626
    %v3643 = vadd.f32 %v3609, %v3627
    %v3644 = vadd.f32 %v3610, %v3628
    %v3645 = vadd.f32 %v3611, %v3629
    %v3646 = vadd.f32 %v3612, %v3630
    %v3647 = vadd.f32 %v3613, %v3631
    %v3648 = vadd.f32 %v3614, %v3632
    %v3649 = vadd.f32 %v3615, %v3633
    %v3650 = vadd.f32 %v3616, %v3634
    %v3651 = vadd.f32 %v3617, %v3635
    %v3652 = vadd.f32 %v3618, %v3636
    %s3653 = sld [smem:[#allocation2 + $0xa]]
    %v3654 = vstv %s3653
    %v3655 = vmul.f32 %v185, %v3654
    %v3656 = vmul.f32 %v186, %v3654
    %v3657 = vmul.f32 %v187, %v3654
    %v3658 = vmul.f32 %v188, %v3654
    %v3659 = vmul.f32 %v189, %v3654
    %v3660 = vmul.f32 %v190, %v3654
    %v3661 = vmul.f32 %v191, %v3654
    %v3662 = vmul.f32 %v192, %v3654
    %v3663 = vmul.f32 %v193, %v3654
    %v3664 = vmul.f32 %v194, %v3654
    %v3665 = vmul.f32 %v195, %v3654
    %v3666 = vmul.f32 %v196, %v3654
    %v3667 = vmul.f32 %v197, %v3654
    %v3668 = vmul.f32 %v198, %v3654
    %v3669 = vmul.f32 %v199, %v3654
    %v3670 = vmul.f32 %v200, %v3654
    %v3671 = vadd.f32 %v3637, %v3655
    %v3672 = vadd.f32 %v3638, %v3656
    %v3673 = vadd.f32 %v3639, %v3657
    %v3674 = vadd.f32 %v3640, %v3658
    %v3675 = vadd.f32 %v3641, %v3659
    %v3676 = vadd.f32 %v3642, %v3660
    %v3677 = vadd.f32 %v3643, %v3661
    %v3678 = vadd.f32 %v3644, %v3662
    %v3679 = vadd.f32 %v3645, %v3663
    %v3680 = vadd.f32 %v3646, %v3664
    %v3681 = vadd.f32 %v3647, %v3665
    %v3682 = vadd.f32 %v3648, %v3666
    %v3683 = vadd.f32 %v3649, %v3667
    %v3684 = vadd.f32 %v3650, %v3668
    %v3685 = vadd.f32 %v3651, %v3669
    %v3686 = vadd.f32 %v3652, %v3670
    %s3687 = sld [smem:[#allocation2 + $0xc]]
    %v3688 = vstv %s3687
    %v3689 = vmul.f32 %v233, %v3688
    %v3690 = vmul.f32 %v234, %v3688
    %v3691 = vmul.f32 %v235, %v3688
    %v3692 = vmul.f32 %v236, %v3688
    %v3693 = vmul.f32 %v237, %v3688
    %v3694 = vmul.f32 %v238, %v3688
    %v3695 = vmul.f32 %v239, %v3688
    %v3696 = vmul.f32 %v240, %v3688
    %v3697 = vmul.f32 %v241, %v3688
    %v3698 = vmul.f32 %v242, %v3688
    %v3699 = vmul.f32 %v243, %v3688
    %v3700 = vmul.f32 %v244, %v3688
    %v3701 = vmul.f32 %v245, %v3688
    %v3702 = vmul.f32 %v246, %v3688
    %v3703 = vmul.f32 %v247, %v3688
    %v3704 = vmul.f32 %v248, %v3688
    %v3705 = vadd.f32 %v3671, %v3689
    %v3706 = vadd.f32 %v3672, %v3690
    %v3707 = vadd.f32 %v3673, %v3691
    %v3708 = vadd.f32 %v3674, %v3692
    %v3709 = vadd.f32 %v3675, %v3693
    %v3710 = vadd.f32 %v3676, %v3694
    %v3711 = vadd.f32 %v3677, %v3695
    %v3712 = vadd.f32 %v3678, %v3696
    %v3713 = vadd.f32 %v3679, %v3697
    %v3714 = vadd.f32 %v3680, %v3698
    %v3715 = vadd.f32 %v3681, %v3699
    %v3716 = vadd.f32 %v3682, %v3700
    %v3717 = vadd.f32 %v3683, %v3701
    %v3718 = vadd.f32 %v3684, %v3702
    %v3719 = vadd.f32 %v3685, %v3703
    %v3720 = vadd.f32 %v3686, %v3704
    %s3721 = sld [smem:[#allocation2 + $0xe]]
    %v3722 = vstv %s3721
    %v3723 = vmul.f32 %v281, %v3722
    %v3724 = vmul.f32 %v282, %v3722
    %v3725 = vmul.f32 %v283, %v3722
    %v3726 = vmul.f32 %v284, %v3722
    %v3727 = vmul.f32 %v285, %v3722
    %v3728 = vmul.f32 %v286, %v3722
    %v3729 = vmul.f32 %v287, %v3722
    %v3730 = vmul.f32 %v288, %v3722
    %v3731 = vmul.f32 %v289, %v3722
    %v3732 = vmul.f32 %v290, %v3722
    %v3733 = vmul.f32 %v291, %v3722
    %v3734 = vmul.f32 %v292, %v3722
    %v3735 = vmul.f32 %v293, %v3722
    %v3736 = vmul.f32 %v294, %v3722
    %v3737 = vmul.f32 %v295, %v3722
    %v3738 = vmul.f32 %v296, %v3722
    %v3739 = vadd.f32 %v3705, %v3723
    %v3740 = vadd.f32 %v3706, %v3724
    %v3741 = vadd.f32 %v3707, %v3725
    %v3742 = vadd.f32 %v3708, %v3726
    %v3743 = vadd.f32 %v3709, %v3727
    %v3744 = vadd.f32 %v3710, %v3728
    %v3745 = vadd.f32 %v3711, %v3729
    %v3746 = vadd.f32 %v3712, %v3730
    %v3747 = vadd.f32 %v3713, %v3731
    %v3748 = vadd.f32 %v3714, %v3732
    %v3749 = vadd.f32 %v3715, %v3733
    %v3750 = vadd.f32 %v3716, %v3734
    %v3751 = vadd.f32 %v3717, %v3735
    %v3752 = vadd.f32 %v3718, %v3736
    %v3753 = vadd.f32 %v3719, %v3737
    %v3754 = vadd.f32 %v3720, %v3738
    %vm3755 = vcmp.gt.f32.partialorder %v3739, 0.0
    %vm3756 = vcmp.gt.f32.partialorder %v3740, 0.0
    %vm3757 = vcmp.gt.f32.partialorder %v3741, 0.0
    %vm3758 = vcmp.gt.f32.partialorder %v3742, 0.0
    %vm3759 = vcmp.gt.f32.partialorder %v3743, 0.0
    %vm3760 = vcmp.gt.f32.partialorder %v3744, 0.0
    %vm3761 = vcmp.gt.f32.partialorder %v3745, 0.0
    %vm3762 = vcmp.gt.f32.partialorder %v3746, 0.0
    %vm3763 = vcmp.gt.f32.partialorder %v3747, 0.0
    %vm3764 = vcmp.gt.f32.partialorder %v3748, 0.0
    %vm3765 = vcmp.gt.f32.partialorder %v3749, 0.0
    %vm3766 = vcmp.gt.f32.partialorder %v3750, 0.0
    %vm3767 = vcmp.gt.f32.partialorder %v3751, 0.0
    %vm3768 = vcmp.gt.f32.partialorder %v3752, 0.0
    %vm3769 = vcmp.gt.f32.partialorder %v3753, 0.0
    %vm3770 = vcmp.gt.f32.partialorder %v3754, 0.0
    %v3771 = vmul.f32 %v3739, 0.2
    %v3772 = vmul.f32 %v3740, 0.2
    %v3773 = vmul.f32 %v3741, 0.2
    %v3774 = vmul.f32 %v3742, 0.2
    %v3775 = vmul.f32 %v3743, 0.2
    %v3776 = vmul.f32 %v3744, 0.2
    %v3777 = vmul.f32 %v3745, 0.2
    %v3778 = vmul.f32 %v3746, 0.2
    %v3779 = vmul.f32 %v3747, 0.2
    %v3780 = vmul.f32 %v3748, 0.2
    %v3781 = vmul.f32 %v3749, 0.2
    %v3782 = vmul.f32 %v3750, 0.2
    %v3783 = vmul.f32 %v3751, 0.2
    %v3784 = vmul.f32 %v3752, 0.2
    %v3785 = vmul.f32 %v3753, 0.2
    %v3786 = vmul.f32 %v3754, 0.2
    %v3787 = vsel %vm3755, %v3739, %v3771
    %v3788 = vsel %vm3756, %v3740, %v3772
    %v3789 = vsel %vm3757, %v3741, %v3773
    %v3790 = vsel %vm3758, %v3742, %v3774
    %v3791 = vsel %vm3759, %v3743, %v3775
    %v3792 = vsel %vm3760, %v3744, %v3776
    %v3793 = vsel %vm3761, %v3745, %v3777
    %v3794 = vsel %vm3762, %v3746, %v3778
    %v3795 = vsel %vm3763, %v3747, %v3779
    %v3796 = vsel %vm3764, %v3748, %v3780
    %v3797 = vsel %vm3765, %v3749, %v3781
    %v3798 = vsel %vm3766, %v3750, %v3782
    %v3799 = vsel %vm3767, %v3751, %v3783
    %v3800 = vsel %vm3768, %v3752, %v3784
    %v3801 = vsel %vm3769, %v3753, %v3785
    %v3802 = vsel %vm3770, %v3754, %v3786
    %v3803 = vsel %vm89, %v3787, -1e+30
    %v3804 = vsel %vm90, %v3788, -1e+30
    %v3805 = vsel %vm91, %v3789, -1e+30
    %v3806 = vsel %vm92, %v3790, -1e+30
    %v3807 = vsel %vm93, %v3791, -1e+30
    %v3808 = vsel %vm94, %v3792, -1e+30
    %v3809 = vsel %vm95, %v3793, -1e+30
    %v3810 = vsel %vm96, %v3794, -1e+30
    %v3811 = vsel %vm97, %v3795, -1e+30
    %v3812 = vsel %vm98, %v3796, -1e+30
    %v3813 = vsel %vm99, %v3797, -1e+30
    %v3814 = vsel %vm100, %v3798, -1e+30
    %v3815 = vsel %vm101, %v3799, -1e+30
    %v3816 = vsel %vm102, %v3800, -1e+30
    %v3817 = vsel %vm103, %v3801, -1e+30
    %v3818 = vsel %vm104, %v3802, -1e+30
    %3819 = vmax.xlane.f32.xlu0 %v3803
    %v3820 = vpop.xlane.xlu0 %3819
    %3821 = vmax.xlane.f32.xlu0 %v3804
    %v3822 = vpop.xlane.xlu0 %3821
    %3823 = vmax.xlane.f32.xlu0 %v3805
    %v3824 = vpop.xlane.xlu0 %3823
    %3825 = vmax.xlane.f32.xlu0 %v3806
    %v3826 = vpop.xlane.xlu0 %3825
    %3827 = vmax.xlane.f32.xlu0 %v3807
    %v3828 = vpop.xlane.xlu0 %3827
    %3829 = vmax.xlane.f32.xlu0 %v3808
    %v3830 = vpop.xlane.xlu0 %3829
    %3831 = vmax.xlane.f32.xlu0 %v3809
    %v3832 = vpop.xlane.xlu0 %3831
    %3833 = vmax.xlane.f32.xlu0 %v3810
    %v3834 = vpop.xlane.xlu0 %3833
    %3835 = vmax.xlane.f32.xlu0 %v3811
    %v3836 = vpop.xlane.xlu0 %3835
    %3837 = vmax.xlane.f32.xlu0 %v3812
    %v3838 = vpop.xlane.xlu0 %3837
    %3839 = vmax.xlane.f32.xlu0 %v3813
    %v3840 = vpop.xlane.xlu0 %3839
    %3841 = vmax.xlane.f32.xlu0 %v3814
    %v3842 = vpop.xlane.xlu0 %3841
    %3843 = vmax.xlane.f32.xlu0 %v3815
    %v3844 = vpop.xlane.xlu0 %3843
    %3845 = vmax.xlane.f32.xlu0 %v3816
    %v3846 = vpop.xlane.xlu0 %3845
    %3847 = vmax.xlane.f32.xlu0 %v3817
    %v3848 = vpop.xlane.xlu0 %3847
    %3849 = vmax.xlane.f32.xlu0 %v3818
    %v3850 = vpop.xlane.xlu0 %3849
    %v3851 = vsub.f32 %v3803, %v3820
    %v3852 = vsub.f32 %v3804, %v3822
    %v3853 = vsub.f32 %v3805, %v3824
    %v3854 = vsub.f32 %v3806, %v3826
    %v3855 = vsub.f32 %v3807, %v3828
    %v3856 = vsub.f32 %v3808, %v3830
    %v3857 = vsub.f32 %v3809, %v3832
    %v3858 = vsub.f32 %v3810, %v3834
    %v3859 = vsub.f32 %v3811, %v3836
    %v3860 = vsub.f32 %v3812, %v3838
    %v3861 = vsub.f32 %v3813, %v3840
    %v3862 = vsub.f32 %v3814, %v3842
    %v3863 = vsub.f32 %v3815, %v3844
    %v3864 = vsub.f32 %v3816, %v3846
    %v3865 = vsub.f32 %v3817, %v3848
    %v3866 = vsub.f32 %v3818, %v3850
    %v3867 = vmul.f32 %v3851, 1.442695
    %v3868 = vpow.pop %v3867
    %v3869 = vmul.f32 %v3852, 1.442695
    %v3870 = vpow.pop %v3869
    %v3871 = vmul.f32 %v3853, 1.442695
    %v3872 = vpow.pop %v3871
    %v3873 = vmul.f32 %v3854, 1.442695
    %v3874 = vpow.pop %v3873
    %v3875 = vmul.f32 %v3855, 1.442695
    %v3876 = vpow.pop %v3875
    %v3877 = vmul.f32 %v3856, 1.442695
    %v3878 = vpow.pop %v3877
    %v3879 = vmul.f32 %v3857, 1.442695
    %v3880 = vpow.pop %v3879
    %v3881 = vmul.f32 %v3858, 1.442695
    %v3882 = vpow.pop %v3881
    %v3883 = vmul.f32 %v3859, 1.442695
    %v3884 = vpow.pop %v3883
    %v3885 = vmul.f32 %v3860, 1.442695
    %v3886 = vpow.pop %v3885
    %v3887 = vmul.f32 %v3861, 1.442695
    %v3888 = vpow.pop %v3887
    %v3889 = vmul.f32 %v3862, 1.442695
    %v3890 = vpow.pop %v3889
    %v3891 = vmul.f32 %v3863, 1.442695
    %v3892 = vpow.pop %v3891
    %v3893 = vmul.f32 %v3864, 1.442695
    %v3894 = vpow.pop %v3893
    %v3895 = vmul.f32 %v3865, 1.442695
    %v3896 = vpow.pop %v3895
    %v3897 = vmul.f32 %v3866, 1.442695
    %v3898 = vpow.pop %v3897
    %v3899 = vmul.f32 %v3868, %v57
    %v3900 = vmul.f32 %v3870, %v58
    %v3901 = vmul.f32 %v3872, %v59
    %v3902 = vmul.f32 %v3874, %v60
    %v3903 = vmul.f32 %v3876, %v61
    %v3904 = vmul.f32 %v3878, %v62
    %v3905 = vmul.f32 %v3880, %v63
    %v3906 = vmul.f32 %v3882, %v64
    %v3907 = vmul.f32 %v3884, %v65
    %v3908 = vmul.f32 %v3886, %v66
    %v3909 = vmul.f32 %v3888, %v67
    %v3910 = vmul.f32 %v3890, %v68
    %v3911 = vmul.f32 %v3892, %v69
    %v3912 = vmul.f32 %v3894, %v70
    %v3913 = vmul.f32 %v3896, %v71
    %v3914 = vmul.f32 %v3898, %v72
    %3915 = vadd.xlane.f32.xlu0 %v3899
    %v3916 = vpop.xlane.xlu0 %3915
    %3917 = vadd.xlane.f32.xlu0 %v3900
    %v3918 = vpop.xlane.xlu0 %3917
    %3919 = vadd.xlane.f32.xlu0 %v3901
    %v3920 = vpop.xlane.xlu0 %3919
    %3921 = vadd.xlane.f32.xlu0 %v3902
    %v3922 = vpop.xlane.xlu0 %3921
    %3923 = vadd.xlane.f32.xlu0 %v3903
    %v3924 = vpop.xlane.xlu0 %3923
    %3925 = vadd.xlane.f32.xlu0 %v3904
    %v3926 = vpop.xlane.xlu0 %3925
    %3927 = vadd.xlane.f32.xlu0 %v3905
    %v3928 = vpop.xlane.xlu0 %3927
    %3929 = vadd.xlane.f32.xlu0 %v3906
    %v3930 = vpop.xlane.xlu0 %3929
    %3931 = vadd.xlane.f32.xlu0 %v3907
    %v3932 = vpop.xlane.xlu0 %3931
    %3933 = vadd.xlane.f32.xlu0 %v3908
    %v3934 = vpop.xlane.xlu0 %3933
    %3935 = vadd.xlane.f32.xlu0 %v3909
    %v3936 = vpop.xlane.xlu0 %3935
    %3937 = vadd.xlane.f32.xlu0 %v3910
    %v3938 = vpop.xlane.xlu0 %3937
    %3939 = vadd.xlane.f32.xlu0 %v3911
    %v3940 = vpop.xlane.xlu0 %3939
    %3941 = vadd.xlane.f32.xlu0 %v3912
    %v3942 = vpop.xlane.xlu0 %3941
    %3943 = vadd.xlane.f32.xlu0 %v3913
    %v3944 = vpop.xlane.xlu0 %3943
    %3945 = vadd.xlane.f32.xlu0 %v3914
    %v3946 = vpop.xlane.xlu0 %3945
    %v3947 = vmax.f32 %v3916, 1e-30
    %v3948 = vmax.f32 %v3918, 1e-30
    %v3949 = vmax.f32 %v3920, 1e-30
    %v3950 = vmax.f32 %v3922, 1e-30
    %v3951 = vmax.f32 %v3924, 1e-30
    %v3952 = vmax.f32 %v3926, 1e-30
    %v3953 = vmax.f32 %v3928, 1e-30
    %v3954 = vmax.f32 %v3930, 1e-30
    %v3955 = vmax.f32 %v3932, 1e-30
    %v3956 = vmax.f32 %v3934, 1e-30
    %v3957 = vmax.f32 %v3936, 1e-30
    %v3958 = vmax.f32 %v3938, 1e-30
    %v3959 = vmax.f32 %v3940, 1e-30
    %v3960 = vmax.f32 %v3942, 1e-30
    %v3961 = vmax.f32 %v3944, 1e-30
    %v3962 = vmax.f32 %v3946, 1e-30
    %v3963 = vrcp.pop %v3947
    %v3964 = vmul.f32 1.0, %v3963
    %v3965 = vrcp.pop %v3948
    %v3966 = vmul.f32 1.0, %v3965
    %v3967 = vrcp.pop %v3949
    %v3968 = vmul.f32 1.0, %v3967
    %v3969 = vrcp.pop %v3950
    %v3970 = vmul.f32 1.0, %v3969
    %v3971 = vrcp.pop %v3951
    %v3972 = vmul.f32 1.0, %v3971
    %v3973 = vrcp.pop %v3952
    %v3974 = vmul.f32 1.0, %v3973
    %v3975 = vrcp.pop %v3953
    %v3976 = vmul.f32 1.0, %v3975
    %v3977 = vrcp.pop %v3954
    %v3978 = vmul.f32 1.0, %v3977
    %v3979 = vrcp.pop %v3955
    %v3980 = vmul.f32 1.0, %v3979
    %v3981 = vrcp.pop %v3956
    %v3982 = vmul.f32 1.0, %v3981
    %v3983 = vrcp.pop %v3957
    %v3984 = vmul.f32 1.0, %v3983
    %v3985 = vrcp.pop %v3958
    %v3986 = vmul.f32 1.0, %v3985
    %v3987 = vrcp.pop %v3959
    %v3988 = vmul.f32 1.0, %v3987
    %v3989 = vrcp.pop %v3960
    %v3990 = vmul.f32 1.0, %v3989
    %v3991 = vrcp.pop %v3961
    %v3992 = vmul.f32 1.0, %v3991
    %v3993 = vrcp.pop %v3962
    %v3994 = vmul.f32 1.0, %v3993
    %v3995 = vmul.f32 %v3899, %v3964
    %v3996 = vmul.f32 %v3900, %v3966
    %v3997 = vmul.f32 %v3901, %v3968
    %v3998 = vmul.f32 %v3902, %v3970
    %v3999 = vmul.f32 %v3903, %v3972
    %v4000 = vmul.f32 %v3904, %v3974
    %v4001 = vmul.f32 %v3905, %v3976
    %v4002 = vmul.f32 %v3906, %v3978
    %v4003 = vmul.f32 %v3907, %v3980
    %v4004 = vmul.f32 %v3908, %v3982
    %v4005 = vmul.f32 %v3909, %v3984
    %v4006 = vmul.f32 %v3910, %v3986
    %v4007 = vmul.f32 %v3911, %v3988
    %v4008 = vmul.f32 %v3912, %v3990
    %v4009 = vmul.f32 %v3913, %v3992
    %v4010 = vmul.f32 %v3914, %v3994
    %v4011 = vmul.f32 %v3995, 0.95
    %v4012 = vmul.f32 %v3996, 0.95
    %v4013 = vmul.f32 %v3997, 0.95
    %v4014 = vmul.f32 %v3998, 0.95
    %v4015 = vmul.f32 %v3999, 0.95
    %v4016 = vmul.f32 %v4000, 0.95
    %v4017 = vmul.f32 %v4001, 0.95
    %v4018 = vmul.f32 %v4002, 0.95
    %v4019 = vmul.f32 %v4003, 0.95
    %v4020 = vmul.f32 %v4004, 0.95
    %v4021 = vmul.f32 %v4005, 0.95
    %v4022 = vmul.f32 %v4006, 0.95
    %v4023 = vmul.f32 %v4007, 0.95
    %v4024 = vmul.f32 %v4008, 0.95
    %v4025 = vmul.f32 %v4009, 0.95
    %v4026 = vmul.f32 %v4010, 0.95
    %v4027 = vmul.f32 %v1702, 0.05
    %v4028 = vmul.f32 %v1703, 0.05
    %v4029 = vmul.f32 %v1704, 0.05
    %v4030 = vmul.f32 %v1705, 0.05
    %v4031 = vmul.f32 %v1706, 0.05
    %v4032 = vmul.f32 %v1707, 0.05
    %v4033 = vmul.f32 %v1708, 0.05
    %v4034 = vmul.f32 %v1709, 0.05
    %v4035 = vmul.f32 %v1710, 0.05
    %v4036 = vmul.f32 %v1711, 0.05
    %v4037 = vmul.f32 %v1712, 0.05
    %v4038 = vmul.f32 %v1713, 0.05
    %v4039 = vmul.f32 %v1714, 0.05
    %v4040 = vmul.f32 %v1715, 0.05
    %v4041 = vmul.f32 %v1716, 0.05
    %v4042 = vmul.f32 %v1717, 0.05
    %v4043 = vadd.f32 %v4011, %v4027
    %v4044 = vadd.f32 %v4012, %v4028
    %v4045 = vadd.f32 %v4013, %v4029
    %v4046 = vadd.f32 %v4014, %v4030
    %v4047 = vadd.f32 %v4015, %v4031
    %v4048 = vadd.f32 %v4016, %v4032
    %v4049 = vadd.f32 %v4017, %v4033
    %v4050 = vadd.f32 %v4018, %v4034
    %v4051 = vadd.f32 %v4019, %v4035
    %v4052 = vadd.f32 %v4020, %v4036
    %v4053 = vadd.f32 %v4021, %v4037
    %v4054 = vadd.f32 %v4022, %v4038
    %v4055 = vadd.f32 %v4023, %v4039
    %v4056 = vadd.f32 %v4024, %v4040
    %v4057 = vadd.f32 %v4025, %v4041
    %v4058 = vadd.f32 %v4026, %v4042
    %4059 = vmatprep.subr.mxu0 0.0
    %4060 = vmatpush1.msra.mxu0 %v3203
    %4061 = vmatprep.subr.mxu0 0.0
    %4062 = vmatpush1.msra.mxu0 %v3208
    %4063 = vmatprep.subr.mxu0 0.0
    %4064 = vmatpush1.msra.mxu0 %v3213
    %4065 = vmatprep.subr.mxu0 0.0
    %4066 = vmatpush1.msra.mxu0 %v3218
    %4067 = vmatprep.subr.mxu0 0.0
    %4068 = vmatpush1.msra.mxu0 %v3223
    %4069 = vmatprep.subr.mxu0 0.0
    %4070 = vmatpush1.msra.mxu0 %v3228
    %4071 = vmatprep.subr.mxu0 0.0
    %4072 = vmatpush1.msra.mxu0 %v3233
    %4073 = vmatprep.subr.mxu0 0.0
    %4074 = vmatpush1.msra.mxu0 %v3238
    %4075 = vmatprep.subr.mxu0 0.0
    %4076 = vmatpush1.msra.mxu0 %v3243
    %4077 = vmatprep.subr.mxu0 0.0
    %4078 = vmatpush1.msra.mxu0 %v3248
    %4079 = vmatprep.subr.mxu0 0.0
    %4080 = vmatpush1.msra.mxu0 %v3253
    %4081 = vmatprep.subr.mxu0 0.0
    %4082 = vmatpush1.msra.mxu0 %v3258
    %4083 = vmatprep.subr.mxu0 0.0
    %4084 = vmatpush1.msra.mxu0 %v3263
    %4085 = vmatprep.subr.mxu0 0.0
    %4086 = vmatpush1.msra.mxu0 %v3268
    %4087 = vmatprep.subr.mxu0 0.0
    %4088 = vmatpush1.msra.mxu0 %v3273
    %4089 = vmatprep.subr.mxu0 0.0
    %4090 = vmatpush1.msra.mxu0 %v3278
    %4091 = vmatprep.subr.mxu0 0.0
    %4092 = vmatpush1.msra.mxu0 0.0
    %4093 = vmatprep.subr.mxu0 0.0
    %4094 = vmatpush1.msra.mxu0 0.0
    %4095 = vmatprep.subr.mxu0 0.0
    %4096 = vmatpush1.msra.mxu0 0.0
    %4097 = vmatprep.subr.mxu0 0.0
    %4098 = vmatpush1.msra.mxu0 0.0
    %4099 = vmatprep.subr.mxu0 0.0
    %4100 = vmatpush1.msra.mxu0 0.0
    %4101 = vmatprep.subr.mxu0 0.0
    %4102 = vmatpush1.msra.mxu0 0.0
    %4103 = vmatprep.subr.mxu0 0.0
    %4104 = vmatpush1.msra.mxu0 0.0
    %4105 = vmatprep.subr.mxu0 0.0
    %4106 = vmatpush1.msra.mxu0 0.0
    %4107 = vmatprep.subr.mxu0 0.0
    %4108 = vmatpush1.msra.mxu0 0.0
    %4109 = vmatprep.subr.mxu0 0.0
    %4110 = vmatpush1.msra.mxu0 0.0
    %4111 = vmatprep.subr.mxu0 0.0
    %4112 = vmatpush1.msra.mxu0 0.0
    %4113 = vmatprep.subr.mxu0 0.0
    %4114 = vmatpush1.msra.mxu0 0.0
    %4115 = vmatprep.subr.mxu0 0.0
    %4116 = vmatpush1.msra.mxu0 0.0
    %4117 = vmatprep.subr.mxu0 0.0
    %4118 = vmatpush1.msra.mxu0 0.0
    %4119 = vmatprep.subr.mxu0 0.0
    %4120 = vmatpush1.msra.mxu0 0.0
    %4121 = vmatprep.subr.mxu0 0.0
    %4122 = vmatpush1.msra.mxu0 0.0
    %4123 = vmatprep.mubr.f32.mxu0 0.0
    %4124 = vmatmul.mubr.f32.gmra.mrb[0].mxu0 %v4043
    %v4125 = vpop.f32.mrb[0].mxu0
    %v4126 = vadd.f32 0.0, %v4125
    %v4127 = vpop.f32.mrb[0].mxu0
    %4128 = vmatprep.mubr.f32.mxu0 0.0
    %4129 = vmatmul.mubr.f32.gmra.mrb[0].mxu0 %v4044
    %v4130 = vpop.f32.mrb[0].mxu0
    %v4131 = vadd.f32 0.0, %v4130
    %v4132 = vpop.f32.mrb[0].mxu0
    %4133 = vmatprep.mubr.f32.mxu0 0.0
    %4134 = vmatmul.mubr.f32.gmra.mrb[0].mxu0 %v4045
    %v4135 = vpop.f32.mrb[0].mxu0
    %v4136 = vadd.f32 0.0, %v4135
    %v4137 = vpop.f32.mrb[0].mxu0
    %4138 = vmatprep.mubr.f32.mxu0 0.0
    %4139 = vmatmul.mubr.f32.gmra.mrb[0].mxu0 %v4046
    %v4140 = vpop.f32.mrb[0].mxu0
    %v4141 = vadd.f32 0.0, %v4140
    %v4142 = vpop.f32.mrb[0].mxu0
    %4143 = vmatprep.mubr.f32.mxu0 0.0
    %4144 = vmatmul.mubr.f32.gmra.mrb[0].mxu0 %v4047
    %v4145 = vpop.f32.mrb[0].mxu0
    %v4146 = vadd.f32 0.0, %v4145
    %v4147 = vpop.f32.mrb[0].mxu0
    %4148 = vmatprep.mubr.f32.mxu0 0.0
    %4149 = vmatmul.mubr.f32.gmra.mrb[0].mxu0 %v4048
    %v4150 = vpop.f32.mrb[0].mxu0
    %v4151 = vadd.f32 0.0, %v4150
    %v4152 = vpop.f32.mrb[0].mxu0
    %4153 = vmatprep.mubr.f32.mxu0 0.0
    %4154 = vmatmul.mubr.f32.gmra.mrb[0].mxu0 %v4049
    %v4155 = vpop.f32.mrb[0].mxu0
    %v4156 = vadd.f32 0.0, %v4155
    %v4157 = vpop.f32.mrb[0].mxu0
    %4158 = vmatprep.mubr.f32.mxu0 0.0
    %4159 = vmatmul.mubr.f32.gmra.mrb[0].mxu0 %v4050
    %v4160 = vpop.f32.mrb[0].mxu0
    %v4161 = vadd.f32 0.0, %v4160
    %v4162 = vpop.f32.mrb[0].mxu0
    %4163 = vmatprep.mubr.f32.mxu0 0.0
    %4164 = vmatmul.mubr.f32.gmra.mrb[0].mxu0 %v4051
    %v4165 = vpop.f32.mrb[0].mxu0
    %v4166 = vadd.f32 0.0, %v4165
    %v4167 = vpop.f32.mrb[0].mxu0
    %4168 = vmatprep.mubr.f32.mxu0 0.0
    %4169 = vmatmul.mubr.f32.gmra.mrb[0].mxu0 %v4052
    %v4170 = vpop.f32.mrb[0].mxu0
    %v4171 = vadd.f32 0.0, %v4170
    %v4172 = vpop.f32.mrb[0].mxu0
    %4173 = vmatprep.mubr.f32.mxu0 0.0
    %4174 = vmatmul.mubr.f32.gmra.mrb[0].mxu0 %v4053
    %v4175 = vpop.f32.mrb[0].mxu0
    %v4176 = vadd.f32 0.0, %v4175
    %v4177 = vpop.f32.mrb[0].mxu0
    %4178 = vmatprep.mubr.f32.mxu0 0.0
    %4179 = vmatmul.mubr.f32.gmra.mrb[0].mxu0 %v4054
    %v4180 = vpop.f32.mrb[0].mxu0
    %v4181 = vadd.f32 0.0, %v4180
    %v4182 = vpop.f32.mrb[0].mxu0
    %4183 = vmatprep.mubr.f32.mxu0 0.0
    %4184 = vmatmul.mubr.f32.gmra.mrb[0].mxu0 %v4055
    %v4185 = vpop.f32.mrb[0].mxu0
    %v4186 = vadd.f32 0.0, %v4185
    %v4187 = vpop.f32.mrb[0].mxu0
    %4188 = vmatprep.mubr.f32.mxu0 0.0
    %4189 = vmatmul.mubr.f32.gmra.mrb[0].mxu0 %v4056
    %v4190 = vpop.f32.mrb[0].mxu0
    %v4191 = vadd.f32 0.0, %v4190
    %v4192 = vpop.f32.mrb[0].mxu0
    %4193 = vmatprep.mubr.f32.mxu0 0.0
    %4194 = vmatmul.mubr.f32.gmra.mrb[0].mxu0 %v4057
    %v4195 = vpop.f32.mrb[0].mxu0
    %v4196 = vadd.f32 0.0, %v4195
    %v4197 = vpop.f32.mrb[0].mxu0
    %4198 = vmatprep.mubr.f32.mxu0 0.0
    %4199 = vmatmul.mubr.f32.gmra.mrb[0].mxu0 %v4058
    %v4200 = vpop.f32.mrb[0].mxu0
    %v4201 = vadd.f32 0.0, %v4200
    %v4202 = vpop.f32.mrb[0].mxu0
    %4203 = vdwg.mxu0
    %vm4204 = vcmp.gt.f32.partialorder %v4126, 0.0
    %vm4205 = vcmp.gt.f32.partialorder %v4131, 0.0
    %vm4206 = vcmp.gt.f32.partialorder %v4136, 0.0
    %vm4207 = vcmp.gt.f32.partialorder %v4141, 0.0
    %vm4208 = vcmp.gt.f32.partialorder %v4146, 0.0
    %vm4209 = vcmp.gt.f32.partialorder %v4151, 0.0
    %vm4210 = vcmp.gt.f32.partialorder %v4156, 0.0
    %vm4211 = vcmp.gt.f32.partialorder %v4161, 0.0
    %vm4212 = vcmp.gt.f32.partialorder %v4166, 0.0
    %vm4213 = vcmp.gt.f32.partialorder %v4171, 0.0
    %vm4214 = vcmp.gt.f32.partialorder %v4176, 0.0
    %vm4215 = vcmp.gt.f32.partialorder %v4181, 0.0
    %vm4216 = vcmp.gt.f32.partialorder %v4186, 0.0
    %vm4217 = vcmp.gt.f32.partialorder %v4191, 0.0
    %vm4218 = vcmp.gt.f32.partialorder %v4196, 0.0
    %vm4219 = vcmp.gt.f32.partialorder %v4201, 0.0
    %v4220 = vmul.f32 %v4126, 1.442695
    %v4221 = vpow.pop %v4220
    %v4222 = vmul.f32 %v4131, 1.442695
    %v4223 = vpow.pop %v4222
    %v4224 = vmul.f32 %v4136, 1.442695
    %v4225 = vpow.pop %v4224
    %v4226 = vmul.f32 %v4141, 1.442695
    %v4227 = vpow.pop %v4226
    %v4228 = vmul.f32 %v4146, 1.442695
    %v4229 = vpow.pop %v4228
    %v4230 = vmul.f32 %v4151, 1.442695
    %v4231 = vpow.pop %v4230
    %v4232 = vmul.f32 %v4156, 1.442695
    %v4233 = vpow.pop %v4232
    %v4234 = vmul.f32 %v4161, 1.442695
    %v4235 = vpow.pop %v4234
    %v4236 = vmul.f32 %v4166, 1.442695
    %v4237 = vpow.pop %v4236
    %v4238 = vmul.f32 %v4171, 1.442695
    %v4239 = vpow.pop %v4238
    %v4240 = vmul.f32 %v4176, 1.442695
    %v4241 = vpow.pop %v4240
    %v4242 = vmul.f32 %v4181, 1.442695
    %v4243 = vpow.pop %v4242
    %v4244 = vmul.f32 %v4186, 1.442695
    %v4245 = vpow.pop %v4244
    %v4246 = vmul.f32 %v4191, 1.442695
    %v4247 = vpow.pop %v4246
    %v4248 = vmul.f32 %v4196, 1.442695
    %v4249 = vpow.pop %v4248
    %v4250 = vmul.f32 %v4201, 1.442695
    %v4251 = vpow.pop %v4250
    %v4252 = vsub.f32 %v4221, 1.0
    %v4253 = vsub.f32 %v4223, 1.0
    %v4254 = vsub.f32 %v4225, 1.0
    %v4255 = vsub.f32 %v4227, 1.0
    %v4256 = vsub.f32 %v4229, 1.0
    %v4257 = vsub.f32 %v4231, 1.0
    %v4258 = vsub.f32 %v4233, 1.0
    %v4259 = vsub.f32 %v4235, 1.0
    %v4260 = vsub.f32 %v4237, 1.0
    %v4261 = vsub.f32 %v4239, 1.0
    %v4262 = vsub.f32 %v4241, 1.0
    %v4263 = vsub.f32 %v4243, 1.0
    %v4264 = vsub.f32 %v4245, 1.0
    %v4265 = vsub.f32 %v4247, 1.0
    %v4266 = vsub.f32 %v4249, 1.0
    %v4267 = vsub.f32 %v4251, 1.0
    %v4268 = vsel %vm4204, %v4126, %v4252
    %v4269 = vsel %vm4205, %v4131, %v4253
    %v4270 = vsel %vm4206, %v4136, %v4254
    %v4271 = vsel %vm4207, %v4141, %v4255
    %v4272 = vsel %vm4208, %v4146, %v4256
    %v4273 = vsel %vm4209, %v4151, %v4257
    %v4274 = vsel %vm4210, %v4156, %v4258
    %v4275 = vsel %vm4211, %v4161, %v4259
    %v4276 = vsel %vm4212, %v4166, %v4260
    %v4277 = vsel %vm4213, %v4171, %v4261
    %v4278 = vsel %vm4214, %v4176, %v4262
    %v4279 = vsel %vm4215, %v4181, %v4263
    %v4280 = vsel %vm4216, %v4186, %v4264
    %v4281 = vsel %vm4217, %v4191, %v4265
    %v4282 = vsel %vm4218, %v4196, %v4266
    %v4283 = vsel %vm4219, %v4201, %v4267
    %4284 = vset.pattern.permute.xlu0 1
    %4285 = vperm.xlu0 %4284, %v3409
    %v4286 = vpop.permute.xlu0 %4285
    %4288 = vset.pattern.permute.xlu0 1
    %4289 = vperm.xlu0 %4288, %v3414
    %v4290 = vpop.permute.xlu0 %4289
    %4292 = vset.pattern.permute.xlu0 1
    %4293 = vperm.xlu0 %4292, %v3419
    %v4294 = vpop.permute.xlu0 %4293
    %4296 = vset.pattern.permute.xlu0 1
    %4297 = vperm.xlu0 %4296, %v3424
    %v4298 = vpop.permute.xlu0 %4297
    %4300 = vset.pattern.permute.xlu0 1
    %4301 = vperm.xlu0 %4300, %v3429
    %v4302 = vpop.permute.xlu0 %4301
    %4304 = vset.pattern.permute.xlu0 1
    %4305 = vperm.xlu0 %4304, %v3434
    %v4306 = vpop.permute.xlu0 %4305
    %4308 = vset.pattern.permute.xlu0 1
    %4309 = vperm.xlu0 %4308, %v3439
    %v4310 = vpop.permute.xlu0 %4309
    %4312 = vset.pattern.permute.xlu0 1
    %4313 = vperm.xlu0 %4312, %v3444
    %v4314 = vpop.permute.xlu0 %4313
    %4316 = vset.pattern.permute.xlu0 1
    %4317 = vperm.xlu0 %4316, %v3449
    %v4318 = vpop.permute.xlu0 %4317
    %4320 = vset.pattern.permute.xlu0 1
    %4321 = vperm.xlu0 %4320, %v3454
    %v4322 = vpop.permute.xlu0 %4321
    %4324 = vset.pattern.permute.xlu0 1
    %4325 = vperm.xlu0 %4324, %v3459
    %v4326 = vpop.permute.xlu0 %4325
    %4328 = vset.pattern.permute.xlu0 1
    %4329 = vperm.xlu0 %4328, %v3464
    %v4330 = vpop.permute.xlu0 %4329
    %4332 = vset.pattern.permute.xlu0 1
    %4333 = vperm.xlu0 %4332, %v3469
    %v4334 = vpop.permute.xlu0 %4333
    %4336 = vset.pattern.permute.xlu0 1
    %4337 = vperm.xlu0 %4336, %v3474
    %v4338 = vpop.permute.xlu0 %4337
    %4340 = vset.pattern.permute.xlu0 1
    %4341 = vperm.xlu0 %4340, %v3479
    %v4342 = vpop.permute.xlu0 %4341
    %4344 = vset.pattern.permute.xlu0 1
    %4345 = vperm.xlu0 %4344, %v3484
    %v4346 = vpop.permute.xlu0 %4345
    %v4348 = vlaneseq
    %v4349 = vshrl.u32 %v4348, 7
    %v4350 = vsub.s32 3, %v4349
    %v4351 = vrot.slane %v3503, %v4350
    %v4352 = vadd.f32 %v4286, %v4351
    %v4353 = vadd.f32 %v4290, %v4351
    %v4354 = vadd.f32 %v4294, %v4351
    %v4355 = vadd.f32 %v4298, %v4351
    %v4356 = vadd.f32 %v4302, %v4351
    %v4357 = vadd.f32 %v4306, %v4351
    %v4358 = vadd.f32 %v4310, %v4351
    %v4359 = vadd.f32 %v4314, %v4351
    %v4360 = vadd.f32 %v4318, %v4351
    %v4361 = vadd.f32 %v4322, %v4351
    %v4362 = vadd.f32 %v4326, %v4351
    %v4363 = vadd.f32 %v4330, %v4351
    %v4364 = vadd.f32 %v4334, %v4351
    %v4365 = vadd.f32 %v4338, %v4351
    %v4366 = vadd.f32 %v4342, %v4351
    %v4367 = vadd.f32 %v4346, %v4351
    %s4368 = sld [smem:[#allocation2 + $0x9]]
    %v4369 = vstv %s4368
    %v4370 = vmul.f32 %v137, %v4369
    %v4371 = vmul.f32 %v138, %v4369
    %v4372 = vmul.f32 %v139, %v4369
    %v4373 = vmul.f32 %v140, %v4369
    %v4374 = vmul.f32 %v141, %v4369
    %v4375 = vmul.f32 %v142, %v4369
    %v4376 = vmul.f32 %v143, %v4369
    %v4377 = vmul.f32 %v144, %v4369
    %v4378 = vmul.f32 %v145, %v4369
    %v4379 = vmul.f32 %v146, %v4369
    %v4380 = vmul.f32 %v147, %v4369
    %v4381 = vmul.f32 %v148, %v4369
    %v4382 = vmul.f32 %v149, %v4369
    %v4383 = vmul.f32 %v150, %v4369
    %v4384 = vmul.f32 %v151, %v4369
    %v4385 = vmul.f32 %v152, %v4369
    %v4386 = vadd.f32 %v4352, %v4370
    %v4387 = vadd.f32 %v4353, %v4371
    %v4388 = vadd.f32 %v4354, %v4372
    %v4389 = vadd.f32 %v4355, %v4373
    %v4390 = vadd.f32 %v4356, %v4374
    %v4391 = vadd.f32 %v4357, %v4375
    %v4392 = vadd.f32 %v4358, %v4376
    %v4393 = vadd.f32 %v4359, %v4377
    %v4394 = vadd.f32 %v4360, %v4378
    %v4395 = vadd.f32 %v4361, %v4379
    %v4396 = vadd.f32 %v4362, %v4380
    %v4397 = vadd.f32 %v4363, %v4381
    %v4398 = vadd.f32 %v4364, %v4382
    %v4399 = vadd.f32 %v4365, %v4383
    %v4400 = vadd.f32 %v4366, %v4384
    %v4401 = vadd.f32 %v4367, %v4385
    %s4402 = sld [smem:[#allocation2 + $0xb]]
    %v4403 = vstv %s4402
    %v4404 = vmul.f32 %v185, %v4403
    %v4405 = vmul.f32 %v186, %v4403
    %v4406 = vmul.f32 %v187, %v4403
    %v4407 = vmul.f32 %v188, %v4403
    %v4408 = vmul.f32 %v189, %v4403
    %v4409 = vmul.f32 %v190, %v4403
    %v4410 = vmul.f32 %v191, %v4403
    %v4411 = vmul.f32 %v192, %v4403
    %v4412 = vmul.f32 %v193, %v4403
    %v4413 = vmul.f32 %v194, %v4403
    %v4414 = vmul.f32 %v195, %v4403
    %v4415 = vmul.f32 %v196, %v4403
    %v4416 = vmul.f32 %v197, %v4403
    %v4417 = vmul.f32 %v198, %v4403
    %v4418 = vmul.f32 %v199, %v4403
    %v4419 = vmul.f32 %v200, %v4403
    %v4420 = vadd.f32 %v4386, %v4404
    %v4421 = vadd.f32 %v4387, %v4405
    %v4422 = vadd.f32 %v4388, %v4406
    %v4423 = vadd.f32 %v4389, %v4407
    %v4424 = vadd.f32 %v4390, %v4408
    %v4425 = vadd.f32 %v4391, %v4409
    %v4426 = vadd.f32 %v4392, %v4410
    %v4427 = vadd.f32 %v4393, %v4411
    %v4428 = vadd.f32 %v4394, %v4412
    %v4429 = vadd.f32 %v4395, %v4413
    %v4430 = vadd.f32 %v4396, %v4414
    %v4431 = vadd.f32 %v4397, %v4415
    %v4432 = vadd.f32 %v4398, %v4416
    %v4433 = vadd.f32 %v4399, %v4417
    %v4434 = vadd.f32 %v4400, %v4418
    %v4435 = vadd.f32 %v4401, %v4419
    %s4436 = sld [smem:[#allocation2 + $0xd]]
    %v4437 = vstv %s4436
    %v4438 = vmul.f32 %v233, %v4437
    %v4439 = vmul.f32 %v234, %v4437
    %v4440 = vmul.f32 %v235, %v4437
    %v4441 = vmul.f32 %v236, %v4437
    %v4442 = vmul.f32 %v237, %v4437
    %v4443 = vmul.f32 %v238, %v4437
    %v4444 = vmul.f32 %v239, %v4437
    %v4445 = vmul.f32 %v240, %v4437
    %v4446 = vmul.f32 %v241, %v4437
    %v4447 = vmul.f32 %v242, %v4437
    %v4448 = vmul.f32 %v243, %v4437
    %v4449 = vmul.f32 %v244, %v4437
    %v4450 = vmul.f32 %v245, %v4437
    %v4451 = vmul.f32 %v246, %v4437
    %v4452 = vmul.f32 %v247, %v4437
    %v4453 = vmul.f32 %v248, %v4437
    %v4454 = vadd.f32 %v4420, %v4438
    %v4455 = vadd.f32 %v4421, %v4439
    %v4456 = vadd.f32 %v4422, %v4440
    %v4457 = vadd.f32 %v4423, %v4441
    %v4458 = vadd.f32 %v4424, %v4442
    %v4459 = vadd.f32 %v4425, %v4443
    %v4460 = vadd.f32 %v4426, %v4444
    %v4461 = vadd.f32 %v4427, %v4445
    %v4462 = vadd.f32 %v4428, %v4446
    %v4463 = vadd.f32 %v4429, %v4447
    %v4464 = vadd.f32 %v4430, %v4448
    %v4465 = vadd.f32 %v4431, %v4449
    %v4466 = vadd.f32 %v4432, %v4450
    %v4467 = vadd.f32 %v4433, %v4451
    %v4468 = vadd.f32 %v4434, %v4452
    %v4469 = vadd.f32 %v4435, %v4453
    %s4470 = sld [smem:[#allocation2 + $0xf]]
    %v4471 = vstv %s4470
    %v4472 = vmul.f32 %v281, %v4471
    %v4473 = vmul.f32 %v282, %v4471
    %v4474 = vmul.f32 %v283, %v4471
    %v4475 = vmul.f32 %v284, %v4471
    %v4476 = vmul.f32 %v285, %v4471
    %v4477 = vmul.f32 %v286, %v4471
    %v4478 = vmul.f32 %v287, %v4471
    %v4479 = vmul.f32 %v288, %v4471
    %v4480 = vmul.f32 %v289, %v4471
    %v4481 = vmul.f32 %v290, %v4471
    %v4482 = vmul.f32 %v291, %v4471
    %v4483 = vmul.f32 %v292, %v4471
    %v4484 = vmul.f32 %v293, %v4471
    %v4485 = vmul.f32 %v294, %v4471
    %v4486 = vmul.f32 %v295, %v4471
    %v4487 = vmul.f32 %v296, %v4471
    %v4488 = vadd.f32 %v4454, %v4472
    %v4489 = vadd.f32 %v4455, %v4473
    %v4490 = vadd.f32 %v4456, %v4474
    %v4491 = vadd.f32 %v4457, %v4475
    %v4492 = vadd.f32 %v4458, %v4476
    %v4493 = vadd.f32 %v4459, %v4477
    %v4494 = vadd.f32 %v4460, %v4478
    %v4495 = vadd.f32 %v4461, %v4479
    %v4496 = vadd.f32 %v4462, %v4480
    %v4497 = vadd.f32 %v4463, %v4481
    %v4498 = vadd.f32 %v4464, %v4482
    %v4499 = vadd.f32 %v4465, %v4483
    %v4500 = vadd.f32 %v4466, %v4484
    %v4501 = vadd.f32 %v4467, %v4485
    %v4502 = vadd.f32 %v4468, %v4486
    %v4503 = vadd.f32 %v4469, %v4487
    %vm4504 = vcmp.gt.f32.partialorder %v4488, 0.0
    %vm4505 = vcmp.gt.f32.partialorder %v4489, 0.0
    %vm4506 = vcmp.gt.f32.partialorder %v4490, 0.0
    %vm4507 = vcmp.gt.f32.partialorder %v4491, 0.0
    %vm4508 = vcmp.gt.f32.partialorder %v4492, 0.0
    %vm4509 = vcmp.gt.f32.partialorder %v4493, 0.0
    %vm4510 = vcmp.gt.f32.partialorder %v4494, 0.0
    %vm4511 = vcmp.gt.f32.partialorder %v4495, 0.0
    %vm4512 = vcmp.gt.f32.partialorder %v4496, 0.0
    %vm4513 = vcmp.gt.f32.partialorder %v4497, 0.0
    %vm4514 = vcmp.gt.f32.partialorder %v4498, 0.0
    %vm4515 = vcmp.gt.f32.partialorder %v4499, 0.0
    %vm4516 = vcmp.gt.f32.partialorder %v4500, 0.0
    %vm4517 = vcmp.gt.f32.partialorder %v4501, 0.0
    %vm4518 = vcmp.gt.f32.partialorder %v4502, 0.0
    %vm4519 = vcmp.gt.f32.partialorder %v4503, 0.0
    %v4520 = vmul.f32 %v4488, 0.2
    %v4521 = vmul.f32 %v4489, 0.2
    %v4522 = vmul.f32 %v4490, 0.2
    %v4523 = vmul.f32 %v4491, 0.2
    %v4524 = vmul.f32 %v4492, 0.2
    %v4525 = vmul.f32 %v4493, 0.2
    %v4526 = vmul.f32 %v4494, 0.2
    %v4527 = vmul.f32 %v4495, 0.2
    %v4528 = vmul.f32 %v4496, 0.2
    %v4529 = vmul.f32 %v4497, 0.2
    %v4530 = vmul.f32 %v4498, 0.2
    %v4531 = vmul.f32 %v4499, 0.2
    %v4532 = vmul.f32 %v4500, 0.2
    %v4533 = vmul.f32 %v4501, 0.2
    %v4534 = vmul.f32 %v4502, 0.2
    %v4535 = vmul.f32 %v4503, 0.2
    %v4536 = vsel %vm4504, %v4488, %v4520
    %v4537 = vsel %vm4505, %v4489, %v4521
    %v4538 = vsel %vm4506, %v4490, %v4522
    %v4539 = vsel %vm4507, %v4491, %v4523
    %v4540 = vsel %vm4508, %v4492, %v4524
    %v4541 = vsel %vm4509, %v4493, %v4525
    %v4542 = vsel %vm4510, %v4494, %v4526
    %v4543 = vsel %vm4511, %v4495, %v4527
    %v4544 = vsel %vm4512, %v4496, %v4528
    %v4545 = vsel %vm4513, %v4497, %v4529
    %v4546 = vsel %vm4514, %v4498, %v4530
    %v4547 = vsel %vm4515, %v4499, %v4531
    %v4548 = vsel %vm4516, %v4500, %v4532
    %v4549 = vsel %vm4517, %v4501, %v4533
    %v4550 = vsel %vm4518, %v4502, %v4534
    %v4551 = vsel %vm4519, %v4503, %v4535
    %v4552 = vsel %vm89, %v4536, -1e+30
    %v4553 = vsel %vm90, %v4537, -1e+30
    %v4554 = vsel %vm91, %v4538, -1e+30
    %v4555 = vsel %vm92, %v4539, -1e+30
    %v4556 = vsel %vm93, %v4540, -1e+30
    %v4557 = vsel %vm94, %v4541, -1e+30
    %v4558 = vsel %vm95, %v4542, -1e+30
    %v4559 = vsel %vm96, %v4543, -1e+30
    %v4560 = vsel %vm97, %v4544, -1e+30
    %v4561 = vsel %vm98, %v4545, -1e+30
    %v4562 = vsel %vm99, %v4546, -1e+30
    %v4563 = vsel %vm100, %v4547, -1e+30
    %v4564 = vsel %vm101, %v4548, -1e+30
    %v4565 = vsel %vm102, %v4549, -1e+30
    %v4566 = vsel %vm103, %v4550, -1e+30
    %v4567 = vsel %vm104, %v4551, -1e+30
    %4568 = vmax.xlane.f32.xlu0 %v4552
    %v4569 = vpop.xlane.xlu0 %4568
    %4570 = vmax.xlane.f32.xlu0 %v4553
    %v4571 = vpop.xlane.xlu0 %4570
    %4572 = vmax.xlane.f32.xlu0 %v4554
    %v4573 = vpop.xlane.xlu0 %4572
    %4574 = vmax.xlane.f32.xlu0 %v4555
    %v4575 = vpop.xlane.xlu0 %4574
    %4576 = vmax.xlane.f32.xlu0 %v4556
    %v4577 = vpop.xlane.xlu0 %4576
    %4578 = vmax.xlane.f32.xlu0 %v4557
    %v4579 = vpop.xlane.xlu0 %4578
    %4580 = vmax.xlane.f32.xlu0 %v4558
    %v4581 = vpop.xlane.xlu0 %4580
    %4582 = vmax.xlane.f32.xlu0 %v4559
    %v4583 = vpop.xlane.xlu0 %4582
    %4584 = vmax.xlane.f32.xlu0 %v4560
    %v4585 = vpop.xlane.xlu0 %4584
    %4586 = vmax.xlane.f32.xlu0 %v4561
    %v4587 = vpop.xlane.xlu0 %4586
    %4588 = vmax.xlane.f32.xlu0 %v4562
    %v4589 = vpop.xlane.xlu0 %4588
    %4590 = vmax.xlane.f32.xlu0 %v4563
    %v4591 = vpop.xlane.xlu0 %4590
    %4592 = vmax.xlane.f32.xlu0 %v4564
    %v4593 = vpop.xlane.xlu0 %4592
    %4594 = vmax.xlane.f32.xlu0 %v4565
    %v4595 = vpop.xlane.xlu0 %4594
    %4596 = vmax.xlane.f32.xlu0 %v4566
    %v4597 = vpop.xlane.xlu0 %4596
    %4598 = vmax.xlane.f32.xlu0 %v4567
    %v4599 = vpop.xlane.xlu0 %4598
    %v4600 = vsub.f32 %v4552, %v4569
    %v4601 = vsub.f32 %v4553, %v4571
    %v4602 = vsub.f32 %v4554, %v4573
    %v4603 = vsub.f32 %v4555, %v4575
    %v4604 = vsub.f32 %v4556, %v4577
    %v4605 = vsub.f32 %v4557, %v4579
    %v4606 = vsub.f32 %v4558, %v4581
    %v4607 = vsub.f32 %v4559, %v4583
    %v4608 = vsub.f32 %v4560, %v4585
    %v4609 = vsub.f32 %v4561, %v4587
    %v4610 = vsub.f32 %v4562, %v4589
    %v4611 = vsub.f32 %v4563, %v4591
    %v4612 = vsub.f32 %v4564, %v4593
    %v4613 = vsub.f32 %v4565, %v4595
    %v4614 = vsub.f32 %v4566, %v4597
    %v4615 = vsub.f32 %v4567, %v4599
    %v4616 = vmul.f32 %v4600, 1.442695
    %v4617 = vpow.pop %v4616
    %v4618 = vmul.f32 %v4601, 1.442695
    %v4619 = vpow.pop %v4618
    %v4620 = vmul.f32 %v4602, 1.442695
    %v4621 = vpow.pop %v4620
    %v4622 = vmul.f32 %v4603, 1.442695
    %v4623 = vpow.pop %v4622
    %v4624 = vmul.f32 %v4604, 1.442695
    %v4625 = vpow.pop %v4624
    %v4626 = vmul.f32 %v4605, 1.442695
    %v4627 = vpow.pop %v4626
    %v4628 = vmul.f32 %v4606, 1.442695
    %v4629 = vpow.pop %v4628
    %v4630 = vmul.f32 %v4607, 1.442695
    %v4631 = vpow.pop %v4630
    %v4632 = vmul.f32 %v4608, 1.442695
    %v4633 = vpow.pop %v4632
    %v4634 = vmul.f32 %v4609, 1.442695
    %v4635 = vpow.pop %v4634
    %v4636 = vmul.f32 %v4610, 1.442695
    %v4637 = vpow.pop %v4636
    %v4638 = vmul.f32 %v4611, 1.442695
    %v4639 = vpow.pop %v4638
    %v4640 = vmul.f32 %v4612, 1.442695
    %v4641 = vpow.pop %v4640
    %v4642 = vmul.f32 %v4613, 1.442695
    %v4643 = vpow.pop %v4642
    %v4644 = vmul.f32 %v4614, 1.442695
    %v4645 = vpow.pop %v4644
    %v4646 = vmul.f32 %v4615, 1.442695
    %v4647 = vpow.pop %v4646
    %v4648 = vmul.f32 %v4617, %v57
    %v4649 = vmul.f32 %v4619, %v58
    %v4650 = vmul.f32 %v4621, %v59
    %v4651 = vmul.f32 %v4623, %v60
    %v4652 = vmul.f32 %v4625, %v61
    %v4653 = vmul.f32 %v4627, %v62
    %v4654 = vmul.f32 %v4629, %v63
    %v4655 = vmul.f32 %v4631, %v64
    %v4656 = vmul.f32 %v4633, %v65
    %v4657 = vmul.f32 %v4635, %v66
    %v4658 = vmul.f32 %v4637, %v67
    %v4659 = vmul.f32 %v4639, %v68
    %v4660 = vmul.f32 %v4641, %v69
    %v4661 = vmul.f32 %v4643, %v70
    %v4662 = vmul.f32 %v4645, %v71
    %v4663 = vmul.f32 %v4647, %v72
    %4664 = vadd.xlane.f32.xlu0 %v4648
    %v4665 = vpop.xlane.xlu0 %4664
    %4666 = vadd.xlane.f32.xlu0 %v4649
    %v4667 = vpop.xlane.xlu0 %4666
    %4668 = vadd.xlane.f32.xlu0 %v4650
    %v4669 = vpop.xlane.xlu0 %4668
    %4670 = vadd.xlane.f32.xlu0 %v4651
    %v4671 = vpop.xlane.xlu0 %4670
    %4672 = vadd.xlane.f32.xlu0 %v4652
    %v4673 = vpop.xlane.xlu0 %4672
    %4674 = vadd.xlane.f32.xlu0 %v4653
    %v4675 = vpop.xlane.xlu0 %4674
    %4676 = vadd.xlane.f32.xlu0 %v4654
    %v4677 = vpop.xlane.xlu0 %4676
    %4678 = vadd.xlane.f32.xlu0 %v4655
    %v4679 = vpop.xlane.xlu0 %4678
    %4680 = vadd.xlane.f32.xlu0 %v4656
    %v4681 = vpop.xlane.xlu0 %4680
    %4682 = vadd.xlane.f32.xlu0 %v4657
    %v4683 = vpop.xlane.xlu0 %4682
    %4684 = vadd.xlane.f32.xlu0 %v4658
    %v4685 = vpop.xlane.xlu0 %4684
    %4686 = vadd.xlane.f32.xlu0 %v4659
    %v4687 = vpop.xlane.xlu0 %4686
    %4688 = vadd.xlane.f32.xlu0 %v4660
    %v4689 = vpop.xlane.xlu0 %4688
    %4690 = vadd.xlane.f32.xlu0 %v4661
    %v4691 = vpop.xlane.xlu0 %4690
    %4692 = vadd.xlane.f32.xlu0 %v4662
    %v4693 = vpop.xlane.xlu0 %4692
    %4694 = vadd.xlane.f32.xlu0 %v4663
    %v4695 = vpop.xlane.xlu0 %4694
    %v4696 = vmax.f32 %v4665, 1e-30
    %v4697 = vmax.f32 %v4667, 1e-30
    %v4698 = vmax.f32 %v4669, 1e-30
    %v4699 = vmax.f32 %v4671, 1e-30
    %v4700 = vmax.f32 %v4673, 1e-30
    %v4701 = vmax.f32 %v4675, 1e-30
    %v4702 = vmax.f32 %v4677, 1e-30
    %v4703 = vmax.f32 %v4679, 1e-30
    %v4704 = vmax.f32 %v4681, 1e-30
    %v4705 = vmax.f32 %v4683, 1e-30
    %v4706 = vmax.f32 %v4685, 1e-30
    %v4707 = vmax.f32 %v4687, 1e-30
    %v4708 = vmax.f32 %v4689, 1e-30
    %v4709 = vmax.f32 %v4691, 1e-30
    %v4710 = vmax.f32 %v4693, 1e-30
    %v4711 = vmax.f32 %v4695, 1e-30
    %v4712 = vrcp.pop %v4696
    %v4713 = vmul.f32 1.0, %v4712
    %v4714 = vrcp.pop %v4697
    %v4715 = vmul.f32 1.0, %v4714
    %v4716 = vrcp.pop %v4698
    %v4717 = vmul.f32 1.0, %v4716
    %v4718 = vrcp.pop %v4699
    %v4719 = vmul.f32 1.0, %v4718
    %v4720 = vrcp.pop %v4700
    %v4721 = vmul.f32 1.0, %v4720
    %v4722 = vrcp.pop %v4701
    %v4723 = vmul.f32 1.0, %v4722
    %v4724 = vrcp.pop %v4702
    %v4725 = vmul.f32 1.0, %v4724
    %v4726 = vrcp.pop %v4703
    %v4727 = vmul.f32 1.0, %v4726
    %v4728 = vrcp.pop %v4704
    %v4729 = vmul.f32 1.0, %v4728
    %v4730 = vrcp.pop %v4705
    %v4731 = vmul.f32 1.0, %v4730
    %v4732 = vrcp.pop %v4706
    %v4733 = vmul.f32 1.0, %v4732
    %v4734 = vrcp.pop %v4707
    %v4735 = vmul.f32 1.0, %v4734
    %v4736 = vrcp.pop %v4708
    %v4737 = vmul.f32 1.0, %v4736
    %v4738 = vrcp.pop %v4709
    %v4739 = vmul.f32 1.0, %v4738
    %v4740 = vrcp.pop %v4710
    %v4741 = vmul.f32 1.0, %v4740
    %v4742 = vrcp.pop %v4711
    %v4743 = vmul.f32 1.0, %v4742
    %v4744 = vmul.f32 %v4648, %v4713
    %v4745 = vmul.f32 %v4649, %v4715
    %v4746 = vmul.f32 %v4650, %v4717
    %v4747 = vmul.f32 %v4651, %v4719
    %v4748 = vmul.f32 %v4652, %v4721
    %v4749 = vmul.f32 %v4653, %v4723
    %v4750 = vmul.f32 %v4654, %v4725
    %v4751 = vmul.f32 %v4655, %v4727
    %v4752 = vmul.f32 %v4656, %v4729
    %v4753 = vmul.f32 %v4657, %v4731
    %v4754 = vmul.f32 %v4658, %v4733
    %v4755 = vmul.f32 %v4659, %v4735
    %v4756 = vmul.f32 %v4660, %v4737
    %v4757 = vmul.f32 %v4661, %v4739
    %v4758 = vmul.f32 %v4662, %v4741
    %v4759 = vmul.f32 %v4663, %v4743
    %v4760 = vmul.f32 %v4744, 0.95
    %v4761 = vmul.f32 %v4745, 0.95
    %v4762 = vmul.f32 %v4746, 0.95
    %v4763 = vmul.f32 %v4747, 0.95
    %v4764 = vmul.f32 %v4748, 0.95
    %v4765 = vmul.f32 %v4749, 0.95
    %v4766 = vmul.f32 %v4750, 0.95
    %v4767 = vmul.f32 %v4751, 0.95
    %v4768 = vmul.f32 %v4752, 0.95
    %v4769 = vmul.f32 %v4753, 0.95
    %v4770 = vmul.f32 %v4754, 0.95
    %v4771 = vmul.f32 %v4755, 0.95
    %v4772 = vmul.f32 %v4756, 0.95
    %v4773 = vmul.f32 %v4757, 0.95
    %v4774 = vmul.f32 %v4758, 0.95
    %v4775 = vmul.f32 %v4759, 0.95
    %v4776 = vmul.f32 %v2403, 0.05
    %v4777 = vmul.f32 %v2404, 0.05
    %v4778 = vmul.f32 %v2405, 0.05
    %v4779 = vmul.f32 %v2406, 0.05
    %v4780 = vmul.f32 %v2407, 0.05
    %v4781 = vmul.f32 %v2408, 0.05
    %v4782 = vmul.f32 %v2409, 0.05
    %v4783 = vmul.f32 %v2410, 0.05
    %v4784 = vmul.f32 %v2411, 0.05
    %v4785 = vmul.f32 %v2412, 0.05
    %v4786 = vmul.f32 %v2413, 0.05
    %v4787 = vmul.f32 %v2414, 0.05
    %v4788 = vmul.f32 %v2415, 0.05
    %v4789 = vmul.f32 %v2416, 0.05
    %v4790 = vmul.f32 %v2417, 0.05
    %v4791 = vmul.f32 %v2418, 0.05
    %v4792 = vadd.f32 %v4760, %v4776
    %v4793 = vadd.f32 %v4761, %v4777
    %v4794 = vadd.f32 %v4762, %v4778
    %v4795 = vadd.f32 %v4763, %v4779
    %v4796 = vadd.f32 %v4764, %v4780
    %v4797 = vadd.f32 %v4765, %v4781
    %v4798 = vadd.f32 %v4766, %v4782
    %v4799 = vadd.f32 %v4767, %v4783
    %v4800 = vadd.f32 %v4768, %v4784
    %v4801 = vadd.f32 %v4769, %v4785
    %v4802 = vadd.f32 %v4770, %v4786
    %v4803 = vadd.f32 %v4771, %v4787
    %v4804 = vadd.f32 %v4772, %v4788
    %v4805 = vadd.f32 %v4773, %v4789
    %v4806 = vadd.f32 %v4774, %v4790
    %v4807 = vadd.f32 %v4775, %v4791
    %4808 = vrot.lane.b32.xlu0 %v3203, 80
    %v4809 = vpop.permute.xlu0 %4808
    %4810 = vrot.lane.b32.xlu0 %v3208, 80
    %v4811 = vpop.permute.xlu0 %4810
    %4812 = vrot.lane.b32.xlu0 %v3213, 80
    %v4813 = vpop.permute.xlu0 %4812
    %4814 = vrot.lane.b32.xlu0 %v3218, 80
    %v4815 = vpop.permute.xlu0 %4814
    %4816 = vrot.lane.b32.xlu0 %v3223, 80
    %v4817 = vpop.permute.xlu0 %4816
    %4818 = vrot.lane.b32.xlu0 %v3228, 80
    %v4819 = vpop.permute.xlu0 %4818
    %4820 = vrot.lane.b32.xlu0 %v3233, 80
    %v4821 = vpop.permute.xlu0 %4820
    %4822 = vrot.lane.b32.xlu0 %v3238, 80
    %v4823 = vpop.permute.xlu0 %4822
    %4824 = vrot.lane.b32.xlu0 %v3243, 80
    %v4825 = vpop.permute.xlu0 %4824
    %4826 = vrot.lane.b32.xlu0 %v3248, 80
    %v4827 = vpop.permute.xlu0 %4826
    %4828 = vrot.lane.b32.xlu0 %v3253, 80
    %v4829 = vpop.permute.xlu0 %4828
    %4830 = vrot.lane.b32.xlu0 %v3258, 80
    %v4831 = vpop.permute.xlu0 %4830
    %4832 = vrot.lane.b32.xlu0 %v3263, 80
    %v4833 = vpop.permute.xlu0 %4832
    %4834 = vrot.lane.b32.xlu0 %v3268, 80
    %v4835 = vpop.permute.xlu0 %4834
    %4836 = vrot.lane.b32.xlu0 %v3273, 80
    %v4837 = vpop.permute.xlu0 %4836
    %4838 = vrot.lane.b32.xlu0 %v3278, 80
    %v4839 = vpop.permute.xlu0 %4838
    %4856 = vmatprep.subr.mxu0 0.0
    %4857 = vmatpush1.msra.mxu0 %v4809
    %4858 = vmatprep.subr.mxu0 0.0
    %4859 = vmatpush1.msra.mxu0 %v4811
    %4860 = vmatprep.subr.mxu0 0.0
    %4861 = vmatpush1.msra.mxu0 %v4813
    %4862 = vmatprep.subr.mxu0 0.0
    %4863 = vmatpush1.msra.mxu0 %v4815
    %4864 = vmatprep.subr.mxu0 0.0
    %4865 = vmatpush1.msra.mxu0 %v4817
    %4866 = vmatprep.subr.mxu0 0.0
    %4867 = vmatpush1.msra.mxu0 %v4819
    %4868 = vmatprep.subr.mxu0 0.0
    %4869 = vmatpush1.msra.mxu0 %v4821
    %4870 = vmatprep.subr.mxu0 0.0
    %4871 = vmatpush1.msra.mxu0 %v4823
    %4872 = vmatprep.subr.mxu0 0.0
    %4873 = vmatpush1.msra.mxu0 %v4825
    %4874 = vmatprep.subr.mxu0 0.0
    %4875 = vmatpush1.msra.mxu0 %v4827
    %4876 = vmatprep.subr.mxu0 0.0
    %4877 = vmatpush1.msra.mxu0 %v4829
    %4878 = vmatprep.subr.mxu0 0.0
    %4879 = vmatpush1.msra.mxu0 %v4831
    %4880 = vmatprep.subr.mxu0 0.0
    %4881 = vmatpush1.msra.mxu0 %v4833
    %4882 = vmatprep.subr.mxu0 0.0
    %4883 = vmatpush1.msra.mxu0 %v4835
    %4884 = vmatprep.subr.mxu0 0.0
    %4885 = vmatpush1.msra.mxu0 %v4837
    %4886 = vmatprep.subr.mxu0 0.0
    %4887 = vmatpush1.msra.mxu0 %v4839
    %4888 = vmatprep.subr.mxu0 0.0
    %4889 = vmatpush1.msra.mxu0 0.0
    %4890 = vmatprep.subr.mxu0 0.0
    %4891 = vmatpush1.msra.mxu0 0.0
    %4892 = vmatprep.subr.mxu0 0.0
    %4893 = vmatpush1.msra.mxu0 0.0
    %4894 = vmatprep.subr.mxu0 0.0
    %4895 = vmatpush1.msra.mxu0 0.0
    %4896 = vmatprep.subr.mxu0 0.0
    %4897 = vmatpush1.msra.mxu0 0.0
    %4898 = vmatprep.subr.mxu0 0.0
    %4899 = vmatpush1.msra.mxu0 0.0
    %4900 = vmatprep.subr.mxu0 0.0
    %4901 = vmatpush1.msra.mxu0 0.0
    %4902 = vmatprep.subr.mxu0 0.0
    %4903 = vmatpush1.msra.mxu0 0.0
    %4904 = vmatprep.subr.mxu0 0.0
    %4905 = vmatpush1.msra.mxu0 0.0
    %4906 = vmatprep.subr.mxu0 0.0
    %4907 = vmatpush1.msra.mxu0 0.0
    %4908 = vmatprep.subr.mxu0 0.0
    %4909 = vmatpush1.msra.mxu0 0.0
    %4910 = vmatprep.subr.mxu0 0.0
    %4911 = vmatpush1.msra.mxu0 0.0
    %4912 = vmatprep.subr.mxu0 0.0
    %4913 = vmatpush1.msra.mxu0 0.0
    %4914 = vmatprep.subr.mxu0 0.0
    %4915 = vmatpush1.msra.mxu0 0.0
    %4916 = vmatprep.subr.mxu0 0.0
    %4917 = vmatpush1.msra.mxu0 0.0
    %4918 = vmatprep.subr.mxu0 0.0
    %4919 = vmatpush1.msra.mxu0 0.0
    %4920 = vmatprep.mubr.f32.mxu0 0.0
    %4921 = vmatmul.mubr.f32.gmra.mrb[0].mxu0 %v4792
    %v4922 = vpop.f32.mrb[0].mxu0
    %v4923 = vadd.f32 0.0, %v4922
    %v4924 = vpop.f32.mrb[0].mxu0
    %4925 = vmatprep.mubr.f32.mxu0 0.0
    %4926 = vmatmul.mubr.f32.gmra.mrb[0].mxu0 %v4793
    %v4927 = vpop.f32.mrb[0].mxu0
    %v4928 = vadd.f32 0.0, %v4927
    %v4929 = vpop.f32.mrb[0].mxu0
    %4930 = vmatprep.mubr.f32.mxu0 0.0
    %4931 = vmatmul.mubr.f32.gmra.mrb[0].mxu0 %v4794
    %v4932 = vpop.f32.mrb[0].mxu0
    %v4933 = vadd.f32 0.0, %v4932
    %v4934 = vpop.f32.mrb[0].mxu0
    %4935 = vmatprep.mubr.f32.mxu0 0.0
    %4936 = vmatmul.mubr.f32.gmra.mrb[0].mxu0 %v4795
    %v4937 = vpop.f32.mrb[0].mxu0
    %v4938 = vadd.f32 0.0, %v4937
    %v4939 = vpop.f32.mrb[0].mxu0
    %4940 = vmatprep.mubr.f32.mxu0 0.0
    %4941 = vmatmul.mubr.f32.gmra.mrb[0].mxu0 %v4796
    %v4942 = vpop.f32.mrb[0].mxu0
    %v4943 = vadd.f32 0.0, %v4942
    %v4944 = vpop.f32.mrb[0].mxu0
    %4945 = vmatprep.mubr.f32.mxu0 0.0
    %4946 = vmatmul.mubr.f32.gmra.mrb[0].mxu0 %v4797
    %v4947 = vpop.f32.mrb[0].mxu0
    %v4948 = vadd.f32 0.0, %v4947
    %v4949 = vpop.f32.mrb[0].mxu0
    %4950 = vmatprep.mubr.f32.mxu0 0.0
    %4951 = vmatmul.mubr.f32.gmra.mrb[0].mxu0 %v4798
    %v4952 = vpop.f32.mrb[0].mxu0
    %v4953 = vadd.f32 0.0, %v4952
    %v4954 = vpop.f32.mrb[0].mxu0
    %4955 = vmatprep.mubr.f32.mxu0 0.0
    %4956 = vmatmul.mubr.f32.gmra.mrb[0].mxu0 %v4799
    %v4957 = vpop.f32.mrb[0].mxu0
    %v4958 = vadd.f32 0.0, %v4957
    %v4959 = vpop.f32.mrb[0].mxu0
    %4960 = vmatprep.mubr.f32.mxu0 0.0
    %4961 = vmatmul.mubr.f32.gmra.mrb[0].mxu0 %v4800
    %v4962 = vpop.f32.mrb[0].mxu0
    %v4963 = vadd.f32 0.0, %v4962
    %v4964 = vpop.f32.mrb[0].mxu0
    %4965 = vmatprep.mubr.f32.mxu0 0.0
    %4966 = vmatmul.mubr.f32.gmra.mrb[0].mxu0 %v4801
    %v4967 = vpop.f32.mrb[0].mxu0
    %v4968 = vadd.f32 0.0, %v4967
    %v4969 = vpop.f32.mrb[0].mxu0
    %4970 = vmatprep.mubr.f32.mxu0 0.0
    %4971 = vmatmul.mubr.f32.gmra.mrb[0].mxu0 %v4802
    %v4972 = vpop.f32.mrb[0].mxu0
    %v4973 = vadd.f32 0.0, %v4972
    %v4974 = vpop.f32.mrb[0].mxu0
    %4975 = vmatprep.mubr.f32.mxu0 0.0
    %4976 = vmatmul.mubr.f32.gmra.mrb[0].mxu0 %v4803
    %v4977 = vpop.f32.mrb[0].mxu0
    %v4978 = vadd.f32 0.0, %v4977
    %v4979 = vpop.f32.mrb[0].mxu0
    %4980 = vmatprep.mubr.f32.mxu0 0.0
    %4981 = vmatmul.mubr.f32.gmra.mrb[0].mxu0 %v4804
    %v4982 = vpop.f32.mrb[0].mxu0
    %v4983 = vadd.f32 0.0, %v4982
    %v4984 = vpop.f32.mrb[0].mxu0
    %4985 = vmatprep.mubr.f32.mxu0 0.0
    %4986 = vmatmul.mubr.f32.gmra.mrb[0].mxu0 %v4805
    %v4987 = vpop.f32.mrb[0].mxu0
    %v4988 = vadd.f32 0.0, %v4987
    %v4989 = vpop.f32.mrb[0].mxu0
    %4990 = vmatprep.mubr.f32.mxu0 0.0
    %4991 = vmatmul.mubr.f32.gmra.mrb[0].mxu0 %v4806
    %v4992 = vpop.f32.mrb[0].mxu0
    %v4993 = vadd.f32 0.0, %v4992
    %v4994 = vpop.f32.mrb[0].mxu0
    %4995 = vmatprep.mubr.f32.mxu0 0.0
    %4996 = vmatmul.mubr.f32.gmra.mrb[0].mxu0 %v4807
    %v4997 = vpop.f32.mrb[0].mxu0
    %v4998 = vadd.f32 0.0, %v4997
    %v4999 = vpop.f32.mrb[0].mxu0
    %5000 = vdwg.mxu0
    %vm5001 = vcmp.gt.f32.partialorder %v4923, 0.0
    %vm5002 = vcmp.gt.f32.partialorder %v4928, 0.0
    %vm5003 = vcmp.gt.f32.partialorder %v4933, 0.0
    %vm5004 = vcmp.gt.f32.partialorder %v4938, 0.0
    %vm5005 = vcmp.gt.f32.partialorder %v4943, 0.0
    %vm5006 = vcmp.gt.f32.partialorder %v4948, 0.0
    %vm5007 = vcmp.gt.f32.partialorder %v4953, 0.0
    %vm5008 = vcmp.gt.f32.partialorder %v4958, 0.0
    %vm5009 = vcmp.gt.f32.partialorder %v4963, 0.0
    %vm5010 = vcmp.gt.f32.partialorder %v4968, 0.0
    %vm5011 = vcmp.gt.f32.partialorder %v4973, 0.0
    %vm5012 = vcmp.gt.f32.partialorder %v4978, 0.0
    %vm5013 = vcmp.gt.f32.partialorder %v4983, 0.0
    %vm5014 = vcmp.gt.f32.partialorder %v4988, 0.0
    %vm5015 = vcmp.gt.f32.partialorder %v4993, 0.0
    %vm5016 = vcmp.gt.f32.partialorder %v4998, 0.0
    %v5017 = vmul.f32 %v4923, 1.442695
    %v5018 = vpow.pop %v5017
    %v5019 = vmul.f32 %v4928, 1.442695
    %v5020 = vpow.pop %v5019
    %v5021 = vmul.f32 %v4933, 1.442695
    %v5022 = vpow.pop %v5021
    %v5023 = vmul.f32 %v4938, 1.442695
    %v5024 = vpow.pop %v5023
    %v5025 = vmul.f32 %v4943, 1.442695
    %v5026 = vpow.pop %v5025
    %v5027 = vmul.f32 %v4948, 1.442695
    %v5028 = vpow.pop %v5027
    %v5029 = vmul.f32 %v4953, 1.442695
    %v5030 = vpow.pop %v5029
    %v5031 = vmul.f32 %v4958, 1.442695
    %v5032 = vpow.pop %v5031
    %v5033 = vmul.f32 %v4963, 1.442695
    %v5034 = vpow.pop %v5033
    %v5035 = vmul.f32 %v4968, 1.442695
    %v5036 = vpow.pop %v5035
    %v5037 = vmul.f32 %v4973, 1.442695
    %v5038 = vpow.pop %v5037
    %v5039 = vmul.f32 %v4978, 1.442695
    %v5040 = vpow.pop %v5039
    %v5041 = vmul.f32 %v4983, 1.442695
    %v5042 = vpow.pop %v5041
    %v5043 = vmul.f32 %v4988, 1.442695
    %v5044 = vpow.pop %v5043
    %v5045 = vmul.f32 %v4993, 1.442695
    %v5046 = vpow.pop %v5045
    %v5047 = vmul.f32 %v4998, 1.442695
    %v5048 = vpow.pop %v5047
    %v5049 = vsub.f32 %v5018, 1.0
    %v5050 = vsub.f32 %v5020, 1.0
    %v5051 = vsub.f32 %v5022, 1.0
    %v5052 = vsub.f32 %v5024, 1.0
    %v5053 = vsub.f32 %v5026, 1.0
    %v5054 = vsub.f32 %v5028, 1.0
    %v5055 = vsub.f32 %v5030, 1.0
    %v5056 = vsub.f32 %v5032, 1.0
    %v5057 = vsub.f32 %v5034, 1.0
    %v5058 = vsub.f32 %v5036, 1.0
    %v5059 = vsub.f32 %v5038, 1.0
    %v5060 = vsub.f32 %v5040, 1.0
    %v5061 = vsub.f32 %v5042, 1.0
    %v5062 = vsub.f32 %v5044, 1.0
    %v5063 = vsub.f32 %v5046, 1.0
    %v5064 = vsub.f32 %v5048, 1.0
    %v5065 = vsel %vm5001, %v4923, %v5049
    %v5066 = vsel %vm5002, %v4928, %v5050
    %v5067 = vsel %vm5003, %v4933, %v5051
    %v5068 = vsel %vm5004, %v4938, %v5052
    %v5069 = vsel %vm5005, %v4943, %v5053
    %v5070 = vsel %vm5006, %v4948, %v5054
    %v5071 = vsel %vm5007, %v4953, %v5055
    %v5072 = vsel %vm5008, %v4958, %v5056
    %v5073 = vsel %vm5009, %v4963, %v5057
    %v5074 = vsel %vm5010, %v4968, %v5058
    %v5075 = vsel %vm5011, %v4973, %v5059
    %v5076 = vsel %vm5012, %v4978, %v5060
    %v5077 = vsel %vm5013, %v4983, %v5061
    %v5078 = vsel %vm5014, %v4988, %v5062
    %v5079 = vsel %vm5015, %v4993, %v5063
    %v5080 = vsel %vm5016, %v4998, %v5064
    %v5081 = vadd.f32 %v4268, %v5065
    %v5082 = vadd.f32 %v4269, %v5066
    %v5083 = vadd.f32 %v4270, %v5067
    %v5084 = vadd.f32 %v4271, %v5068
    %v5085 = vadd.f32 %v4272, %v5069
    %v5086 = vadd.f32 %v4273, %v5070
    %v5087 = vadd.f32 %v4274, %v5071
    %v5088 = vadd.f32 %v4275, %v5072
    %v5089 = vadd.f32 %v4276, %v5073
    %v5090 = vadd.f32 %v4277, %v5074
    %v5091 = vadd.f32 %v4278, %v5075
    %v5092 = vadd.f32 %v4279, %v5076
    %v5093 = vadd.f32 %v4280, %v5077
    %v5094 = vadd.f32 %v4281, %v5078
    %v5095 = vadd.f32 %v4282, %v5079
    %v5096 = vadd.f32 %v4283, %v5080
    %v5097 = vmul.f32 %v5081, 0.5
    %v5098 = vmul.f32 %v5082, 0.5
    %v5099 = vmul.f32 %v5083, 0.5
    %v5100 = vmul.f32 %v5084, 0.5
    %v5101 = vmul.f32 %v5085, 0.5
    %v5102 = vmul.f32 %v5086, 0.5
    %v5103 = vmul.f32 %v5087, 0.5
    %v5104 = vmul.f32 %v5088, 0.5
    %v5105 = vmul.f32 %v5089, 0.5
    %v5106 = vmul.f32 %v5090, 0.5
    %v5107 = vmul.f32 %v5091, 0.5
    %v5108 = vmul.f32 %v5092, 0.5
    %v5109 = vmul.f32 %v5093, 0.5
    %v5110 = vmul.f32 %v5094, 0.5
    %v5111 = vmul.f32 %v5095, 0.5
    %v5112 = vmul.f32 %v5096, 0.5
    %v5113 = vmul.f32 %v5097, %v5097
    %v5114 = vmul.f32 %v5098, %v5098
    %v5115 = vmul.f32 %v5099, %v5099
    %v5116 = vmul.f32 %v5100, %v5100
    %v5117 = vmul.f32 %v5101, %v5101
    %v5118 = vmul.f32 %v5102, %v5102
    %v5119 = vmul.f32 %v5103, %v5103
    %v5120 = vmul.f32 %v5104, %v5104
    %v5121 = vmul.f32 %v5105, %v5105
    %v5122 = vmul.f32 %v5106, %v5106
    %v5123 = vmul.f32 %v5107, %v5107
    %v5124 = vmul.f32 %v5108, %v5108
    %v5125 = vmul.f32 %v5109, %v5109
    %v5126 = vmul.f32 %v5110, %v5110
    %v5127 = vmul.f32 %v5111, %v5111
    %v5128 = vmul.f32 %v5112, %v5112
    %v5129 = vsel %vm532, %v5113, 0.0
    %5130 = vadd.xlane.f32.xlu0 %v5129
    %v5131 = vpop.xlane.xlu0 %5130
    %v5132 = vsel %vm532, %v5114, 0.0
    %5133 = vadd.xlane.f32.xlu0 %v5132
    %v5134 = vpop.xlane.xlu0 %5133
    %v5135 = vsel %vm532, %v5115, 0.0
    %5136 = vadd.xlane.f32.xlu0 %v5135
    %v5137 = vpop.xlane.xlu0 %5136
    %v5138 = vsel %vm532, %v5116, 0.0
    %5139 = vadd.xlane.f32.xlu0 %v5138
    %v5140 = vpop.xlane.xlu0 %5139
    %v5141 = vsel %vm532, %v5117, 0.0
    %5142 = vadd.xlane.f32.xlu0 %v5141
    %v5143 = vpop.xlane.xlu0 %5142
    %v5144 = vsel %vm532, %v5118, 0.0
    %5145 = vadd.xlane.f32.xlu0 %v5144
    %v5146 = vpop.xlane.xlu0 %5145
    %v5147 = vsel %vm532, %v5119, 0.0
    %5148 = vadd.xlane.f32.xlu0 %v5147
    %v5149 = vpop.xlane.xlu0 %5148
    %v5150 = vsel %vm532, %v5120, 0.0
    %5151 = vadd.xlane.f32.xlu0 %v5150
    %v5152 = vpop.xlane.xlu0 %5151
    %v5153 = vsel %vm532, %v5121, 0.0
    %5154 = vadd.xlane.f32.xlu0 %v5153
    %v5155 = vpop.xlane.xlu0 %5154
    %v5156 = vsel %vm532, %v5122, 0.0
    %5157 = vadd.xlane.f32.xlu0 %v5156
    %v5158 = vpop.xlane.xlu0 %5157
    %v5159 = vsel %vm532, %v5123, 0.0
    %5160 = vadd.xlane.f32.xlu0 %v5159
    %v5161 = vpop.xlane.xlu0 %5160
    %v5162 = vsel %vm532, %v5124, 0.0
    %5163 = vadd.xlane.f32.xlu0 %v5162
    %v5164 = vpop.xlane.xlu0 %5163
    %v5165 = vsel %vm532, %v5125, 0.0
    %5166 = vadd.xlane.f32.xlu0 %v5165
    %v5167 = vpop.xlane.xlu0 %5166
    %v5168 = vsel %vm532, %v5126, 0.0
    %5169 = vadd.xlane.f32.xlu0 %v5168
    %v5170 = vpop.xlane.xlu0 %5169
    %v5171 = vsel %vm532, %v5127, 0.0
    %5172 = vadd.xlane.f32.xlu0 %v5171
    %v5173 = vpop.xlane.xlu0 %5172
    %v5174 = vsel %vm532, %v5128, 0.0
    %5175 = vadd.xlane.f32.xlu0 %v5174
    %v5176 = vpop.xlane.xlu0 %5175
    %v5177 = vmax.f32 %v5131, 1e-24
    %v5178 = vmax.f32 %v5134, 1e-24
    %v5179 = vmax.f32 %v5137, 1e-24
    %v5180 = vmax.f32 %v5140, 1e-24
    %v5181 = vmax.f32 %v5143, 1e-24
    %v5182 = vmax.f32 %v5146, 1e-24
    %v5183 = vmax.f32 %v5149, 1e-24
    %v5184 = vmax.f32 %v5152, 1e-24
    %v5185 = vmax.f32 %v5155, 1e-24
    %v5186 = vmax.f32 %v5158, 1e-24
    %v5187 = vmax.f32 %v5161, 1e-24
    %v5188 = vmax.f32 %v5164, 1e-24
    %v5189 = vmax.f32 %v5167, 1e-24
    %v5190 = vmax.f32 %v5170, 1e-24
    %v5191 = vmax.f32 %v5173, 1e-24
    %v5192 = vmax.f32 %v5176, 1e-24
    %v5193 = vrsqrt.pop %v5177
    %v5194 = vrsqrt.pop %v5178
    %v5195 = vrsqrt.pop %v5179
    %v5196 = vrsqrt.pop %v5180
    %v5197 = vrsqrt.pop %v5181
    %v5198 = vrsqrt.pop %v5182
    %v5199 = vrsqrt.pop %v5183
    %v5200 = vrsqrt.pop %v5184
    %v5201 = vrsqrt.pop %v5185
    %v5202 = vrsqrt.pop %v5186
    %v5203 = vrsqrt.pop %v5187
    %v5204 = vrsqrt.pop %v5188
    %v5205 = vrsqrt.pop %v5189
    %v5206 = vrsqrt.pop %v5190
    %v5207 = vrsqrt.pop %v5191
    %v5208 = vrsqrt.pop %v5192
    %v5209 = vmul.f32 %v5097, %v5193
    %v5210 = vmul.f32 %v5098, %v5194
    %v5211 = vmul.f32 %v5099, %v5195
    %v5212 = vmul.f32 %v5100, %v5196
    %v5213 = vmul.f32 %v5101, %v5197
    %v5214 = vmul.f32 %v5102, %v5198
    %v5215 = vmul.f32 %v5103, %v5199
    %v5216 = vmul.f32 %v5104, %v5200
    %v5217 = vmul.f32 %v5105, %v5201
    %v5218 = vmul.f32 %v5106, %v5202
    %v5219 = vmul.f32 %v5107, %v5203
    %v5220 = vmul.f32 %v5108, %v5204
    %v5221 = vmul.f32 %v5109, %v5205
    %v5222 = vmul.f32 %v5110, %v5206
    %v5223 = vmul.f32 %v5111, %v5207
    %v5224 = vmul.f32 %v5112, %v5208
    %5241 = vrot.lane.b32.xlu0 %v5209, 112
    %v5242 = vpop.permute.xlu0 %5241
    %5243 = vrot.lane.b32.xlu0 %v5210, 112
    %v5244 = vpop.permute.xlu0 %5243
    %5245 = vrot.lane.b32.xlu0 %v5211, 112
    %v5246 = vpop.permute.xlu0 %5245
    %5247 = vrot.lane.b32.xlu0 %v5212, 112
    %v5248 = vpop.permute.xlu0 %5247
    %5249 = vrot.lane.b32.xlu0 %v5213, 112
    %v5250 = vpop.permute.xlu0 %5249
    %5251 = vrot.lane.b32.xlu0 %v5214, 112
    %v5252 = vpop.permute.xlu0 %5251
    %5253 = vrot.lane.b32.xlu0 %v5215, 112
    %v5254 = vpop.permute.xlu0 %5253
    %5255 = vrot.lane.b32.xlu0 %v5216, 112
    %v5256 = vpop.permute.xlu0 %5255
    %5257 = vrot.lane.b32.xlu0 %v5217, 112
    %v5258 = vpop.permute.xlu0 %5257
    %5259 = vrot.lane.b32.xlu0 %v5218, 112
    %v5260 = vpop.permute.xlu0 %5259
    %5261 = vrot.lane.b32.xlu0 %v5219, 112
    %v5262 = vpop.permute.xlu0 %5261
    %5263 = vrot.lane.b32.xlu0 %v5220, 112
    %v5264 = vpop.permute.xlu0 %5263
    %5265 = vrot.lane.b32.xlu0 %v5221, 112
    %v5266 = vpop.permute.xlu0 %5265
    %5267 = vrot.lane.b32.xlu0 %v5222, 112
    %v5268 = vpop.permute.xlu0 %5267
    %5269 = vrot.lane.b32.xlu0 %v5223, 112
    %v5270 = vpop.permute.xlu0 %5269
    %5271 = vrot.lane.b32.xlu0 %v5224, 112
    %v5272 = vpop.permute.xlu0 %5271
    %v5289 = vadd.f32 %v5209, %v5242
    %v5290 = vadd.f32 %v5210, %v5244
    %v5291 = vadd.f32 %v5211, %v5246
    %v5292 = vadd.f32 %v5212, %v5248
    %v5293 = vadd.f32 %v5213, %v5250
    %v5294 = vadd.f32 %v5214, %v5252
    %v5295 = vadd.f32 %v5215, %v5254
    %v5296 = vadd.f32 %v5216, %v5256
    %v5297 = vadd.f32 %v5217, %v5258
    %v5298 = vadd.f32 %v5218, %v5260
    %v5299 = vadd.f32 %v5219, %v5262
    %v5300 = vadd.f32 %v5220, %v5264
    %v5301 = vadd.f32 %v5221, %v5266
    %v5302 = vadd.f32 %v5222, %v5268
    %v5303 = vadd.f32 %v5223, %v5270
    %v5304 = vadd.f32 %v5224, %v5272
    %5305 = vrot.lane.b32.xlu0 %v5209, 96
    %v5306 = vpop.permute.xlu0 %5305
    %5307 = vrot.lane.b32.xlu0 %v5210, 96
    %v5308 = vpop.permute.xlu0 %5307
    %5309 = vrot.lane.b32.xlu0 %v5211, 96
    %v5310 = vpop.permute.xlu0 %5309
    %5311 = vrot.lane.b32.xlu0 %v5212, 96
    %v5312 = vpop.permute.xlu0 %5311
    %5313 = vrot.lane.b32.xlu0 %v5213, 96
    %v5314 = vpop.permute.xlu0 %5313
    %5315 = vrot.lane.b32.xlu0 %v5214, 96
    %v5316 = vpop.permute.xlu0 %5315
    %5317 = vrot.lane.b32.xlu0 %v5215, 96
    %v5318 = vpop.permute.xlu0 %5317
    %5319 = vrot.lane.b32.xlu0 %v5216, 96
    %v5320 = vpop.permute.xlu0 %5319
    %5321 = vrot.lane.b32.xlu0 %v5217, 96
    %v5322 = vpop.permute.xlu0 %5321
    %5323 = vrot.lane.b32.xlu0 %v5218, 96
    %v5324 = vpop.permute.xlu0 %5323
    %5325 = vrot.lane.b32.xlu0 %v5219, 96
    %v5326 = vpop.permute.xlu0 %5325
    %5327 = vrot.lane.b32.xlu0 %v5220, 96
    %v5328 = vpop.permute.xlu0 %5327
    %5329 = vrot.lane.b32.xlu0 %v5221, 96
    %v5330 = vpop.permute.xlu0 %5329
    %5331 = vrot.lane.b32.xlu0 %v5222, 96
    %v5332 = vpop.permute.xlu0 %5331
    %5333 = vrot.lane.b32.xlu0 %v5223, 96
    %v5334 = vpop.permute.xlu0 %5333
    %5335 = vrot.lane.b32.xlu0 %v5224, 96
    %v5336 = vpop.permute.xlu0 %5335
    %v5353 = vadd.f32 %v5289, %v5306
    %v5354 = vadd.f32 %v5290, %v5308
    %v5355 = vadd.f32 %v5291, %v5310
    %v5356 = vadd.f32 %v5292, %v5312
    %v5357 = vadd.f32 %v5293, %v5314
    %v5358 = vadd.f32 %v5294, %v5316
    %v5359 = vadd.f32 %v5295, %v5318
    %v5360 = vadd.f32 %v5296, %v5320
    %v5361 = vadd.f32 %v5297, %v5322
    %v5362 = vadd.f32 %v5298, %v5324
    %v5363 = vadd.f32 %v5299, %v5326
    %v5364 = vadd.f32 %v5300, %v5328
    %v5365 = vadd.f32 %v5301, %v5330
    %v5366 = vadd.f32 %v5302, %v5332
    %v5367 = vadd.f32 %v5303, %v5334
    %v5368 = vadd.f32 %v5304, %v5336
    %v5369 = vmul.f32 %v5353, 0.33333334
    %v5370 = vmul.f32 %v5354, 0.33333334
    %v5371 = vmul.f32 %v5355, 0.33333334
    %v5372 = vmul.f32 %v5356, 0.33333334
    %v5373 = vmul.f32 %v5357, 0.33333334
    %v5374 = vmul.f32 %v5358, 0.33333334
    %v5375 = vmul.f32 %v5359, 0.33333334
    %v5376 = vmul.f32 %v5360, 0.33333334
    %v5377 = vmul.f32 %v5361, 0.33333334
    %v5378 = vmul.f32 %v5362, 0.33333334
    %v5379 = vmul.f32 %v5363, 0.33333334
    %v5380 = vmul.f32 %v5364, 0.33333334
    %v5381 = vmul.f32 %v5365, 0.33333334
    %v5382 = vmul.f32 %v5366, 0.33333334
    %v5383 = vmul.f32 %v5367, 0.33333334
    %v5384 = vmul.f32 %v5368, 0.33333334
    %5401 = vrot.lane.b32.xlu0 %v5065, 48
    %v5402 = vpop.permute.xlu0 %5401
    %5403 = vrot.lane.b32.xlu0 %v5066, 48
    %v5404 = vpop.permute.xlu0 %5403
    %5405 = vrot.lane.b32.xlu0 %v5067, 48
    %v5406 = vpop.permute.xlu0 %5405
    %5407 = vrot.lane.b32.xlu0 %v5068, 48
    %v5408 = vpop.permute.xlu0 %5407
    %5409 = vrot.lane.b32.xlu0 %v5069, 48
    %v5410 = vpop.permute.xlu0 %5409
    %5411 = vrot.lane.b32.xlu0 %v5070, 48
    %v5412 = vpop.permute.xlu0 %5411
    %5413 = vrot.lane.b32.xlu0 %v5071, 48
    %v5414 = vpop.permute.xlu0 %5413
    %5415 = vrot.lane.b32.xlu0 %v5072, 48
    %v5416 = vpop.permute.xlu0 %5415
    %5417 = vrot.lane.b32.xlu0 %v5073, 48
    %v5418 = vpop.permute.xlu0 %5417
    %5419 = vrot.lane.b32.xlu0 %v5074, 48
    %v5420 = vpop.permute.xlu0 %5419
    %5421 = vrot.lane.b32.xlu0 %v5075, 48
    %v5422 = vpop.permute.xlu0 %5421
    %5423 = vrot.lane.b32.xlu0 %v5076, 48
    %v5424 = vpop.permute.xlu0 %5423
    %5425 = vrot.lane.b32.xlu0 %v5077, 48
    %v5426 = vpop.permute.xlu0 %5425
    %5427 = vrot.lane.b32.xlu0 %v5078, 48
    %v5428 = vpop.permute.xlu0 %5427
    %5429 = vrot.lane.b32.xlu0 %v5079, 48
    %v5430 = vpop.permute.xlu0 %5429
    %5431 = vrot.lane.b32.xlu0 %v5080, 48
    %v5432 = vpop.permute.xlu0 %5431
    %v5449 = vsel %vm532, %v4268, %v5402
    %v5450 = vsel %vm532, %v4269, %v5404
    %v5451 = vsel %vm532, %v4270, %v5406
    %v5452 = vsel %vm532, %v4271, %v5408
    %v5453 = vsel %vm532, %v4272, %v5410
    %v5454 = vsel %vm532, %v4273, %v5412
    %v5455 = vsel %vm532, %v4274, %v5414
    %v5456 = vsel %vm532, %v4275, %v5416
    %v5457 = vsel %vm532, %v4276, %v5418
    %v5458 = vsel %vm532, %v4277, %v5420
    %v5459 = vsel %vm532, %v4278, %v5422
    %v5460 = vsel %vm532, %v4279, %v5424
    %v5461 = vsel %vm532, %v4280, %v5426
    %v5462 = vsel %vm532, %v4281, %v5428
    %v5463 = vsel %vm532, %v4282, %v5430
    %v5464 = vsel %vm532, %v4283, %v5432
    %v5465 = vld [vmem:[%s6] sm:$0xff]
    %v5466 = vld [vmem:[%s6 + $0x8] sm:$0xff]
    %v5467 = vld [vmem:[%s6 + $0x10] sm:$0xff]
    %v5468 = vld [vmem:[%s6 + $0x18] sm:$0xff]
    %v5469 = vld [vmem:[%s6 + $0x20] sm:$0xff]
    %v5470 = vld [vmem:[%s6 + $0x28] sm:$0xff]
    %v5471 = vld [vmem:[%s6 + $0x30] sm:$0xff]
    %v5472 = vld [vmem:[%s6 + $0x38] sm:$0xff]
    %v5473 = vld [vmem:[%s6 + $0x40] sm:$0xff]
    %v5474 = vld [vmem:[%s6 + $0x48] sm:$0xff]
    %v5475 = vld [vmem:[%s6 + $0x50] sm:$0xff]
    %v5476 = vld [vmem:[%s6 + $0x58] sm:$0xff]
    %v5478 = vsel %vm1000, %v5449, 0
    %v5481 = vsel %vm1000, %v5450, 0
    %v5484 = vsel %vm1000, %v5451, 0
    %v5487 = vsel %vm1000, %v5452, 0
    %v5490 = vsel %vm1000, %v5453, 0
    %v5493 = vsel %vm1000, %v5454, 0
    %v5496 = vsel %vm1000, %v5455, 0
    %v5499 = vsel %vm1000, %v5456, 0
    %v5502 = vsel %vm1000, %v5457, 0
    %v5505 = vsel %vm1000, %v5458, 0
    %v5508 = vsel %vm1000, %v5459, 0
    %v5511 = vsel %vm1000, %v5460, 0
    %v5514 = vsel %vm1000, %v5461, 0
    %v5517 = vsel %vm1000, %v5462, 0
    %v5520 = vsel %vm1000, %v5463, 0
    %v5523 = vsel %vm1000, %v5464, 0
    %5525 = vmatprep.subr.mxu0 0.0
    %5526 = vmatpush1.msra.mxu0 %v5465
    %5527 = vmatprep.subr.mxu0 0.0
    %5528 = vmatpush1.msra.mxu0 %v5466
    %5529 = vmatprep.subr.mxu0 0.0
    %5530 = vmatpush1.msra.mxu0 %v5467
    %5531 = vmatprep.subr.mxu0 0.0
    %5532 = vmatpush1.msra.mxu0 %v5468
    %5533 = vmatprep.subr.mxu0 0.0
    %5534 = vmatpush1.msra.mxu0 %v5469
    %5535 = vmatprep.subr.mxu0 0.0
    %5536 = vmatpush1.msra.mxu0 %v5470
    %5537 = vmatprep.subr.mxu0 0.0
    %5538 = vmatpush1.msra.mxu0 %v5471
    %5539 = vmatprep.subr.mxu0 0.0
    %5540 = vmatpush1.msra.mxu0 %v5472
    %5541 = vmatprep.subr.mxu0 0.0
    %5542 = vmatpush1.msra.mxu0 %v5473
    %5543 = vmatprep.subr.mxu0 0.0
    %5544 = vmatpush1.msra.mxu0 %v5474
    %5545 = vmatprep.subr.mxu0 0.0
    %5546 = vmatpush1.msra.mxu0 %v5475
    %5547 = vmatprep.subr.mxu0 0.0
    %5548 = vmatpush1.msra.mxu0 %v5476
    %5549 = vmatprep.subr.mxu0 0.0
    %5550 = vmatpush1.msra.mxu0 0.0
    %5551 = vmatprep.subr.mxu0 0.0
    %5552 = vmatpush1.msra.mxu0 0.0
    %5553 = vmatprep.subr.mxu0 0.0
    %5554 = vmatpush1.msra.mxu0 0.0
    %5555 = vmatprep.subr.mxu0 0.0
    %5556 = vmatpush1.msra.mxu0 0.0
    %5557 = vmatprep.subr.mxu0 0.0
    %5558 = vmatpush1.msra.mxu0 0.0
    %5559 = vmatprep.subr.mxu0 0.0
    %5560 = vmatpush1.msra.mxu0 0.0
    %5561 = vmatprep.subr.mxu0 0.0
    %5562 = vmatpush1.msra.mxu0 0.0
    %5563 = vmatprep.subr.mxu0 0.0
    %5564 = vmatpush1.msra.mxu0 0.0
    %5565 = vmatprep.subr.mxu0 0.0
    %5566 = vmatpush1.msra.mxu0 0.0
    %5567 = vmatprep.subr.mxu0 0.0
    %5568 = vmatpush1.msra.mxu0 0.0
    %5569 = vmatprep.subr.mxu0 0.0
    %5570 = vmatpush1.msra.mxu0 0.0
    %5571 = vmatprep.subr.mxu0 0.0
    %5572 = vmatpush1.msra.mxu0 0.0
    %5573 = vmatprep.subr.mxu0 0.0
    %5574 = vmatpush1.msra.mxu0 0.0
    %5575 = vmatprep.subr.mxu0 0.0
    %5576 = vmatpush1.msra.mxu0 0.0
    %5577 = vmatprep.subr.mxu0 0.0
    %5578 = vmatpush1.msra.mxu0 0.0
    %5579 = vmatprep.subr.mxu0 0.0
    %5580 = vmatpush1.msra.mxu0 0.0
    %5581 = vmatprep.subr.mxu0 0.0
    %5582 = vmatpush1.msra.mxu0 0.0
    %5583 = vmatprep.subr.mxu0 0.0
    %5584 = vmatpush1.msra.mxu0 0.0
    %5585 = vmatprep.subr.mxu0 0.0
    %5586 = vmatpush1.msra.mxu0 0.0
    %5587 = vmatprep.subr.mxu0 0.0
    %5588 = vmatpush1.msra.mxu0 0.0
    %5589 = vmatprep.mubr.f32.mxu0 0.0
    %5590 = vmatmul.mubr.f32.gmra.mrb[0].mxu0 %v5478
    %v5591 = vpop.f32.mrb[0].mxu0
    %v5592 = vadd.f32 0.0, %v5591
    %v5593 = vpop.f32.mrb[0].mxu0
    %5594 = vmatprep.mubr.f32.mxu0 0.0
    %5595 = vmatmul.mubr.f32.gmra.mrb[0].mxu0 %v5481
    %v5596 = vpop.f32.mrb[0].mxu0
    %v5597 = vadd.f32 0.0, %v5596
    %v5598 = vpop.f32.mrb[0].mxu0
    %5599 = vmatprep.mubr.f32.mxu0 0.0
    %5600 = vmatmul.mubr.f32.gmra.mrb[0].mxu0 %v5484
    %v5601 = vpop.f32.mrb[0].mxu0
    %v5602 = vadd.f32 0.0, %v5601
    %v5603 = vpop.f32.mrb[0].mxu0
    %5604 = vmatprep.mubr.f32.mxu0 0.0
    %5605 = vmatmul.mubr.f32.gmra.mrb[0].mxu0 %v5487
    %v5606 = vpop.f32.mrb[0].mxu0
    %v5607 = vadd.f32 0.0, %v5606
    %v5608 = vpop.f32.mrb[0].mxu0
    %5609 = vmatprep.mubr.f32.mxu0 0.0
    %5610 = vmatmul.mubr.f32.gmra.mrb[0].mxu0 %v5490
    %v5611 = vpop.f32.mrb[0].mxu0
    %v5612 = vadd.f32 0.0, %v5611
    %v5613 = vpop.f32.mrb[0].mxu0
    %5614 = vmatprep.mubr.f32.mxu0 0.0
    %5615 = vmatmul.mubr.f32.gmra.mrb[0].mxu0 %v5493
    %v5616 = vpop.f32.mrb[0].mxu0
    %v5617 = vadd.f32 0.0, %v5616
    %v5618 = vpop.f32.mrb[0].mxu0
    %5619 = vmatprep.mubr.f32.mxu0 0.0
    %5620 = vmatmul.mubr.f32.gmra.mrb[0].mxu0 %v5496
    %v5621 = vpop.f32.mrb[0].mxu0
    %v5622 = vadd.f32 0.0, %v5621
    %v5623 = vpop.f32.mrb[0].mxu0
    %5624 = vmatprep.mubr.f32.mxu0 0.0
    %5625 = vmatmul.mubr.f32.gmra.mrb[0].mxu0 %v5499
    %v5626 = vpop.f32.mrb[0].mxu0
    %v5627 = vadd.f32 0.0, %v5626
    %v5628 = vpop.f32.mrb[0].mxu0
    %5629 = vmatprep.mubr.f32.mxu0 0.0
    %5630 = vmatmul.mubr.f32.gmra.mrb[0].mxu0 %v5502
    %v5631 = vpop.f32.mrb[0].mxu0
    %v5632 = vadd.f32 0.0, %v5631
    %v5633 = vpop.f32.mrb[0].mxu0
    %5634 = vmatprep.mubr.f32.mxu0 0.0
    %5635 = vmatmul.mubr.f32.gmra.mrb[0].mxu0 %v5505
    %v5636 = vpop.f32.mrb[0].mxu0
    %v5637 = vadd.f32 0.0, %v5636
    %v5638 = vpop.f32.mrb[0].mxu0
    %5639 = vmatprep.mubr.f32.mxu0 0.0
    %5640 = vmatmul.mubr.f32.gmra.mrb[0].mxu0 %v5508
    %v5641 = vpop.f32.mrb[0].mxu0
    %v5642 = vadd.f32 0.0, %v5641
    %v5643 = vpop.f32.mrb[0].mxu0
    %5644 = vmatprep.mubr.f32.mxu0 0.0
    %5645 = vmatmul.mubr.f32.gmra.mrb[0].mxu0 %v5511
    %v5646 = vpop.f32.mrb[0].mxu0
    %v5647 = vadd.f32 0.0, %v5646
    %v5648 = vpop.f32.mrb[0].mxu0
    %5649 = vmatprep.mubr.f32.mxu0 0.0
    %5650 = vmatmul.mubr.f32.gmra.mrb[0].mxu0 %v5514
    %v5651 = vpop.f32.mrb[0].mxu0
    %v5652 = vadd.f32 0.0, %v5651
    %v5653 = vpop.f32.mrb[0].mxu0
    %5654 = vmatprep.mubr.f32.mxu0 0.0
    %5655 = vmatmul.mubr.f32.gmra.mrb[0].mxu0 %v5517
    %v5656 = vpop.f32.mrb[0].mxu0
    %v5657 = vadd.f32 0.0, %v5656
    %v5658 = vpop.f32.mrb[0].mxu0
    %5659 = vmatprep.mubr.f32.mxu0 0.0
    %5660 = vmatmul.mubr.f32.gmra.mrb[0].mxu0 %v5520
    %v5661 = vpop.f32.mrb[0].mxu0
    %v5662 = vadd.f32 0.0, %v5661
    %v5663 = vpop.f32.mrb[0].mxu0
    %5664 = vmatprep.mubr.f32.mxu0 0.0
    %5665 = vmatmul.mubr.f32.gmra.mrb[0].mxu0 %v5523
    %v5666 = vpop.f32.mrb[0].mxu0
    %v5667 = vadd.f32 0.0, %v5666
    %v5668 = vpop.f32.mrb[0].mxu0
    %5669 = vdwg.mxu0
    %s5670 = scalar_lea.vmem %s7, 192
    %v5671 = vld [vmem:[%s5670] sm:$0xff]
    %v5672 = vld [vmem:[%s5670 + $0x8] sm:$0xff]
    %v5673 = vld [vmem:[%s5670 + $0x10] sm:$0xff]
    %v5674 = vld [vmem:[%s5670 + $0x18] sm:$0xff]
    %v5675 = vld [vmem:[%s5670 + $0x20] sm:$0xff]
    %v5676 = vld [vmem:[%s5670 + $0x28] sm:$0xff]
    %v5677 = vld [vmem:[%s5670 + $0x30] sm:$0xff]
    %v5678 = vld [vmem:[%s5670 + $0x38] sm:$0xff]
    %v5679 = vld [vmem:[%s5670 + $0x40] sm:$0xff]
    %v5680 = vld [vmem:[%s5670 + $0x48] sm:$0xff]
    %v5681 = vld [vmem:[%s5670 + $0x50] sm:$0xff]
    %v5682 = vld [vmem:[%s5670 + $0x58] sm:$0xff]
    %v5684 = vsel %vm1000, %v5592, 0
    %v5687 = vsel %vm1000, %v5597, 0
    %v5690 = vsel %vm1000, %v5602, 0
    %v5693 = vsel %vm1000, %v5607, 0
    %v5696 = vsel %vm1000, %v5612, 0
    %v5699 = vsel %vm1000, %v5617, 0
    %v5702 = vsel %vm1000, %v5622, 0
    %v5705 = vsel %vm1000, %v5627, 0
    %v5708 = vsel %vm1000, %v5632, 0
    %v5711 = vsel %vm1000, %v5637, 0
    %v5714 = vsel %vm1000, %v5642, 0
    %v5717 = vsel %vm1000, %v5647, 0
    %v5720 = vsel %vm1000, %v5652, 0
    %v5723 = vsel %vm1000, %v5657, 0
    %v5726 = vsel %vm1000, %v5662, 0
    %v5729 = vsel %vm1000, %v5667, 0
    %5731 = vmatprep.subr.mxu0 0.0
    %5732 = vmatpush1.msra.mxu0 %v5671
    %5733 = vmatprep.subr.mxu0 0.0
    %5734 = vmatpush1.msra.mxu0 %v5672
    %5735 = vmatprep.subr.mxu0 0.0
    %5736 = vmatpush1.msra.mxu0 %v5673
    %5737 = vmatprep.subr.mxu0 0.0
    %5738 = vmatpush1.msra.mxu0 %v5674
    %5739 = vmatprep.subr.mxu0 0.0
    %5740 = vmatpush1.msra.mxu0 %v5675
    %5741 = vmatprep.subr.mxu0 0.0
    %5742 = vmatpush1.msra.mxu0 %v5676
    %5743 = vmatprep.subr.mxu0 0.0
    %5744 = vmatpush1.msra.mxu0 %v5677
    %5745 = vmatprep.subr.mxu0 0.0
    %5746 = vmatpush1.msra.mxu0 %v5678
    %5747 = vmatprep.subr.mxu0 0.0
    %5748 = vmatpush1.msra.mxu0 %v5679
    %5749 = vmatprep.subr.mxu0 0.0
    %5750 = vmatpush1.msra.mxu0 %v5680
    %5751 = vmatprep.subr.mxu0 0.0
    %5752 = vmatpush1.msra.mxu0 %v5681
    %5753 = vmatprep.subr.mxu0 0.0
    %5754 = vmatpush1.msra.mxu0 %v5682
    %5755 = vmatprep.subr.mxu0 0.0
    %5756 = vmatpush1.msra.mxu0 0.0
    %5757 = vmatprep.subr.mxu0 0.0
    %5758 = vmatpush1.msra.mxu0 0.0
    %5759 = vmatprep.subr.mxu0 0.0
    %5760 = vmatpush1.msra.mxu0 0.0
    %5761 = vmatprep.subr.mxu0 0.0
    %5762 = vmatpush1.msra.mxu0 0.0
    %5763 = vmatprep.subr.mxu0 0.0
    %5764 = vmatpush1.msra.mxu0 0.0
    %5765 = vmatprep.subr.mxu0 0.0
    %5766 = vmatpush1.msra.mxu0 0.0
    %5767 = vmatprep.subr.mxu0 0.0
    %5768 = vmatpush1.msra.mxu0 0.0
    %5769 = vmatprep.subr.mxu0 0.0
    %5770 = vmatpush1.msra.mxu0 0.0
    %5771 = vmatprep.subr.mxu0 0.0
    %5772 = vmatpush1.msra.mxu0 0.0
    %5773 = vmatprep.subr.mxu0 0.0
    %5774 = vmatpush1.msra.mxu0 0.0
    %5775 = vmatprep.subr.mxu0 0.0
    %5776 = vmatpush1.msra.mxu0 0.0
    %5777 = vmatprep.subr.mxu0 0.0
    %5778 = vmatpush1.msra.mxu0 0.0
    %5779 = vmatprep.subr.mxu0 0.0
    %5780 = vmatpush1.msra.mxu0 0.0
    %5781 = vmatprep.subr.mxu0 0.0
    %5782 = vmatpush1.msra.mxu0 0.0
    %5783 = vmatprep.subr.mxu0 0.0
    %5784 = vmatpush1.msra.mxu0 0.0
    %5785 = vmatprep.subr.mxu0 0.0
    %5786 = vmatpush1.msra.mxu0 0.0
    %5787 = vmatprep.subr.mxu0 0.0
    %5788 = vmatpush1.msra.mxu0 0.0
    %5789 = vmatprep.subr.mxu0 0.0
    %5790 = vmatpush1.msra.mxu0 0.0
    %5791 = vmatprep.subr.mxu0 0.0
    %5792 = vmatpush1.msra.mxu0 0.0
    %5793 = vmatprep.subr.mxu0 0.0
    %5794 = vmatpush1.msra.mxu0 0.0
    %5795 = vmatprep.mubr.f32.mxu0 0.0
    %5796 = vmatmul.mubr.f32.gmra.mrb[0].mxu0 %v5684
    %v5797 = vpop.f32.mrb[0].mxu0
    %v5798 = vadd.f32 0.0, %v5797
    %v5799 = vpop.f32.mrb[0].mxu0
    %5800 = vmatprep.mubr.f32.mxu0 0.0
    %5801 = vmatmul.mubr.f32.gmra.mrb[0].mxu0 %v5687
    %v5802 = vpop.f32.mrb[0].mxu0
    %v5803 = vadd.f32 0.0, %v5802
    %v5804 = vpop.f32.mrb[0].mxu0
    %5805 = vmatprep.mubr.f32.mxu0 0.0
    %5806 = vmatmul.mubr.f32.gmra.mrb[0].mxu0 %v5690
    %v5807 = vpop.f32.mrb[0].mxu0
    %v5808 = vadd.f32 0.0, %v5807
    %v5809 = vpop.f32.mrb[0].mxu0
    %5810 = vmatprep.mubr.f32.mxu0 0.0
    %5811 = vmatmul.mubr.f32.gmra.mrb[0].mxu0 %v5693
    %v5812 = vpop.f32.mrb[0].mxu0
    %v5813 = vadd.f32 0.0, %v5812
    %v5814 = vpop.f32.mrb[0].mxu0
    %5815 = vmatprep.mubr.f32.mxu0 0.0
    %5816 = vmatmul.mubr.f32.gmra.mrb[0].mxu0 %v5696
    %v5817 = vpop.f32.mrb[0].mxu0
    %v5818 = vadd.f32 0.0, %v5817
    %v5819 = vpop.f32.mrb[0].mxu0
    %5820 = vmatprep.mubr.f32.mxu0 0.0
    %5821 = vmatmul.mubr.f32.gmra.mrb[0].mxu0 %v5699
    %v5822 = vpop.f32.mrb[0].mxu0
    %v5823 = vadd.f32 0.0, %v5822
    %v5824 = vpop.f32.mrb[0].mxu0
    %5825 = vmatprep.mubr.f32.mxu0 0.0
    %5826 = vmatmul.mubr.f32.gmra.mrb[0].mxu0 %v5702
    %v5827 = vpop.f32.mrb[0].mxu0
    %v5828 = vadd.f32 0.0, %v5827
    %v5829 = vpop.f32.mrb[0].mxu0
    %5830 = vmatprep.mubr.f32.mxu0 0.0
    %5831 = vmatmul.mubr.f32.gmra.mrb[0].mxu0 %v5705
    %v5832 = vpop.f32.mrb[0].mxu0
    %v5833 = vadd.f32 0.0, %v5832
    %v5834 = vpop.f32.mrb[0].mxu0
    %5835 = vmatprep.mubr.f32.mxu0 0.0
    %5836 = vmatmul.mubr.f32.gmra.mrb[0].mxu0 %v5708
    %v5837 = vpop.f32.mrb[0].mxu0
    %v5838 = vadd.f32 0.0, %v5837
    %v5839 = vpop.f32.mrb[0].mxu0
    %5840 = vmatprep.mubr.f32.mxu0 0.0
    %5841 = vmatmul.mubr.f32.gmra.mrb[0].mxu0 %v5711
    %v5842 = vpop.f32.mrb[0].mxu0
    %v5843 = vadd.f32 0.0, %v5842
    %v5844 = vpop.f32.mrb[0].mxu0
    %5845 = vmatprep.mubr.f32.mxu0 0.0
    %5846 = vmatmul.mubr.f32.gmra.mrb[0].mxu0 %v5714
    %v5847 = vpop.f32.mrb[0].mxu0
    %v5848 = vadd.f32 0.0, %v5847
    %v5849 = vpop.f32.mrb[0].mxu0
    %5850 = vmatprep.mubr.f32.mxu0 0.0
    %5851 = vmatmul.mubr.f32.gmra.mrb[0].mxu0 %v5717
    %v5852 = vpop.f32.mrb[0].mxu0
    %v5853 = vadd.f32 0.0, %v5852
    %v5854 = vpop.f32.mrb[0].mxu0
    %5855 = vmatprep.mubr.f32.mxu0 0.0
    %5856 = vmatmul.mubr.f32.gmra.mrb[0].mxu0 %v5720
    %v5857 = vpop.f32.mrb[0].mxu0
    %v5858 = vadd.f32 0.0, %v5857
    %v5859 = vpop.f32.mrb[0].mxu0
    %5860 = vmatprep.mubr.f32.mxu0 0.0
    %5861 = vmatmul.mubr.f32.gmra.mrb[0].mxu0 %v5723
    %v5862 = vpop.f32.mrb[0].mxu0
    %v5863 = vadd.f32 0.0, %v5862
    %v5864 = vpop.f32.mrb[0].mxu0
    %5865 = vmatprep.mubr.f32.mxu0 0.0
    %5866 = vmatmul.mubr.f32.gmra.mrb[0].mxu0 %v5726
    %v5867 = vpop.f32.mrb[0].mxu0
    %v5868 = vadd.f32 0.0, %v5867
    %v5869 = vpop.f32.mrb[0].mxu0
    %5870 = vmatprep.mubr.f32.mxu0 0.0
    %5871 = vmatmul.mubr.f32.gmra.mrb[0].mxu0 %v5729
    %v5872 = vpop.f32.mrb[0].mxu0
    %v5873 = vadd.f32 0.0, %v5872
    %v5874 = vpop.f32.mrb[0].mxu0
    %5875 = vdwg.mxu0
    %5876 = vxpose.xlu0.b32.start [1/16] %v5798, 128
    %5877 = vxpose.xlu0.b32.cont [2/16] %v5803, 128
    %5878 = vxpose.xlu0.b32.cont [3/16] %v5808, 128
    %5879 = vxpose.xlu0.b32.cont [4/16] %v5813, 128
    %5880 = vxpose.xlu0.b32.cont [5/16] %v5818, 128
    %5881 = vxpose.xlu0.b32.cont [6/16] %v5823, 128
    %5882 = vxpose.xlu0.b32.cont [7/16] %v5828, 128
    %5883 = vxpose.xlu0.b32.cont [8/16] %v5833, 128
    %5884 = vxpose.xlu0.b32.cont [9/16] %v5838, 128
    %5885 = vxpose.xlu0.b32.cont [10/16] %v5843, 128
    %5886 = vxpose.xlu0.b32.cont [11/16] %v5848, 128
    %5887 = vxpose.xlu0.b32.cont [12/16] %v5853, 128
    %5888 = vxpose.xlu0.b32.cont [13/16] %v5858, 128
    %5889 = vxpose.xlu0.b32.cont [14/16] %v5863, 128
    %5890 = vxpose.xlu0.b32.cont [15/16] %v5868, 128
    %5891 = vxpose.xlu0.b32.end [16/16] %v5873, 128
    %v5892 = vpop.trf.xlu0
    %v5893 = vpop.trf.xlu0
    %v5894 = vpop.trf.xlu0
    %v5895 = vpop.trf.xlu0
    %v5896 = vpop.trf.xlu0
    %v5897 = vpop.trf.xlu0
    %v5898 = vpop.trf.xlu0
    %v5899 = vpop.trf.xlu0
    %v5900 = vpop.trf.xlu0
    %v5901 = vpop.trf.xlu0
    %v5902 = vpop.trf.xlu0
    %v5903 = vpop.trf.xlu0
    %v5904 = vpop.trf.xlu0
    %v5905 = vpop.trf.xlu0
    %v5906 = vpop.trf.xlu0
    %v5907 = vpop.trf.xlu0
    %5909 = vset.pattern.permute.xlu0 0
    %5910 = vperm.xlu0 %5909, %v5798
    %v5911 = vpop.permute.xlu0 %5910
    %5914 = vset.pattern.permute.xlu0 0
    %5915 = vperm.xlu0 %5914, %v5803
    %v5916 = vpop.permute.xlu0 %5915
    %5919 = vset.pattern.permute.xlu0 0
    %5920 = vperm.xlu0 %5919, %v5808
    %v5921 = vpop.permute.xlu0 %5920
    %5924 = vset.pattern.permute.xlu0 0
    %5925 = vperm.xlu0 %5924, %v5813
    %v5926 = vpop.permute.xlu0 %5925
    %5929 = vset.pattern.permute.xlu0 0
    %5930 = vperm.xlu0 %5929, %v5818
    %v5931 = vpop.permute.xlu0 %5930
    %5934 = vset.pattern.permute.xlu0 0
    %5935 = vperm.xlu0 %5934, %v5823
    %v5936 = vpop.permute.xlu0 %5935
    %5939 = vset.pattern.permute.xlu0 0
    %5940 = vperm.xlu0 %5939, %v5828
    %v5941 = vpop.permute.xlu0 %5940
    %5944 = vset.pattern.permute.xlu0 0
    %5945 = vperm.xlu0 %5944, %v5833
    %v5946 = vpop.permute.xlu0 %5945
    %5949 = vset.pattern.permute.xlu0 0
    %5950 = vperm.xlu0 %5949, %v5838
    %v5951 = vpop.permute.xlu0 %5950
    %5954 = vset.pattern.permute.xlu0 0
    %5955 = vperm.xlu0 %5954, %v5843
    %v5956 = vpop.permute.xlu0 %5955
    %5959 = vset.pattern.permute.xlu0 0
    %5960 = vperm.xlu0 %5959, %v5848
    %v5961 = vpop.permute.xlu0 %5960
    %5964 = vset.pattern.permute.xlu0 0
    %5965 = vperm.xlu0 %5964, %v5853
    %v5966 = vpop.permute.xlu0 %5965
    %5969 = vset.pattern.permute.xlu0 0
    %5970 = vperm.xlu0 %5969, %v5858
    %v5971 = vpop.permute.xlu0 %5970
    %5974 = vset.pattern.permute.xlu0 0
    %5975 = vperm.xlu0 %5974, %v5863
    %v5976 = vpop.permute.xlu0 %5975
    %5979 = vset.pattern.permute.xlu0 0
    %5980 = vperm.xlu0 %5979, %v5868
    %v5981 = vpop.permute.xlu0 %5980
    %5984 = vset.pattern.permute.xlu0 0
    %5985 = vperm.xlu0 %5984, %v5873
    %v5986 = vpop.permute.xlu0 %5985
    %v5988 = vlaneseq
    %v5989 = vshrl.u32 %v5988, 7
    %v5990 = vsub.s32 2, %v5989
    %v5991 = vrot.slane %v5892, %v5990
    %v5992 = vadd.f32 %v5911, %v5991
    %v5993 = vadd.f32 %v5916, %v5991
    %v5994 = vadd.f32 %v5921, %v5991
    %v5995 = vadd.f32 %v5926, %v5991
    %v5996 = vadd.f32 %v5931, %v5991
    %v5997 = vadd.f32 %v5936, %v5991
    %v5998 = vadd.f32 %v5941, %v5991
    %v5999 = vadd.f32 %v5946, %v5991
    %v6000 = vadd.f32 %v5951, %v5991
    %v6001 = vadd.f32 %v5956, %v5991
    %v6002 = vadd.f32 %v5961, %v5991
    %v6003 = vadd.f32 %v5966, %v5991
    %v6004 = vadd.f32 %v5971, %v5991
    %v6005 = vadd.f32 %v5976, %v5991
    %v6006 = vadd.f32 %v5981, %v5991
    %v6007 = vadd.f32 %v5986, %v5991
    %s6008 = sld [smem:[#allocation2 + $0x10]]
    %v6009 = vstv %s6008
    %v6010 = vmul.f32 %v137, %v6009
    %v6011 = vmul.f32 %v138, %v6009
    %v6012 = vmul.f32 %v139, %v6009
    %v6013 = vmul.f32 %v140, %v6009
    %v6014 = vmul.f32 %v141, %v6009
    %v6015 = vmul.f32 %v142, %v6009
    %v6016 = vmul.f32 %v143, %v6009
    %v6017 = vmul.f32 %v144, %v6009
    %v6018 = vmul.f32 %v145, %v6009
    %v6019 = vmul.f32 %v146, %v6009
    %v6020 = vmul.f32 %v147, %v6009
    %v6021 = vmul.f32 %v148, %v6009
    %v6022 = vmul.f32 %v149, %v6009
    %v6023 = vmul.f32 %v150, %v6009
    %v6024 = vmul.f32 %v151, %v6009
    %v6025 = vmul.f32 %v152, %v6009
    %v6026 = vadd.f32 %v5992, %v6010
    %v6027 = vadd.f32 %v5993, %v6011
    %v6028 = vadd.f32 %v5994, %v6012
    %v6029 = vadd.f32 %v5995, %v6013
    %v6030 = vadd.f32 %v5996, %v6014
    %v6031 = vadd.f32 %v5997, %v6015
    %v6032 = vadd.f32 %v5998, %v6016
    %v6033 = vadd.f32 %v5999, %v6017
    %v6034 = vadd.f32 %v6000, %v6018
    %v6035 = vadd.f32 %v6001, %v6019
    %v6036 = vadd.f32 %v6002, %v6020
    %v6037 = vadd.f32 %v6003, %v6021
    %v6038 = vadd.f32 %v6004, %v6022
    %v6039 = vadd.f32 %v6005, %v6023
    %v6040 = vadd.f32 %v6006, %v6024
    %v6041 = vadd.f32 %v6007, %v6025
    %s6042 = sld [smem:[#allocation2 + $0x12]]
    %v6043 = vstv %s6042
    %v6044 = vmul.f32 %v185, %v6043
    %v6045 = vmul.f32 %v186, %v6043
    %v6046 = vmul.f32 %v187, %v6043
    %v6047 = vmul.f32 %v188, %v6043
    %v6048 = vmul.f32 %v189, %v6043
    %v6049 = vmul.f32 %v190, %v6043
    %v6050 = vmul.f32 %v191, %v6043
    %v6051 = vmul.f32 %v192, %v6043
    %v6052 = vmul.f32 %v193, %v6043
    %v6053 = vmul.f32 %v194, %v6043
    %v6054 = vmul.f32 %v195, %v6043
    %v6055 = vmul.f32 %v196, %v6043
    %v6056 = vmul.f32 %v197, %v6043
    %v6057 = vmul.f32 %v198, %v6043
    %v6058 = vmul.f32 %v199, %v6043
    %v6059 = vmul.f32 %v200, %v6043
    %v6060 = vadd.f32 %v6026, %v6044
    %v6061 = vadd.f32 %v6027, %v6045
    %v6062 = vadd.f32 %v6028, %v6046
    %v6063 = vadd.f32 %v6029, %v6047
    %v6064 = vadd.f32 %v6030, %v6048
    %v6065 = vadd.f32 %v6031, %v6049
    %v6066 = vadd.f32 %v6032, %v6050
    %v6067 = vadd.f32 %v6033, %v6051
    %v6068 = vadd.f32 %v6034, %v6052
    %v6069 = vadd.f32 %v6035, %v6053
    %v6070 = vadd.f32 %v6036, %v6054
    %v6071 = vadd.f32 %v6037, %v6055
    %v6072 = vadd.f32 %v6038, %v6056
    %v6073 = vadd.f32 %v6039, %v6057
    %v6074 = vadd.f32 %v6040, %v6058
    %v6075 = vadd.f32 %v6041, %v6059
    %s6076 = sld [smem:[#allocation2 + $0x14]]
    %v6077 = vstv %s6076
    %v6078 = vmul.f32 %v233, %v6077
    %v6079 = vmul.f32 %v234, %v6077
    %v6080 = vmul.f32 %v235, %v6077
    %v6081 = vmul.f32 %v236, %v6077
    %v6082 = vmul.f32 %v237, %v6077
    %v6083 = vmul.f32 %v238, %v6077
    %v6084 = vmul.f32 %v239, %v6077
    %v6085 = vmul.f32 %v240, %v6077
    %v6086 = vmul.f32 %v241, %v6077
    %v6087 = vmul.f32 %v242, %v6077
    %v6088 = vmul.f32 %v243, %v6077
    %v6089 = vmul.f32 %v244, %v6077
    %v6090 = vmul.f32 %v245, %v6077
    %v6091 = vmul.f32 %v246, %v6077
    %v6092 = vmul.f32 %v247, %v6077
    %v6093 = vmul.f32 %v248, %v6077
    %v6094 = vadd.f32 %v6060, %v6078
    %v6095 = vadd.f32 %v6061, %v6079
    %v6096 = vadd.f32 %v6062, %v6080
    %v6097 = vadd.f32 %v6063, %v6081
    %v6098 = vadd.f32 %v6064, %v6082
    %v6099 = vadd.f32 %v6065, %v6083
    %v6100 = vadd.f32 %v6066, %v6084
    %v6101 = vadd.f32 %v6067, %v6085
    %v6102 = vadd.f32 %v6068, %v6086
    %v6103 = vadd.f32 %v6069, %v6087
    %v6104 = vadd.f32 %v6070, %v6088
    %v6105 = vadd.f32 %v6071, %v6089
    %v6106 = vadd.f32 %v6072, %v6090
    %v6107 = vadd.f32 %v6073, %v6091
    %v6108 = vadd.f32 %v6074, %v6092
    %v6109 = vadd.f32 %v6075, %v6093
    %s6110 = sld [smem:[#allocation2 + $0x16]]
    %v6111 = vstv %s6110
    %v6112 = vmul.f32 %v281, %v6111
    %v6113 = vmul.f32 %v282, %v6111
    %v6114 = vmul.f32 %v283, %v6111
    %v6115 = vmul.f32 %v284, %v6111
    %v6116 = vmul.f32 %v285, %v6111
    %v6117 = vmul.f32 %v286, %v6111
    %v6118 = vmul.f32 %v287, %v6111
    %v6119 = vmul.f32 %v288, %v6111
    %v6120 = vmul.f32 %v289, %v6111
    %v6121 = vmul.f32 %v290, %v6111
    %v6122 = vmul.f32 %v291, %v6111
    %v6123 = vmul.f32 %v292, %v6111
    %v6124 = vmul.f32 %v293, %v6111
    %v6125 = vmul.f32 %v294, %v6111
    %v6126 = vmul.f32 %v295, %v6111
    %v6127 = vmul.f32 %v296, %v6111
    %v6128 = vadd.f32 %v6094, %v6112
    %v6129 = vadd.f32 %v6095, %v6113
    %v6130 = vadd.f32 %v6096, %v6114
    %v6131 = vadd.f32 %v6097, %v6115
    %v6132 = vadd.f32 %v6098, %v6116
    %v6133 = vadd.f32 %v6099, %v6117
    %v6134 = vadd.f32 %v6100, %v6118
    %v6135 = vadd.f32 %v6101, %v6119
    %v6136 = vadd.f32 %v6102, %v6120
    %v6137 = vadd.f32 %v6103, %v6121
    %v6138 = vadd.f32 %v6104, %v6122
    %v6139 = vadd.f32 %v6105, %v6123
    %v6140 = vadd.f32 %v6106, %v6124
    %v6141 = vadd.f32 %v6107, %v6125
    %v6142 = vadd.f32 %v6108, %v6126
    %v6143 = vadd.f32 %v6109, %v6127
    %vm6144 = vcmp.gt.f32.partialorder %v6128, 0.0
    %vm6145 = vcmp.gt.f32.partialorder %v6129, 0.0
    %vm6146 = vcmp.gt.f32.partialorder %v6130, 0.0
    %vm6147 = vcmp.gt.f32.partialorder %v6131, 0.0
    %vm6148 = vcmp.gt.f32.partialorder %v6132, 0.0
    %vm6149 = vcmp.gt.f32.partialorder %v6133, 0.0
    %vm6150 = vcmp.gt.f32.partialorder %v6134, 0.0
    %vm6151 = vcmp.gt.f32.partialorder %v6135, 0.0
    %vm6152 = vcmp.gt.f32.partialorder %v6136, 0.0
    %vm6153 = vcmp.gt.f32.partialorder %v6137, 0.0
    %vm6154 = vcmp.gt.f32.partialorder %v6138, 0.0
    %vm6155 = vcmp.gt.f32.partialorder %v6139, 0.0
    %vm6156 = vcmp.gt.f32.partialorder %v6140, 0.0
    %vm6157 = vcmp.gt.f32.partialorder %v6141, 0.0
    %vm6158 = vcmp.gt.f32.partialorder %v6142, 0.0
    %vm6159 = vcmp.gt.f32.partialorder %v6143, 0.0
    %v6160 = vmul.f32 %v6128, 0.2
    %v6161 = vmul.f32 %v6129, 0.2
    %v6162 = vmul.f32 %v6130, 0.2
    %v6163 = vmul.f32 %v6131, 0.2
    %v6164 = vmul.f32 %v6132, 0.2
    %v6165 = vmul.f32 %v6133, 0.2
    %v6166 = vmul.f32 %v6134, 0.2
    %v6167 = vmul.f32 %v6135, 0.2
    %v6168 = vmul.f32 %v6136, 0.2
    %v6169 = vmul.f32 %v6137, 0.2
    %v6170 = vmul.f32 %v6138, 0.2
    %v6171 = vmul.f32 %v6139, 0.2
    %v6172 = vmul.f32 %v6140, 0.2
    %v6173 = vmul.f32 %v6141, 0.2
    %v6174 = vmul.f32 %v6142, 0.2
    %v6175 = vmul.f32 %v6143, 0.2
    %v6176 = vsel %vm6144, %v6128, %v6160
    %v6177 = vsel %vm6145, %v6129, %v6161
    %v6178 = vsel %vm6146, %v6130, %v6162
    %v6179 = vsel %vm6147, %v6131, %v6163
    %v6180 = vsel %vm6148, %v6132, %v6164
    %v6181 = vsel %vm6149, %v6133, %v6165
    %v6182 = vsel %vm6150, %v6134, %v6166
    %v6183 = vsel %vm6151, %v6135, %v6167
    %v6184 = vsel %vm6152, %v6136, %v6168
    %v6185 = vsel %vm6153, %v6137, %v6169
    %v6186 = vsel %vm6154, %v6138, %v6170
    %v6187 = vsel %vm6155, %v6139, %v6171
    %v6188 = vsel %vm6156, %v6140, %v6172
    %v6189 = vsel %vm6157, %v6141, %v6173
    %v6190 = vsel %vm6158, %v6142, %v6174
    %v6191 = vsel %vm6159, %v6143, %v6175
    %v6192 = vsel %vm89, %v6176, -1e+30
    %v6193 = vsel %vm90, %v6177, -1e+30
    %v6194 = vsel %vm91, %v6178, -1e+30
    %v6195 = vsel %vm92, %v6179, -1e+30
    %v6196 = vsel %vm93, %v6180, -1e+30
    %v6197 = vsel %vm94, %v6181, -1e+30
    %v6198 = vsel %vm95, %v6182, -1e+30
    %v6199 = vsel %vm96, %v6183, -1e+30
    %v6200 = vsel %vm97, %v6184, -1e+30
    %v6201 = vsel %vm98, %v6185, -1e+30
    %v6202 = vsel %vm99, %v6186, -1e+30
    %v6203 = vsel %vm100, %v6187, -1e+30
    %v6204 = vsel %vm101, %v6188, -1e+30
    %v6205 = vsel %vm102, %v6189, -1e+30
    %v6206 = vsel %vm103, %v6190, -1e+30
    %v6207 = vsel %vm104, %v6191, -1e+30
    %6208 = vmax.xlane.f32.xlu0 %v6192
    %v6209 = vpop.xlane.xlu0 %6208
    %6210 = vmax.xlane.f32.xlu0 %v6193
    %v6211 = vpop.xlane.xlu0 %6210
    %6212 = vmax.xlane.f32.xlu0 %v6194
    %v6213 = vpop.xlane.xlu0 %6212
    %6214 = vmax.xlane.f32.xlu0 %v6195
    %v6215 = vpop.xlane.xlu0 %6214
    %6216 = vmax.xlane.f32.xlu0 %v6196
    %v6217 = vpop.xlane.xlu0 %6216
    %6218 = vmax.xlane.f32.xlu0 %v6197
    %v6219 = vpop.xlane.xlu0 %6218
    %6220 = vmax.xlane.f32.xlu0 %v6198
    %v6221 = vpop.xlane.xlu0 %6220
    %6222 = vmax.xlane.f32.xlu0 %v6199
    %v6223 = vpop.xlane.xlu0 %6222
    %6224 = vmax.xlane.f32.xlu0 %v6200
    %v6225 = vpop.xlane.xlu0 %6224
    %6226 = vmax.xlane.f32.xlu0 %v6201
    %v6227 = vpop.xlane.xlu0 %6226
    %6228 = vmax.xlane.f32.xlu0 %v6202
    %v6229 = vpop.xlane.xlu0 %6228
    %6230 = vmax.xlane.f32.xlu0 %v6203
    %v6231 = vpop.xlane.xlu0 %6230
    %6232 = vmax.xlane.f32.xlu0 %v6204
    %v6233 = vpop.xlane.xlu0 %6232
    %6234 = vmax.xlane.f32.xlu0 %v6205
    %v6235 = vpop.xlane.xlu0 %6234
    %6236 = vmax.xlane.f32.xlu0 %v6206
    %v6237 = vpop.xlane.xlu0 %6236
    %6238 = vmax.xlane.f32.xlu0 %v6207
    %v6239 = vpop.xlane.xlu0 %6238
    %v6240 = vsub.f32 %v6192, %v6209
    %v6241 = vsub.f32 %v6193, %v6211
    %v6242 = vsub.f32 %v6194, %v6213
    %v6243 = vsub.f32 %v6195, %v6215
    %v6244 = vsub.f32 %v6196, %v6217
    %v6245 = vsub.f32 %v6197, %v6219
    %v6246 = vsub.f32 %v6198, %v6221
    %v6247 = vsub.f32 %v6199, %v6223
    %v6248 = vsub.f32 %v6200, %v6225
    %v6249 = vsub.f32 %v6201, %v6227
    %v6250 = vsub.f32 %v6202, %v6229
    %v6251 = vsub.f32 %v6203, %v6231
    %v6252 = vsub.f32 %v6204, %v6233
    %v6253 = vsub.f32 %v6205, %v6235
    %v6254 = vsub.f32 %v6206, %v6237
    %v6255 = vsub.f32 %v6207, %v6239
    %v6256 = vmul.f32 %v6240, 1.442695
    %v6257 = vpow.pop %v6256
    %v6258 = vmul.f32 %v6241, 1.442695
    %v6259 = vpow.pop %v6258
    %v6260 = vmul.f32 %v6242, 1.442695
    %v6261 = vpow.pop %v6260
    %v6262 = vmul.f32 %v6243, 1.442695
    %v6263 = vpow.pop %v6262
    %v6264 = vmul.f32 %v6244, 1.442695
    %v6265 = vpow.pop %v6264
    %v6266 = vmul.f32 %v6245, 1.442695
    %v6267 = vpow.pop %v6266
    %v6268 = vmul.f32 %v6246, 1.442695
    %v6269 = vpow.pop %v6268
    %v6270 = vmul.f32 %v6247, 1.442695
    %v6271 = vpow.pop %v6270
    %v6272 = vmul.f32 %v6248, 1.442695
    %v6273 = vpow.pop %v6272
    %v6274 = vmul.f32 %v6249, 1.442695
    %v6275 = vpow.pop %v6274
    %v6276 = vmul.f32 %v6250, 1.442695
    %v6277 = vpow.pop %v6276
    %v6278 = vmul.f32 %v6251, 1.442695
    %v6279 = vpow.pop %v6278
    %v6280 = vmul.f32 %v6252, 1.442695
    %v6281 = vpow.pop %v6280
    %v6282 = vmul.f32 %v6253, 1.442695
    %v6283 = vpow.pop %v6282
    %v6284 = vmul.f32 %v6254, 1.442695
    %v6285 = vpow.pop %v6284
    %v6286 = vmul.f32 %v6255, 1.442695
    %v6287 = vpow.pop %v6286
    %v6288 = vmul.f32 %v6257, %v57
    %v6289 = vmul.f32 %v6259, %v58
    %v6290 = vmul.f32 %v6261, %v59
    %v6291 = vmul.f32 %v6263, %v60
    %v6292 = vmul.f32 %v6265, %v61
    %v6293 = vmul.f32 %v6267, %v62
    %v6294 = vmul.f32 %v6269, %v63
    %v6295 = vmul.f32 %v6271, %v64
    %v6296 = vmul.f32 %v6273, %v65
    %v6297 = vmul.f32 %v6275, %v66
    %v6298 = vmul.f32 %v6277, %v67
    %v6299 = vmul.f32 %v6279, %v68
    %v6300 = vmul.f32 %v6281, %v69
    %v6301 = vmul.f32 %v6283, %v70
    %v6302 = vmul.f32 %v6285, %v71
    %v6303 = vmul.f32 %v6287, %v72
    %6304 = vadd.xlane.f32.xlu0 %v6288
    %v6305 = vpop.xlane.xlu0 %6304
    %6306 = vadd.xlane.f32.xlu0 %v6289
    %v6307 = vpop.xlane.xlu0 %6306
    %6308 = vadd.xlane.f32.xlu0 %v6290
    %v6309 = vpop.xlane.xlu0 %6308
    %6310 = vadd.xlane.f32.xlu0 %v6291
    %v6311 = vpop.xlane.xlu0 %6310
    %6312 = vadd.xlane.f32.xlu0 %v6292
    %v6313 = vpop.xlane.xlu0 %6312
    %6314 = vadd.xlane.f32.xlu0 %v6293
    %v6315 = vpop.xlane.xlu0 %6314
    %6316 = vadd.xlane.f32.xlu0 %v6294
    %v6317 = vpop.xlane.xlu0 %6316
    %6318 = vadd.xlane.f32.xlu0 %v6295
    %v6319 = vpop.xlane.xlu0 %6318
    %6320 = vadd.xlane.f32.xlu0 %v6296
    %v6321 = vpop.xlane.xlu0 %6320
    %6322 = vadd.xlane.f32.xlu0 %v6297
    %v6323 = vpop.xlane.xlu0 %6322
    %6324 = vadd.xlane.f32.xlu0 %v6298
    %v6325 = vpop.xlane.xlu0 %6324
    %6326 = vadd.xlane.f32.xlu0 %v6299
    %v6327 = vpop.xlane.xlu0 %6326
    %6328 = vadd.xlane.f32.xlu0 %v6300
    %v6329 = vpop.xlane.xlu0 %6328
    %6330 = vadd.xlane.f32.xlu0 %v6301
    %v6331 = vpop.xlane.xlu0 %6330
    %6332 = vadd.xlane.f32.xlu0 %v6302
    %v6333 = vpop.xlane.xlu0 %6332
    %6334 = vadd.xlane.f32.xlu0 %v6303
    %v6335 = vpop.xlane.xlu0 %6334
    %v6336 = vmax.f32 %v6305, 1e-30
    %v6337 = vmax.f32 %v6307, 1e-30
    %v6338 = vmax.f32 %v6309, 1e-30
    %v6339 = vmax.f32 %v6311, 1e-30
    %v6340 = vmax.f32 %v6313, 1e-30
    %v6341 = vmax.f32 %v6315, 1e-30
    %v6342 = vmax.f32 %v6317, 1e-30
    %v6343 = vmax.f32 %v6319, 1e-30
    %v6344 = vmax.f32 %v6321, 1e-30
    %v6345 = vmax.f32 %v6323, 1e-30
    %v6346 = vmax.f32 %v6325, 1e-30
    %v6347 = vmax.f32 %v6327, 1e-30
    %v6348 = vmax.f32 %v6329, 1e-30
    %v6349 = vmax.f32 %v6331, 1e-30
    %v6350 = vmax.f32 %v6333, 1e-30
    %v6351 = vmax.f32 %v6335, 1e-30
    %v6352 = vrcp.pop %v6336
    %v6353 = vmul.f32 1.0, %v6352
    %v6354 = vrcp.pop %v6337
    %v6355 = vmul.f32 1.0, %v6354
    %v6356 = vrcp.pop %v6338
    %v6357 = vmul.f32 1.0, %v6356
    %v6358 = vrcp.pop %v6339
    %v6359 = vmul.f32 1.0, %v6358
    %v6360 = vrcp.pop %v6340
    %v6361 = vmul.f32 1.0, %v6360
    %v6362 = vrcp.pop %v6341
    %v6363 = vmul.f32 1.0, %v6362
    %v6364 = vrcp.pop %v6342
    %v6365 = vmul.f32 1.0, %v6364
    %v6366 = vrcp.pop %v6343
    %v6367 = vmul.f32 1.0, %v6366
    %v6368 = vrcp.pop %v6344
    %v6369 = vmul.f32 1.0, %v6368
    %v6370 = vrcp.pop %v6345
    %v6371 = vmul.f32 1.0, %v6370
    %v6372 = vrcp.pop %v6346
    %v6373 = vmul.f32 1.0, %v6372
    %v6374 = vrcp.pop %v6347
    %v6375 = vmul.f32 1.0, %v6374
    %v6376 = vrcp.pop %v6348
    %v6377 = vmul.f32 1.0, %v6376
    %v6378 = vrcp.pop %v6349
    %v6379 = vmul.f32 1.0, %v6378
    %v6380 = vrcp.pop %v6350
    %v6381 = vmul.f32 1.0, %v6380
    %v6382 = vrcp.pop %v6351
    %v6383 = vmul.f32 1.0, %v6382
    %v6384 = vmul.f32 %v6288, %v6353
    %v6385 = vmul.f32 %v6289, %v6355
    %v6386 = vmul.f32 %v6290, %v6357
    %v6387 = vmul.f32 %v6291, %v6359
    %v6388 = vmul.f32 %v6292, %v6361
    %v6389 = vmul.f32 %v6293, %v6363
    %v6390 = vmul.f32 %v6294, %v6365
    %v6391 = vmul.f32 %v6295, %v6367
    %v6392 = vmul.f32 %v6296, %v6369
    %v6393 = vmul.f32 %v6297, %v6371
    %v6394 = vmul.f32 %v6298, %v6373
    %v6395 = vmul.f32 %v6299, %v6375
    %v6396 = vmul.f32 %v6300, %v6377
    %v6397 = vmul.f32 %v6301, %v6379
    %v6398 = vmul.f32 %v6302, %v6381
    %v6399 = vmul.f32 %v6303, %v6383
    %v6400 = vmul.f32 %v6384, 0.95
    %v6401 = vmul.f32 %v6385, 0.95
    %v6402 = vmul.f32 %v6386, 0.95
    %v6403 = vmul.f32 %v6387, 0.95
    %v6404 = vmul.f32 %v6388, 0.95
    %v6405 = vmul.f32 %v6389, 0.95
    %v6406 = vmul.f32 %v6390, 0.95
    %v6407 = vmul.f32 %v6391, 0.95
    %v6408 = vmul.f32 %v6392, 0.95
    %v6409 = vmul.f32 %v6393, 0.95
    %v6410 = vmul.f32 %v6394, 0.95
    %v6411 = vmul.f32 %v6395, 0.95
    %v6412 = vmul.f32 %v6396, 0.95
    %v6413 = vmul.f32 %v6397, 0.95
    %v6414 = vmul.f32 %v6398, 0.95
    %v6415 = vmul.f32 %v6399, 0.95
    %v6416 = vmul.f32 %v4043, 0.05
    %v6417 = vmul.f32 %v4044, 0.05
    %v6418 = vmul.f32 %v4045, 0.05
    %v6419 = vmul.f32 %v4046, 0.05
    %v6420 = vmul.f32 %v4047, 0.05
    %v6421 = vmul.f32 %v4048, 0.05
    %v6422 = vmul.f32 %v4049, 0.05
    %v6423 = vmul.f32 %v4050, 0.05
    %v6424 = vmul.f32 %v4051, 0.05
    %v6425 = vmul.f32 %v4052, 0.05
    %v6426 = vmul.f32 %v4053, 0.05
    %v6427 = vmul.f32 %v4054, 0.05
    %v6428 = vmul.f32 %v4055, 0.05
    %v6429 = vmul.f32 %v4056, 0.05
    %v6430 = vmul.f32 %v4057, 0.05
    %v6431 = vmul.f32 %v4058, 0.05
    %v6432 = vadd.f32 %v6400, %v6416
    %v6433 = vadd.f32 %v6401, %v6417
    %v6434 = vadd.f32 %v6402, %v6418
    %v6435 = vadd.f32 %v6403, %v6419
    %v6436 = vadd.f32 %v6404, %v6420
    %v6437 = vadd.f32 %v6405, %v6421
    %v6438 = vadd.f32 %v6406, %v6422
    %v6439 = vadd.f32 %v6407, %v6423
    %v6440 = vadd.f32 %v6408, %v6424
    %v6441 = vadd.f32 %v6409, %v6425
    %v6442 = vadd.f32 %v6410, %v6426
    %v6443 = vadd.f32 %v6411, %v6427
    %v6444 = vadd.f32 %v6412, %v6428
    %v6445 = vadd.f32 %v6413, %v6429
    %v6446 = vadd.f32 %v6414, %v6430
    %v6447 = vadd.f32 %v6415, %v6431
    %6448 = vset.pattern.permute.xlu0 1
    %6449 = vperm.xlu0 %6448, %v5798
    %v6450 = vpop.permute.xlu0 %6449
    %6452 = vset.pattern.permute.xlu0 1
    %6453 = vperm.xlu0 %6452, %v5803
    %v6454 = vpop.permute.xlu0 %6453
    %6456 = vset.pattern.permute.xlu0 1
    %6457 = vperm.xlu0 %6456, %v5808
    %v6458 = vpop.permute.xlu0 %6457
    %6460 = vset.pattern.permute.xlu0 1
    %6461 = vperm.xlu0 %6460, %v5813
    %v6462 = vpop.permute.xlu0 %6461
    %6464 = vset.pattern.permute.xlu0 1
    %6465 = vperm.xlu0 %6464, %v5818
    %v6466 = vpop.permute.xlu0 %6465
    %6468 = vset.pattern.permute.xlu0 1
    %6469 = vperm.xlu0 %6468, %v5823
    %v6470 = vpop.permute.xlu0 %6469
    %6472 = vset.pattern.permute.xlu0 1
    %6473 = vperm.xlu0 %6472, %v5828
    %v6474 = vpop.permute.xlu0 %6473
    %6476 = vset.pattern.permute.xlu0 1
    %6477 = vperm.xlu0 %6476, %v5833
    %v6478 = vpop.permute.xlu0 %6477
    %6480 = vset.pattern.permute.xlu0 1
    %6481 = vperm.xlu0 %6480, %v5838
    %v6482 = vpop.permute.xlu0 %6481
    %6484 = vset.pattern.permute.xlu0 1
    %6485 = vperm.xlu0 %6484, %v5843
    %v6486 = vpop.permute.xlu0 %6485
    %6488 = vset.pattern.permute.xlu0 1
    %6489 = vperm.xlu0 %6488, %v5848
    %v6490 = vpop.permute.xlu0 %6489
    %6492 = vset.pattern.permute.xlu0 1
    %6493 = vperm.xlu0 %6492, %v5853
    %v6494 = vpop.permute.xlu0 %6493
    %6496 = vset.pattern.permute.xlu0 1
    %6497 = vperm.xlu0 %6496, %v5858
    %v6498 = vpop.permute.xlu0 %6497
    %6500 = vset.pattern.permute.xlu0 1
    %6501 = vperm.xlu0 %6500, %v5863
    %v6502 = vpop.permute.xlu0 %6501
    %6504 = vset.pattern.permute.xlu0 1
    %6505 = vperm.xlu0 %6504, %v5868
    %v6506 = vpop.permute.xlu0 %6505
    %6508 = vset.pattern.permute.xlu0 1
    %6509 = vperm.xlu0 %6508, %v5873
    %v6510 = vpop.permute.xlu0 %6509
    %v6512 = vlaneseq
    %v6513 = vshrl.u32 %v6512, 7
    %v6514 = vsub.s32 3, %v6513
    %v6515 = vrot.slane %v5892, %v6514
    %v6516 = vadd.f32 %v6450, %v6515
    %v6517 = vadd.f32 %v6454, %v6515
    %v6518 = vadd.f32 %v6458, %v6515
    %v6519 = vadd.f32 %v6462, %v6515
    %v6520 = vadd.f32 %v6466, %v6515
    %v6521 = vadd.f32 %v6470, %v6515
    %v6522 = vadd.f32 %v6474, %v6515
    %v6523 = vadd.f32 %v6478, %v6515
    %v6524 = vadd.f32 %v6482, %v6515
    %v6525 = vadd.f32 %v6486, %v6515
    %v6526 = vadd.f32 %v6490, %v6515
    %v6527 = vadd.f32 %v6494, %v6515
    %v6528 = vadd.f32 %v6498, %v6515
    %v6529 = vadd.f32 %v6502, %v6515
    %v6530 = vadd.f32 %v6506, %v6515
    %v6531 = vadd.f32 %v6510, %v6515
    %s6532 = sld [smem:[#allocation2 + $0x11]]
    %v6533 = vstv %s6532
    %v6534 = vmul.f32 %v137, %v6533
    %v6535 = vmul.f32 %v138, %v6533
    %v6536 = vmul.f32 %v139, %v6533
    %v6537 = vmul.f32 %v140, %v6533
    %v6538 = vmul.f32 %v141, %v6533
    %v6539 = vmul.f32 %v142, %v6533
    %v6540 = vmul.f32 %v143, %v6533
    %v6541 = vmul.f32 %v144, %v6533
    %v6542 = vmul.f32 %v145, %v6533
    %v6543 = vmul.f32 %v146, %v6533
    %v6544 = vmul.f32 %v147, %v6533
    %v6545 = vmul.f32 %v148, %v6533
    %v6546 = vmul.f32 %v149, %v6533
    %v6547 = vmul.f32 %v150, %v6533
    %v6548 = vmul.f32 %v151, %v6533
    %v6549 = vmul.f32 %v152, %v6533
    %v6550 = vadd.f32 %v6516, %v6534
    %v6551 = vadd.f32 %v6517, %v6535
    %v6552 = vadd.f32 %v6518, %v6536
    %v6553 = vadd.f32 %v6519, %v6537
    %v6554 = vadd.f32 %v6520, %v6538
    %v6555 = vadd.f32 %v6521, %v6539
    %v6556 = vadd.f32 %v6522, %v6540
    %v6557 = vadd.f32 %v6523, %v6541
    %v6558 = vadd.f32 %v6524, %v6542
    %v6559 = vadd.f32 %v6525, %v6543
    %v6560 = vadd.f32 %v6526, %v6544
    %v6561 = vadd.f32 %v6527, %v6545
    %v6562 = vadd.f32 %v6528, %v6546
    %v6563 = vadd.f32 %v6529, %v6547
    %v6564 = vadd.f32 %v6530, %v6548
    %v6565 = vadd.f32 %v6531, %v6549
    %s6566 = sld [smem:[#allocation2 + $0x13]]
    %v6567 = vstv %s6566
    %v6568 = vmul.f32 %v185, %v6567
    %v6569 = vmul.f32 %v186, %v6567
    %v6570 = vmul.f32 %v187, %v6567
    %v6571 = vmul.f32 %v188, %v6567
    %v6572 = vmul.f32 %v189, %v6567
    %v6573 = vmul.f32 %v190, %v6567
    %v6574 = vmul.f32 %v191, %v6567
    %v6575 = vmul.f32 %v192, %v6567
    %v6576 = vmul.f32 %v193, %v6567
    %v6577 = vmul.f32 %v194, %v6567
    %v6578 = vmul.f32 %v195, %v6567
    %v6579 = vmul.f32 %v196, %v6567
    %v6580 = vmul.f32 %v197, %v6567
    %v6581 = vmul.f32 %v198, %v6567
    %v6582 = vmul.f32 %v199, %v6567
    %v6583 = vmul.f32 %v200, %v6567
    %v6584 = vadd.f32 %v6550, %v6568
    %v6585 = vadd.f32 %v6551, %v6569
    %v6586 = vadd.f32 %v6552, %v6570
    %v6587 = vadd.f32 %v6553, %v6571
    %v6588 = vadd.f32 %v6554, %v6572
    %v6589 = vadd.f32 %v6555, %v6573
    %v6590 = vadd.f32 %v6556, %v6574
    %v6591 = vadd.f32 %v6557, %v6575
    %v6592 = vadd.f32 %v6558, %v6576
    %v6593 = vadd.f32 %v6559, %v6577
    %v6594 = vadd.f32 %v6560, %v6578
    %v6595 = vadd.f32 %v6561, %v6579
    %v6596 = vadd.f32 %v6562, %v6580
    %v6597 = vadd.f32 %v6563, %v6581
    %v6598 = vadd.f32 %v6564, %v6582
    %v6599 = vadd.f32 %v6565, %v6583
    %s6600 = sld [smem:[#allocation2 + $0x15]]
    %v6601 = vstv %s6600
    %v6602 = vmul.f32 %v233, %v6601
    %v6603 = vmul.f32 %v234, %v6601
    %v6604 = vmul.f32 %v235, %v6601
    %v6605 = vmul.f32 %v236, %v6601
    %v6606 = vmul.f32 %v237, %v6601
    %v6607 = vmul.f32 %v238, %v6601
    %v6608 = vmul.f32 %v239, %v6601
    %v6609 = vmul.f32 %v240, %v6601
    %v6610 = vmul.f32 %v241, %v6601
    %v6611 = vmul.f32 %v242, %v6601
    %v6612 = vmul.f32 %v243, %v6601
    %v6613 = vmul.f32 %v244, %v6601
    %v6614 = vmul.f32 %v245, %v6601
    %v6615 = vmul.f32 %v246, %v6601
    %v6616 = vmul.f32 %v247, %v6601
    %v6617 = vmul.f32 %v248, %v6601
    %v6618 = vadd.f32 %v6584, %v6602
    %v6619 = vadd.f32 %v6585, %v6603
    %v6620 = vadd.f32 %v6586, %v6604
    %v6621 = vadd.f32 %v6587, %v6605
    %v6622 = vadd.f32 %v6588, %v6606
    %v6623 = vadd.f32 %v6589, %v6607
    %v6624 = vadd.f32 %v6590, %v6608
    %v6625 = vadd.f32 %v6591, %v6609
    %v6626 = vadd.f32 %v6592, %v6610
    %v6627 = vadd.f32 %v6593, %v6611
    %v6628 = vadd.f32 %v6594, %v6612
    %v6629 = vadd.f32 %v6595, %v6613
    %v6630 = vadd.f32 %v6596, %v6614
    %v6631 = vadd.f32 %v6597, %v6615
    %v6632 = vadd.f32 %v6598, %v6616
    %v6633 = vadd.f32 %v6599, %v6617
    %s6634 = sld [smem:[#allocation2 + $0x17]]
    %v6635 = vstv %s6634
    %v6636 = vmul.f32 %v281, %v6635
    %v6637 = vmul.f32 %v282, %v6635
    %v6638 = vmul.f32 %v283, %v6635
    %v6639 = vmul.f32 %v284, %v6635
    %v6640 = vmul.f32 %v285, %v6635
    %v6641 = vmul.f32 %v286, %v6635
    %v6642 = vmul.f32 %v287, %v6635
    %v6643 = vmul.f32 %v288, %v6635
    %v6644 = vmul.f32 %v289, %v6635
    %v6645 = vmul.f32 %v290, %v6635
    %v6646 = vmul.f32 %v291, %v6635
    %v6647 = vmul.f32 %v292, %v6635
    %v6648 = vmul.f32 %v293, %v6635
    %v6649 = vmul.f32 %v294, %v6635
    %v6650 = vmul.f32 %v295, %v6635
    %v6651 = vmul.f32 %v296, %v6635
    %v6652 = vadd.f32 %v6618, %v6636
    %v6653 = vadd.f32 %v6619, %v6637
    %v6654 = vadd.f32 %v6620, %v6638
    %v6655 = vadd.f32 %v6621, %v6639
    %v6656 = vadd.f32 %v6622, %v6640
    %v6657 = vadd.f32 %v6623, %v6641
    %v6658 = vadd.f32 %v6624, %v6642
    %v6659 = vadd.f32 %v6625, %v6643
    %v6660 = vadd.f32 %v6626, %v6644
    %v6661 = vadd.f32 %v6627, %v6645
    %v6662 = vadd.f32 %v6628, %v6646
    %v6663 = vadd.f32 %v6629, %v6647
    %v6664 = vadd.f32 %v6630, %v6648
    %v6665 = vadd.f32 %v6631, %v6649
    %v6666 = vadd.f32 %v6632, %v6650
    %v6667 = vadd.f32 %v6633, %v6651
    %vm6668 = vcmp.gt.f32.partialorder %v6652, 0.0
    %vm6669 = vcmp.gt.f32.partialorder %v6653, 0.0
    %vm6670 = vcmp.gt.f32.partialorder %v6654, 0.0
    %vm6671 = vcmp.gt.f32.partialorder %v6655, 0.0
    %vm6672 = vcmp.gt.f32.partialorder %v6656, 0.0
    %vm6673 = vcmp.gt.f32.partialorder %v6657, 0.0
    %vm6674 = vcmp.gt.f32.partialorder %v6658, 0.0
    %vm6675 = vcmp.gt.f32.partialorder %v6659, 0.0
    %vm6676 = vcmp.gt.f32.partialorder %v6660, 0.0
    %vm6677 = vcmp.gt.f32.partialorder %v6661, 0.0
    %vm6678 = vcmp.gt.f32.partialorder %v6662, 0.0
    %vm6679 = vcmp.gt.f32.partialorder %v6663, 0.0
    %vm6680 = vcmp.gt.f32.partialorder %v6664, 0.0
    %vm6681 = vcmp.gt.f32.partialorder %v6665, 0.0
    %vm6682 = vcmp.gt.f32.partialorder %v6666, 0.0
    %vm6683 = vcmp.gt.f32.partialorder %v6667, 0.0
    %v6684 = vmul.f32 %v6652, 0.2
    %v6685 = vmul.f32 %v6653, 0.2
    %v6686 = vmul.f32 %v6654, 0.2
    %v6687 = vmul.f32 %v6655, 0.2
    %v6688 = vmul.f32 %v6656, 0.2
    %v6689 = vmul.f32 %v6657, 0.2
    %v6690 = vmul.f32 %v6658, 0.2
    %v6691 = vmul.f32 %v6659, 0.2
    %v6692 = vmul.f32 %v6660, 0.2
    %v6693 = vmul.f32 %v6661, 0.2
    %v6694 = vmul.f32 %v6662, 0.2
    %v6695 = vmul.f32 %v6663, 0.2
    %v6696 = vmul.f32 %v6664, 0.2
    %v6697 = vmul.f32 %v6665, 0.2
    %v6698 = vmul.f32 %v6666, 0.2
    %v6699 = vmul.f32 %v6667, 0.2
    %v6700 = vsel %vm6668, %v6652, %v6684
    %v6701 = vsel %vm6669, %v6653, %v6685
    %v6702 = vsel %vm6670, %v6654, %v6686
    %v6703 = vsel %vm6671, %v6655, %v6687
    %v6704 = vsel %vm6672, %v6656, %v6688
    %v6705 = vsel %vm6673, %v6657, %v6689
    %v6706 = vsel %vm6674, %v6658, %v6690
    %v6707 = vsel %vm6675, %v6659, %v6691
    %v6708 = vsel %vm6676, %v6660, %v6692
    %v6709 = vsel %vm6677, %v6661, %v6693
    %v6710 = vsel %vm6678, %v6662, %v6694
    %v6711 = vsel %vm6679, %v6663, %v6695
    %v6712 = vsel %vm6680, %v6664, %v6696
    %v6713 = vsel %vm6681, %v6665, %v6697
    %v6714 = vsel %vm6682, %v6666, %v6698
    %v6715 = vsel %vm6683, %v6667, %v6699
    %v6716 = vsel %vm89, %v6700, -1e+30
    %v6717 = vsel %vm90, %v6701, -1e+30
    %v6718 = vsel %vm91, %v6702, -1e+30
    %v6719 = vsel %vm92, %v6703, -1e+30
    %v6720 = vsel %vm93, %v6704, -1e+30
    %v6721 = vsel %vm94, %v6705, -1e+30
    %v6722 = vsel %vm95, %v6706, -1e+30
    %v6723 = vsel %vm96, %v6707, -1e+30
    %v6724 = vsel %vm97, %v6708, -1e+30
    %v6725 = vsel %vm98, %v6709, -1e+30
    %v6726 = vsel %vm99, %v6710, -1e+30
    %v6727 = vsel %vm100, %v6711, -1e+30
    %v6728 = vsel %vm101, %v6712, -1e+30
    %v6729 = vsel %vm102, %v6713, -1e+30
    %v6730 = vsel %vm103, %v6714, -1e+30
    %v6731 = vsel %vm104, %v6715, -1e+30
    %6732 = vmax.xlane.f32.xlu0 %v6716
    %v6733 = vpop.xlane.xlu0 %6732
    %6734 = vmax.xlane.f32.xlu0 %v6717
    %v6735 = vpop.xlane.xlu0 %6734
    %6736 = vmax.xlane.f32.xlu0 %v6718
    %v6737 = vpop.xlane.xlu0 %6736
    %6738 = vmax.xlane.f32.xlu0 %v6719
    %v6739 = vpop.xlane.xlu0 %6738
    %6740 = vmax.xlane.f32.xlu0 %v6720
    %v6741 = vpop.xlane.xlu0 %6740
    %6742 = vmax.xlane.f32.xlu0 %v6721
    %v6743 = vpop.xlane.xlu0 %6742
    %6744 = vmax.xlane.f32.xlu0 %v6722
    %v6745 = vpop.xlane.xlu0 %6744
    %6746 = vmax.xlane.f32.xlu0 %v6723
    %v6747 = vpop.xlane.xlu0 %6746
    %6748 = vmax.xlane.f32.xlu0 %v6724
    %v6749 = vpop.xlane.xlu0 %6748
    %6750 = vmax.xlane.f32.xlu0 %v6725
    %v6751 = vpop.xlane.xlu0 %6750
    %6752 = vmax.xlane.f32.xlu0 %v6726
    %v6753 = vpop.xlane.xlu0 %6752
    %6754 = vmax.xlane.f32.xlu0 %v6727
    %v6755 = vpop.xlane.xlu0 %6754
    %6756 = vmax.xlane.f32.xlu0 %v6728
    %v6757 = vpop.xlane.xlu0 %6756
    %6758 = vmax.xlane.f32.xlu0 %v6729
    %v6759 = vpop.xlane.xlu0 %6758
    %6760 = vmax.xlane.f32.xlu0 %v6730
    %v6761 = vpop.xlane.xlu0 %6760
    %6762 = vmax.xlane.f32.xlu0 %v6731
    %v6763 = vpop.xlane.xlu0 %6762
    %v6764 = vsub.f32 %v6716, %v6733
    %v6765 = vsub.f32 %v6717, %v6735
    %v6766 = vsub.f32 %v6718, %v6737
    %v6767 = vsub.f32 %v6719, %v6739
    %v6768 = vsub.f32 %v6720, %v6741
    %v6769 = vsub.f32 %v6721, %v6743
    %v6770 = vsub.f32 %v6722, %v6745
    %v6771 = vsub.f32 %v6723, %v6747
    %v6772 = vsub.f32 %v6724, %v6749
    %v6773 = vsub.f32 %v6725, %v6751
    %v6774 = vsub.f32 %v6726, %v6753
    %v6775 = vsub.f32 %v6727, %v6755
    %v6776 = vsub.f32 %v6728, %v6757
    %v6777 = vsub.f32 %v6729, %v6759
    %v6778 = vsub.f32 %v6730, %v6761
    %v6779 = vsub.f32 %v6731, %v6763
    %v6780 = vmul.f32 %v6764, 1.442695
    %v6781 = vpow.pop %v6780
    %v6782 = vmul.f32 %v6765, 1.442695
    %v6783 = vpow.pop %v6782
    %v6784 = vmul.f32 %v6766, 1.442695
    %v6785 = vpow.pop %v6784
    %v6786 = vmul.f32 %v6767, 1.442695
    %v6787 = vpow.pop %v6786
    %v6788 = vmul.f32 %v6768, 1.442695
    %v6789 = vpow.pop %v6788
    %v6790 = vmul.f32 %v6769, 1.442695
    %v6791 = vpow.pop %v6790
    %v6792 = vmul.f32 %v6770, 1.442695
    %v6793 = vpow.pop %v6792
    %v6794 = vmul.f32 %v6771, 1.442695
    %v6795 = vpow.pop %v6794
    %v6796 = vmul.f32 %v6772, 1.442695
    %v6797 = vpow.pop %v6796
    %v6798 = vmul.f32 %v6773, 1.442695
    %v6799 = vpow.pop %v6798
    %v6800 = vmul.f32 %v6774, 1.442695
    %v6801 = vpow.pop %v6800
    %v6802 = vmul.f32 %v6775, 1.442695
    %v6803 = vpow.pop %v6802
    %v6804 = vmul.f32 %v6776, 1.442695
    %v6805 = vpow.pop %v6804
    %v6806 = vmul.f32 %v6777, 1.442695
    %v6807 = vpow.pop %v6806
    %v6808 = vmul.f32 %v6778, 1.442695
    %v6809 = vpow.pop %v6808
    %v6810 = vmul.f32 %v6779, 1.442695
    %v6811 = vpow.pop %v6810
    %v6812 = vmul.f32 %v6781, %v57
    %v6813 = vmul.f32 %v6783, %v58
    %v6814 = vmul.f32 %v6785, %v59
    %v6815 = vmul.f32 %v6787, %v60
    %v6816 = vmul.f32 %v6789, %v61
    %v6817 = vmul.f32 %v6791, %v62
    %v6818 = vmul.f32 %v6793, %v63
    %v6819 = vmul.f32 %v6795, %v64
    %v6820 = vmul.f32 %v6797, %v65
    %v6821 = vmul.f32 %v6799, %v66
    %v6822 = vmul.f32 %v6801, %v67
    %v6823 = vmul.f32 %v6803, %v68
    %v6824 = vmul.f32 %v6805, %v69
    %v6825 = vmul.f32 %v6807, %v70
    %v6826 = vmul.f32 %v6809, %v71
    %v6827 = vmul.f32 %v6811, %v72
    %6828 = vadd.xlane.f32.xlu0 %v6812
    %v6829 = vpop.xlane.xlu0 %6828
    %6830 = vadd.xlane.f32.xlu0 %v6813
    %v6831 = vpop.xlane.xlu0 %6830
    %6832 = vadd.xlane.f32.xlu0 %v6814
    %v6833 = vpop.xlane.xlu0 %6832
    %6834 = vadd.xlane.f32.xlu0 %v6815
    %v6835 = vpop.xlane.xlu0 %6834
    %6836 = vadd.xlane.f32.xlu0 %v6816
    %v6837 = vpop.xlane.xlu0 %6836
    %6838 = vadd.xlane.f32.xlu0 %v6817
    %v6839 = vpop.xlane.xlu0 %6838
    %6840 = vadd.xlane.f32.xlu0 %v6818
    %v6841 = vpop.xlane.xlu0 %6840
    %6842 = vadd.xlane.f32.xlu0 %v6819
    %v6843 = vpop.xlane.xlu0 %6842
    %6844 = vadd.xlane.f32.xlu0 %v6820
    %v6845 = vpop.xlane.xlu0 %6844
    %6846 = vadd.xlane.f32.xlu0 %v6821
    %v6847 = vpop.xlane.xlu0 %6846
    %6848 = vadd.xlane.f32.xlu0 %v6822
    %v6849 = vpop.xlane.xlu0 %6848
    %6850 = vadd.xlane.f32.xlu0 %v6823
    %v6851 = vpop.xlane.xlu0 %6850
    %6852 = vadd.xlane.f32.xlu0 %v6824
    %v6853 = vpop.xlane.xlu0 %6852
    %6854 = vadd.xlane.f32.xlu0 %v6825
    %v6855 = vpop.xlane.xlu0 %6854
    %6856 = vadd.xlane.f32.xlu0 %v6826
    %v6857 = vpop.xlane.xlu0 %6856
    %6858 = vadd.xlane.f32.xlu0 %v6827
    %v6859 = vpop.xlane.xlu0 %6858
    %v6860 = vmax.f32 %v6829, 1e-30
    %v6861 = vmax.f32 %v6831, 1e-30
    %v6862 = vmax.f32 %v6833, 1e-30
    %v6863 = vmax.f32 %v6835, 1e-30
    %v6864 = vmax.f32 %v6837, 1e-30
    %v6865 = vmax.f32 %v6839, 1e-30
    %v6866 = vmax.f32 %v6841, 1e-30
    %v6867 = vmax.f32 %v6843, 1e-30
    %v6868 = vmax.f32 %v6845, 1e-30
    %v6869 = vmax.f32 %v6847, 1e-30
    %v6870 = vmax.f32 %v6849, 1e-30
    %v6871 = vmax.f32 %v6851, 1e-30
    %v6872 = vmax.f32 %v6853, 1e-30
    %v6873 = vmax.f32 %v6855, 1e-30
    %v6874 = vmax.f32 %v6857, 1e-30
    %v6875 = vmax.f32 %v6859, 1e-30
    %v6876 = vrcp.pop %v6860
    %v6877 = vmul.f32 1.0, %v6876
    %v6878 = vrcp.pop %v6861
    %v6879 = vmul.f32 1.0, %v6878
    %v6880 = vrcp.pop %v6862
    %v6881 = vmul.f32 1.0, %v6880
    %v6882 = vrcp.pop %v6863
    %v6883 = vmul.f32 1.0, %v6882
    %v6884 = vrcp.pop %v6864
    %v6885 = vmul.f32 1.0, %v6884
    %v6886 = vrcp.pop %v6865
    %v6887 = vmul.f32 1.0, %v6886
    %v6888 = vrcp.pop %v6866
    %v6889 = vmul.f32 1.0, %v6888
    %v6890 = vrcp.pop %v6867
    %v6891 = vmul.f32 1.0, %v6890
    %v6892 = vrcp.pop %v6868
    %v6893 = vmul.f32 1.0, %v6892
    %v6894 = vrcp.pop %v6869
    %v6895 = vmul.f32 1.0, %v6894
    %v6896 = vrcp.pop %v6870
    %v6897 = vmul.f32 1.0, %v6896
    %v6898 = vrcp.pop %v6871
    %v6899 = vmul.f32 1.0, %v6898
    %v6900 = vrcp.pop %v6872
    %v6901 = vmul.f32 1.0, %v6900
    %v6902 = vrcp.pop %v6873
    %v6903 = vmul.f32 1.0, %v6902
    %v6904 = vrcp.pop %v6874
    %v6905 = vmul.f32 1.0, %v6904
    %v6906 = vrcp.pop %v6875
    %v6907 = vmul.f32 1.0, %v6906
    %v6908 = vmul.f32 %v6812, %v6877
    %v6909 = vmul.f32 %v6813, %v6879
    %v6910 = vmul.f32 %v6814, %v6881
    %v6911 = vmul.f32 %v6815, %v6883
    %v6912 = vmul.f32 %v6816, %v6885
    %v6913 = vmul.f32 %v6817, %v6887
    %v6914 = vmul.f32 %v6818, %v6889
    %v6915 = vmul.f32 %v6819, %v6891
    %v6916 = vmul.f32 %v6820, %v6893
    %v6917 = vmul.f32 %v6821, %v6895
    %v6918 = vmul.f32 %v6822, %v6897
    %v6919 = vmul.f32 %v6823, %v6899
    %v6920 = vmul.f32 %v6824, %v6901
    %v6921 = vmul.f32 %v6825, %v6903
    %v6922 = vmul.f32 %v6826, %v6905
    %v6923 = vmul.f32 %v6827, %v6907
    %v6924 = vmul.f32 %v6908, 0.95
    %v6925 = vmul.f32 %v6909, 0.95
    %v6926 = vmul.f32 %v6910, 0.95
    %v6927 = vmul.f32 %v6911, 0.95
    %v6928 = vmul.f32 %v6912, 0.95
    %v6929 = vmul.f32 %v6913, 0.95
    %v6930 = vmul.f32 %v6914, 0.95
    %v6931 = vmul.f32 %v6915, 0.95
    %v6932 = vmul.f32 %v6916, 0.95
    %v6933 = vmul.f32 %v6917, 0.95
    %v6934 = vmul.f32 %v6918, 0.95
    %v6935 = vmul.f32 %v6919, 0.95
    %v6936 = vmul.f32 %v6920, 0.95
    %v6937 = vmul.f32 %v6921, 0.95
    %v6938 = vmul.f32 %v6922, 0.95
    %v6939 = vmul.f32 %v6923, 0.95
    %v6940 = vmul.f32 %v4792, 0.05
    %v6941 = vmul.f32 %v4793, 0.05
    %v6942 = vmul.f32 %v4794, 0.05
    %v6943 = vmul.f32 %v4795, 0.05
    %v6944 = vmul.f32 %v4796, 0.05
    %v6945 = vmul.f32 %v4797, 0.05
    %v6946 = vmul.f32 %v4798, 0.05
    %v6947 = vmul.f32 %v4799, 0.05
    %v6948 = vmul.f32 %v4800, 0.05
    %v6949 = vmul.f32 %v4801, 0.05
    %v6950 = vmul.f32 %v4802, 0.05
    %v6951 = vmul.f32 %v4803, 0.05
    %v6952 = vmul.f32 %v4804, 0.05
    %v6953 = vmul.f32 %v4805, 0.05
    %v6954 = vmul.f32 %v4806, 0.05
    %v6955 = vmul.f32 %v4807, 0.05
    %v6956 = vadd.f32 %v6924, %v6940
    %v6957 = vadd.f32 %v6925, %v6941
    %v6958 = vadd.f32 %v6926, %v6942
    %v6959 = vadd.f32 %v6927, %v6943
    %v6960 = vadd.f32 %v6928, %v6944
    %v6961 = vadd.f32 %v6929, %v6945
    %v6962 = vadd.f32 %v6930, %v6946
    %v6963 = vadd.f32 %v6931, %v6947
    %v6964 = vadd.f32 %v6932, %v6948
    %v6965 = vadd.f32 %v6933, %v6949
    %v6966 = vadd.f32 %v6934, %v6950
    %v6967 = vadd.f32 %v6935, %v6951
    %v6968 = vadd.f32 %v6936, %v6952
    %v6969 = vadd.f32 %v6937, %v6953
    %v6970 = vadd.f32 %v6938, %v6954
    %v6971 = vadd.f32 %v6939, %v6955
    %6972 = vrot.lane.b32.xlu0 %v5592, 80
    %v6973 = vpop.permute.xlu0 %6972
    %6974 = vrot.lane.b32.xlu0 %v5597, 80
    %v6975 = vpop.permute.xlu0 %6974
    %6976 = vrot.lane.b32.xlu0 %v5602, 80
    %v6977 = vpop.permute.xlu0 %6976
    %6978 = vrot.lane.b32.xlu0 %v5607, 80
    %v6979 = vpop.permute.xlu0 %6978
    %6980 = vrot.lane.b32.xlu0 %v5612, 80
    %v6981 = vpop.permute.xlu0 %6980
    %6982 = vrot.lane.b32.xlu0 %v5617, 80
    %v6983 = vpop.permute.xlu0 %6982
    %6984 = vrot.lane.b32.xlu0 %v5622, 80
    %v6985 = vpop.permute.xlu0 %6984
    %6986 = vrot.lane.b32.xlu0 %v5627, 80
    %v6987 = vpop.permute.xlu0 %6986
    %6988 = vrot.lane.b32.xlu0 %v5632, 80
    %v6989 = vpop.permute.xlu0 %6988
    %6990 = vrot.lane.b32.xlu0 %v5637, 80
    %v6991 = vpop.permute.xlu0 %6990
    %6992 = vrot.lane.b32.xlu0 %v5642, 80
    %v6993 = vpop.permute.xlu0 %6992
    %6994 = vrot.lane.b32.xlu0 %v5647, 80
    %v6995 = vpop.permute.xlu0 %6994
    %6996 = vrot.lane.b32.xlu0 %v5652, 80
    %v6997 = vpop.permute.xlu0 %6996
    %6998 = vrot.lane.b32.xlu0 %v5657, 80
    %v6999 = vpop.permute.xlu0 %6998
    %7000 = vrot.lane.b32.xlu0 %v5662, 80
    %v7001 = vpop.permute.xlu0 %7000
    %7002 = vrot.lane.b32.xlu0 %v5667, 80
    %v7003 = vpop.permute.xlu0 %7002
    %7020 = vmatprep.subr.mxu0 0.0
    %7021 = vmatpush1.msra.mxu0 %v6973
    %7022 = vmatprep.subr.mxu0 0.0
    %7023 = vmatpush1.msra.mxu0 %v6975
    %7024 = vmatprep.subr.mxu0 0.0
    %7025 = vmatpush1.msra.mxu0 %v6977
    %7026 = vmatprep.subr.mxu0 0.0
    %7027 = vmatpush1.msra.mxu0 %v6979
    %7028 = vmatprep.subr.mxu0 0.0
    %7029 = vmatpush1.msra.mxu0 %v6981
    %7030 = vmatprep.subr.mxu0 0.0
    %7031 = vmatpush1.msra.mxu0 %v6983
    %7032 = vmatprep.subr.mxu0 0.0
    %7033 = vmatpush1.msra.mxu0 %v6985
    %7034 = vmatprep.subr.mxu0 0.0
    %7035 = vmatpush1.msra.mxu0 %v6987
    %7036 = vmatprep.subr.mxu0 0.0
    %7037 = vmatpush1.msra.mxu0 %v6989
    %7038 = vmatprep.subr.mxu0 0.0
    %7039 = vmatpush1.msra.mxu0 %v6991
    %7040 = vmatprep.subr.mxu0 0.0
    %7041 = vmatpush1.msra.mxu0 %v6993
    %7042 = vmatprep.subr.mxu0 0.0
    %7043 = vmatpush1.msra.mxu0 %v6995
    %7044 = vmatprep.subr.mxu0 0.0
    %7045 = vmatpush1.msra.mxu0 %v6997
    %7046 = vmatprep.subr.mxu0 0.0
    %7047 = vmatpush1.msra.mxu0 %v6999
    %7048 = vmatprep.subr.mxu0 0.0
    %7049 = vmatpush1.msra.mxu0 %v7001
    %7050 = vmatprep.subr.mxu0 0.0
    %7051 = vmatpush1.msra.mxu0 %v7003
    %7052 = vmatprep.subr.mxu0 0.0
    %7053 = vmatpush1.msra.mxu0 0.0
    %7054 = vmatprep.subr.mxu0 0.0
    %7055 = vmatpush1.msra.mxu0 0.0
    %7056 = vmatprep.subr.mxu0 0.0
    %7057 = vmatpush1.msra.mxu0 0.0
    %7058 = vmatprep.subr.mxu0 0.0
    %7059 = vmatpush1.msra.mxu0 0.0
    %7060 = vmatprep.subr.mxu0 0.0
    %7061 = vmatpush1.msra.mxu0 0.0
    %7062 = vmatprep.subr.mxu0 0.0
    %7063 = vmatpush1.msra.mxu0 0.0
    %7064 = vmatprep.subr.mxu0 0.0
    %7065 = vmatpush1.msra.mxu0 0.0
    %7066 = vmatprep.subr.mxu0 0.0
    %7067 = vmatpush1.msra.mxu0 0.0
    %7068 = vmatprep.subr.mxu0 0.0
    %7069 = vmatpush1.msra.mxu0 0.0
    %7070 = vmatprep.subr.mxu0 0.0
    %7071 = vmatpush1.msra.mxu0 0.0
    %7072 = vmatprep.subr.mxu0 0.0
    %7073 = vmatpush1.msra.mxu0 0.0
    %7074 = vmatprep.subr.mxu0 0.0
    %7075 = vmatpush1.msra.mxu0 0.0
    %7076 = vmatprep.subr.mxu0 0.0
    %7077 = vmatpush1.msra.mxu0 0.0
    %7078 = vmatprep.subr.mxu0 0.0
    %7079 = vmatpush1.msra.mxu0 0.0
    %7080 = vmatprep.subr.mxu0 0.0
    %7081 = vmatpush1.msra.mxu0 0.0
    %7082 = vmatprep.subr.mxu0 0.0
    %7083 = vmatpush1.msra.mxu0 0.0
    %7084 = vmatprep.mubr.f32.mxu0 0.0
    %7085 = vmatmul.mubr.f32.gmra.mrb[0].mxu0 %v6956
    %v7086 = vpop.f32.mrb[0].mxu0
    %v7087 = vadd.f32 0.0, %v7086
    %v7088 = vpop.f32.mrb[0].mxu0
    %7089 = vmatprep.mubr.f32.mxu0 0.0
    %7090 = vmatmul.mubr.f32.gmra.mrb[0].mxu0 %v6957
    %v7091 = vpop.f32.mrb[0].mxu0
    %v7092 = vadd.f32 0.0, %v7091
    %v7093 = vpop.f32.mrb[0].mxu0
    %7094 = vmatprep.mubr.f32.mxu0 0.0
    %7095 = vmatmul.mubr.f32.gmra.mrb[0].mxu0 %v6958
    %v7096 = vpop.f32.mrb[0].mxu0
    %v7097 = vadd.f32 0.0, %v7096
    %v7098 = vpop.f32.mrb[0].mxu0
    %7099 = vmatprep.mubr.f32.mxu0 0.0
    %7100 = vmatmul.mubr.f32.gmra.mrb[0].mxu0 %v6959
    %v7101 = vpop.f32.mrb[0].mxu0
    %v7102 = vadd.f32 0.0, %v7101
    %v7103 = vpop.f32.mrb[0].mxu0
    %7104 = vmatprep.mubr.f32.mxu0 0.0
    %7105 = vmatmul.mubr.f32.gmra.mrb[0].mxu0 %v6960
    %v7106 = vpop.f32.mrb[0].mxu0
    %v7107 = vadd.f32 0.0, %v7106
    %v7108 = vpop.f32.mrb[0].mxu0
    %7109 = vmatprep.mubr.f32.mxu0 0.0
    %7110 = vmatmul.mubr.f32.gmra.mrb[0].mxu0 %v6961
    %v7111 = vpop.f32.mrb[0].mxu0
    %v7112 = vadd.f32 0.0, %v7111
    %v7113 = vpop.f32.mrb[0].mxu0
    %7114 = vmatprep.mubr.f32.mxu0 0.0
    %7115 = vmatmul.mubr.f32.gmra.mrb[0].mxu0 %v6962
    %v7116 = vpop.f32.mrb[0].mxu0
    %v7117 = vadd.f32 0.0, %v7116
    %v7118 = vpop.f32.mrb[0].mxu0
    %7119 = vmatprep.mubr.f32.mxu0 0.0
    %7120 = vmatmul.mubr.f32.gmra.mrb[0].mxu0 %v6963
    %v7121 = vpop.f32.mrb[0].mxu0
    %v7122 = vadd.f32 0.0, %v7121
    %v7123 = vpop.f32.mrb[0].mxu0
    %7124 = vmatprep.mubr.f32.mxu0 0.0
    %7125 = vmatmul.mubr.f32.gmra.mrb[0].mxu0 %v6964
    %v7126 = vpop.f32.mrb[0].mxu0
    %v7127 = vadd.f32 0.0, %v7126
    %v7128 = vpop.f32.mrb[0].mxu0
    %7129 = vmatprep.mubr.f32.mxu0 0.0
    %7130 = vmatmul.mubr.f32.gmra.mrb[0].mxu0 %v6965
    %v7131 = vpop.f32.mrb[0].mxu0
    %v7132 = vadd.f32 0.0, %v7131
    %v7133 = vpop.f32.mrb[0].mxu0
    %7134 = vmatprep.mubr.f32.mxu0 0.0
    %7135 = vmatmul.mubr.f32.gmra.mrb[0].mxu0 %v6966
    %v7136 = vpop.f32.mrb[0].mxu0
    %v7137 = vadd.f32 0.0, %v7136
    %v7138 = vpop.f32.mrb[0].mxu0
    %7139 = vmatprep.mubr.f32.mxu0 0.0
    %7140 = vmatmul.mubr.f32.gmra.mrb[0].mxu0 %v6967
    %v7141 = vpop.f32.mrb[0].mxu0
    %v7142 = vadd.f32 0.0, %v7141
    %v7143 = vpop.f32.mrb[0].mxu0
    %7144 = vmatprep.mubr.f32.mxu0 0.0
    %7145 = vmatmul.mubr.f32.gmra.mrb[0].mxu0 %v6968
    %v7146 = vpop.f32.mrb[0].mxu0
    %v7147 = vadd.f32 0.0, %v7146
    %v7148 = vpop.f32.mrb[0].mxu0
    %7149 = vmatprep.mubr.f32.mxu0 0.0
    %7150 = vmatmul.mubr.f32.gmra.mrb[0].mxu0 %v6969
    %v7151 = vpop.f32.mrb[0].mxu0
    %v7152 = vadd.f32 0.0, %v7151
    %v7153 = vpop.f32.mrb[0].mxu0
    %7154 = vmatprep.mubr.f32.mxu0 0.0
    %7155 = vmatmul.mubr.f32.gmra.mrb[0].mxu0 %v6970
    %v7156 = vpop.f32.mrb[0].mxu0
    %v7157 = vadd.f32 0.0, %v7156
    %v7158 = vpop.f32.mrb[0].mxu0
    %7159 = vmatprep.mubr.f32.mxu0 0.0
    %7160 = vmatmul.mubr.f32.gmra.mrb[0].mxu0 %v6971
    %v7161 = vpop.f32.mrb[0].mxu0
    %v7162 = vadd.f32 0.0, %v7161
    %v7163 = vpop.f32.mrb[0].mxu0
    %7164 = vdwg.mxu0
    %7165 = vmatprep.subr.mxu0 0.0
    %7166 = vmatpush1.msra.mxu0 %v5592
    %7167 = vmatprep.subr.mxu0 0.0
    %7168 = vmatpush1.msra.mxu0 %v5597
    %7169 = vmatprep.subr.mxu0 0.0
    %7170 = vmatpush1.msra.mxu0 %v5602
    %7171 = vmatprep.subr.mxu0 0.0
    %7172 = vmatpush1.msra.mxu0 %v5607
    %7173 = vmatprep.subr.mxu0 0.0
    %7174 = vmatpush1.msra.mxu0 %v5612
    %7175 = vmatprep.subr.mxu0 0.0
    %7176 = vmatpush1.msra.mxu0 %v5617
    %7177 = vmatprep.subr.mxu0 0.0
    %7178 = vmatpush1.msra.mxu0 %v5622
    %7179 = vmatprep.subr.mxu0 0.0
    %7180 = vmatpush1.msra.mxu0 %v5627
    %7181 = vmatprep.subr.mxu0 0.0
    %7182 = vmatpush1.msra.mxu0 %v5632
    %7183 = vmatprep.subr.mxu0 0.0
    %7184 = vmatpush1.msra.mxu0 %v5637
    %7185 = vmatprep.subr.mxu0 0.0
    %7186 = vmatpush1.msra.mxu0 %v5642
    %7187 = vmatprep.subr.mxu0 0.0
    %7188 = vmatpush1.msra.mxu0 %v5647
    %7189 = vmatprep.subr.mxu0 0.0
    %7190 = vmatpush1.msra.mxu0 %v5652
    %7191 = vmatprep.subr.mxu0 0.0
    %7192 = vmatpush1.msra.mxu0 %v5657
    %7193 = vmatprep.subr.mxu0 0.0
    %7194 = vmatpush1.msra.mxu0 %v5662
    %7195 = vmatprep.subr.mxu0 0.0
    %7196 = vmatpush1.msra.mxu0 %v5667
    %7197 = vmatprep.subr.mxu0 0.0
    %7198 = vmatpush1.msra.mxu0 0.0
    %7199 = vmatprep.subr.mxu0 0.0
    %7200 = vmatpush1.msra.mxu0 0.0
    %7201 = vmatprep.subr.mxu0 0.0
    %7202 = vmatpush1.msra.mxu0 0.0
    %7203 = vmatprep.subr.mxu0 0.0
    %7204 = vmatpush1.msra.mxu0 0.0
    %7205 = vmatprep.subr.mxu0 0.0
    %7206 = vmatpush1.msra.mxu0 0.0
    %7207 = vmatprep.subr.mxu0 0.0
    %7208 = vmatpush1.msra.mxu0 0.0
    %7209 = vmatprep.subr.mxu0 0.0
    %7210 = vmatpush1.msra.mxu0 0.0
    %7211 = vmatprep.subr.mxu0 0.0
    %7212 = vmatpush1.msra.mxu0 0.0
    %7213 = vmatprep.subr.mxu0 0.0
    %7214 = vmatpush1.msra.mxu0 0.0
    %7215 = vmatprep.subr.mxu0 0.0
    %7216 = vmatpush1.msra.mxu0 0.0
    %7217 = vmatprep.subr.mxu0 0.0
    %7218 = vmatpush1.msra.mxu0 0.0
    %7219 = vmatprep.subr.mxu0 0.0
    %7220 = vmatpush1.msra.mxu0 0.0
    %7221 = vmatprep.subr.mxu0 0.0
    %7222 = vmatpush1.msra.mxu0 0.0
    %7223 = vmatprep.subr.mxu0 0.0
    %7224 = vmatpush1.msra.mxu0 0.0
    %7225 = vmatprep.subr.mxu0 0.0
    %7226 = vmatpush1.msra.mxu0 0.0
    %7227 = vmatprep.subr.mxu0 0.0
    %7228 = vmatpush1.msra.mxu0 0.0
    %7229 = vmatprep.mubr.f32.mxu0 0.0
    %7230 = vmatmul.mubr.f32.gmra.mrb[0].mxu0 %v6432
    %v7231 = vpop.f32.mrb[0].mxu0
    %v7232 = vadd.f32 %v7087, %v7231
    %v7233 = vpop.f32.mrb[0].mxu0
    %7234 = vmatprep.mubr.f32.mxu0 0.0
    %7235 = vmatmul.mubr.f32.gmra.mrb[0].mxu0 %v6433
    %v7236 = vpop.f32.mrb[0].mxu0
    %v7237 = vadd.f32 %v7092, %v7236
    %v7238 = vpop.f32.mrb[0].mxu0
    %7239 = vmatprep.mubr.f32.mxu0 0.0
    %7240 = vmatmul.mubr.f32.gmra.mrb[0].mxu0 %v6434
    %v7241 = vpop.f32.mrb[0].mxu0
    %v7242 = vadd.f32 %v7097, %v7241
    %v7243 = vpop.f32.mrb[0].mxu0
    %7244 = vmatprep.mubr.f32.mxu0 0.0
    %7245 = vmatmul.mubr.f32.gmra.mrb[0].mxu0 %v6435
    %v7246 = vpop.f32.mrb[0].mxu0
    %v7247 = vadd.f32 %v7102, %v7246
    %v7248 = vpop.f32.mrb[0].mxu0
    %7249 = vmatprep.mubr.f32.mxu0 0.0
    %7250 = vmatmul.mubr.f32.gmra.mrb[0].mxu0 %v6436
    %v7251 = vpop.f32.mrb[0].mxu0
    %v7252 = vadd.f32 %v7107, %v7251
    %v7253 = vpop.f32.mrb[0].mxu0
    %7254 = vmatprep.mubr.f32.mxu0 0.0
    %7255 = vmatmul.mubr.f32.gmra.mrb[0].mxu0 %v6437
    %v7256 = vpop.f32.mrb[0].mxu0
    %v7257 = vadd.f32 %v7112, %v7256
    %v7258 = vpop.f32.mrb[0].mxu0
    %7259 = vmatprep.mubr.f32.mxu0 0.0
    %7260 = vmatmul.mubr.f32.gmra.mrb[0].mxu0 %v6438
    %v7261 = vpop.f32.mrb[0].mxu0
    %v7262 = vadd.f32 %v7117, %v7261
    %v7263 = vpop.f32.mrb[0].mxu0
    %7264 = vmatprep.mubr.f32.mxu0 0.0
    %7265 = vmatmul.mubr.f32.gmra.mrb[0].mxu0 %v6439
    %v7266 = vpop.f32.mrb[0].mxu0
    %v7267 = vadd.f32 %v7122, %v7266
    %v7268 = vpop.f32.mrb[0].mxu0
    %7269 = vmatprep.mubr.f32.mxu0 0.0
    %7270 = vmatmul.mubr.f32.gmra.mrb[0].mxu0 %v6440
    %v7271 = vpop.f32.mrb[0].mxu0
    %v7272 = vadd.f32 %v7127, %v7271
    %v7273 = vpop.f32.mrb[0].mxu0
    %7274 = vmatprep.mubr.f32.mxu0 0.0
    %7275 = vmatmul.mubr.f32.gmra.mrb[0].mxu0 %v6441
    %v7276 = vpop.f32.mrb[0].mxu0
    %v7277 = vadd.f32 %v7132, %v7276
    %v7278 = vpop.f32.mrb[0].mxu0
    %7279 = vmatprep.mubr.f32.mxu0 0.0
    %7280 = vmatmul.mubr.f32.gmra.mrb[0].mxu0 %v6442
    %v7281 = vpop.f32.mrb[0].mxu0
    %v7282 = vadd.f32 %v7137, %v7281
    %v7283 = vpop.f32.mrb[0].mxu0
    %7284 = vmatprep.mubr.f32.mxu0 0.0
    %7285 = vmatmul.mubr.f32.gmra.mrb[0].mxu0 %v6443
    %v7286 = vpop.f32.mrb[0].mxu0
    %v7287 = vadd.f32 %v7142, %v7286
    %v7288 = vpop.f32.mrb[0].mxu0
    %7289 = vmatprep.mubr.f32.mxu0 0.0
    %7290 = vmatmul.mubr.f32.gmra.mrb[0].mxu0 %v6444
    %v7291 = vpop.f32.mrb[0].mxu0
    %v7292 = vadd.f32 %v7147, %v7291
    %v7293 = vpop.f32.mrb[0].mxu0
    %7294 = vmatprep.mubr.f32.mxu0 0.0
    %7295 = vmatmul.mubr.f32.gmra.mrb[0].mxu0 %v6445
    %v7296 = vpop.f32.mrb[0].mxu0
    %v7297 = vadd.f32 %v7152, %v7296
    %v7298 = vpop.f32.mrb[0].mxu0
    %7299 = vmatprep.mubr.f32.mxu0 0.0
    %7300 = vmatmul.mubr.f32.gmra.mrb[0].mxu0 %v6446
    %v7301 = vpop.f32.mrb[0].mxu0
    %v7302 = vadd.f32 %v7157, %v7301
    %v7303 = vpop.f32.mrb[0].mxu0
    %7304 = vmatprep.mubr.f32.mxu0 0.0
    %7305 = vmatmul.mubr.f32.gmra.mrb[0].mxu0 %v6447
    %v7306 = vpop.f32.mrb[0].mxu0
    %v7307 = vadd.f32 %v7162, %v7306
    %v7308 = vpop.f32.mrb[0].mxu0
    %7309 = vdwg.mxu0
    %v7310 = vmul.f32 %v7232, 0.5
    %v7311 = vmul.f32 %v7237, 0.5
    %v7312 = vmul.f32 %v7242, 0.5
    %v7313 = vmul.f32 %v7247, 0.5
    %v7314 = vmul.f32 %v7252, 0.5
    %v7315 = vmul.f32 %v7257, 0.5
    %v7316 = vmul.f32 %v7262, 0.5
    %v7317 = vmul.f32 %v7267, 0.5
    %v7318 = vmul.f32 %v7272, 0.5
    %v7319 = vmul.f32 %v7277, 0.5
    %v7320 = vmul.f32 %v7282, 0.5
    %v7321 = vmul.f32 %v7287, 0.5
    %v7322 = vmul.f32 %v7292, 0.5
    %v7323 = vmul.f32 %v7297, 0.5
    %v7324 = vmul.f32 %v7302, 0.5
    %v7325 = vmul.f32 %v7307, 0.5
    %v7326 = vmul.f32 %v7310, %v7310
    %v7327 = vmul.f32 %v7311, %v7311
    %v7328 = vmul.f32 %v7312, %v7312
    %v7329 = vmul.f32 %v7313, %v7313
    %v7330 = vmul.f32 %v7314, %v7314
    %v7331 = vmul.f32 %v7315, %v7315
    %v7332 = vmul.f32 %v7316, %v7316
    %v7333 = vmul.f32 %v7317, %v7317
    %v7334 = vmul.f32 %v7318, %v7318
    %v7335 = vmul.f32 %v7319, %v7319
    %v7336 = vmul.f32 %v7320, %v7320
    %v7337 = vmul.f32 %v7321, %v7321
    %v7338 = vmul.f32 %v7322, %v7322
    %v7339 = vmul.f32 %v7323, %v7323
    %v7340 = vmul.f32 %v7324, %v7324
    %v7341 = vmul.f32 %v7325, %v7325
    %v7342 = vsel %vm532, %v7326, 0.0
    %7343 = vadd.xlane.f32.xlu0 %v7342
    %v7344 = vpop.xlane.xlu0 %7343
    %v7345 = vsel %vm532, %v7327, 0.0
    %7346 = vadd.xlane.f32.xlu0 %v7345
    %v7347 = vpop.xlane.xlu0 %7346
    %v7348 = vsel %vm532, %v7328, 0.0
    %7349 = vadd.xlane.f32.xlu0 %v7348
    %v7350 = vpop.xlane.xlu0 %7349
    %v7351 = vsel %vm532, %v7329, 0.0
    %7352 = vadd.xlane.f32.xlu0 %v7351
    %v7353 = vpop.xlane.xlu0 %7352
    %v7354 = vsel %vm532, %v7330, 0.0
    %7355 = vadd.xlane.f32.xlu0 %v7354
    %v7356 = vpop.xlane.xlu0 %7355
    %v7357 = vsel %vm532, %v7331, 0.0
    %7358 = vadd.xlane.f32.xlu0 %v7357
    %v7359 = vpop.xlane.xlu0 %7358
    %v7360 = vsel %vm532, %v7332, 0.0
    %7361 = vadd.xlane.f32.xlu0 %v7360
    %v7362 = vpop.xlane.xlu0 %7361
    %v7363 = vsel %vm532, %v7333, 0.0
    %7364 = vadd.xlane.f32.xlu0 %v7363
    %v7365 = vpop.xlane.xlu0 %7364
    %v7366 = vsel %vm532, %v7334, 0.0
    %7367 = vadd.xlane.f32.xlu0 %v7366
    %v7368 = vpop.xlane.xlu0 %7367
    %v7369 = vsel %vm532, %v7335, 0.0
    %7370 = vadd.xlane.f32.xlu0 %v7369
    %v7371 = vpop.xlane.xlu0 %7370
    %v7372 = vsel %vm532, %v7336, 0.0
    %7373 = vadd.xlane.f32.xlu0 %v7372
    %v7374 = vpop.xlane.xlu0 %7373
    %v7375 = vsel %vm532, %v7337, 0.0
    %7376 = vadd.xlane.f32.xlu0 %v7375
    %v7377 = vpop.xlane.xlu0 %7376
    %v7378 = vsel %vm532, %v7338, 0.0
    %7379 = vadd.xlane.f32.xlu0 %v7378
    %v7380 = vpop.xlane.xlu0 %7379
    %v7381 = vsel %vm532, %v7339, 0.0
    %7382 = vadd.xlane.f32.xlu0 %v7381
    %v7383 = vpop.xlane.xlu0 %7382
    %v7384 = vsel %vm532, %v7340, 0.0
    %7385 = vadd.xlane.f32.xlu0 %v7384
    %v7386 = vpop.xlane.xlu0 %7385
    %v7387 = vsel %vm532, %v7341, 0.0
    %7388 = vadd.xlane.f32.xlu0 %v7387
    %v7389 = vpop.xlane.xlu0 %7388
    %v7390 = vmax.f32 %v7344, 1e-24
    %v7391 = vmax.f32 %v7347, 1e-24
    %v7392 = vmax.f32 %v7350, 1e-24
    %v7393 = vmax.f32 %v7353, 1e-24
    %v7394 = vmax.f32 %v7356, 1e-24
    %v7395 = vmax.f32 %v7359, 1e-24
    %v7396 = vmax.f32 %v7362, 1e-24
    %v7397 = vmax.f32 %v7365, 1e-24
    %v7398 = vmax.f32 %v7368, 1e-24
    %v7399 = vmax.f32 %v7371, 1e-24
    %v7400 = vmax.f32 %v7374, 1e-24
    %v7401 = vmax.f32 %v7377, 1e-24
    %v7402 = vmax.f32 %v7380, 1e-24
    %v7403 = vmax.f32 %v7383, 1e-24
    %v7404 = vmax.f32 %v7386, 1e-24
    %v7405 = vmax.f32 %v7389, 1e-24
    %v7406 = vrsqrt.pop %v7390
    %v7407 = vrsqrt.pop %v7391
    %v7408 = vrsqrt.pop %v7392
    %v7409 = vrsqrt.pop %v7393
    %v7410 = vrsqrt.pop %v7394
    %v7411 = vrsqrt.pop %v7395
    %v7412 = vrsqrt.pop %v7396
    %v7413 = vrsqrt.pop %v7397
    %v7414 = vrsqrt.pop %v7398
    %v7415 = vrsqrt.pop %v7399
    %v7416 = vrsqrt.pop %v7400
    %v7417 = vrsqrt.pop %v7401
    %v7418 = vrsqrt.pop %v7402
    %v7419 = vrsqrt.pop %v7403
    %v7420 = vrsqrt.pop %v7404
    %v7421 = vrsqrt.pop %v7405
    %v7422 = vmul.f32 %v7310, %v7406
    %v7423 = vmul.f32 %v7311, %v7407
    %v7424 = vmul.f32 %v7312, %v7408
    %v7425 = vmul.f32 %v7313, %v7409
    %v7426 = vmul.f32 %v7314, %v7410
    %v7427 = vmul.f32 %v7315, %v7411
    %v7428 = vmul.f32 %v7316, %v7412
    %v7429 = vmul.f32 %v7317, %v7413
    %v7430 = vmul.f32 %v7318, %v7414
    %v7431 = vmul.f32 %v7319, %v7415
    %v7432 = vmul.f32 %v7320, %v7416
    %v7433 = vmul.f32 %v7321, %v7417
    %v7434 = vmul.f32 %v7322, %v7418
    %v7435 = vmul.f32 %v7323, %v7419
    %v7436 = vmul.f32 %v7324, %v7420
    %v7437 = vmul.f32 %v7325, %v7421
    %7454 = vrot.lane.b32.xlu0 %v7422, 112
    %v7455 = vpop.permute.xlu0 %7454
    %7456 = vrot.lane.b32.xlu0 %v7423, 112
    %v7457 = vpop.permute.xlu0 %7456
    %7458 = vrot.lane.b32.xlu0 %v7424, 112
    %v7459 = vpop.permute.xlu0 %7458
    %7460 = vrot.lane.b32.xlu0 %v7425, 112
    %v7461 = vpop.permute.xlu0 %7460
    %7462 = vrot.lane.b32.xlu0 %v7426, 112
    %v7463 = vpop.permute.xlu0 %7462
    %7464 = vrot.lane.b32.xlu0 %v7427, 112
    %v7465 = vpop.permute.xlu0 %7464
    %7466 = vrot.lane.b32.xlu0 %v7428, 112
    %v7467 = vpop.permute.xlu0 %7466
    %7468 = vrot.lane.b32.xlu0 %v7429, 112
    %v7469 = vpop.permute.xlu0 %7468
    %7470 = vrot.lane.b32.xlu0 %v7430, 112
    %v7471 = vpop.permute.xlu0 %7470
    %7472 = vrot.lane.b32.xlu0 %v7431, 112
    %v7473 = vpop.permute.xlu0 %7472
    %7474 = vrot.lane.b32.xlu0 %v7432, 112
    %v7475 = vpop.permute.xlu0 %7474
    %7476 = vrot.lane.b32.xlu0 %v7433, 112
    %v7477 = vpop.permute.xlu0 %7476
    %7478 = vrot.lane.b32.xlu0 %v7434, 112
    %v7479 = vpop.permute.xlu0 %7478
    %7480 = vrot.lane.b32.xlu0 %v7435, 112
    %v7481 = vpop.permute.xlu0 %7480
    %7482 = vrot.lane.b32.xlu0 %v7436, 112
    %v7483 = vpop.permute.xlu0 %7482
    %7484 = vrot.lane.b32.xlu0 %v7437, 112
    %v7485 = vpop.permute.xlu0 %7484
    %v7502 = vadd.f32 %v7422, %v7455
    %v7503 = vadd.f32 %v7423, %v7457
    %v7504 = vadd.f32 %v7424, %v7459
    %v7505 = vadd.f32 %v7425, %v7461
    %v7506 = vadd.f32 %v7426, %v7463
    %v7507 = vadd.f32 %v7427, %v7465
    %v7508 = vadd.f32 %v7428, %v7467
    %v7509 = vadd.f32 %v7429, %v7469
    %v7510 = vadd.f32 %v7430, %v7471
    %v7511 = vadd.f32 %v7431, %v7473
    %v7512 = vadd.f32 %v7432, %v7475
    %v7513 = vadd.f32 %v7433, %v7477
    %v7514 = vadd.f32 %v7434, %v7479
    %v7515 = vadd.f32 %v7435, %v7481
    %v7516 = vadd.f32 %v7436, %v7483
    %v7517 = vadd.f32 %v7437, %v7485
    %7518 = vrot.lane.b32.xlu0 %v7422, 96
    %v7519 = vpop.permute.xlu0 %7518
    %7520 = vrot.lane.b32.xlu0 %v7423, 96
    %v7521 = vpop.permute.xlu0 %7520
    %7522 = vrot.lane.b32.xlu0 %v7424, 96
    %v7523 = vpop.permute.xlu0 %7522
    %7524 = vrot.lane.b32.xlu0 %v7425, 96
    %v7525 = vpop.permute.xlu0 %7524
    %7526 = vrot.lane.b32.xlu0 %v7426, 96
    %v7527 = vpop.permute.xlu0 %7526
    %7528 = vrot.lane.b32.xlu0 %v7427, 96
    %v7529 = vpop.permute.xlu0 %7528
    %7530 = vrot.lane.b32.xlu0 %v7428, 96
    %v7531 = vpop.permute.xlu0 %7530
    %7532 = vrot.lane.b32.xlu0 %v7429, 96
    %v7533 = vpop.permute.xlu0 %7532
    %7534 = vrot.lane.b32.xlu0 %v7430, 96
    %v7535 = vpop.permute.xlu0 %7534
    %7536 = vrot.lane.b32.xlu0 %v7431, 96
    %v7537 = vpop.permute.xlu0 %7536
    %7538 = vrot.lane.b32.xlu0 %v7432, 96
    %v7539 = vpop.permute.xlu0 %7538
    %7540 = vrot.lane.b32.xlu0 %v7433, 96
    %v7541 = vpop.permute.xlu0 %7540
    %7542 = vrot.lane.b32.xlu0 %v7434, 96
    %v7543 = vpop.permute.xlu0 %7542
    %7544 = vrot.lane.b32.xlu0 %v7435, 96
    %v7545 = vpop.permute.xlu0 %7544
    %7546 = vrot.lane.b32.xlu0 %v7436, 96
    %v7547 = vpop.permute.xlu0 %7546
    %7548 = vrot.lane.b32.xlu0 %v7437, 96
    %v7549 = vpop.permute.xlu0 %7548
    %v7566 = vadd.f32 %v7502, %v7519
    %v7567 = vadd.f32 %v7503, %v7521
    %v7568 = vadd.f32 %v7504, %v7523
    %v7569 = vadd.f32 %v7505, %v7525
    %v7570 = vadd.f32 %v7506, %v7527
    %v7571 = vadd.f32 %v7507, %v7529
    %v7572 = vadd.f32 %v7508, %v7531
    %v7573 = vadd.f32 %v7509, %v7533
    %v7574 = vadd.f32 %v7510, %v7535
    %v7575 = vadd.f32 %v7511, %v7537
    %v7576 = vadd.f32 %v7512, %v7539
    %v7577 = vadd.f32 %v7513, %v7541
    %v7578 = vadd.f32 %v7514, %v7543
    %v7579 = vadd.f32 %v7515, %v7545
    %v7580 = vadd.f32 %v7516, %v7547
    %v7581 = vadd.f32 %v7517, %v7549
    %v7582 = vmul.f32 %v7566, 0.33333334
    %v7583 = vmul.f32 %v7567, 0.33333334
    %v7584 = vmul.f32 %v7568, 0.33333334
    %v7585 = vmul.f32 %v7569, 0.33333334
    %v7586 = vmul.f32 %v7570, 0.33333334
    %v7587 = vmul.f32 %v7571, 0.33333334
    %v7588 = vmul.f32 %v7572, 0.33333334
    %v7589 = vmul.f32 %v7573, 0.33333334
    %v7590 = vmul.f32 %v7574, 0.33333334
    %v7591 = vmul.f32 %v7575, 0.33333334
    %v7592 = vmul.f32 %v7576, 0.33333334
    %v7593 = vmul.f32 %v7577, 0.33333334
    %v7594 = vmul.f32 %v7578, 0.33333334
    %v7595 = vmul.f32 %v7579, 0.33333334
    %v7596 = vmul.f32 %v7580, 0.33333334
    %v7597 = vmul.f32 %v7581, 0.33333334
    %7614 = vrot.lane.b32.xlu0 %v2980, 16
    %v7615 = vpop.permute.xlu0 %7614
    %7616 = vrot.lane.b32.xlu0 %v2981, 16
    %v7617 = vpop.permute.xlu0 %7616
    %7618 = vrot.lane.b32.xlu0 %v2982, 16
    %v7619 = vpop.permute.xlu0 %7618
    %7620 = vrot.lane.b32.xlu0 %v2983, 16
    %v7621 = vpop.permute.xlu0 %7620
    %7622 = vrot.lane.b32.xlu0 %v2984, 16
    %v7623 = vpop.permute.xlu0 %7622
    %7624 = vrot.lane.b32.xlu0 %v2985, 16
    %v7625 = vpop.permute.xlu0 %7624
    %7626 = vrot.lane.b32.xlu0 %v2986, 16
    %v7627 = vpop.permute.xlu0 %7626
    %7628 = vrot.lane.b32.xlu0 %v2987, 16
    %v7629 = vpop.permute.xlu0 %7628
    %7630 = vrot.lane.b32.xlu0 %v2988, 16
    %v7631 = vpop.permute.xlu0 %7630
    %7632 = vrot.lane.b32.xlu0 %v2989, 16
    %v7633 = vpop.permute.xlu0 %7632
    %7634 = vrot.lane.b32.xlu0 %v2990, 16
    %v7635 = vpop.permute.xlu0 %7634
    %7636 = vrot.lane.b32.xlu0 %v2991, 16
    %v7637 = vpop.permute.xlu0 %7636
    %7638 = vrot.lane.b32.xlu0 %v2992, 16
    %v7639 = vpop.permute.xlu0 %7638
    %7640 = vrot.lane.b32.xlu0 %v2993, 16
    %v7641 = vpop.permute.xlu0 %7640
    %7642 = vrot.lane.b32.xlu0 %v2994, 16
    %v7643 = vpop.permute.xlu0 %7642
    %7644 = vrot.lane.b32.xlu0 %v2995, 16
    %v7645 = vpop.permute.xlu0 %7644
    %7678 = vrot.lane.b32.xlu0 %v5369, 32
    %v7679 = vpop.permute.xlu0 %7678
    %7680 = vrot.lane.b32.xlu0 %v5370, 32
    %v7681 = vpop.permute.xlu0 %7680
    %7682 = vrot.lane.b32.xlu0 %v5371, 32
    %v7683 = vpop.permute.xlu0 %7682
    %7684 = vrot.lane.b32.xlu0 %v5372, 32
    %v7685 = vpop.permute.xlu0 %7684
    %7686 = vrot.lane.b32.xlu0 %v5373, 32
    %v7687 = vpop.permute.xlu0 %7686
    %7688 = vrot.lane.b32.xlu0 %v5374, 32
    %v7689 = vpop.permute.xlu0 %7688
    %7690 = vrot.lane.b32.xlu0 %v5375, 32
    %v7691 = vpop.permute.xlu0 %7690
    %7692 = vrot.lane.b32.xlu0 %v5376, 32
    %v7693 = vpop.permute.xlu0 %7692
    %7694 = vrot.lane.b32.xlu0 %v5377, 32
    %v7695 = vpop.permute.xlu0 %7694
    %7696 = vrot.lane.b32.xlu0 %v5378, 32
    %v7697 = vpop.permute.xlu0 %7696
    %7698 = vrot.lane.b32.xlu0 %v5379, 32
    %v7699 = vpop.permute.xlu0 %7698
    %7700 = vrot.lane.b32.xlu0 %v5380, 32
    %v7701 = vpop.permute.xlu0 %7700
    %7702 = vrot.lane.b32.xlu0 %v5381, 32
    %v7703 = vpop.permute.xlu0 %7702
    %7704 = vrot.lane.b32.xlu0 %v5382, 32
    %v7705 = vpop.permute.xlu0 %7704
    %7706 = vrot.lane.b32.xlu0 %v5383, 32
    %v7707 = vpop.permute.xlu0 %7706
    %7708 = vrot.lane.b32.xlu0 %v5384, 32
    %v7709 = vpop.permute.xlu0 %7708
    %7742 = vrot.lane.b32.xlu0 %v7582, 48
    %v7743 = vpop.permute.xlu0 %7742
    %7744 = vrot.lane.b32.xlu0 %v7583, 48
    %v7745 = vpop.permute.xlu0 %7744
    %7746 = vrot.lane.b32.xlu0 %v7584, 48
    %v7747 = vpop.permute.xlu0 %7746
    %7748 = vrot.lane.b32.xlu0 %v7585, 48
    %v7749 = vpop.permute.xlu0 %7748
    %7750 = vrot.lane.b32.xlu0 %v7586, 48
    %v7751 = vpop.permute.xlu0 %7750
    %7752 = vrot.lane.b32.xlu0 %v7587, 48
    %v7753 = vpop.permute.xlu0 %7752
    %7754 = vrot.lane.b32.xlu0 %v7588, 48
    %v7755 = vpop.permute.xlu0 %7754
    %7756 = vrot.lane.b32.xlu0 %v7589, 48
    %v7757 = vpop.permute.xlu0 %7756
    %7758 = vrot.lane.b32.xlu0 %v7590, 48
    %v7759 = vpop.permute.xlu0 %7758
    %7760 = vrot.lane.b32.xlu0 %v7591, 48
    %v7761 = vpop.permute.xlu0 %7760
    %7762 = vrot.lane.b32.xlu0 %v7592, 48
    %v7763 = vpop.permute.xlu0 %7762
    %7764 = vrot.lane.b32.xlu0 %v7593, 48
    %v7765 = vpop.permute.xlu0 %7764
    %7766 = vrot.lane.b32.xlu0 %v7594, 48
    %v7767 = vpop.permute.xlu0 %7766
    %7768 = vrot.lane.b32.xlu0 %v7595, 48
    %v7769 = vpop.permute.xlu0 %7768
    %7770 = vrot.lane.b32.xlu0 %v7596, 48
    %v7771 = vpop.permute.xlu0 %7770
    %7772 = vrot.lane.b32.xlu0 %v7597, 48
    %v7773 = vpop.permute.xlu0 %7772
    %vm7790 = vcmask 130048
    %v7791 = vsel %vm7790, %v773, %v7615
    %v7792 = vsel %vm7790, %v774, %v7617
    %v7793 = vsel %vm7790, %v775, %v7619
    %v7794 = vsel %vm7790, %v776, %v7621
    %v7795 = vsel %vm7790, %v777, %v7623
    %v7796 = vsel %vm7790, %v778, %v7625
    %v7797 = vsel %vm7790, %v779, %v7627
    %v7798 = vsel %vm7790, %v780, %v7629
    %v7799 = vsel %vm7790, %v781, %v7631
    %v7800 = vsel %vm7790, %v782, %v7633
    %v7801 = vsel %vm7790, %v783, %v7635
    %v7802 = vsel %vm7790, %v784, %v7637
    %v7803 = vsel %vm7790, %v785, %v7639
    %v7804 = vsel %vm7790, %v786, %v7641
    %v7805 = vsel %vm7790, %v787, %v7643
    %v7806 = vsel %vm7790, %v788, %v7645
    %vm7807 = vcmask 261120
    %v7808 = vsel %vm7807, %v7791, %v7679
    %v7809 = vsel %vm7807, %v7792, %v7681
    %v7810 = vsel %vm7807, %v7793, %v7683
    %v7811 = vsel %vm7807, %v7794, %v7685
    %v7812 = vsel %vm7807, %v7795, %v7687
    %v7813 = vsel %vm7807, %v7796, %v7689
    %v7814 = vsel %vm7807, %v7797, %v7691
    %v7815 = vsel %vm7807, %v7798, %v7693
    %v7816 = vsel %vm7807, %v7799, %v7695
    %v7817 = vsel %vm7807, %v7800, %v7697
    %v7818 = vsel %vm7807, %v7801, %v7699
    %v7819 = vsel %vm7807, %v7802, %v7701
    %v7820 = vsel %vm7807, %v7803, %v7703
    %v7821 = vsel %vm7807, %v7804, %v7705
    %v7822 = vsel %vm7807, %v7805, %v7707
    %v7823 = vsel %vm7807, %v7806, %v7709
    %v7824 = vsel %vm532, %v7808, %v7743
    %v7825 = vsel %vm532, %v7809, %v7745
    %v7826 = vsel %vm532, %v7810, %v7747
    %v7827 = vsel %vm532, %v7811, %v7749
    %v7828 = vsel %vm532, %v7812, %v7751
    %v7829 = vsel %vm532, %v7813, %v7753
    %v7830 = vsel %vm532, %v7814, %v7755
    %v7831 = vsel %vm532, %v7815, %v7757
    %v7832 = vsel %vm532, %v7816, %v7759
    %v7833 = vsel %vm532, %v7817, %v7761
    %v7834 = vsel %vm532, %v7818, %v7763
    %v7835 = vsel %vm532, %v7819, %v7765
    %v7836 = vsel %vm532, %v7820, %v7767
    %v7837 = vsel %vm532, %v7821, %v7769
    %v7838 = vsel %vm532, %v7822, %v7771
    %v7839 = vsel %vm532, %v7823, %v7773
    %v7840 = vld [vmem:[%s10] sm:$0xff]
    %v7841 = vld [vmem:[%s10 + $0x8] sm:$0xff]
    %7842 = vmatprep.subr.mxu0 0.0
    %7843 = vmatpush1.msra.mxu0 %v7824
    %7844 = vmatprep.subr.mxu0 0.0
    %7845 = vmatpush1.msra.mxu0 %v7825
    %7846 = vmatprep.subr.mxu0 0.0
    %7847 = vmatpush1.msra.mxu0 %v7826
    %7848 = vmatprep.subr.mxu0 0.0
    %7849 = vmatpush1.msra.mxu0 %v7827
    %7850 = vmatprep.subr.mxu0 0.0
    %7851 = vmatpush1.msra.mxu0 %v7828
    %7852 = vmatprep.subr.mxu0 0.0
    %7853 = vmatpush1.msra.mxu0 %v7829
    %7854 = vmatprep.subr.mxu0 0.0
    %7855 = vmatpush1.msra.mxu0 %v7830
    %7856 = vmatprep.subr.mxu0 0.0
    %7857 = vmatpush1.msra.mxu0 %v7831
    %7858 = vmatprep.subr.mxu0 0.0
    %7859 = vmatpush1.msra.mxu0 %v7832
    %7860 = vmatprep.subr.mxu0 0.0
    %7861 = vmatpush1.msra.mxu0 %v7833
    %7862 = vmatprep.subr.mxu0 0.0
    %7863 = vmatpush1.msra.mxu0 %v7834
    %7864 = vmatprep.subr.mxu0 0.0
    %7865 = vmatpush1.msra.mxu0 %v7835
    %7866 = vmatprep.subr.mxu0 0.0
    %7867 = vmatpush1.msra.mxu0 %v7836
    %7868 = vmatprep.subr.mxu0 0.0
    %7869 = vmatpush1.msra.mxu0 %v7837
    %7870 = vmatprep.subr.mxu0 0.0
    %7871 = vmatpush1.msra.mxu0 %v7838
    %7872 = vmatprep.subr.mxu0 0.0
    %7873 = vmatpush1.msra.mxu0 %v7839
    %7874 = vmatprep.subr.mxu0 0.0
    %7875 = vmatpush1.msra.mxu0 0.0
    %7876 = vmatprep.subr.mxu0 0.0
    %7877 = vmatpush1.msra.mxu0 0.0
    %7878 = vmatprep.subr.mxu0 0.0
    %7879 = vmatpush1.msra.mxu0 0.0
    %7880 = vmatprep.subr.mxu0 0.0
    %7881 = vmatpush1.msra.mxu0 0.0
    %7882 = vmatprep.subr.mxu0 0.0
    %7883 = vmatpush1.msra.mxu0 0.0
    %7884 = vmatprep.subr.mxu0 0.0
    %7885 = vmatpush1.msra.mxu0 0.0
    %7886 = vmatprep.subr.mxu0 0.0
    %7887 = vmatpush1.msra.mxu0 0.0
    %7888 = vmatprep.subr.mxu0 0.0
    %7889 = vmatpush1.msra.mxu0 0.0
    %7890 = vmatprep.subr.mxu0 0.0
    %7891 = vmatpush1.msra.mxu0 0.0
    %7892 = vmatprep.subr.mxu0 0.0
    %7893 = vmatpush1.msra.mxu0 0.0
    %7894 = vmatprep.subr.mxu0 0.0
    %7895 = vmatpush1.msra.mxu0 0.0
    %7896 = vmatprep.subr.mxu0 0.0
    %7897 = vmatpush1.msra.mxu0 0.0
    %7898 = vmatprep.subr.mxu0 0.0
    %7899 = vmatpush1.msra.mxu0 0.0
    %7900 = vmatprep.subr.mxu0 0.0
    %7901 = vmatpush1.msra.mxu0 0.0
    %7902 = vmatprep.subr.mxu0 0.0
    %7903 = vmatpush1.msra.mxu0 0.0
    %7904 = vmatprep.subr.mxu0 0.0
    %7905 = vmatpush1.msra.mxu0 0.0
    %7906 = vmatprep.mubr.f32.mxu0 0.0
    %7907 = vmatmul.mubr.f32.gmra.mrb[0].mxu0 %v7840
    %v7908 = vpop.f32.mrb[0].mxu0
    %v7909 = vadd.f32 0.0, %v7908
    %v7910 = vpop.f32.mrb[0].mxu0
    %7911 = vmatprep.mubr.f32.mxu0 0.0
    %7912 = vmatmul.mubr.f32.gmra.mrb[0].mxu0 %v7841
    %v7913 = vpop.f32.mrb[0].mxu0
    %v7914 = vadd.f32 0.0, %v7913
    %v7915 = vpop.f32.mrb[0].mxu0
    %7916 = vdwg.mxu0
    %v7917 = vld [vmem:[%s11] sm:$0xff]
    %v7918 = vld [vmem:[%s11 + $0x8] sm:$0xff]
    %7919 = vmatprep.subr.mxu0 0.0
    %7920 = vmatpush1.msra.mxu0 %v7824
    %7921 = vmatprep.subr.mxu0 0.0
    %7922 = vmatpush1.msra.mxu0 %v7825
    %7923 = vmatprep.subr.mxu0 0.0
    %7924 = vmatpush1.msra.mxu0 %v7826
    %7925 = vmatprep.subr.mxu0 0.0
    %7926 = vmatpush1.msra.mxu0 %v7827
    %7927 = vmatprep.subr.mxu0 0.0
    %7928 = vmatpush1.msra.mxu0 %v7828
    %7929 = vmatprep.subr.mxu0 0.0
    %7930 = vmatpush1.msra.mxu0 %v7829
    %7931 = vmatprep.subr.mxu0 0.0
    %7932 = vmatpush1.msra.mxu0 %v7830
    %7933 = vmatprep.subr.mxu0 0.0
    %7934 = vmatpush1.msra.mxu0 %v7831
    %7935 = vmatprep.subr.mxu0 0.0
    %7936 = vmatpush1.msra.mxu0 %v7832
    %7937 = vmatprep.subr.mxu0 0.0
    %7938 = vmatpush1.msra.mxu0 %v7833
    %7939 = vmatprep.subr.mxu0 0.0
    %7940 = vmatpush1.msra.mxu0 %v7834
    %7941 = vmatprep.subr.mxu0 0.0
    %7942 = vmatpush1.msra.mxu0 %v7835
    %7943 = vmatprep.subr.mxu0 0.0
    %7944 = vmatpush1.msra.mxu0 %v7836
    %7945 = vmatprep.subr.mxu0 0.0
    %7946 = vmatpush1.msra.mxu0 %v7837
    %7947 = vmatprep.subr.mxu0 0.0
    %7948 = vmatpush1.msra.mxu0 %v7838
    %7949 = vmatprep.subr.mxu0 0.0
    %7950 = vmatpush1.msra.mxu0 %v7839
    %7951 = vmatprep.subr.mxu0 0.0
    %7952 = vmatpush1.msra.mxu0 0.0
    %7953 = vmatprep.subr.mxu0 0.0
    %7954 = vmatpush1.msra.mxu0 0.0
    %7955 = vmatprep.subr.mxu0 0.0
    %7956 = vmatpush1.msra.mxu0 0.0
    %7957 = vmatprep.subr.mxu0 0.0
    %7958 = vmatpush1.msra.mxu0 0.0
    %7959 = vmatprep.subr.mxu0 0.0
    %7960 = vmatpush1.msra.mxu0 0.0
    %7961 = vmatprep.subr.mxu0 0.0
    %7962 = vmatpush1.msra.mxu0 0.0
    %7963 = vmatprep.subr.mxu0 0.0
    %7964 = vmatpush1.msra.mxu0 0.0
    %7965 = vmatprep.subr.mxu0 0.0
    %7966 = vmatpush1.msra.mxu0 0.0
    %7967 = vmatprep.subr.mxu0 0.0
    %7968 = vmatpush1.msra.mxu0 0.0
    %7969 = vmatprep.subr.mxu0 0.0
    %7970 = vmatpush1.msra.mxu0 0.0
    %7971 = vmatprep.subr.mxu0 0.0
    %7972 = vmatpush1.msra.mxu0 0.0
    %7973 = vmatprep.subr.mxu0 0.0
    %7974 = vmatpush1.msra.mxu0 0.0
    %7975 = vmatprep.subr.mxu0 0.0
    %7976 = vmatpush1.msra.mxu0 0.0
    %7977 = vmatprep.subr.mxu0 0.0
    %7978 = vmatpush1.msra.mxu0 0.0
    %7979 = vmatprep.subr.mxu0 0.0
    %7980 = vmatpush1.msra.mxu0 0.0
    %7981 = vmatprep.subr.mxu0 0.0
    %7982 = vmatpush1.msra.mxu0 0.0
    %7983 = vmatprep.mubr.f32.mxu0 0.0
    %7984 = vmatmul.mubr.f32.gmra.mrb[0].mxu0 %v7917
    %v7985 = vpop.f32.mrb[0].mxu0
    %v7986 = vadd.f32 0.0, %v7985
    %v7987 = vpop.f32.mrb[0].mxu0
    %7988 = vmatprep.mubr.f32.mxu0 0.0
    %7989 = vmatmul.mubr.f32.gmra.mrb[0].mxu0 %v7918
    %v7990 = vpop.f32.mrb[0].mxu0
    %v7991 = vadd.f32 0.0, %v7990
    %v7992 = vpop.f32.mrb[0].mxu0
    %7993 = vdwg.mxu0
    %v7994 = vld [vmem:[%s9] sm:$0xff]
    %v7995 = vld [vmem:[%s9 + $0x8] sm:$0xff]
    %v7996 = vld [vmem:[%s9 + $0x10] sm:$0xff]
    %v7997 = vld [vmem:[%s9 + $0x18] sm:$0xff]
    %v7998 = vld [vmem:[%s9 + $0x20] sm:$0xff]
    %v7999 = vld [vmem:[%s9 + $0x28] sm:$0xff]
    %v8000 = vld [vmem:[%s9 + $0x30] sm:$0xff]
    %v8001 = vld [vmem:[%s9 + $0x38] sm:$0xff]
    %v8002 = vld [vmem:[%s9 + $0x40] sm:$0xff]
    %v8003 = vld [vmem:[%s9 + $0x48] sm:$0xff]
    %v8004 = vld [vmem:[%s9 + $0x50] sm:$0xff]
    %v8005 = vld [vmem:[%s9 + $0x58] sm:$0xff]
    %v8006 = vld [vmem:[%s9 + $0x60] sm:$0xff]
    %v8007 = vld [vmem:[%s9 + $0x68] sm:$0xff]
    %v8008 = vld [vmem:[%s9 + $0x70] sm:$0xff]
    %v8009 = vld [vmem:[%s9 + $0x78] sm:$0xff]
    %vm8010 = vcmask 523264
    %v8012 = vsel %vm8010, %v7909, 0
    %v8015 = vsel %vm8010, %v7914, 0
    %8017 = vmatprep.subr.mxu0 %v7995
    %8018 = vmatpush1.msra.mxu0 %v7994
    %8019 = vmatprep.subr.mxu0 %v7997
    %8020 = vmatpush1.msra.mxu0 %v7996
    %8021 = vmatprep.subr.mxu0 %v7999
    %8022 = vmatpush1.msra.mxu0 %v7998
    %8023 = vmatprep.subr.mxu0 %v8001
    %8024 = vmatpush1.msra.mxu0 %v8000
    %8025 = vmatprep.subr.mxu0 %v8003
    %8026 = vmatpush1.msra.mxu0 %v8002
    %8027 = vmatprep.subr.mxu0 %v8005
    %8028 = vmatpush1.msra.mxu0 %v8004
    %8029 = vmatprep.subr.mxu0 %v8007
    %8030 = vmatpush1.msra.mxu0 %v8006
    %8031 = vmatprep.subr.mxu0 %v8009
    %8032 = vmatpush1.msra.mxu0 %v8008
    %8033 = vmatprep.subr.mxu0 0.0
    %8034 = vmatpush1.msra.mxu0 0.0
    %8035 = vmatprep.subr.mxu0 0.0
    %8036 = vmatpush1.msra.mxu0 0.0
    %8037 = vmatprep.subr.mxu0 0.0
    %8038 = vmatpush1.msra.mxu0 0.0
    %8039 = vmatprep.subr.mxu0 0.0
    %8040 = vmatpush1.msra.mxu0 0.0
    %8041 = vmatprep.subr.mxu0 0.0
    %8042 = vmatpush1.msra.mxu0 0.0
    %8043 = vmatprep.subr.mxu0 0.0
    %8044 = vmatpush1.msra.mxu0 0.0
    %8045 = vmatprep.subr.mxu0 0.0
    %8046 = vmatpush1.msra.mxu0 0.0
    %8047 = vmatprep.subr.mxu0 0.0
    %8048 = vmatpush1.msra.mxu0 0.0
    %8049 = vmatprep.subr.mxu0 0.0
    %8050 = vmatpush1.msra.mxu0 0.0
    %8051 = vmatprep.subr.mxu0 0.0
    %8052 = vmatpush1.msra.mxu0 0.0
    %8053 = vmatprep.subr.mxu0 0.0
    %8054 = vmatpush1.msra.mxu0 0.0
    %8055 = vmatprep.subr.mxu0 0.0
    %8056 = vmatpush1.msra.mxu0 0.0
    %8057 = vmatprep.subr.mxu0 0.0
    %8058 = vmatpush1.msra.mxu0 0.0
    %8059 = vmatprep.subr.mxu0 0.0
    %8060 = vmatpush1.msra.mxu0 0.0
    %8061 = vmatprep.subr.mxu0 0.0
    %8062 = vmatpush1.msra.mxu0 0.0
    %8063 = vmatprep.subr.mxu0 0.0
    %8064 = vmatpush1.msra.mxu0 0.0
    %8065 = vmatprep.subr.mxu0 0.0
    %8066 = vmatpush1.msra.mxu0 0.0
    %8067 = vmatprep.subr.mxu0 0.0
    %8068 = vmatpush1.msra.mxu0 0.0
    %8069 = vmatprep.subr.mxu0 0.0
    %8070 = vmatpush1.msra.mxu0 0.0
    %8071 = vmatprep.subr.mxu0 0.0
    %8072 = vmatpush1.msra.mxu0 0.0
    %8073 = vmatprep.subr.mxu0 0.0
    %8074 = vmatpush1.msra.mxu0 0.0
    %8075 = vmatprep.subr.mxu0 0.0
    %8076 = vmatpush1.msra.mxu0 0.0
    %8077 = vmatprep.subr.mxu0 0.0
    %8078 = vmatpush1.msra.mxu0 0.0
    %8079 = vmatprep.subr.mxu0 0.0
    %8080 = vmatpush1.msra.mxu0 0.0
    %8081 = vmatprep.mubr.f32.mxu0 0.0
    %8082 = vmatmul.mubr.f32.gmra.mrb[0].mxu0 %v8012
    %v8083 = vpop.f32.mrb[0].mxu0
    %v8084 = vadd.f32 0.0, %v8083
    %v8085 = vpop.f32.mrb[0].mxu0
    %v8086 = vadd.f32 0.0, %v8085
    %8087 = vmatprep.mubr.f32.mxu0 0.0
    %8088 = vmatmul.mubr.f32.gmra.mrb[0].mxu0 %v8015
    %v8089 = vpop.f32.mrb[0].mxu0
    %v8090 = vadd.f32 0.0, %v8089
    %v8091 = vpop.f32.mrb[0].mxu0
    %v8092 = vadd.f32 0.0, %v8091
    %8093 = vdwg.mxu0
    %v8094 = vld [vmem:[%s12] sm:$0xff]
    %v8095 = vld [vmem:[%s12 + $0x8] sm:$0xff]
    %v8096 = vmul.f32 %v8084, %v7986
    %v8097 = vmul.f32 %v8090, %v7991
    %v8098 = vsel %vm8010, %v8096, 0.0
    %8099 = vadd.xlane.f32.xlu0 %v8098
    %v8100 = vpop.xlane.xlu0 %8099
    %v8101 = vsel %vm8010, %v8097, 0.0
    %8102 = vadd.xlane.f32.xlu0 %v8101
    %v8103 = vpop.xlane.xlu0 %8102
    %v8104 = vmul.f32 %v8094, %v8100
    %v8105 = vmul.f32 %v8095, %v8103
    %v8106 = vadd.f32 %v8104, 0.0
    %v8107 = vadd.f32 %v8105, 0.0
    %8110 = vrot.lane.b32.xlu0 %v7986, 64
    %v8111 = vpop.permute.xlu0 %8110
    %8112 = vrot.lane.b32.xlu0 %v7991, 64
    %v8113 = vpop.permute.xlu0 %8112
    %v8116 = vmul.f32 %v8084, %v8111
    %v8117 = vmul.f32 %v8090, %v8113
    %8120 = vrot.lane.b32.xlu0 %v8116, 64
    %v8121 = vpop.permute.xlu0 %8120
    %8122 = vrot.lane.b32.xlu0 %v8117, 64
    %v8123 = vpop.permute.xlu0 %8122
    %v8126 = vsel %vm8010, %v8121, 0.0
    %8127 = vadd.xlane.f32.xlu0 %v8126
    %v8128 = vpop.xlane.xlu0 %8127
    %v8129 = vsel %vm8010, %v8123, 0.0
    %8130 = vadd.xlane.f32.xlu0 %v8129
    %v8131 = vpop.xlane.xlu0 %8130
    %v8132 = vmul.f32 %v8094, %v8128
    %v8133 = vmul.f32 %v8095, %v8131
    %8136 = vrot.lane.b32.xlu0 %v8132, 127
    %v8137 = vpop.permute.xlu0 %8136
    %8138 = vrot.lane.b32.xlu0 %v8133, 127
    %v8139 = vpop.permute.xlu0 %8138
    %v8142 = vadd.f32 %v8106, %v8137
    %v8143 = vadd.f32 %v8107, %v8139
    %v8144 = vmul.f32 %v8086, %v7986
    %v8145 = vmul.f32 %v8092, %v7991
    %v8146 = vsel %vm8010, %v8144, 0.0
    %8147 = vadd.xlane.f32.xlu0 %v8146
    %v8148 = vpop.xlane.xlu0 %8147
    %v8149 = vsel %vm8010, %v8145, 0.0
    %8150 = vadd.xlane.f32.xlu0 %v8149
    %v8151 = vpop.xlane.xlu0 %8150
    %v8152 = vmul.f32 %v8094, %v8148
    %v8153 = vmul.f32 %v8095, %v8151
    %8156 = vrot.lane.b32.xlu0 %v8152, 126
    %v8157 = vpop.permute.xlu0 %8156
    %8158 = vrot.lane.b32.xlu0 %v8153, 126
    %v8159 = vpop.permute.xlu0 %8158
    %v8162 = vadd.f32 %v8142, %v8157
    %v8163 = vadd.f32 %v8143, %v8159
    %v8164 = vmul.f32 %v8086, %v8111
    %v8165 = vmul.f32 %v8092, %v8113
    %8168 = vrot.lane.b32.xlu0 %v8164, 64
    %v8169 = vpop.permute.xlu0 %8168
    %8170 = vrot.lane.b32.xlu0 %v8165, 64
    %v8171 = vpop.permute.xlu0 %8170
    %v8174 = vsel %vm8010, %v8169, 0.0
    %8175 = vadd.xlane.f32.xlu0 %v8174
    %v8176 = vpop.xlane.xlu0 %8175
    %v8177 = vsel %vm8010, %v8171, 0.0
    %8178 = vadd.xlane.f32.xlu0 %v8177
    %v8179 = vpop.xlane.xlu0 %8178
    %v8180 = vmul.f32 %v8094, %v8176
    %v8181 = vmul.f32 %v8095, %v8179
    %8184 = vrot.lane.b32.xlu0 %v8180, 125
    %v8185 = vpop.permute.xlu0 %8184
    %8186 = vrot.lane.b32.xlu0 %v8181, 125
    %v8187 = vpop.permute.xlu0 %8186
    %v8190 = vadd.f32 %v8162, %v8185
    %v8191 = vadd.f32 %v8163, %v8187
    %v8192 = vxor.u32 %v8190, 2147483648
    %v8193 = vxor.u32 %v8191, 2147483648
    %v8194 = vmul.f32 %v8192, 1.442695
    %v8195 = vpow.pop %v8194
    %v8196 = vmul.f32 %v8193, 1.442695
    %v8197 = vpow.pop %v8196
    %v8198 = vadd.f32 %v8195, 1.0
    %v8199 = vadd.f32 %v8197, 1.0
    %v8200 = vrcp.pop %v8198
    %v8201 = vmul.f32 1.0, %v8200
    %v8202 = vrcp.pop %v8199
    %v8203 = vmul.f32 1.0, %v8202
    %vm8204 = vcmask 7168
    %8205 = vst.msk [vmem:[%s13] sm:$0xff] %vm8204, %v8201
    %8206 = vst.msk [vmem:[%s13 + $0x8] sm:$0xff] %vm8204, %v8203
    // Predicated region
    $region58: #{slot_gat_forward.1} parent=1 // pred_check
      _
    $region59: #{slot_gat_forward.1} parent=1 // pred_check_branch
      %8208 = sbr.rel (0) target = $region61
    $region60: #{slot_gat_forward.1} parent=1 // pred_region
      _
    $region61: #{slot_gat_forward.1} parent=1 // pred_fallthru
      _
    // Predicated region
    $region62: #{slot_gat_forward.1} parent=1 // pred_check
      _
    $region63: #{slot_gat_forward.1} parent=1 // pred_check_branch
      %8210 = sbr.rel (0) target = $region65
    $region64: #{slot_gat_forward.1} parent=1 // pred_region
      _
    $region65: #{slot_gat_forward.1} parent=1 // pred_fallthru
      _
    %8211 = vsyncpa [#allocation3], 1

</llo_original>
